<compile_context>
chip_gen: v6e
topology: v6e:2x2x1
jax: 0.10.0
libtpu: 0.0.40
codegen_flags: <defaults>
</compile_context>

<pallas_src>
import jax
import jax.numpy as jnp
from jax.experimental import pallas as pl
from jax.experimental.pallas import tpu as pltpu

NEG_SLOPE = 0.01          # nn.LeakyReLU() default
IN_DIM = 3
HIDDEN = 50               # logical hidden width (PyTorch)
HID_PAD = 64              # lane-padded hidden width used by the kernel
N_HIDDEN_LAYERS = 12      # layers 2..13 in the PyTorch module
OUT_DIM = 8               # logical output width (PyTorch)
OUT_PAD = 128             # lane-padded output width (unmasked vst / dense DMA)
TILE_N = 512              # batch tile (rows) per grid step


def _round_up(x, m):
    return ((x + m - 1) // m) * m


def _leaky_relu(x):
    # slope < 1  =>  max(x, slope*x) == LeakyReLU(x); one fewer VPU op than where().
    return jnp.maximum(x, NEG_SLOPE * x)


def mlp_kernel(x_ref, w1_ref, b1_ref, wh_ref, bh_ref, wo_ref, bo_ref, o_ref):
    cdt = w1_ref.dtype  # matmul input dtype (bf16); accumulation is always f32

    # First layer: [tile, 3] @ [3, 64] + [1, 64]
    h = jnp.dot(x_ref[...].astype(cdt), w1_ref[...],
                preferred_element_type=jnp.float32)
    h = _leaky_relu(h + b1_ref[...])

    # 12 hidden layers: [tile, 64] @ [64, 64] + [1, 64]  (statically unrolled)
    for i in range(N_HIDDEN_LAYERS):
        h = jnp.dot(h.astype(cdt), wh_ref[i],
                    preferred_element_type=jnp.float32)
        h = _leaky_relu(h + bh_ref[i])

    # Output layer: [tile, 64] @ [64, 128] + [1, 128]  (lane-dense, cols 8..127 are 0)
    out = jnp.dot(h.astype(cdt), wo_ref[...],
                  preferred_element_type=jnp.float32) + bo_ref[...]
    o_ref[...] = out.astype(o_ref.dtype)


def mlp_forward(x, params, tile_n=TILE_N):
    w1, b1, wh, bh, wo, bo = params
    n = x.shape[0]

    # Clamp the tile for tiny batches; pad N to a multiple of the tile so every
    # grid step writes a fully valid block (padded rows are sliced off at the end).
    tile_n = min(tile_n, _round_up(max(n, 1), 8))
    n_pad = _round_up(n, tile_n)
    if n_pad != n:
        x = jnp.pad(x, ((0, n_pad - n), (0, 0)))
    grid = (n_pad // tile_n,)

    def const(a):
        # Weights/biases: full-array block, same block every grid step
        # -> stays resident in VMEM across the batch grid.
        return pl.BlockSpec(a.shape, lambda i, _nd=a.ndim: (0,) * _nd)

    flops = 2 * n_pad * (IN_DIM * HID_PAD
                         + N_HIDDEN_LAYERS * HID_PAD * HID_PAD
                         + HID_PAD * OUT_PAD)
    param_bytes = sum(int(p.size) * p.dtype.itemsize
                      for p in (w1, b1, wh, bh, wo, bo))
    io_bytes = n_pad * IN_DIM * 4 + n_pad * OUT_PAD * 4

    out = pl.pallas_call(
        mlp_kernel,
        out_shape=jax.ShapeDtypeStruct((n_pad, OUT_PAD), jnp.float32),
        grid=grid,
        in_specs=[
            pl.BlockSpec((tile_n, IN_DIM), lambda i: (i, 0)),   # x: streamed
            const(w1), const(b1),
            const(wh), const(bh),
            const(wo), const(bo),
        ],
        out_specs=pl.BlockSpec((tile_n, OUT_PAD), lambda i: (i, 0)),
        compiler_params=pltpu.CompilerParams(
            dimension_semantics=("parallel",),   # independent batch tiles (2 TCs on v7x)
        ),
        cost_estimate=pl.CostEstimate(
            flops=flops, transcendentals=0,
            bytes_accessed=io_bytes + param_bytes),
    )(x, w1, b1, wh, bh, wo, bo)

    return out[:n, :OUT_DIM]


def init_params(key, param_dtype=jnp.bfloat16):
    """Deterministic init mimicking PyTorch nn.Linear defaults
    (uniform(-1/sqrt(fan_in), 1/sqrt(fan_in)) for weight and bias).
    Weights stored transposed vs. PyTorch ([in, out]), zero-padded to the
    lane-padded widths, and cast to `param_dtype` (bf16 for native MXU).
    Biases stay f32 (f32 elementwise path)."""
    keys = jax.random.split(key, 2 * (2 + N_HIDDEN_LAYERS))
    ki = iter(range(len(keys)))

    def lin(kw, kb, fan_in, fan_out, pad_in, pad_out):
        bound = 1.0 / (fan_in ** 0.5)
        w = jax.random.uniform(kw, (fan_in, fan_out), jnp.float32, -bound, bound)
        b = jax.random.uniform(kb, (1, fan_out), jnp.float32, -bound, bound)
        w = jnp.pad(w, ((0, pad_in - fan_in), (0, pad_out - fan_out)))
        b = jnp.pad(b, ((0, 0), (0, pad_out - fan_out)))
        return w.astype(param_dtype), b

    w1, b1 = lin(keys[next(ki)], keys[next(ki)], IN_DIM, HIDDEN, IN_DIM, HID_PAD)

    whs, bhs = [], []
    for _ in range(N_HIDDEN_LAYERS):
        w, b = lin(keys[next(ki)], keys[next(ki)], HIDDEN, HIDDEN, HID_PAD, HID_PAD)
        whs.append(w)
        bhs.append(b)
    wh = jnp.stack(whs)          # [12, 64, 64] bf16
    bh = jnp.stack(bhs)          # [12, 1, 64]  f32

    wo, bo = lin(keys[next(ki)], keys[next(ki)], HIDDEN, OUT_DIM, HID_PAD, OUT_PAD)
    return w1, b1, wh, bh, wo, bo


def reference_forward(x, params):
    """Pure-JAX reference mirroring the kernel's mixed precision
    (bf16 matmul inputs, f32 accumulation, f32 bias/LeakyReLU)."""
    w1, b1, wh, bh, wo, bo = params
    cdt = w1.dtype
    h = jnp.dot(x.astype(cdt), w1, preferred_element_type=jnp.float32)
    h = _leaky_relu(h + b1)
    for i in range(N_HIDDEN_LAYERS):
        h = jnp.dot(h.astype(cdt), wh[i], preferred_element_type=jnp.float32)
        h = _leaky_relu(h + bh[i])
    out = jnp.dot(h.astype(cdt), wo, preferred_element_type=jnp.float32) + bo
    return out[:, :OUT_DIM]


if __name__ == "__main__":
    key = jax.random.PRNGKey(0)
    k_param, k_x = jax.random.split(key)

    params = init_params(k_param)

    # x ~ (t, x, y) collocation points.
    n = 512
    x = jax.random.normal(k_x, (n, IN_DIM), dtype=jnp.float32)

    out = jax.block_until_ready(mlp_forward(x, params))
    ref = reference_forward(x, params)
    assert out.shape == (n, OUT_DIM), out.shape
    assert jnp.allclose(out, ref, atol=1e-2, rtol=1e-2), (
        f"max abs err {jnp.max(jnp.abs(out - ref))}"
    )

    # Also exercise the non-tile-multiple / small-batch path.
    n2 = 100
    x2 = jax.random.normal(jax.random.PRNGKey(1), (n2, IN_DIM), dtype=jnp.float32)
    out2 = jax.block_until_ready(mlp_forward(x2, params))
    ref2 = reference_forward(x2, params)
    assert out2.shape == (n2, OUT_DIM), out2.shape
    assert jnp.allclose(out2, ref2, atol=1e-2, rtol=1e-2), (
        f"max abs err {jnp.max(jnp.abs(out2 - ref2))}"
    )

    print("KERNEL_OK")
</pallas_src>

<mosaic_0001>
module attributes {stable_mosaic.version = 11 : i64} {
  func.func @mlp_kernel(%arg0: i32, %arg1: memref<512x3xf32, #tpu.memory_space<vmem>>, %arg2: memref<3x64xbf16, #tpu.memory_space<vmem>>, %arg3: memref<1x64xf32, #tpu.memory_space<vmem>>, %arg4: memref<12x64x64xbf16, #tpu.memory_space<vmem>>, %arg5: memref<12x1x64xf32, #tpu.memory_space<vmem>>, %arg6: memref<64x128xbf16, #tpu.memory_space<vmem>>, %arg7: memref<1x128xf32, #tpu.memory_space<vmem>>, %arg8: memref<512x128xf32, #tpu.memory_space<vmem>>) attributes {dimension_semantics = [#tpu.dimension_semantics<parallel>], iteration_bounds = array<i64: 1>, scalar_prefetch = 0 : i64, scratch_operands = 0 : i64, tpu.core_type = #tpu.core_type<tc>, window_params = [{transform_indices = @transform_0, window_bounds = array<i64: 512, 3>}, {pipeline_mode = #tpu.pipeline_mode<synchronous>, transform_indices = @transform_1, window_bounds = array<i64: 3, 64>}, {pipeline_mode = #tpu.pipeline_mode<synchronous>, transform_indices = @transform_2, window_bounds = array<i64: 1, 64>}, {pipeline_mode = #tpu.pipeline_mode<synchronous>, transform_indices = @transform_3, window_bounds = array<i64: 12, 64, 64>}, {pipeline_mode = #tpu.pipeline_mode<synchronous>, transform_indices = @transform_4, window_bounds = array<i64: 12, 1, 64>}, {pipeline_mode = #tpu.pipeline_mode<synchronous>, transform_indices = @transform_5, window_bounds = array<i64: 64, 128>}, {pipeline_mode = #tpu.pipeline_mode<synchronous>, transform_indices = @transform_6, window_bounds = array<i64: 1, 128>}, {transform_indices = @transform_7, window_bounds = array<i64: 512, 128>}]} {
    %c0 = arith.constant 0 : index
    %c0_0 = arith.constant 0 : index
    %0 = vector.load %arg1[%c0, %c0_0] : memref<512x3xf32, #tpu.memory_space<vmem>>, vector<512x3xf32>
    %1 = arith.truncf %0 : vector<512x3xf32> to vector<512x3xbf16>
    %c0_1 = arith.constant 0 : index
    %c0_2 = arith.constant 0 : index
    %2 = vector.load %arg2[%c0_1, %c0_2] : memref<3x64xbf16, #tpu.memory_space<vmem>>, vector<3x64xbf16>
    %cst = arith.constant dense<0.000000e+00> : vector<512x64xf32>
    %3 = tpu.matmul %1, %2, %cst {dimension_numbers = #tpu.dot_dimension_numbers<[1], [0], [0], [1], [0, 0, 1, 1], [], []>} : vector<512x3xbf16>, vector<3x64xbf16>, vector<512x64xf32> -> vector<512x64xf32>
    %c0_3 = arith.constant 0 : index
    %c0_4 = arith.constant 0 : index
    %4 = vector.load %arg3[%c0_3, %c0_4] : memref<1x64xf32, #tpu.memory_space<vmem>>, vector<1x64xf32>
    %5 = vector.broadcast %4 : vector<1x64xf32> to vector<512x64xf32>
    %6 = arith.addf %3, %5 : vector<512x64xf32>
    %cst_5 = arith.constant 0.00999999977 : f32
    %7 = vector.broadcast %cst_5 : f32 to vector<512x64xf32>
    %8 = arith.mulf %7, %6 : vector<512x64xf32>
    %9 = arith.maximumf %6, %8 : vector<512x64xf32>
    %10 = arith.truncf %9 : vector<512x64xf32> to vector<512x64xbf16>
    %c0_6 = arith.constant 0 : index
    %c0_7 = arith.constant 0 : index
    %c0_8 = arith.constant 0 : index
    %11 = vector.load %arg4[%c0_6, %c0_7, %c0_8] : memref<12x64x64xbf16, #tpu.memory_space<vmem>>, vector<1x64x64xbf16>
    %12 = vector.shape_cast %11 : vector<1x64x64xbf16> to vector<64x64xbf16>
    %cst_9 = arith.constant dense<0.000000e+00> : vector<512x64xf32>
    %13 = tpu.matmul %10, %12, %cst_9 {dimension_numbers = #tpu.dot_dimension_numbers<[1], [0], [0], [1], [0, 0, 1, 1], [], []>} : vector<512x64xbf16>, vector<64x64xbf16>, vector<512x64xf32> -> vector<512x64xf32>
    %c0_10 = arith.constant 0 : index
    %c0_11 = arith.constant 0 : index
    %c0_12 = arith.constant 0 : index
    %14 = vector.load %arg5[%c0_10, %c0_11, %c0_12] : memref<12x1x64xf32, #tpu.memory_space<vmem>>, vector<1x1x64xf32>
    %15 = vector.shape_cast %14 : vector<1x1x64xf32> to vector<1x64xf32>
    %16 = vector.broadcast %15 : vector<1x64xf32> to vector<512x64xf32>
    %17 = arith.addf %13, %16 : vector<512x64xf32>
    %cst_13 = arith.constant 0.00999999977 : f32
    %18 = vector.broadcast %cst_13 : f32 to vector<512x64xf32>
    %19 = arith.mulf %18, %17 : vector<512x64xf32>
    %20 = arith.maximumf %17, %19 : vector<512x64xf32>
    %21 = arith.truncf %20 : vector<512x64xf32> to vector<512x64xbf16>
    %c1 = arith.constant 1 : index
    %c0_14 = arith.constant 0 : index
    %c0_15 = arith.constant 0 : index
    %22 = vector.load %arg4[%c1, %c0_14, %c0_15] : memref<12x64x64xbf16, #tpu.memory_space<vmem>>, vector<1x64x64xbf16>
    %23 = vector.shape_cast %22 : vector<1x64x64xbf16> to vector<64x64xbf16>
    %cst_16 = arith.constant dense<0.000000e+00> : vector<512x64xf32>
    %24 = tpu.matmul %21, %23, %cst_16 {dimension_numbers = #tpu.dot_dimension_numbers<[1], [0], [0], [1], [0, 0, 1, 1], [], []>} : vector<512x64xbf16>, vector<64x64xbf16>, vector<512x64xf32> -> vector<512x64xf32>
    %c1_17 = arith.constant 1 : index
    %c0_18 = arith.constant 0 : index
    %c0_19 = arith.constant 0 : index
    %25 = vector.load %arg5[%c1_17, %c0_18, %c0_19] : memref<12x1x64xf32, #tpu.memory_space<vmem>>, vector<1x1x64xf32>
    %26 = vector.shape_cast %25 : vector<1x1x64xf32> to vector<1x64xf32>
    %27 = vector.broadcast %26 : vector<1x64xf32> to vector<512x64xf32>
    %28 = arith.addf %24, %27 : vector<512x64xf32>
    %cst_20 = arith.constant 0.00999999977 : f32
    %29 = vector.broadcast %cst_20 : f32 to vector<512x64xf32>
    %30 = arith.mulf %29, %28 : vector<512x64xf32>
    %31 = arith.maximumf %28, %30 : vector<512x64xf32>
    %32 = arith.truncf %31 : vector<512x64xf32> to vector<512x64xbf16>
    %c2 = arith.constant 2 : index
    %c0_21 = arith.constant 0 : index
    %c0_22 = arith.constant 0 : index
    %33 = vector.load %arg4[%c2, %c0_21, %c0_22] : memref<12x64x64xbf16, #tpu.memory_space<vmem>>, vector<1x64x64xbf16>
    %34 = vector.shape_cast %33 : vector<1x64x64xbf16> to vector<64x64xbf16>
    %cst_23 = arith.constant dense<0.000000e+00> : vector<512x64xf32>
    %35 = tpu.matmul %32, %34, %cst_23 {dimension_numbers = #tpu.dot_dimension_numbers<[1], [0], [0], [1], [0, 0, 1, 1], [], []>} : vector<512x64xbf16>, vector<64x64xbf16>, vector<512x64xf32> -> vector<512x64xf32>
    %c2_24 = arith.constant 2 : index
    %c0_25 = arith.constant 0 : index
    %c0_26 = arith.constant 0 : index
    %36 = vector.load %arg5[%c2_24, %c0_25, %c0_26] : memref<12x1x64xf32, #tpu.memory_space<vmem>>, vector<1x1x64xf32>
    %37 = vector.shape_cast %36 : vector<1x1x64xf32> to vector<1x64xf32>
    %38 = vector.broadcast %37 : vector<1x64xf32> to vector<512x64xf32>
    %39 = arith.addf %35, %38 : vector<512x64xf32>
    %cst_27 = arith.constant 0.00999999977 : f32
    %40 = vector.broadcast %cst_27 : f32 to vector<512x64xf32>
    %41 = arith.mulf %40, %39 : vector<512x64xf32>
    %42 = arith.maximumf %39, %41 : vector<512x64xf32>
    %43 = arith.truncf %42 : vector<512x64xf32> to vector<512x64xbf16>
    %c3 = arith.constant 3 : index
    %c0_28 = arith.constant 0 : index
    %c0_29 = arith.constant 0 : index
    %44 = vector.load %arg4[%c3, %c0_28, %c0_29] : memref<12x64x64xbf16, #tpu.memory_space<vmem>>, vector<1x64x64xbf16>
    %45 = vector.shape_cast %44 : vector<1x64x64xbf16> to vector<64x64xbf16>
    %cst_30 = arith.constant dense<0.000000e+00> : vector<512x64xf32>
    %46 = tpu.matmul %43, %45, %cst_30 {dimension_numbers = #tpu.dot_dimension_numbers<[1], [0], [0], [1], [0, 0, 1, 1], [], []>} : vector<512x64xbf16>, vector<64x64xbf16>, vector<512x64xf32> -> vector<512x64xf32>
    %c3_31 = arith.constant 3 : index
    %c0_32 = arith.constant 0 : index
    %c0_33 = arith.constant 0 : index
    %47 = vector.load %arg5[%c3_31, %c0_32, %c0_33] : memref<12x1x64xf32, #tpu.memory_space<vmem>>, vector<1x1x64xf32>
    %48 = vector.shape_cast %47 : vector<1x1x64xf32> to vector<1x64xf32>
    %49 = vector.broadcast %48 : vector<1x64xf32> to vector<512x64xf32>
    %50 = arith.addf %46, %49 : vector<512x64xf32>
    %cst_34 = arith.constant 0.00999999977 : f32
    %51 = vector.broadcast %cst_34 : f32 to vector<512x64xf32>
    %52 = arith.mulf %51, %50 : vector<512x64xf32>
    %53 = arith.maximumf %50, %52 : vector<512x64xf32>
    %54 = arith.truncf %53 : vector<512x64xf32> to vector<512x64xbf16>
    %c4 = arith.constant 4 : index
    %c0_35 = arith.constant 0 : index
    %c0_36 = arith.constant 0 : index
    %55 = vector.load %arg4[%c4, %c0_35, %c0_36] : memref<12x64x64xbf16, #tpu.memory_space<vmem>>, vector<1x64x64xbf16>
    %56 = vector.shape_cast %55 : vector<1x64x64xbf16> to vector<64x64xbf16>
    %cst_37 = arith.constant dense<0.000000e+00> : vector<512x64xf32>
    %57 = tpu.matmul %54, %56, %cst_37 {dimension_numbers = #tpu.dot_dimension_numbers<[1], [0], [0], [1], [0, 0, 1, 1], [], []>} : vector<512x64xbf16>, vector<64x64xbf16>, vector<512x64xf32> -> vector<512x64xf32>
    %c4_38 = arith.constant 4 : index
    %c0_39 = arith.constant 0 : index
    %c0_40 = arith.constant 0 : index
    %58 = vector.load %arg5[%c4_38, %c0_39, %c0_40] : memref<12x1x64xf32, #tpu.memory_space<vmem>>, vector<1x1x64xf32>
    %59 = vector.shape_cast %58 : vector<1x1x64xf32> to vector<1x64xf32>
    %60 = vector.broadcast %59 : vector<1x64xf32> to vector<512x64xf32>
    %61 = arith.addf %57, %60 : vector<512x64xf32>
    %cst_41 = arith.constant 0.00999999977 : f32
    %62 = vector.broadcast %cst_41 : f32 to vector<512x64xf32>
    %63 = arith.mulf %62, %61 : vector<512x64xf32>
    %64 = arith.maximumf %61, %63 : vector<512x64xf32>
    %65 = arith.truncf %64 : vector<512x64xf32> to vector<512x64xbf16>
    %c5 = arith.constant 5 : index
    %c0_42 = arith.constant 0 : index
    %c0_43 = arith.constant 0 : index
    %66 = vector.load %arg4[%c5, %c0_42, %c0_43] : memref<12x64x64xbf16, #tpu.memory_space<vmem>>, vector<1x64x64xbf16>
    %67 = vector.shape_cast %66 : vector<1x64x64xbf16> to vector<64x64xbf16>
    %cst_44 = arith.constant dense<0.000000e+00> : vector<512x64xf32>
    %68 = tpu.matmul %65, %67, %cst_44 {dimension_numbers = #tpu.dot_dimension_numbers<[1], [0], [0], [1], [0, 0, 1, 1], [], []>} : vector<512x64xbf16>, vector<64x64xbf16>, vector<512x64xf32> -> vector<512x64xf32>
    %c5_45 = arith.constant 5 : index
    %c0_46 = arith.constant 0 : index
    %c0_47 = arith.constant 0 : index
    %69 = vector.load %arg5[%c5_45, %c0_46, %c0_47] : memref<12x1x64xf32, #tpu.memory_space<vmem>>, vector<1x1x64xf32>
    %70 = vector.shape_cast %69 : vector<1x1x64xf32> to vector<1x64xf32>
    %71 = vector.broadcast %70 : vector<1x64xf32> to vector<512x64xf32>
    %72 = arith.addf %68, %71 : vector<512x64xf32>
    %cst_48 = arith.constant 0.00999999977 : f32
    %73 = vector.broadcast %cst_48 : f32 to vector<512x64xf32>
    %74 = arith.mulf %73, %72 : vector<512x64xf32>
    %75 = arith.maximumf %72, %74 : vector<512x64xf32>
    %76 = arith.truncf %75 : vector<512x64xf32> to vector<512x64xbf16>
    %c6 = arith.constant 6 : index
    %c0_49 = arith.constant 0 : index
    %c0_50 = arith.constant 0 : index
    %77 = vector.load %arg4[%c6, %c0_49, %c0_50] : memref<12x64x64xbf16, #tpu.memory_space<vmem>>, vector<1x64x64xbf16>
    %78 = vector.shape_cast %77 : vector<1x64x64xbf16> to vector<64x64xbf16>
    %cst_51 = arith.constant dense<0.000000e+00> : vector<512x64xf32>
    %79 = tpu.matmul %76, %78, %cst_51 {dimension_numbers = #tpu.dot_dimension_numbers<[1], [0], [0], [1], [0, 0, 1, 1], [], []>} : vector<512x64xbf16>, vector<64x64xbf16>, vector<512x64xf32> -> vector<512x64xf32>
    %c6_52 = arith.constant 6 : index
    %c0_53 = arith.constant 0 : index
    %c0_54 = arith.constant 0 : index
    %80 = vector.load %arg5[%c6_52, %c0_53, %c0_54] : memref<12x1x64xf32, #tpu.memory_space<vmem>>, vector<1x1x64xf32>
    %81 = vector.shape_cast %80 : vector<1x1x64xf32> to vector<1x64xf32>
    %82 = vector.broadcast %81 : vector<1x64xf32> to vector<512x64xf32>
    %83 = arith.addf %79, %82 : vector<512x64xf32>
    %cst_55 = arith.constant 0.00999999977 : f32
    %84 = vector.broadcast %cst_55 : f32 to vector<512x64xf32>
    %85 = arith.mulf %84, %83 : vector<512x64xf32>
    %86 = arith.maximumf %83, %85 : vector<512x64xf32>
    %87 = arith.truncf %86 : vector<512x64xf32> to vector<512x64xbf16>
    %c7 = arith.constant 7 : index
    %c0_56 = arith.constant 0 : index
    %c0_57 = arith.constant 0 : index
    %88 = vector.load %arg4[%c7, %c0_56, %c0_57] : memref<12x64x64xbf16, #tpu.memory_space<vmem>>, vector<1x64x64xbf16>
    %89 = vector.shape_cast %88 : vector<1x64x64xbf16> to vector<64x64xbf16>
    %cst_58 = arith.constant dense<0.000000e+00> : vector<512x64xf32>
    %90 = tpu.matmul %87, %89, %cst_58 {dimension_numbers = #tpu.dot_dimension_numbers<[1], [0], [0], [1], [0, 0, 1, 1], [], []>} : vector<512x64xbf16>, vector<64x64xbf16>, vector<512x64xf32> -> vector<512x64xf32>
    %c7_59 = arith.constant 7 : index
    %c0_60 = arith.constant 0 : index
    %c0_61 = arith.constant 0 : index
    %91 = vector.load %arg5[%c7_59, %c0_60, %c0_61] : memref<12x1x64xf32, #tpu.memory_space<vmem>>, vector<1x1x64xf32>
    %92 = vector.shape_cast %91 : vector<1x1x64xf32> to vector<1x64xf32>
    %93 = vector.broadcast %92 : vector<1x64xf32> to vector<512x64xf32>
    %94 = arith.addf %90, %93 : vector<512x64xf32>
    %cst_62 = arith.constant 0.00999999977 : f32
    %95 = vector.broadcast %cst_62 : f32 to vector<512x64xf32>
    %96 = arith.mulf %95, %94 : vector<512x64xf32>
    %97 = arith.maximumf %94, %96 : vector<512x64xf32>
    %98 = arith.truncf %97 : vector<512x64xf32> to vector<512x64xbf16>
    %c8 = arith.constant 8 : index
    %c0_63 = arith.constant 0 : index
    %c0_64 = arith.constant 0 : index
    %99 = vector.load %arg4[%c8, %c0_63, %c0_64] : memref<12x64x64xbf16, #tpu.memory_space<vmem>>, vector<1x64x64xbf16>
    %100 = vector.shape_cast %99 : vector<1x64x64xbf16> to vector<64x64xbf16>
    %cst_65 = arith.constant dense<0.000000e+00> : vector<512x64xf32>
    %101 = tpu.matmul %98, %100, %cst_65 {dimension_numbers = #tpu.dot_dimension_numbers<[1], [0], [0], [1], [0, 0, 1, 1], [], []>} : vector<512x64xbf16>, vector<64x64xbf16>, vector<512x64xf32> -> vector<512x64xf32>
    %c8_66 = arith.constant 8 : index
    %c0_67 = arith.constant 0 : index
    %c0_68 = arith.constant 0 : index
    %102 = vector.load %arg5[%c8_66, %c0_67, %c0_68] : memref<12x1x64xf32, #tpu.memory_space<vmem>>, vector<1x1x64xf32>
    %103 = vector.shape_cast %102 : vector<1x1x64xf32> to vector<1x64xf32>
    %104 = vector.broadcast %103 : vector<1x64xf32> to vector<512x64xf32>
    %105 = arith.addf %101, %104 : vector<512x64xf32>
    %cst_69 = arith.constant 0.00999999977 : f32
    %106 = vector.broadcast %cst_69 : f32 to vector<512x64xf32>
    %107 = arith.mulf %106, %105 : vector<512x64xf32>
    %108 = arith.maximumf %105, %107 : vector<512x64xf32>
    %109 = arith.truncf %108 : vector<512x64xf32> to vector<512x64xbf16>
    %c9 = arith.constant 9 : index
    %c0_70 = arith.constant 0 : index
    %c0_71 = arith.constant 0 : index
    %110 = vector.load %arg4[%c9, %c0_70, %c0_71] : memref<12x64x64xbf16, #tpu.memory_space<vmem>>, vector<1x64x64xbf16>
    %111 = vector.shape_cast %110 : vector<1x64x64xbf16> to vector<64x64xbf16>
    %cst_72 = arith.constant dense<0.000000e+00> : vector<512x64xf32>
    %112 = tpu.matmul %109, %111, %cst_72 {dimension_numbers = #tpu.dot_dimension_numbers<[1], [0], [0], [1], [0, 0, 1, 1], [], []>} : vector<512x64xbf16>, vector<64x64xbf16>, vector<512x64xf32> -> vector<512x64xf32>
    %c9_73 = arith.constant 9 : index
    %c0_74 = arith.constant 0 : index
    %c0_75 = arith.constant 0 : index
    %113 = vector.load %arg5[%c9_73, %c0_74, %c0_75] : memref<12x1x64xf32, #tpu.memory_space<vmem>>, vector<1x1x64xf32>
    %114 = vector.shape_cast %113 : vector<1x1x64xf32> to vector<1x64xf32>
    %115 = vector.broadcast %114 : vector<1x64xf32> to vector<512x64xf32>
    %116 = arith.addf %112, %115 : vector<512x64xf32>
    %cst_76 = arith.constant 0.00999999977 : f32
    %117 = vector.broadcast %cst_76 : f32 to vector<512x64xf32>
    %118 = arith.mulf %117, %116 : vector<512x64xf32>
    %119 = arith.maximumf %116, %118 : vector<512x64xf32>
    %120 = arith.truncf %119 : vector<512x64xf32> to vector<512x64xbf16>
    %c10 = arith.constant 10 : index
    %c0_77 = arith.constant 0 : index
    %c0_78 = arith.constant 0 : index
    %121 = vector.load %arg4[%c10, %c0_77, %c0_78] : memref<12x64x64xbf16, #tpu.memory_space<vmem>>, vector<1x64x64xbf16>
    %122 = vector.shape_cast %121 : vector<1x64x64xbf16> to vector<64x64xbf16>
    %cst_79 = arith.constant dense<0.000000e+00> : vector<512x64xf32>
    %123 = tpu.matmul %120, %122, %cst_79 {dimension_numbers = #tpu.dot_dimension_numbers<[1], [0], [0], [1], [0, 0, 1, 1], [], []>} : vector<512x64xbf16>, vector<64x64xbf16>, vector<512x64xf32> -> vector<512x64xf32>
    %c10_80 = arith.constant 10 : index
    %c0_81 = arith.constant 0 : index
    %c0_82 = arith.constant 0 : index
    %124 = vector.load %arg5[%c10_80, %c0_81, %c0_82] : memref<12x1x64xf32, #tpu.memory_space<vmem>>, vector<1x1x64xf32>
    %125 = vector.shape_cast %124 : vector<1x1x64xf32> to vector<1x64xf32>
    %126 = vector.broadcast %125 : vector<1x64xf32> to vector<512x64xf32>
    %127 = arith.addf %123, %126 : vector<512x64xf32>
    %cst_83 = arith.constant 0.00999999977 : f32
    %128 = vector.broadcast %cst_83 : f32 to vector<512x64xf32>
    %129 = arith.mulf %128, %127 : vector<512x64xf32>
    %130 = arith.maximumf %127, %129 : vector<512x64xf32>
    %131 = arith.truncf %130 : vector<512x64xf32> to vector<512x64xbf16>
    %c11 = arith.constant 11 : index
    %c0_84 = arith.constant 0 : index
    %c0_85 = arith.constant 0 : index
    %132 = vector.load %arg4[%c11, %c0_84, %c0_85] : memref<12x64x64xbf16, #tpu.memory_space<vmem>>, vector<1x64x64xbf16>
    %133 = vector.shape_cast %132 : vector<1x64x64xbf16> to vector<64x64xbf16>
    %cst_86 = arith.constant dense<0.000000e+00> : vector<512x64xf32>
    %134 = tpu.matmul %131, %133, %cst_86 {dimension_numbers = #tpu.dot_dimension_numbers<[1], [0], [0], [1], [0, 0, 1, 1], [], []>} : vector<512x64xbf16>, vector<64x64xbf16>, vector<512x64xf32> -> vector<512x64xf32>
    %c11_87 = arith.constant 11 : index
    %c0_88 = arith.constant 0 : index
    %c0_89 = arith.constant 0 : index
    %135 = vector.load %arg5[%c11_87, %c0_88, %c0_89] : memref<12x1x64xf32, #tpu.memory_space<vmem>>, vector<1x1x64xf32>
    %136 = vector.shape_cast %135 : vector<1x1x64xf32> to vector<1x64xf32>
    %137 = vector.broadcast %136 : vector<1x64xf32> to vector<512x64xf32>
    %138 = arith.addf %134, %137 : vector<512x64xf32>
    %cst_90 = arith.constant 0.00999999977 : f32
    %139 = vector.broadcast %cst_90 : f32 to vector<512x64xf32>
    %140 = arith.mulf %139, %138 : vector<512x64xf32>
    %141 = arith.maximumf %138, %140 : vector<512x64xf32>
    %142 = arith.truncf %141 : vector<512x64xf32> to vector<512x64xbf16>
    %c0_91 = arith.constant 0 : index
    %c0_92 = arith.constant 0 : index
    %143 = vector.load %arg6[%c0_91, %c0_92] : memref<64x128xbf16, #tpu.memory_space<vmem>>, vector<64x128xbf16>
    %cst_93 = arith.constant dense<0.000000e+00> : vector<512x128xf32>
    %144 = tpu.matmul %142, %143, %cst_93 {dimension_numbers = #tpu.dot_dimension_numbers<[1], [0], [0], [1], [0, 0, 1, 1], [], []>} : vector<512x64xbf16>, vector<64x128xbf16>, vector<512x128xf32> -> vector<512x128xf32>
    %c0_94 = arith.constant 0 : index
    %c0_95 = arith.constant 0 : index
    %145 = vector.load %arg7[%c0_94, %c0_95] : memref<1x128xf32, #tpu.memory_space<vmem>>, vector<1x128xf32>
    %146 = vector.broadcast %145 : vector<1x128xf32> to vector<512x128xf32>
    %147 = arith.addf %144, %146 : vector<512x128xf32>
    %c0_96 = arith.constant 0 : index
    %c0_97 = arith.constant 0 : index
    %148 = vector.load %arg8[%c0_96, %c0_97] : memref<512x128xf32, #tpu.memory_space<vmem>>, vector<512x128xf32>
    tpu.vector_store %arg8[%c0_96, %c0_97], %147 {strides = array<i32>} : memref<512x128xf32, #tpu.memory_space<vmem>>, vector<512x128xf32>,
    return
  }
  func.func @transform_0(%arg0: i32) -> (i32, i32) {
    %c0_i32 = arith.constant 0 : i32
    %c0_i32_0 = arith.constant 0 : i32
    return %arg0, %c0_i32 : i32, i32
  }
  func.func @transform_1(%arg0: i32) -> (i32, i32) {
    %c0_i32 = arith.constant 0 : i32
    %c0_i32_0 = arith.constant 0 : i32
    %c0_i32_1 = arith.constant 0 : i32
    return %c0_i32, %c0_i32_0 : i32, i32
  }
  func.func @transform_2(%arg0: i32) -> (i32, i32) {
    %c0_i32 = arith.constant 0 : i32
    %c0_i32_0 = arith.constant 0 : i32
    %c0_i32_1 = arith.constant 0 : i32
    return %c0_i32, %c0_i32_0 : i32, i32
  }
  func.func @transform_3(%arg0: i32) -> (i32, i32, i32) {
    %c0_i32 = arith.constant 0 : i32
    %c0_i32_0 = arith.constant 0 : i32
    %c0_i32_1 = arith.constant 0 : i32
    %c0_i32_2 = arith.constant 0 : i32
    return %c0_i32, %c0_i32_0, %c0_i32_1 : i32, i32, i32
  }
  func.func @transform_4(%arg0: i32) -> (i32, i32, i32) {
    %c0_i32 = arith.constant 0 : i32
    %c0_i32_0 = arith.constant 0 : i32
    %c0_i32_1 = arith.constant 0 : i32
    %c0_i32_2 = arith.constant 0 : i32
    return %c0_i32, %c0_i32_0, %c0_i32_1 : i32, i32, i32
  }
  func.func @transform_5(%arg0: i32) -> (i32, i32) {
    %c0_i32 = arith.constant 0 : i32
    %c0_i32_0 = arith.constant 0 : i32
    %c0_i32_1 = arith.constant 0 : i32
    return %c0_i32, %c0_i32_0 : i32, i32
  }
  func.func @transform_6(%arg0: i32) -> (i32, i32) {
    %c0_i32 = arith.constant 0 : i32
    %c0_i32_0 = arith.constant 0 : i32
    %c0_i32_1 = arith.constant 0 : i32
    return %c0_i32, %c0_i32_0 : i32, i32
  }
  func.func @transform_7(%arg0: i32) -> (i32, i32) {
    %c0_i32 = arith.constant 0 : i32
    %c0_i32_0 = arith.constant 0 : i32
    return %arg0, %c0_i32 : i32, i32
  }
}

</mosaic_0001>

<llo_original>
// kernel: tpu_custom_call.1
$region0: #{tpu_custom_call.1}
  #allocation0 [shape = 'u32[]', space=smem, size = 0x4, offset = 0x4, fixed_abs, tag = 'smem constant byte address 0x4 - core index']
  #allocation1 [shape = 'u32[144,128]{1,0:T(1,128)}', space=vmem, size = 0x12000, scoped, tag = 'internal scratch']
  %s0 = inlined_call_operand.vmem [shape: f32[512,3], index: 0, kind: input, shape index: {}]
  %s1 = inlined_call_operand.vmem [shape: bf16[3,64], index: 1, kind: input, shape index: {}]
  %s2 = inlined_call_operand.vmem [shape: f32[1,64], index: 2, kind: input, shape index: {}]
  %s3 = inlined_call_operand.vmem [shape: bf16[12,64,64], index: 3, kind: input, shape index: {}]
  %s4 = inlined_call_operand.vmem [shape: f32[12,1,64], index: 4, kind: input, shape index: {}]
  %s5 = inlined_call_operand.vmem [shape: bf16[64,128], index: 5, kind: input, shape index: {}]
  %s6 = inlined_call_operand.vmem [shape: f32[1,128], index: 6, kind: input, shape index: {}]
  %s7 = inlined_call_operand.hbm [shape: f32[512,128], index: 7, kind: output, shape index: {}]
  %s8 = sld [smem:[#allocation0]]
  $region38: #{tpu_custom_call.1} parent=0
    _
  %s10 = ssub.s32 1, %s8
  %s11 = scalar_select 0, %s10, %s8
  $region1: #{tpu_custom_call.1} parent=0
    #allocation2 [shape = 'u8[262144]{0}', space=vmem, size = 0x40000, scoped, tag = 'output window, operand 0, single buffered']
    #allocation3 [shape = 's32[1]{0}', space=sflag, size = 0x4, scoped, tag = 'scoped memory for tpu_custom_call.1']
    %12 = vsyncpa [#allocation3], 0
    // Predicated region
    $region2: #{tpu_custom_call.1} parent=1 // pred_check
      _
    $region3: #{tpu_custom_call.1} parent=1 // pred_check_branch
      %14 = sbr.rel (0) target = $region5
    $region4: #{tpu_custom_call.1} parent=1 // pred_region
      _
    $region5: #{tpu_custom_call.1} parent=1 // pred_fallthru
      _
    // Predicated region
    $region6: #{tpu_custom_call.1} parent=1 // pred_check
      _
    $region7: #{tpu_custom_call.1} parent=1 // pred_check_branch
      %16 = sbr.rel (0) target = $region9
    $region8: #{tpu_custom_call.1} parent=1 // pred_region
      _
    $region9: #{tpu_custom_call.1} parent=1 // pred_fallthru
      _
    // Predicated region
    $region10: #{tpu_custom_call.1} parent=1 // pred_check
      _
    $region11: #{tpu_custom_call.1} parent=1 // pred_check_branch
      %18 = sbr.rel (0) target = $region13
    $region12: #{tpu_custom_call.1} parent=1 // pred_region
      _
    $region13: #{tpu_custom_call.1} parent=1 // pred_fallthru
      _
    // Predicated region
    $region14: #{tpu_custom_call.1} parent=1 // pred_check
      _
    $region15: #{tpu_custom_call.1} parent=1 // pred_check_branch
      %20 = sbr.rel (0) target = $region17
    $region16: #{tpu_custom_call.1} parent=1 // pred_region
      _
    $region17: #{tpu_custom_call.1} parent=1 // pred_fallthru
      _
    // Predicated region
    $region18: #{tpu_custom_call.1} parent=1 // pred_check
      _
    $region19: #{tpu_custom_call.1} parent=1 // pred_check_branch
      %22 = sbr.rel (0) target = $region21
    $region20: #{tpu_custom_call.1} parent=1 // pred_region
      _
    $region21: #{tpu_custom_call.1} parent=1 // pred_fallthru
      _
    // Predicated region
    $region22: #{tpu_custom_call.1} parent=1 // pred_check
      _
    $region23: #{tpu_custom_call.1} parent=1 // pred_check_branch
      %24 = sbr.rel (0) target = $region25
    $region24: #{tpu_custom_call.1} parent=1 // pred_region
      _
    $region25: #{tpu_custom_call.1} parent=1 // pred_fallthru
      _
    // Predicated region
    $region26: #{tpu_custom_call.1} parent=1 // pred_check
      _
    $region27: #{tpu_custom_call.1} parent=1 // pred_check_branch
      %26 = sbr.rel (0) target = $region29
    $region28: #{tpu_custom_call.1} parent=1 // pred_region
      _
    $region29: #{tpu_custom_call.1} parent=1 // pred_fallthru
      _
    %v28 = vld [vmem:[%s0] sm:$0xff]
    %v29 = vld [vmem:[%s0 + $0x8] sm:$0xff]
    %v30 = vld [vmem:[%s0 + $0x10] sm:$0xff]
    %v31 = vld [vmem:[%s0 + $0x18] sm:$0xff]
    %v32 = vld [vmem:[%s0 + $0x20] sm:$0xff]
    %v33 = vld [vmem:[%s0 + $0x28] sm:$0xff]
    %v34 = vld [vmem:[%s0 + $0x30] sm:$0xff]
    %v35 = vld [vmem:[%s0 + $0x38] sm:$0xff]
    %v36 = vld [vmem:[%s0 + $0x40] sm:$0xff]
    %v37 = vld [vmem:[%s0 + $0x48] sm:$0xff]
    %v38 = vld [vmem:[%s0 + $0x50] sm:$0xff]
    %v39 = vld [vmem:[%s0 + $0x58] sm:$0xff]
    %v40 = vld [vmem:[%s0 + $0x60] sm:$0xff]
    %v41 = vld [vmem:[%s0 + $0x68] sm:$0xff]
    %v42 = vld [vmem:[%s0 + $0x70] sm:$0xff]
    %v43 = vld [vmem:[%s0 + $0x78] sm:$0xff]
    %v44 = vld [vmem:[%s0 + $0x80] sm:$0xff]
    %v45 = vld [vmem:[%s0 + $0x88] sm:$0xff]
    %v46 = vld [vmem:[%s0 + $0x90] sm:$0xff]
    %v47 = vld [vmem:[%s0 + $0x98] sm:$0xff]
    %v48 = vld [vmem:[%s0 + $0xa0] sm:$0xff]
    %v49 = vld [vmem:[%s0 + $0xa8] sm:$0xff]
    %v50 = vld [vmem:[%s0 + $0xb0] sm:$0xff]
    %v51 = vld [vmem:[%s0 + $0xb8] sm:$0xff]
    %v52 = vld [vmem:[%s0 + $0xc0] sm:$0xff]
    %v53 = vld [vmem:[%s0 + $0xc8] sm:$0xff]
    %v54 = vld [vmem:[%s0 + $0xd0] sm:$0xff]
    %v55 = vld [vmem:[%s0 + $0xd8] sm:$0xff]
    %v56 = vld [vmem:[%s0 + $0xe0] sm:$0xff]
    %v57 = vld [vmem:[%s0 + $0xe8] sm:$0xff]
    %v58 = vld [vmem:[%s0 + $0xf0] sm:$0xff]
    %v59 = vld [vmem:[%s0 + $0xf8] sm:$0xff]
    %v60 = vld [vmem:[%s0 + $0x100] sm:$0xff]
    %v61 = vld [vmem:[%s0 + $0x108] sm:$0xff]
    %v62 = vld [vmem:[%s0 + $0x110] sm:$0xff]
    %v63 = vld [vmem:[%s0 + $0x118] sm:$0xff]
    %v64 = vld [vmem:[%s0 + $0x120] sm:$0xff]
    %v65 = vld [vmem:[%s0 + $0x128] sm:$0xff]
    %v66 = vld [vmem:[%s0 + $0x130] sm:$0xff]
    %v67 = vld [vmem:[%s0 + $0x138] sm:$0xff]
    %v68 = vld [vmem:[%s0 + $0x140] sm:$0xff]
    %v69 = vld [vmem:[%s0 + $0x148] sm:$0xff]
    %v70 = vld [vmem:[%s0 + $0x150] sm:$0xff]
    %v71 = vld [vmem:[%s0 + $0x158] sm:$0xff]
    %v72 = vld [vmem:[%s0 + $0x160] sm:$0xff]
    %v73 = vld [vmem:[%s0 + $0x168] sm:$0xff]
    %v74 = vld [vmem:[%s0 + $0x170] sm:$0xff]
    %v75 = vld [vmem:[%s0 + $0x178] sm:$0xff]
    %v76 = vld [vmem:[%s0 + $0x180] sm:$0xff]
    %v77 = vld [vmem:[%s0 + $0x188] sm:$0xff]
    %v78 = vld [vmem:[%s0 + $0x190] sm:$0xff]
    %v79 = vld [vmem:[%s0 + $0x198] sm:$0xff]
    %v80 = vld [vmem:[%s0 + $0x1a0] sm:$0xff]
    %v81 = vld [vmem:[%s0 + $0x1a8] sm:$0xff]
    %v82 = vld [vmem:[%s0 + $0x1b0] sm:$0xff]
    %v83 = vld [vmem:[%s0 + $0x1b8] sm:$0xff]
    %v84 = vld [vmem:[%s0 + $0x1c0] sm:$0xff]
    %v85 = vld [vmem:[%s0 + $0x1c8] sm:$0xff]
    %v86 = vld [vmem:[%s0 + $0x1d0] sm:$0xff]
    %v87 = vld [vmem:[%s0 + $0x1d8] sm:$0xff]
    %v88 = vld [vmem:[%s0 + $0x1e0] sm:$0xff]
    %v89 = vld [vmem:[%s0 + $0x1e8] sm:$0xff]
    %v90 = vld [vmem:[%s0 + $0x1f0] sm:$0xff]
    %v91 = vld [vmem:[%s0 + $0x1f8] sm:$0xff]
    %v92 = vpack.c.bf16 %v29, %v28
    %v93 = vpack.c.bf16 %v31, %v30
    %v94 = vpack.c.bf16 %v33, %v32
    %v95 = vpack.c.bf16 %v35, %v34
    %v96 = vpack.c.bf16 %v37, %v36
    %v97 = vpack.c.bf16 %v39, %v38
    %v98 = vpack.c.bf16 %v41, %v40
    %v99 = vpack.c.bf16 %v43, %v42
    %v100 = vpack.c.bf16 %v45, %v44
    %v101 = vpack.c.bf16 %v47, %v46
    %v102 = vpack.c.bf16 %v49, %v48
    %v103 = vpack.c.bf16 %v51, %v50
    %v104 = vpack.c.bf16 %v53, %v52
    %v105 = vpack.c.bf16 %v55, %v54
    %v106 = vpack.c.bf16 %v57, %v56
    %v107 = vpack.c.bf16 %v59, %v58
    %v108 = vpack.c.bf16 %v61, %v60
    %v109 = vpack.c.bf16 %v63, %v62
    %v110 = vpack.c.bf16 %v65, %v64
    %v111 = vpack.c.bf16 %v67, %v66
    %v112 = vpack.c.bf16 %v69, %v68
    %v113 = vpack.c.bf16 %v71, %v70
    %v114 = vpack.c.bf16 %v73, %v72
    %v115 = vpack.c.bf16 %v75, %v74
    %v116 = vpack.c.bf16 %v77, %v76
    %v117 = vpack.c.bf16 %v79, %v78
    %v118 = vpack.c.bf16 %v81, %v80
    %v119 = vpack.c.bf16 %v83, %v82
    %v120 = vpack.c.bf16 %v85, %v84
    %v121 = vpack.c.bf16 %v87, %v86
    %v122 = vpack.c.bf16 %v89, %v88
    %v123 = vpack.c.bf16 %v91, %v90
    %v124 = vld [vmem:[%s1] sm:$0x3]
    %v125 = vld [vmem:[%s2] sm:$0x1]
    %v127 = vlaneseq
    %v128 = vshrl.u32 %v127, 7
    %v129 = vsub.s32 0, %v128
    %v130 = vrot.slane %v125, %v129
    %vm132 = vcmask 23552
    %v134 = vsel %vm132, %v92, 0
    %v137 = vsel %vm132, %v93, 0
    %v140 = vsel %vm132, %v94, 0
    %v143 = vsel %vm132, %v95, 0
    %v146 = vsel %vm132, %v96, 0
    %v149 = vsel %vm132, %v97, 0
    %v152 = vsel %vm132, %v98, 0
    %v155 = vsel %vm132, %v99, 0
    %v158 = vsel %vm132, %v100, 0
    %v161 = vsel %vm132, %v101, 0
    %v164 = vsel %vm132, %v102, 0
    %v167 = vsel %vm132, %v103, 0
    %v170 = vsel %vm132, %v104, 0
    %v173 = vsel %vm132, %v105, 0
    %v176 = vsel %vm132, %v106, 0
    %v179 = vsel %vm132, %v107, 0
    %v182 = vsel %vm132, %v108, 0
    %v185 = vsel %vm132, %v109, 0
    %v188 = vsel %vm132, %v110, 0
    %v191 = vsel %vm132, %v111, 0
    %v194 = vsel %vm132, %v112, 0
    %v197 = vsel %vm132, %v113, 0
    %v200 = vsel %vm132, %v114, 0
    %v203 = vsel %vm132, %v115, 0
    %v206 = vsel %vm132, %v116, 0
    %v209 = vsel %vm132, %v117, 0
    %v212 = vsel %vm132, %v118, 0
    %v215 = vsel %vm132, %v119, 0
    %v218 = vsel %vm132, %v120, 0
    %v221 = vsel %vm132, %v121, 0
    %v224 = vsel %vm132, %v122, 0
    %v227 = vsel %vm132, %v123, 0
    %vm229 = vcmask 1040384
    %vm230 = vcmask 1041408
    %v231 = vsel %vm229, 4294967295, 65535
    %v232 = vsel %vm230, %v231, 0
    %v234 = vand.u32 %v124, %v232
    %236 = vmatprep.subr.bf16.mxu0 0
    %237 = vmatpush1.bf16.msra.mxu0 0
    %238 = vmatprep.subr.bf16.mxu0 0
    %239 = vmatpush1.bf16.msra.mxu0 0
    %240 = vmatprep.subr.bf16.mxu0 0
    %241 = vmatpush1.bf16.msra.mxu0 0
    %242 = vmatprep.subr.bf16.mxu0 0
    %243 = vmatpush1.bf16.msra.mxu0 0
    %244 = vmatprep.subr.bf16.mxu0 0
    %245 = vmatpush1.bf16.msra.mxu0 0
    %246 = vmatprep.subr.bf16.mxu0 0
    %247 = vmatpush1.bf16.msra.mxu0 0
    %248 = vmatprep.subr.bf16.mxu0 0
    %249 = vmatpush1.bf16.msra.mxu0 0
    %250 = vmatprep.subr.bf16.mxu0 0
    %251 = vmatpush1.bf16.msra.mxu0 %v234
    %252 = vmatprep.subr.bf16.mxu0 0
    %253 = vmatpush2.bf16.msra.mxu0 0
    %254 = vmatprep.subr.bf16.mxu0 0
    %255 = vmatpush2.bf16.msra.mxu0 0
    %256 = vmatprep.subr.bf16.mxu0 0
    %257 = vmatpush2.bf16.msra.mxu0 0
    %258 = vmatprep.subr.bf16.mxu0 0
    %259 = vmatpush2.bf16.msra.mxu0 0
    %260 = vmatprep.subr.bf16.mxu0 0
    %261 = vmatpush2.bf16.msra.mxu0 0
    %262 = vmatprep.subr.bf16.mxu0 0
    %263 = vmatpush2.bf16.msra.mxu0 0
    %264 = vmatprep.subr.bf16.mxu0 0
    %265 = vmatpush2.bf16.msra.mxu0 0
    %266 = vmatprep.subr.bf16.mxu0 0
    %267 = vmatpush2.bf16.msra.mxu0 0
    %268 = vmatprep.mubr.bf16.mxu0 0
    %269 = vmatmul.mubr.bf16.gmra.mxu0 %v134
    %v270 = vpop.f32.mrf.mxu0
    %v271 = vadd.f32 %v130, %v270
    %v272 = vpop.f32.mrf.mxu0
    %v273 = vpop.f32.mrf.mxu0
    %v274 = vadd.f32 %v130, %v273
    %v275 = vpop.f32.mrf.mxu0
    %276 = vmatprep.mubr.bf16.mxu0 0
    %277 = vmatmul.mubr.bf16.gmra.mxu0 %v137
    %v278 = vpop.f32.mrf.mxu0
    %v279 = vadd.f32 %v130, %v278
    %v280 = vpop.f32.mrf.mxu0
    %v281 = vpop.f32.mrf.mxu0
    %v282 = vadd.f32 %v130, %v281
    %v283 = vpop.f32.mrf.mxu0
    %284 = vmatprep.mubr.bf16.mxu0 0
    %285 = vmatmul.mubr.bf16.gmra.mxu0 %v140
    %v286 = vpop.f32.mrf.mxu0
    %v287 = vadd.f32 %v130, %v286
    %v288 = vpop.f32.mrf.mxu0
    %v289 = vpop.f32.mrf.mxu0
    %v290 = vadd.f32 %v130, %v289
    %v291 = vpop.f32.mrf.mxu0
    %292 = vmatprep.mubr.bf16.mxu0 0
    %293 = vmatmul.mubr.bf16.gmra.mxu0 %v143
    %v294 = vpop.f32.mrf.mxu0
    %v295 = vadd.f32 %v130, %v294
    %v296 = vpop.f32.mrf.mxu0
    %v297 = vpop.f32.mrf.mxu0
    %v298 = vadd.f32 %v130, %v297
    %v299 = vpop.f32.mrf.mxu0
    %300 = vmatprep.mubr.bf16.mxu0 0
    %301 = vmatmul.mubr.bf16.gmra.mxu0 %v146
    %v302 = vpop.f32.mrf.mxu0
    %v303 = vadd.f32 %v130, %v302
    %v304 = vpop.f32.mrf.mxu0
    %v305 = vpop.f32.mrf.mxu0
    %v306 = vadd.f32 %v130, %v305
    %v307 = vpop.f32.mrf.mxu0
    %308 = vmatprep.mubr.bf16.mxu0 0
    %309 = vmatmul.mubr.bf16.gmra.mxu0 %v149
    %v310 = vpop.f32.mrf.mxu0
    %v311 = vadd.f32 %v130, %v310
    %v312 = vpop.f32.mrf.mxu0
    %v313 = vpop.f32.mrf.mxu0
    %v314 = vadd.f32 %v130, %v313
    %v315 = vpop.f32.mrf.mxu0
    %316 = vmatprep.mubr.bf16.mxu0 0
    %317 = vmatmul.mubr.bf16.gmra.mxu0 %v152
    %v318 = vpop.f32.mrf.mxu0
    %v319 = vadd.f32 %v130, %v318
    %v320 = vpop.f32.mrf.mxu0
    %v321 = vpop.f32.mrf.mxu0
    %v322 = vadd.f32 %v130, %v321
    %v323 = vpop.f32.mrf.mxu0
    %324 = vmatprep.mubr.bf16.mxu0 0
    %325 = vmatmul.mubr.bf16.gmra.mxu0 %v155
    %v326 = vpop.f32.mrf.mxu0
    %v327 = vadd.f32 %v130, %v326
    %v328 = vpop.f32.mrf.mxu0
    %v329 = vpop.f32.mrf.mxu0
    %v330 = vadd.f32 %v130, %v329
    %v331 = vpop.f32.mrf.mxu0
    %332 = vmatprep.mubr.bf16.mxu0 0
    %333 = vmatmul.mubr.bf16.gmra.mxu0 %v158
    %v334 = vpop.f32.mrf.mxu0
    %v335 = vadd.f32 %v130, %v334
    %v336 = vpop.f32.mrf.mxu0
    %v337 = vpop.f32.mrf.mxu0
    %v338 = vadd.f32 %v130, %v337
    %v339 = vpop.f32.mrf.mxu0
    %340 = vmatprep.mubr.bf16.mxu0 0
    %341 = vmatmul.mubr.bf16.gmra.mxu0 %v161
    %v342 = vpop.f32.mrf.mxu0
    %v343 = vadd.f32 %v130, %v342
    %v344 = vpop.f32.mrf.mxu0
    %v345 = vpop.f32.mrf.mxu0
    %v346 = vadd.f32 %v130, %v345
    %v347 = vpop.f32.mrf.mxu0
    %348 = vmatprep.mubr.bf16.mxu0 0
    %349 = vmatmul.mubr.bf16.gmra.mxu0 %v164
    %v350 = vpop.f32.mrf.mxu0
    %v351 = vadd.f32 %v130, %v350
    %v352 = vpop.f32.mrf.mxu0
    %v353 = vpop.f32.mrf.mxu0
    %v354 = vadd.f32 %v130, %v353
    %v355 = vpop.f32.mrf.mxu0
    %356 = vmatprep.mubr.bf16.mxu0 0
    %357 = vmatmul.mubr.bf16.gmra.mxu0 %v167
    %v358 = vpop.f32.mrf.mxu0
    %v359 = vadd.f32 %v130, %v358
    %v360 = vpop.f32.mrf.mxu0
    %v361 = vpop.f32.mrf.mxu0
    %v362 = vadd.f32 %v130, %v361
    %v363 = vpop.f32.mrf.mxu0
    %364 = vmatprep.mubr.bf16.mxu0 0
    %365 = vmatmul.mubr.bf16.gmra.mxu0 %v170
    %v366 = vpop.f32.mrf.mxu0
    %v367 = vadd.f32 %v130, %v366
    %v368 = vpop.f32.mrf.mxu0
    %v369 = vpop.f32.mrf.mxu0
    %v370 = vadd.f32 %v130, %v369
    %v371 = vpop.f32.mrf.mxu0
    %372 = vmatprep.mubr.bf16.mxu0 0
    %373 = vmatmul.mubr.bf16.gmra.mxu0 %v173
    %v374 = vpop.f32.mrf.mxu0
    %v375 = vadd.f32 %v130, %v374
    %v376 = vpop.f32.mrf.mxu0
    %v377 = vpop.f32.mrf.mxu0
    %v378 = vadd.f32 %v130, %v377
    %v379 = vpop.f32.mrf.mxu0
    %380 = vmatprep.mubr.bf16.mxu0 0
    %381 = vmatmul.mubr.bf16.gmra.mxu0 %v176
    %v382 = vpop.f32.mrf.mxu0
    %v383 = vadd.f32 %v130, %v382
    %v384 = vpop.f32.mrf.mxu0
    %v385 = vpop.f32.mrf.mxu0
    %v386 = vadd.f32 %v130, %v385
    %v387 = vpop.f32.mrf.mxu0
    %388 = vmatprep.mubr.bf16.mxu0 0
    %389 = vmatmul.mubr.bf16.gmra.mxu0 %v179
    %v390 = vpop.f32.mrf.mxu0
    %v391 = vadd.f32 %v130, %v390
    %v392 = vpop.f32.mrf.mxu0
    %v393 = vpop.f32.mrf.mxu0
    %v394 = vadd.f32 %v130, %v393
    %v395 = vpop.f32.mrf.mxu0
    %396 = vmatprep.mubr.bf16.mxu0 0
    %397 = vmatmul.mubr.bf16.gmra.mxu0 %v182
    %v398 = vpop.f32.mrf.mxu0
    %v399 = vadd.f32 %v130, %v398
    %v400 = vpop.f32.mrf.mxu0
    %v401 = vpop.f32.mrf.mxu0
    %v402 = vadd.f32 %v130, %v401
    %v403 = vpop.f32.mrf.mxu0
    %404 = vmatprep.mubr.bf16.mxu0 0
    %405 = vmatmul.mubr.bf16.gmra.mxu0 %v185
    %v406 = vpop.f32.mrf.mxu0
    %v407 = vadd.f32 %v130, %v406
    %v408 = vpop.f32.mrf.mxu0
    %v409 = vpop.f32.mrf.mxu0
    %v410 = vadd.f32 %v130, %v409
    %v411 = vpop.f32.mrf.mxu0
    %412 = vmatprep.mubr.bf16.mxu0 0
    %413 = vmatmul.mubr.bf16.gmra.mxu0 %v188
    %v414 = vpop.f32.mrf.mxu0
    %v415 = vadd.f32 %v130, %v414
    %v416 = vpop.f32.mrf.mxu0
    %v417 = vpop.f32.mrf.mxu0
    %v418 = vadd.f32 %v130, %v417
    %v419 = vpop.f32.mrf.mxu0
    %420 = vmatprep.mubr.bf16.mxu0 0
    %421 = vmatmul.mubr.bf16.gmra.mxu0 %v191
    %v422 = vpop.f32.mrf.mxu0
    %v423 = vadd.f32 %v130, %v422
    %v424 = vpop.f32.mrf.mxu0
    %v425 = vpop.f32.mrf.mxu0
    %v426 = vadd.f32 %v130, %v425
    %v427 = vpop.f32.mrf.mxu0
    %428 = vmatprep.mubr.bf16.mxu0 0
    %429 = vmatmul.mubr.bf16.gmra.mxu0 %v194
    %v430 = vpop.f32.mrf.mxu0
    %v431 = vadd.f32 %v130, %v430
    %v432 = vpop.f32.mrf.mxu0
    %v433 = vpop.f32.mrf.mxu0
    %v434 = vadd.f32 %v130, %v433
    %v435 = vpop.f32.mrf.mxu0
    %436 = vmatprep.mubr.bf16.mxu0 0
    %437 = vmatmul.mubr.bf16.gmra.mxu0 %v197
    %v438 = vpop.f32.mrf.mxu0
    %v439 = vadd.f32 %v130, %v438
    %v440 = vpop.f32.mrf.mxu0
    %v441 = vpop.f32.mrf.mxu0
    %v442 = vadd.f32 %v130, %v441
    %v443 = vpop.f32.mrf.mxu0
    %444 = vmatprep.mubr.bf16.mxu0 0
    %445 = vmatmul.mubr.bf16.gmra.mxu0 %v200
    %v446 = vpop.f32.mrf.mxu0
    %v447 = vadd.f32 %v130, %v446
    %v448 = vpop.f32.mrf.mxu0
    %v449 = vpop.f32.mrf.mxu0
    %v450 = vadd.f32 %v130, %v449
    %v451 = vpop.f32.mrf.mxu0
    %452 = vmatprep.mubr.bf16.mxu0 0
    %453 = vmatmul.mubr.bf16.gmra.mxu0 %v203
    %v454 = vpop.f32.mrf.mxu0
    %v455 = vadd.f32 %v130, %v454
    %v456 = vpop.f32.mrf.mxu0
    %v457 = vpop.f32.mrf.mxu0
    %v458 = vadd.f32 %v130, %v457
    %v459 = vpop.f32.mrf.mxu0
    %460 = vmatprep.mubr.bf16.mxu0 0
    %461 = vmatmul.mubr.bf16.gmra.mxu0 %v206
    %v462 = vpop.f32.mrf.mxu0
    %v463 = vadd.f32 %v130, %v462
    %v464 = vpop.f32.mrf.mxu0
    %v465 = vpop.f32.mrf.mxu0
    %v466 = vadd.f32 %v130, %v465
    %v467 = vpop.f32.mrf.mxu0
    %468 = vmatprep.mubr.bf16.mxu0 0
    %469 = vmatmul.mubr.bf16.gmra.mxu0 %v209
    %v470 = vpop.f32.mrf.mxu0
    %v471 = vadd.f32 %v130, %v470
    %v472 = vpop.f32.mrf.mxu0
    %v473 = vpop.f32.mrf.mxu0
    %v474 = vadd.f32 %v130, %v473
    %v475 = vpop.f32.mrf.mxu0
    %476 = vmatprep.mubr.bf16.mxu0 0
    %477 = vmatmul.mubr.bf16.gmra.mxu0 %v212
    %v478 = vpop.f32.mrf.mxu0
    %v479 = vadd.f32 %v130, %v478
    %v480 = vpop.f32.mrf.mxu0
    %v481 = vpop.f32.mrf.mxu0
    %v482 = vadd.f32 %v130, %v481
    %v483 = vpop.f32.mrf.mxu0
    %484 = vmatprep.mubr.bf16.mxu0 0
    %485 = vmatmul.mubr.bf16.gmra.mxu0 %v215
    %v486 = vpop.f32.mrf.mxu0
    %v487 = vadd.f32 %v130, %v486
    %v488 = vpop.f32.mrf.mxu0
    %v489 = vpop.f32.mrf.mxu0
    %v490 = vadd.f32 %v130, %v489
    %v491 = vpop.f32.mrf.mxu0
    %492 = vmatprep.mubr.bf16.mxu0 0
    %493 = vmatmul.mubr.bf16.gmra.mxu0 %v218
    %v494 = vpop.f32.mrf.mxu0
    %v495 = vadd.f32 %v130, %v494
    %v496 = vpop.f32.mrf.mxu0
    %v497 = vpop.f32.mrf.mxu0
    %v498 = vadd.f32 %v130, %v497
    %v499 = vpop.f32.mrf.mxu0
    %500 = vmatprep.mubr.bf16.mxu0 0
    %501 = vmatmul.mubr.bf16.gmra.mxu0 %v221
    %v502 = vpop.f32.mrf.mxu0
    %v503 = vadd.f32 %v130, %v502
    %v504 = vpop.f32.mrf.mxu0
    %v505 = vpop.f32.mrf.mxu0
    %v506 = vadd.f32 %v130, %v505
    %v507 = vpop.f32.mrf.mxu0
    %508 = vmatprep.mubr.bf16.mxu0 0
    %509 = vmatmul.mubr.bf16.gmra.mxu0 %v224
    %v510 = vpop.f32.mrf.mxu0
    %v511 = vadd.f32 %v130, %v510
    %v512 = vpop.f32.mrf.mxu0
    %v513 = vpop.f32.mrf.mxu0
    %v514 = vadd.f32 %v130, %v513
    %v515 = vpop.f32.mrf.mxu0
    %516 = vmatprep.mubr.bf16.mxu0 0
    %517 = vmatmul.mubr.bf16.gmra.mxu0 %v227
    %v518 = vpop.f32.mrf.mxu0
    %v519 = vadd.f32 %v130, %v518
    %v520 = vpop.f32.mrf.mxu0
    %v521 = vpop.f32.mrf.mxu0
    %v522 = vadd.f32 %v130, %v521
    %v523 = vpop.f32.mrf.mxu0
    %524 = vdwg.mxu0
    %v525 = vmul.f32 %v271, 0.01
    %v526 = vmul.f32 %v274, 0.01
    %v527 = vmul.f32 %v279, 0.01
    %v528 = vmul.f32 %v282, 0.01
    %v529 = vmul.f32 %v287, 0.01
    %v530 = vmul.f32 %v290, 0.01
    %v531 = vmul.f32 %v295, 0.01
    %v532 = vmul.f32 %v298, 0.01
    %v533 = vmul.f32 %v303, 0.01
    %v534 = vmul.f32 %v306, 0.01
    %v535 = vmul.f32 %v311, 0.01
    %v536 = vmul.f32 %v314, 0.01
    %v537 = vmul.f32 %v319, 0.01
    %v538 = vmul.f32 %v322, 0.01
    %v539 = vmul.f32 %v327, 0.01
    %v540 = vmul.f32 %v330, 0.01
    %v541 = vmul.f32 %v335, 0.01
    %v542 = vmul.f32 %v338, 0.01
    %v543 = vmul.f32 %v343, 0.01
    %v544 = vmul.f32 %v346, 0.01
    %v545 = vmul.f32 %v351, 0.01
    %v546 = vmul.f32 %v354, 0.01
    %v547 = vmul.f32 %v359, 0.01
    %v548 = vmul.f32 %v362, 0.01
    %v549 = vmul.f32 %v367, 0.01
    %v550 = vmul.f32 %v370, 0.01
    %v551 = vmul.f32 %v375, 0.01
    %v552 = vmul.f32 %v378, 0.01
    %v553 = vmul.f32 %v383, 0.01
    %v554 = vmul.f32 %v386, 0.01
    %v555 = vmul.f32 %v391, 0.01
    %v556 = vmul.f32 %v394, 0.01
    %v557 = vmul.f32 %v399, 0.01
    %v558 = vmul.f32 %v402, 0.01
    %v559 = vmul.f32 %v407, 0.01
    %v560 = vmul.f32 %v410, 0.01
    %v561 = vmul.f32 %v415, 0.01
    %v562 = vmul.f32 %v418, 0.01
    %v563 = vmul.f32 %v423, 0.01
    %v564 = vmul.f32 %v426, 0.01
    %v565 = vmul.f32 %v431, 0.01
    %v566 = vmul.f32 %v434, 0.01
    %v567 = vmul.f32 %v439, 0.01
    %v568 = vmul.f32 %v442, 0.01
    %v569 = vmul.f32 %v447, 0.01
    %v570 = vmul.f32 %v450, 0.01
    %v571 = vmul.f32 %v455, 0.01
    %v572 = vmul.f32 %v458, 0.01
    %v573 = vmul.f32 %v463, 0.01
    %v574 = vmul.f32 %v466, 0.01
    %v575 = vmul.f32 %v471, 0.01
    %v576 = vmul.f32 %v474, 0.01
    %v577 = vmul.f32 %v479, 0.01
    %v578 = vmul.f32 %v482, 0.01
    %v579 = vmul.f32 %v487, 0.01
    %v580 = vmul.f32 %v490, 0.01
    %v581 = vmul.f32 %v495, 0.01
    %v582 = vmul.f32 %v498, 0.01
    %v583 = vmul.f32 %v503, 0.01
    %v584 = vmul.f32 %v506, 0.01
    %v585 = vmul.f32 %v511, 0.01
    %v586 = vmul.f32 %v514, 0.01
    %v587 = vmul.f32 %v519, 0.01
    %v588 = vmul.f32 %v522, 0.01
    %v589 = vmax.f32 %v271, %v525
    %v590 = vmax.f32 %v274, %v526
    %v591 = vmax.f32 %v279, %v527
    %v592 = vmax.f32 %v282, %v528
    %v593 = vmax.f32 %v287, %v529
    %v594 = vmax.f32 %v290, %v530
    %v595 = vmax.f32 %v295, %v531
    %v596 = vmax.f32 %v298, %v532
    %v597 = vmax.f32 %v303, %v533
    %v598 = vmax.f32 %v306, %v534
    %v599 = vmax.f32 %v311, %v535
    %v600 = vmax.f32 %v314, %v536
    %v601 = vmax.f32 %v319, %v537
    %v602 = vmax.f32 %v322, %v538
    %v603 = vmax.f32 %v327, %v539
    %v604 = vmax.f32 %v330, %v540
    %v605 = vmax.f32 %v335, %v541
    %v606 = vmax.f32 %v338, %v542
    %v607 = vmax.f32 %v343, %v543
    %v608 = vmax.f32 %v346, %v544
    %v609 = vmax.f32 %v351, %v545
    %v610 = vmax.f32 %v354, %v546
    %v611 = vmax.f32 %v359, %v547
    %v612 = vmax.f32 %v362, %v548
    %v613 = vmax.f32 %v367, %v549
    %v614 = vmax.f32 %v370, %v550
    %v615 = vmax.f32 %v375, %v551
    %v616 = vmax.f32 %v378, %v552
    %v617 = vmax.f32 %v383, %v553
    %v618 = vmax.f32 %v386, %v554
    %v619 = vmax.f32 %v391, %v555
    %v620 = vmax.f32 %v394, %v556
    %v621 = vmax.f32 %v399, %v557
    %v622 = vmax.f32 %v402, %v558
    %v623 = vmax.f32 %v407, %v559
    %v624 = vmax.f32 %v410, %v560
    %v625 = vmax.f32 %v415, %v561
    %v626 = vmax.f32 %v418, %v562
    %v627 = vmax.f32 %v423, %v563
    %v628 = vmax.f32 %v426, %v564
    %v629 = vmax.f32 %v431, %v565
    %v630 = vmax.f32 %v434, %v566
    %v631 = vmax.f32 %v439, %v567
    %v632 = vmax.f32 %v442, %v568
    %v633 = vmax.f32 %v447, %v569
    %v634 = vmax.f32 %v450, %v570
    %v635 = vmax.f32 %v455, %v571
    %v636 = vmax.f32 %v458, %v572
    %v637 = vmax.f32 %v463, %v573
    %v638 = vmax.f32 %v466, %v574
    %v639 = vmax.f32 %v471, %v575
    %v640 = vmax.f32 %v474, %v576
    %v641 = vmax.f32 %v479, %v577
    %v642 = vmax.f32 %v482, %v578
    %v643 = vmax.f32 %v487, %v579
    %v644 = vmax.f32 %v490, %v580
    %v645 = vmax.f32 %v495, %v581
    %v646 = vmax.f32 %v498, %v582
    %v647 = vmax.f32 %v503, %v583
    %v648 = vmax.f32 %v506, %v584
    %v649 = vmax.f32 %v511, %v585
    %v650 = vmax.f32 %v514, %v586
    %v651 = vmax.f32 %v519, %v587
    %v652 = vmax.f32 %v522, %v588
    %v653 = vpack.c.bf16 %v590, %v589
    %v654 = vpack.c.bf16 %v592, %v591
    %v655 = vpack.c.bf16 %v594, %v593
    %v656 = vpack.c.bf16 %v596, %v595
    %v657 = vpack.c.bf16 %v598, %v597
    %v658 = vpack.c.bf16 %v600, %v599
    %v659 = vpack.c.bf16 %v602, %v601
    %v660 = vpack.c.bf16 %v604, %v603
    %v661 = vpack.c.bf16 %v606, %v605
    %v662 = vpack.c.bf16 %v608, %v607
    %v663 = vpack.c.bf16 %v610, %v609
    %v664 = vpack.c.bf16 %v612, %v611
    %v665 = vpack.c.bf16 %v614, %v613
    %v666 = vpack.c.bf16 %v616, %v615
    %v667 = vpack.c.bf16 %v618, %v617
    %v668 = vpack.c.bf16 %v620, %v619
    %v669 = vpack.c.bf16 %v622, %v621
    %v670 = vpack.c.bf16 %v624, %v623
    %v671 = vpack.c.bf16 %v626, %v625
    %v672 = vpack.c.bf16 %v628, %v627
    %v673 = vpack.c.bf16 %v630, %v629
    %v674 = vpack.c.bf16 %v632, %v631
    %v675 = vpack.c.bf16 %v634, %v633
    %v676 = vpack.c.bf16 %v636, %v635
    %v677 = vpack.c.bf16 %v638, %v637
    %v678 = vpack.c.bf16 %v640, %v639
    %v679 = vpack.c.bf16 %v642, %v641
    %v680 = vpack.c.bf16 %v644, %v643
    %v681 = vpack.c.bf16 %v646, %v645
    %v682 = vpack.c.bf16 %v648, %v647
    %v683 = vpack.c.bf16 %v650, %v649
    %v684 = vpack.c.bf16 %v652, %v651
    %v685 = vld [vmem:[%s3] sm:$0xf]
    %v686 = vld [vmem:[%s3 + $0x4] sm:$0xf]
    %v687 = vld [vmem:[%s3 + $0x8] sm:$0xf]
    %v688 = vld [vmem:[%s3 + $0xc] sm:$0xf]
    %v689 = vld [vmem:[%s3 + $0x10] sm:$0xf]
    %v690 = vld [vmem:[%s3 + $0x14] sm:$0xf]
    %v691 = vld [vmem:[%s3 + $0x18] sm:$0xf]
    %v692 = vld [vmem:[%s3 + $0x1c] sm:$0xf]
    %v693 = vld [vmem:[%s4] sm:$0x1]
    %v695 = vlaneseq
    %v696 = vshrl.u32 %v695, 7
    %v697 = vsub.s32 0, %v696
    %v698 = vrot.slane %v693, %v697
    %v708 = vunpack.c.l.b16 %v685
    %v709 = vunpack.c.l.b16 %v686
    %v710 = vunpack.c.l.b16 %v687
    %v711 = vunpack.c.l.b16 %v688
    %v712 = vunpack.c.l.b16 %v689
    %v713 = vunpack.c.l.b16 %v690
    %v714 = vunpack.c.l.b16 %v691
    %v715 = vunpack.c.l.b16 %v692
    %v716 = vpack.c.b16 %v709, %v708
    %v717 = vpack.c.b16 %v711, %v710
    %v718 = vpack.c.b16 %v713, %v712
    %v719 = vpack.c.b16 %v715, %v714
    %vm724 = vcmask 523264
    %v726 = vsel %vm724, %v653, 0
    %v729 = vsel %vm724, %v654, 0
    %v732 = vsel %vm724, %v655, 0
    %v735 = vsel %vm724, %v656, 0
    %v738 = vsel %vm724, %v657, 0
    %v741 = vsel %vm724, %v658, 0
    %v744 = vsel %vm724, %v659, 0
    %v747 = vsel %vm724, %v660, 0
    %v750 = vsel %vm724, %v661, 0
    %v753 = vsel %vm724, %v662, 0
    %v756 = vsel %vm724, %v663, 0
    %v759 = vsel %vm724, %v664, 0
    %v762 = vsel %vm724, %v665, 0
    %v765 = vsel %vm724, %v666, 0
    %v768 = vsel %vm724, %v667, 0
    %v771 = vsel %vm724, %v668, 0
    %v774 = vsel %vm724, %v669, 0
    %v777 = vsel %vm724, %v670, 0
    %v780 = vsel %vm724, %v671, 0
    %v783 = vsel %vm724, %v672, 0
    %v786 = vsel %vm724, %v673, 0
    %v789 = vsel %vm724, %v674, 0
    %v792 = vsel %vm724, %v675, 0
    %v795 = vsel %vm724, %v676, 0
    %v798 = vsel %vm724, %v677, 0
    %v801 = vsel %vm724, %v678, 0
    %v804 = vsel %vm724, %v679, 0
    %v807 = vsel %vm724, %v680, 0
    %v810 = vsel %vm724, %v681, 0
    %v813 = vsel %vm724, %v682, 0
    %v816 = vsel %vm724, %v683, 0
    %v819 = vsel %vm724, %v684, 0
    %821 = vmatprep.subr.bf16.mxu0 0
    %822 = vmatpush1.bf16.msra.mxu0 0
    %823 = vmatprep.subr.bf16.mxu0 0
    %824 = vmatpush1.bf16.msra.mxu0 0
    %825 = vmatprep.subr.bf16.mxu0 0
    %826 = vmatpush1.bf16.msra.mxu0 0
    %827 = vmatprep.subr.bf16.mxu0 0
    %828 = vmatpush1.bf16.msra.mxu0 0
    %829 = vmatprep.subr.bf16.mxu0 0
    %830 = vmatpush1.bf16.msra.mxu0 %v719
    %831 = vmatprep.subr.bf16.mxu0 0
    %832 = vmatpush1.bf16.msra.mxu0 %v718
    %833 = vmatprep.subr.bf16.mxu0 0
    %834 = vmatpush1.bf16.msra.mxu0 %v717
    %835 = vmatprep.subr.bf16.mxu0 0
    %836 = vmatpush1.bf16.msra.mxu0 %v716
    %837 = vmatprep.subr.bf16.mxu0 0
    %838 = vmatpush2.bf16.msra.mxu0 0
    %839 = vmatprep.subr.bf16.mxu0 0
    %840 = vmatpush2.bf16.msra.mxu0 0
    %841 = vmatprep.subr.bf16.mxu0 0
    %842 = vmatpush2.bf16.msra.mxu0 0
    %843 = vmatprep.subr.bf16.mxu0 0
    %844 = vmatpush2.bf16.msra.mxu0 0
    %845 = vmatprep.subr.bf16.mxu0 0
    %846 = vmatpush2.bf16.msra.mxu0 0
    %847 = vmatprep.subr.bf16.mxu0 0
    %848 = vmatpush2.bf16.msra.mxu0 0
    %849 = vmatprep.subr.bf16.mxu0 0
    %850 = vmatpush2.bf16.msra.mxu0 0
    %851 = vmatprep.subr.bf16.mxu0 0
    %852 = vmatpush2.bf16.msra.mxu0 0
    %853 = vmatprep.mubr.bf16.mxu0 0
    %854 = vmatmul.mubr.bf16.gmra.mxu0 %v726
    %v855 = vpop.f32.mrf.mxu0
    %v856 = vadd.f32 %v698, %v855
    %v857 = vpop.f32.mrf.mxu0
    %v858 = vpop.f32.mrf.mxu0
    %v859 = vadd.f32 %v698, %v858
    %v860 = vpop.f32.mrf.mxu0
    %861 = vmatprep.mubr.bf16.mxu0 0
    %862 = vmatmul.mubr.bf16.gmra.mxu0 %v729
    %v863 = vpop.f32.mrf.mxu0
    %v864 = vadd.f32 %v698, %v863
    %v865 = vpop.f32.mrf.mxu0
    %v866 = vpop.f32.mrf.mxu0
    %v867 = vadd.f32 %v698, %v866
    %v868 = vpop.f32.mrf.mxu0
    %869 = vmatprep.mubr.bf16.mxu0 0
    %870 = vmatmul.mubr.bf16.gmra.mxu0 %v732
    %v871 = vpop.f32.mrf.mxu0
    %v872 = vadd.f32 %v698, %v871
    %v873 = vpop.f32.mrf.mxu0
    %v874 = vpop.f32.mrf.mxu0
    %v875 = vadd.f32 %v698, %v874
    %v876 = vpop.f32.mrf.mxu0
    %877 = vmatprep.mubr.bf16.mxu0 0
    %878 = vmatmul.mubr.bf16.gmra.mxu0 %v735
    %v879 = vpop.f32.mrf.mxu0
    %v880 = vadd.f32 %v698, %v879
    %v881 = vpop.f32.mrf.mxu0
    %v882 = vpop.f32.mrf.mxu0
    %v883 = vadd.f32 %v698, %v882
    %v884 = vpop.f32.mrf.mxu0
    %885 = vmatprep.mubr.bf16.mxu0 0
    %886 = vmatmul.mubr.bf16.gmra.mxu0 %v738
    %v887 = vpop.f32.mrf.mxu0
    %v888 = vadd.f32 %v698, %v887
    %v889 = vpop.f32.mrf.mxu0
    %v890 = vpop.f32.mrf.mxu0
    %v891 = vadd.f32 %v698, %v890
    %v892 = vpop.f32.mrf.mxu0
    %893 = vmatprep.mubr.bf16.mxu0 0
    %894 = vmatmul.mubr.bf16.gmra.mxu0 %v741
    %v895 = vpop.f32.mrf.mxu0
    %v896 = vadd.f32 %v698, %v895
    %v897 = vpop.f32.mrf.mxu0
    %v898 = vpop.f32.mrf.mxu0
    %v899 = vadd.f32 %v698, %v898
    %v900 = vpop.f32.mrf.mxu0
    %901 = vmatprep.mubr.bf16.mxu0 0
    %902 = vmatmul.mubr.bf16.gmra.mxu0 %v744
    %v903 = vpop.f32.mrf.mxu0
    %v904 = vadd.f32 %v698, %v903
    %v905 = vpop.f32.mrf.mxu0
    %v906 = vpop.f32.mrf.mxu0
    %v907 = vadd.f32 %v698, %v906
    %v908 = vpop.f32.mrf.mxu0
    %909 = vmatprep.mubr.bf16.mxu0 0
    %910 = vmatmul.mubr.bf16.gmra.mxu0 %v747
    %v911 = vpop.f32.mrf.mxu0
    %v912 = vadd.f32 %v698, %v911
    %v913 = vpop.f32.mrf.mxu0
    %v914 = vpop.f32.mrf.mxu0
    %v915 = vadd.f32 %v698, %v914
    %v916 = vpop.f32.mrf.mxu0
    %917 = vmatprep.mubr.bf16.mxu0 0
    %918 = vmatmul.mubr.bf16.gmra.mxu0 %v750
    %v919 = vpop.f32.mrf.mxu0
    %v920 = vadd.f32 %v698, %v919
    %v921 = vpop.f32.mrf.mxu0
    %v922 = vpop.f32.mrf.mxu0
    %v923 = vadd.f32 %v698, %v922
    %v924 = vpop.f32.mrf.mxu0
    %925 = vmatprep.mubr.bf16.mxu0 0
    %926 = vmatmul.mubr.bf16.gmra.mxu0 %v753
    %v927 = vpop.f32.mrf.mxu0
    %v928 = vadd.f32 %v698, %v927
    %v929 = vpop.f32.mrf.mxu0
    %v930 = vpop.f32.mrf.mxu0
    %v931 = vadd.f32 %v698, %v930
    %v932 = vpop.f32.mrf.mxu0
    %933 = vmatprep.mubr.bf16.mxu0 0
    %934 = vmatmul.mubr.bf16.gmra.mxu0 %v756
    %v935 = vpop.f32.mrf.mxu0
    %v936 = vadd.f32 %v698, %v935
    %v937 = vpop.f32.mrf.mxu0
    %v938 = vpop.f32.mrf.mxu0
    %v939 = vadd.f32 %v698, %v938
    %v940 = vpop.f32.mrf.mxu0
    %941 = vmatprep.mubr.bf16.mxu0 0
    %942 = vmatmul.mubr.bf16.gmra.mxu0 %v759
    %v943 = vpop.f32.mrf.mxu0
    %v944 = vadd.f32 %v698, %v943
    %v945 = vpop.f32.mrf.mxu0
    %v946 = vpop.f32.mrf.mxu0
    %v947 = vadd.f32 %v698, %v946
    %v948 = vpop.f32.mrf.mxu0
    %949 = vmatprep.mubr.bf16.mxu0 0
    %950 = vmatmul.mubr.bf16.gmra.mxu0 %v762
    %v951 = vpop.f32.mrf.mxu0
    %v952 = vadd.f32 %v698, %v951
    %v953 = vpop.f32.mrf.mxu0
    %v954 = vpop.f32.mrf.mxu0
    %v955 = vadd.f32 %v698, %v954
    %v956 = vpop.f32.mrf.mxu0
    %957 = vmatprep.mubr.bf16.mxu0 0
    %958 = vmatmul.mubr.bf16.gmra.mxu0 %v765
    %v959 = vpop.f32.mrf.mxu0
    %v960 = vadd.f32 %v698, %v959
    %v961 = vpop.f32.mrf.mxu0
    %v962 = vpop.f32.mrf.mxu0
    %v963 = vadd.f32 %v698, %v962
    %v964 = vpop.f32.mrf.mxu0
    %965 = vmatprep.mubr.bf16.mxu0 0
    %966 = vmatmul.mubr.bf16.gmra.mxu0 %v768
    %v967 = vpop.f32.mrf.mxu0
    %v968 = vadd.f32 %v698, %v967
    %v969 = vpop.f32.mrf.mxu0
    %v970 = vpop.f32.mrf.mxu0
    %v971 = vadd.f32 %v698, %v970
    %v972 = vpop.f32.mrf.mxu0
    %973 = vmatprep.mubr.bf16.mxu0 0
    %974 = vmatmul.mubr.bf16.gmra.mxu0 %v771
    %v975 = vpop.f32.mrf.mxu0
    %v976 = vadd.f32 %v698, %v975
    %v977 = vpop.f32.mrf.mxu0
    %v978 = vpop.f32.mrf.mxu0
    %v979 = vadd.f32 %v698, %v978
    %v980 = vpop.f32.mrf.mxu0
    %981 = vmatprep.mubr.bf16.mxu0 0
    %982 = vmatmul.mubr.bf16.gmra.mxu0 %v774
    %v983 = vpop.f32.mrf.mxu0
    %v984 = vadd.f32 %v698, %v983
    %v985 = vpop.f32.mrf.mxu0
    %v986 = vpop.f32.mrf.mxu0
    %v987 = vadd.f32 %v698, %v986
    %v988 = vpop.f32.mrf.mxu0
    %989 = vmatprep.mubr.bf16.mxu0 0
    %990 = vmatmul.mubr.bf16.gmra.mxu0 %v777
    %v991 = vpop.f32.mrf.mxu0
    %v992 = vadd.f32 %v698, %v991
    %v993 = vpop.f32.mrf.mxu0
    %v994 = vpop.f32.mrf.mxu0
    %v995 = vadd.f32 %v698, %v994
    %v996 = vpop.f32.mrf.mxu0
    %997 = vmatprep.mubr.bf16.mxu0 0
    %998 = vmatmul.mubr.bf16.gmra.mxu0 %v780
    %v999 = vpop.f32.mrf.mxu0
    %v1000 = vadd.f32 %v698, %v999
    %v1001 = vpop.f32.mrf.mxu0
    %v1002 = vpop.f32.mrf.mxu0
    %v1003 = vadd.f32 %v698, %v1002
    %v1004 = vpop.f32.mrf.mxu0
    %1005 = vmatprep.mubr.bf16.mxu0 0
    %1006 = vmatmul.mubr.bf16.gmra.mxu0 %v783
    %v1007 = vpop.f32.mrf.mxu0
    %v1008 = vadd.f32 %v698, %v1007
    %v1009 = vpop.f32.mrf.mxu0
    %v1010 = vpop.f32.mrf.mxu0
    %v1011 = vadd.f32 %v698, %v1010
    %v1012 = vpop.f32.mrf.mxu0
    %1013 = vmatprep.mubr.bf16.mxu0 0
    %1014 = vmatmul.mubr.bf16.gmra.mxu0 %v786
    %v1015 = vpop.f32.mrf.mxu0
    %v1016 = vadd.f32 %v698, %v1015
    %v1017 = vpop.f32.mrf.mxu0
    %v1018 = vpop.f32.mrf.mxu0
    %v1019 = vadd.f32 %v698, %v1018
    %v1020 = vpop.f32.mrf.mxu0
    %1021 = vmatprep.mubr.bf16.mxu0 0
    %1022 = vmatmul.mubr.bf16.gmra.mxu0 %v789
    %v1023 = vpop.f32.mrf.mxu0
    %v1024 = vadd.f32 %v698, %v1023
    %v1025 = vpop.f32.mrf.mxu0
    %v1026 = vpop.f32.mrf.mxu0
    %v1027 = vadd.f32 %v698, %v1026
    %v1028 = vpop.f32.mrf.mxu0
    %1029 = vmatprep.mubr.bf16.mxu0 0
    %1030 = vmatmul.mubr.bf16.gmra.mxu0 %v792
    %v1031 = vpop.f32.mrf.mxu0
    %v1032 = vadd.f32 %v698, %v1031
    %v1033 = vpop.f32.mrf.mxu0
    %v1034 = vpop.f32.mrf.mxu0
    %v1035 = vadd.f32 %v698, %v1034
    %v1036 = vpop.f32.mrf.mxu0
    %1037 = vmatprep.mubr.bf16.mxu0 0
    %1038 = vmatmul.mubr.bf16.gmra.mxu0 %v795
    %v1039 = vpop.f32.mrf.mxu0
    %v1040 = vadd.f32 %v698, %v1039
    %v1041 = vpop.f32.mrf.mxu0
    %v1042 = vpop.f32.mrf.mxu0
    %v1043 = vadd.f32 %v698, %v1042
    %v1044 = vpop.f32.mrf.mxu0
    %1045 = vmatprep.mubr.bf16.mxu0 0
    %1046 = vmatmul.mubr.bf16.gmra.mxu0 %v798
    %v1047 = vpop.f32.mrf.mxu0
    %v1048 = vadd.f32 %v698, %v1047
    %v1049 = vpop.f32.mrf.mxu0
    %v1050 = vpop.f32.mrf.mxu0
    %v1051 = vadd.f32 %v698, %v1050
    %v1052 = vpop.f32.mrf.mxu0
    %1053 = vmatprep.mubr.bf16.mxu0 0
    %1054 = vmatmul.mubr.bf16.gmra.mxu0 %v801
    %v1055 = vpop.f32.mrf.mxu0
    %v1056 = vadd.f32 %v698, %v1055
    %v1057 = vpop.f32.mrf.mxu0
    %v1058 = vpop.f32.mrf.mxu0
    %v1059 = vadd.f32 %v698, %v1058
    %v1060 = vpop.f32.mrf.mxu0
    %1061 = vmatprep.mubr.bf16.mxu0 0
    %1062 = vmatmul.mubr.bf16.gmra.mxu0 %v804
    %v1063 = vpop.f32.mrf.mxu0
    %v1064 = vadd.f32 %v698, %v1063
    %v1065 = vpop.f32.mrf.mxu0
    %v1066 = vpop.f32.mrf.mxu0
    %v1067 = vadd.f32 %v698, %v1066
    %v1068 = vpop.f32.mrf.mxu0
    %1069 = vmatprep.mubr.bf16.mxu0 0
    %1070 = vmatmul.mubr.bf16.gmra.mxu0 %v807
    %v1071 = vpop.f32.mrf.mxu0
    %v1072 = vadd.f32 %v698, %v1071
    %v1073 = vpop.f32.mrf.mxu0
    %v1074 = vpop.f32.mrf.mxu0
    %v1075 = vadd.f32 %v698, %v1074
    %v1076 = vpop.f32.mrf.mxu0
    %1077 = vmatprep.mubr.bf16.mxu0 0
    %1078 = vmatmul.mubr.bf16.gmra.mxu0 %v810
    %v1079 = vpop.f32.mrf.mxu0
    %v1080 = vadd.f32 %v698, %v1079
    %v1081 = vpop.f32.mrf.mxu0
    %v1082 = vpop.f32.mrf.mxu0
    %v1083 = vadd.f32 %v698, %v1082
    %v1084 = vpop.f32.mrf.mxu0
    %1085 = vmatprep.mubr.bf16.mxu0 0
    %1086 = vmatmul.mubr.bf16.gmra.mxu0 %v813
    %v1087 = vpop.f32.mrf.mxu0
    %v1088 = vadd.f32 %v698, %v1087
    %v1089 = vpop.f32.mrf.mxu0
    %v1090 = vpop.f32.mrf.mxu0
    %v1091 = vadd.f32 %v698, %v1090
    %v1092 = vpop.f32.mrf.mxu0
    %1093 = vmatprep.mubr.bf16.mxu0 0
    %1094 = vmatmul.mubr.bf16.gmra.mxu0 %v816
    %v1095 = vpop.f32.mrf.mxu0
    %v1096 = vadd.f32 %v698, %v1095
    %v1097 = vpop.f32.mrf.mxu0
    %v1098 = vpop.f32.mrf.mxu0
    %v1099 = vadd.f32 %v698, %v1098
    %v1100 = vpop.f32.mrf.mxu0
    %1101 = vmatprep.mubr.bf16.mxu0 0
    %1102 = vmatmul.mubr.bf16.gmra.mxu0 %v819
    %v1103 = vpop.f32.mrf.mxu0
    %v1104 = vadd.f32 %v698, %v1103
    %v1105 = vpop.f32.mrf.mxu0
    %v1106 = vpop.f32.mrf.mxu0
    %v1107 = vadd.f32 %v698, %v1106
    %v1108 = vpop.f32.mrf.mxu0
    %1109 = vdwg.mxu0
    %v1110 = vmul.f32 %v856, 0.01
    %v1111 = vmul.f32 %v859, 0.01
    %v1112 = vmul.f32 %v864, 0.01
    %v1113 = vmul.f32 %v867, 0.01
    %v1114 = vmul.f32 %v872, 0.01
    %v1115 = vmul.f32 %v875, 0.01
    %v1116 = vmul.f32 %v880, 0.01
    %v1117 = vmul.f32 %v883, 0.01
    %v1118 = vmul.f32 %v888, 0.01
    %v1119 = vmul.f32 %v891, 0.01
    %v1120 = vmul.f32 %v896, 0.01
    %v1121 = vmul.f32 %v899, 0.01
    %v1122 = vmul.f32 %v904, 0.01
    %v1123 = vmul.f32 %v907, 0.01
    %v1124 = vmul.f32 %v912, 0.01
    %v1125 = vmul.f32 %v915, 0.01
    %v1126 = vmul.f32 %v920, 0.01
    %v1127 = vmul.f32 %v923, 0.01
    %v1128 = vmul.f32 %v928, 0.01
    %v1129 = vmul.f32 %v931, 0.01
    %v1130 = vmul.f32 %v936, 0.01
    %v1131 = vmul.f32 %v939, 0.01
    %v1132 = vmul.f32 %v944, 0.01
    %v1133 = vmul.f32 %v947, 0.01
    %v1134 = vmul.f32 %v952, 0.01
    %v1135 = vmul.f32 %v955, 0.01
    %v1136 = vmul.f32 %v960, 0.01
    %v1137 = vmul.f32 %v963, 0.01
    %v1138 = vmul.f32 %v968, 0.01
    %v1139 = vmul.f32 %v971, 0.01
    %v1140 = vmul.f32 %v976, 0.01
    %v1141 = vmul.f32 %v979, 0.01
    %v1142 = vmul.f32 %v984, 0.01
    %v1143 = vmul.f32 %v987, 0.01
    %v1144 = vmul.f32 %v992, 0.01
    %v1145 = vmul.f32 %v995, 0.01
    %v1146 = vmul.f32 %v1000, 0.01
    %v1147 = vmul.f32 %v1003, 0.01
    %v1148 = vmul.f32 %v1008, 0.01
    %v1149 = vmul.f32 %v1011, 0.01
    %v1150 = vmul.f32 %v1016, 0.01
    %v1151 = vmul.f32 %v1019, 0.01
    %v1152 = vmul.f32 %v1024, 0.01
    %v1153 = vmul.f32 %v1027, 0.01
    %v1154 = vmul.f32 %v1032, 0.01
    %v1155 = vmul.f32 %v1035, 0.01
    %v1156 = vmul.f32 %v1040, 0.01
    %v1157 = vmul.f32 %v1043, 0.01
    %v1158 = vmul.f32 %v1048, 0.01
    %v1159 = vmul.f32 %v1051, 0.01
    %v1160 = vmul.f32 %v1056, 0.01
    %v1161 = vmul.f32 %v1059, 0.01
    %v1162 = vmul.f32 %v1064, 0.01
    %v1163 = vmul.f32 %v1067, 0.01
    %v1164 = vmul.f32 %v1072, 0.01
    %v1165 = vmul.f32 %v1075, 0.01
    %v1166 = vmul.f32 %v1080, 0.01
    %v1167 = vmul.f32 %v1083, 0.01
    %v1168 = vmul.f32 %v1088, 0.01
    %v1169 = vmul.f32 %v1091, 0.01
    %v1170 = vmul.f32 %v1096, 0.01
    %v1171 = vmul.f32 %v1099, 0.01
    %v1172 = vmul.f32 %v1104, 0.01
    %v1173 = vmul.f32 %v1107, 0.01
    %v1174 = vmax.f32 %v856, %v1110
    %v1175 = vmax.f32 %v859, %v1111
    %v1176 = vmax.f32 %v864, %v1112
    %v1177 = vmax.f32 %v867, %v1113
    %v1178 = vmax.f32 %v872, %v1114
    %v1179 = vmax.f32 %v875, %v1115
    %v1180 = vmax.f32 %v880, %v1116
    %v1181 = vmax.f32 %v883, %v1117
    %v1182 = vmax.f32 %v888, %v1118
    %v1183 = vmax.f32 %v891, %v1119
    %v1184 = vmax.f32 %v896, %v1120
    %v1185 = vmax.f32 %v899, %v1121
    %v1186 = vmax.f32 %v904, %v1122
    %v1187 = vmax.f32 %v907, %v1123
    %v1188 = vmax.f32 %v912, %v1124
    %v1189 = vmax.f32 %v915, %v1125
    %v1190 = vmax.f32 %v920, %v1126
    %v1191 = vmax.f32 %v923, %v1127
    %v1192 = vmax.f32 %v928, %v1128
    %v1193 = vmax.f32 %v931, %v1129
    %v1194 = vmax.f32 %v936, %v1130
    %v1195 = vmax.f32 %v939, %v1131
    %v1196 = vmax.f32 %v944, %v1132
    %v1197 = vmax.f32 %v947, %v1133
    %v1198 = vmax.f32 %v952, %v1134
    %v1199 = vmax.f32 %v955, %v1135
    %v1200 = vmax.f32 %v960, %v1136
    %v1201 = vmax.f32 %v963, %v1137
    %v1202 = vmax.f32 %v968, %v1138
    %v1203 = vmax.f32 %v971, %v1139
    %v1204 = vmax.f32 %v976, %v1140
    %v1205 = vmax.f32 %v979, %v1141
    %v1206 = vmax.f32 %v984, %v1142
    %v1207 = vmax.f32 %v987, %v1143
    %v1208 = vmax.f32 %v992, %v1144
    %v1209 = vmax.f32 %v995, %v1145
    %v1210 = vmax.f32 %v1000, %v1146
    %v1211 = vmax.f32 %v1003, %v1147
    %v1212 = vmax.f32 %v1008, %v1148
    %v1213 = vmax.f32 %v1011, %v1149
    %v1214 = vmax.f32 %v1016, %v1150
    %v1215 = vmax.f32 %v1019, %v1151
    %v1216 = vmax.f32 %v1024, %v1152
    %v1217 = vmax.f32 %v1027, %v1153
    %v1218 = vmax.f32 %v1032, %v1154
    %v1219 = vmax.f32 %v1035, %v1155
    %v1220 = vmax.f32 %v1040, %v1156
    %v1221 = vmax.f32 %v1043, %v1157
    %v1222 = vmax.f32 %v1048, %v1158
    %v1223 = vmax.f32 %v1051, %v1159
    %v1224 = vmax.f32 %v1056, %v1160
    %v1225 = vmax.f32 %v1059, %v1161
    %v1226 = vmax.f32 %v1064, %v1162
    %v1227 = vmax.f32 %v1067, %v1163
    %v1228 = vmax.f32 %v1072, %v1164
    %v1229 = vmax.f32 %v1075, %v1165
    %v1230 = vmax.f32 %v1080, %v1166
    %v1231 = vmax.f32 %v1083, %v1167
    %v1232 = vmax.f32 %v1088, %v1168
    %v1233 = vmax.f32 %v1091, %v1169
    %v1234 = vmax.f32 %v1096, %v1170
    %v1235 = vmax.f32 %v1099, %v1171
    %v1236 = vmax.f32 %v1104, %v1172
    %v1237 = vmax.f32 %v1107, %v1173
    %v1238 = vpack.c.bf16 %v1175, %v1174
    %v1239 = vpack.c.bf16 %v1177, %v1176
    %v1240 = vpack.c.bf16 %v1179, %v1178
    %v1241 = vpack.c.bf16 %v1181, %v1180
    %v1242 = vpack.c.bf16 %v1183, %v1182
    %v1243 = vpack.c.bf16 %v1185, %v1184
    %v1244 = vpack.c.bf16 %v1187, %v1186
    %v1245 = vpack.c.bf16 %v1189, %v1188
    %v1246 = vpack.c.bf16 %v1191, %v1190
    %v1247 = vpack.c.bf16 %v1193, %v1192
    %v1248 = vpack.c.bf16 %v1195, %v1194
    %v1249 = vpack.c.bf16 %v1197, %v1196
    %v1250 = vpack.c.bf16 %v1199, %v1198
    %v1251 = vpack.c.bf16 %v1201, %v1200
    %v1252 = vpack.c.bf16 %v1203, %v1202
    %v1253 = vpack.c.bf16 %v1205, %v1204
    %v1254 = vpack.c.bf16 %v1207, %v1206
    %v1255 = vpack.c.bf16 %v1209, %v1208
    %v1256 = vpack.c.bf16 %v1211, %v1210
    %v1257 = vpack.c.bf16 %v1213, %v1212
    %v1258 = vpack.c.bf16 %v1215, %v1214
    %v1259 = vpack.c.bf16 %v1217, %v1216
    %v1260 = vpack.c.bf16 %v1219, %v1218
    %v1261 = vpack.c.bf16 %v1221, %v1220
    %v1262 = vpack.c.bf16 %v1223, %v1222
    %v1263 = vpack.c.bf16 %v1225, %v1224
    %v1264 = vpack.c.bf16 %v1227, %v1226
    %v1265 = vpack.c.bf16 %v1229, %v1228
    %v1266 = vpack.c.bf16 %v1231, %v1230
    %v1267 = vpack.c.bf16 %v1233, %v1232
    %v1268 = vpack.c.bf16 %v1235, %v1234
    %v1269 = vpack.c.bf16 %v1237, %v1236
    %s1270 = scalar_lea.vmem %s3, 32
    %v1271 = vld [vmem:[%s1270] sm:$0xf]
    %v1272 = vld [vmem:[%s1270 + $0x4] sm:$0xf]
    %v1273 = vld [vmem:[%s1270 + $0x8] sm:$0xf]
    %v1274 = vld [vmem:[%s1270 + $0xc] sm:$0xf]
    %v1275 = vld [vmem:[%s1270 + $0x10] sm:$0xf]
    %v1276 = vld [vmem:[%s1270 + $0x14] sm:$0xf]
    %v1277 = vld [vmem:[%s1270 + $0x18] sm:$0xf]
    %v1278 = vld [vmem:[%s1270 + $0x1c] sm:$0xf]
    %s1279 = scalar_lea.vmem %s4, 1
    %v1280 = vld [vmem:[%s1279] sm:$0x1]
    %v1282 = vlaneseq
    %v1283 = vshrl.u32 %v1282, 7
    %v1284 = vsub.s32 0, %v1283
    %v1285 = vrot.slane %v1280, %v1284
    %v1295 = vunpack.c.l.b16 %v1271
    %v1296 = vunpack.c.l.b16 %v1272
    %v1297 = vunpack.c.l.b16 %v1273
    %v1298 = vunpack.c.l.b16 %v1274
    %v1299 = vunpack.c.l.b16 %v1275
    %v1300 = vunpack.c.l.b16 %v1276
    %v1301 = vunpack.c.l.b16 %v1277
    %v1302 = vunpack.c.l.b16 %v1278
    %v1303 = vpack.c.b16 %v1296, %v1295
    %v1304 = vpack.c.b16 %v1298, %v1297
    %v1305 = vpack.c.b16 %v1300, %v1299
    %v1306 = vpack.c.b16 %v1302, %v1301
    %v1312 = vsel %vm724, %v1238, 0
    %v1315 = vsel %vm724, %v1239, 0
    %v1318 = vsel %vm724, %v1240, 0
    %v1321 = vsel %vm724, %v1241, 0
    %v1324 = vsel %vm724, %v1242, 0
    %v1327 = vsel %vm724, %v1243, 0
    %v1330 = vsel %vm724, %v1244, 0
    %v1333 = vsel %vm724, %v1245, 0
    %v1336 = vsel %vm724, %v1246, 0
    %v1339 = vsel %vm724, %v1247, 0
    %v1342 = vsel %vm724, %v1248, 0
    %v1345 = vsel %vm724, %v1249, 0
    %v1348 = vsel %vm724, %v1250, 0
    %v1351 = vsel %vm724, %v1251, 0
    %v1354 = vsel %vm724, %v1252, 0
    %v1357 = vsel %vm724, %v1253, 0
    %v1360 = vsel %vm724, %v1254, 0
    %v1363 = vsel %vm724, %v1255, 0
    %v1366 = vsel %vm724, %v1256, 0
    %v1369 = vsel %vm724, %v1257, 0
    %v1372 = vsel %vm724, %v1258, 0
    %v1375 = vsel %vm724, %v1259, 0
    %v1378 = vsel %vm724, %v1260, 0
    %v1381 = vsel %vm724, %v1261, 0
    %v1384 = vsel %vm724, %v1262, 0
    %v1387 = vsel %vm724, %v1263, 0
    %v1390 = vsel %vm724, %v1264, 0
    %v1393 = vsel %vm724, %v1265, 0
    %v1396 = vsel %vm724, %v1266, 0
    %v1399 = vsel %vm724, %v1267, 0
    %v1402 = vsel %vm724, %v1268, 0
    %v1405 = vsel %vm724, %v1269, 0
    %1407 = vmatprep.subr.bf16.mxu0 0
    %1408 = vmatpush1.bf16.msra.mxu0 0
    %1409 = vmatprep.subr.bf16.mxu0 0
    %1410 = vmatpush1.bf16.msra.mxu0 0
    %1411 = vmatprep.subr.bf16.mxu0 0
    %1412 = vmatpush1.bf16.msra.mxu0 0
    %1413 = vmatprep.subr.bf16.mxu0 0
    %1414 = vmatpush1.bf16.msra.mxu0 0
    %1415 = vmatprep.subr.bf16.mxu0 0
    %1416 = vmatpush1.bf16.msra.mxu0 %v1306
    %1417 = vmatprep.subr.bf16.mxu0 0
    %1418 = vmatpush1.bf16.msra.mxu0 %v1305
    %1419 = vmatprep.subr.bf16.mxu0 0
    %1420 = vmatpush1.bf16.msra.mxu0 %v1304
    %1421 = vmatprep.subr.bf16.mxu0 0
    %1422 = vmatpush1.bf16.msra.mxu0 %v1303
    %1423 = vmatprep.subr.bf16.mxu0 0
    %1424 = vmatpush2.bf16.msra.mxu0 0
    %1425 = vmatprep.subr.bf16.mxu0 0
    %1426 = vmatpush2.bf16.msra.mxu0 0
    %1427 = vmatprep.subr.bf16.mxu0 0
    %1428 = vmatpush2.bf16.msra.mxu0 0
    %1429 = vmatprep.subr.bf16.mxu0 0
    %1430 = vmatpush2.bf16.msra.mxu0 0
    %1431 = vmatprep.subr.bf16.mxu0 0
    %1432 = vmatpush2.bf16.msra.mxu0 0
    %1433 = vmatprep.subr.bf16.mxu0 0
    %1434 = vmatpush2.bf16.msra.mxu0 0
    %1435 = vmatprep.subr.bf16.mxu0 0
    %1436 = vmatpush2.bf16.msra.mxu0 0
    %1437 = vmatprep.subr.bf16.mxu0 0
    %1438 = vmatpush2.bf16.msra.mxu0 0
    %1439 = vmatprep.mubr.bf16.mxu0 0
    %1440 = vmatmul.mubr.bf16.gmra.mxu0 %v1312
    %v1441 = vpop.f32.mrf.mxu0
    %v1442 = vadd.f32 %v1285, %v1441
    %v1443 = vpop.f32.mrf.mxu0
    %v1444 = vpop.f32.mrf.mxu0
    %v1445 = vadd.f32 %v1285, %v1444
    %v1446 = vpop.f32.mrf.mxu0
    %1447 = vmatprep.mubr.bf16.mxu0 0
    %1448 = vmatmul.mubr.bf16.gmra.mxu0 %v1315
    %v1449 = vpop.f32.mrf.mxu0
    %v1450 = vadd.f32 %v1285, %v1449
    %v1451 = vpop.f32.mrf.mxu0
    %v1452 = vpop.f32.mrf.mxu0
    %v1453 = vadd.f32 %v1285, %v1452
    %v1454 = vpop.f32.mrf.mxu0
    %1455 = vmatprep.mubr.bf16.mxu0 0
    %1456 = vmatmul.mubr.bf16.gmra.mxu0 %v1318
    %v1457 = vpop.f32.mrf.mxu0
    %v1458 = vadd.f32 %v1285, %v1457
    %v1459 = vpop.f32.mrf.mxu0
    %v1460 = vpop.f32.mrf.mxu0
    %v1461 = vadd.f32 %v1285, %v1460
    %v1462 = vpop.f32.mrf.mxu0
    %1463 = vmatprep.mubr.bf16.mxu0 0
    %1464 = vmatmul.mubr.bf16.gmra.mxu0 %v1321
    %v1465 = vpop.f32.mrf.mxu0
    %v1466 = vadd.f32 %v1285, %v1465
    %v1467 = vpop.f32.mrf.mxu0
    %v1468 = vpop.f32.mrf.mxu0
    %v1469 = vadd.f32 %v1285, %v1468
    %v1470 = vpop.f32.mrf.mxu0
    %1471 = vmatprep.mubr.bf16.mxu0 0
    %1472 = vmatmul.mubr.bf16.gmra.mxu0 %v1324
    %v1473 = vpop.f32.mrf.mxu0
    %v1474 = vadd.f32 %v1285, %v1473
    %v1475 = vpop.f32.mrf.mxu0
    %v1476 = vpop.f32.mrf.mxu0
    %v1477 = vadd.f32 %v1285, %v1476
    %v1478 = vpop.f32.mrf.mxu0
    %1479 = vmatprep.mubr.bf16.mxu0 0
    %1480 = vmatmul.mubr.bf16.gmra.mxu0 %v1327
    %v1481 = vpop.f32.mrf.mxu0
    %v1482 = vadd.f32 %v1285, %v1481
    %v1483 = vpop.f32.mrf.mxu0
    %v1484 = vpop.f32.mrf.mxu0
    %v1485 = vadd.f32 %v1285, %v1484
    %v1486 = vpop.f32.mrf.mxu0
    %1487 = vmatprep.mubr.bf16.mxu0 0
    %1488 = vmatmul.mubr.bf16.gmra.mxu0 %v1330
    %v1489 = vpop.f32.mrf.mxu0
    %v1490 = vadd.f32 %v1285, %v1489
    %v1491 = vpop.f32.mrf.mxu0
    %v1492 = vpop.f32.mrf.mxu0
    %v1493 = vadd.f32 %v1285, %v1492
    %v1494 = vpop.f32.mrf.mxu0
    %1495 = vmatprep.mubr.bf16.mxu0 0
    %1496 = vmatmul.mubr.bf16.gmra.mxu0 %v1333
    %v1497 = vpop.f32.mrf.mxu0
    %v1498 = vadd.f32 %v1285, %v1497
    %v1499 = vpop.f32.mrf.mxu0
    %v1500 = vpop.f32.mrf.mxu0
    %v1501 = vadd.f32 %v1285, %v1500
    %v1502 = vpop.f32.mrf.mxu0
    %1503 = vmatprep.mubr.bf16.mxu0 0
    %1504 = vmatmul.mubr.bf16.gmra.mxu0 %v1336
    %v1505 = vpop.f32.mrf.mxu0
    %v1506 = vadd.f32 %v1285, %v1505
    %v1507 = vpop.f32.mrf.mxu0
    %v1508 = vpop.f32.mrf.mxu0
    %v1509 = vadd.f32 %v1285, %v1508
    %v1510 = vpop.f32.mrf.mxu0
    %1511 = vmatprep.mubr.bf16.mxu0 0
    %1512 = vmatmul.mubr.bf16.gmra.mxu0 %v1339
    %v1513 = vpop.f32.mrf.mxu0
    %v1514 = vadd.f32 %v1285, %v1513
    %v1515 = vpop.f32.mrf.mxu0
    %v1516 = vpop.f32.mrf.mxu0
    %v1517 = vadd.f32 %v1285, %v1516
    %v1518 = vpop.f32.mrf.mxu0
    %1519 = vmatprep.mubr.bf16.mxu0 0
    %1520 = vmatmul.mubr.bf16.gmra.mxu0 %v1342
    %v1521 = vpop.f32.mrf.mxu0
    %v1522 = vadd.f32 %v1285, %v1521
    %v1523 = vpop.f32.mrf.mxu0
    %v1524 = vpop.f32.mrf.mxu0
    %v1525 = vadd.f32 %v1285, %v1524
    %v1526 = vpop.f32.mrf.mxu0
    %1527 = vmatprep.mubr.bf16.mxu0 0
    %1528 = vmatmul.mubr.bf16.gmra.mxu0 %v1345
    %v1529 = vpop.f32.mrf.mxu0
    %v1530 = vadd.f32 %v1285, %v1529
    %v1531 = vpop.f32.mrf.mxu0
    %v1532 = vpop.f32.mrf.mxu0
    %v1533 = vadd.f32 %v1285, %v1532
    %v1534 = vpop.f32.mrf.mxu0
    %1535 = vmatprep.mubr.bf16.mxu0 0
    %1536 = vmatmul.mubr.bf16.gmra.mxu0 %v1348
    %v1537 = vpop.f32.mrf.mxu0
    %v1538 = vadd.f32 %v1285, %v1537
    %v1539 = vpop.f32.mrf.mxu0
    %v1540 = vpop.f32.mrf.mxu0
    %v1541 = vadd.f32 %v1285, %v1540
    %v1542 = vpop.f32.mrf.mxu0
    %1543 = vmatprep.mubr.bf16.mxu0 0
    %1544 = vmatmul.mubr.bf16.gmra.mxu0 %v1351
    %v1545 = vpop.f32.mrf.mxu0
    %v1546 = vadd.f32 %v1285, %v1545
    %v1547 = vpop.f32.mrf.mxu0
    %v1548 = vpop.f32.mrf.mxu0
    %v1549 = vadd.f32 %v1285, %v1548
    %v1550 = vpop.f32.mrf.mxu0
    %1551 = vmatprep.mubr.bf16.mxu0 0
    %1552 = vmatmul.mubr.bf16.gmra.mxu0 %v1354
    %v1553 = vpop.f32.mrf.mxu0
    %v1554 = vadd.f32 %v1285, %v1553
    %v1555 = vpop.f32.mrf.mxu0
    %v1556 = vpop.f32.mrf.mxu0
    %v1557 = vadd.f32 %v1285, %v1556
    %v1558 = vpop.f32.mrf.mxu0
    %1559 = vmatprep.mubr.bf16.mxu0 0
    %1560 = vmatmul.mubr.bf16.gmra.mxu0 %v1357
    %v1561 = vpop.f32.mrf.mxu0
    %v1562 = vadd.f32 %v1285, %v1561
    %v1563 = vpop.f32.mrf.mxu0
    %v1564 = vpop.f32.mrf.mxu0
    %v1565 = vadd.f32 %v1285, %v1564
    %v1566 = vpop.f32.mrf.mxu0
    %1567 = vmatprep.mubr.bf16.mxu0 0
    %1568 = vmatmul.mubr.bf16.gmra.mxu0 %v1360
    %v1569 = vpop.f32.mrf.mxu0
    %v1570 = vadd.f32 %v1285, %v1569
    %v1571 = vpop.f32.mrf.mxu0
    %v1572 = vpop.f32.mrf.mxu0
    %v1573 = vadd.f32 %v1285, %v1572
    %v1574 = vpop.f32.mrf.mxu0
    %1575 = vmatprep.mubr.bf16.mxu0 0
    %1576 = vmatmul.mubr.bf16.gmra.mxu0 %v1363
    %v1577 = vpop.f32.mrf.mxu0
    %v1578 = vadd.f32 %v1285, %v1577
    %v1579 = vpop.f32.mrf.mxu0
    %v1580 = vpop.f32.mrf.mxu0
    %v1581 = vadd.f32 %v1285, %v1580
    %v1582 = vpop.f32.mrf.mxu0
    %1583 = vmatprep.mubr.bf16.mxu0 0
    %1584 = vmatmul.mubr.bf16.gmra.mxu0 %v1366
    %v1585 = vpop.f32.mrf.mxu0
    %v1586 = vadd.f32 %v1285, %v1585
    %v1587 = vpop.f32.mrf.mxu0
    %v1588 = vpop.f32.mrf.mxu0
    %v1589 = vadd.f32 %v1285, %v1588
    %v1590 = vpop.f32.mrf.mxu0
    %1591 = vmatprep.mubr.bf16.mxu0 0
    %1592 = vmatmul.mubr.bf16.gmra.mxu0 %v1369
    %v1593 = vpop.f32.mrf.mxu0
    %v1594 = vadd.f32 %v1285, %v1593
    %v1595 = vpop.f32.mrf.mxu0
    %v1596 = vpop.f32.mrf.mxu0
    %v1597 = vadd.f32 %v1285, %v1596
    %v1598 = vpop.f32.mrf.mxu0
    %1599 = vmatprep.mubr.bf16.mxu0 0
    %1600 = vmatmul.mubr.bf16.gmra.mxu0 %v1372
    %v1601 = vpop.f32.mrf.mxu0
    %v1602 = vadd.f32 %v1285, %v1601
    %v1603 = vpop.f32.mrf.mxu0
    %v1604 = vpop.f32.mrf.mxu0
    %v1605 = vadd.f32 %v1285, %v1604
    %v1606 = vpop.f32.mrf.mxu0
    %1607 = vmatprep.mubr.bf16.mxu0 0
    %1608 = vmatmul.mubr.bf16.gmra.mxu0 %v1375
    %v1609 = vpop.f32.mrf.mxu0
    %v1610 = vadd.f32 %v1285, %v1609
    %v1611 = vpop.f32.mrf.mxu0
    %v1612 = vpop.f32.mrf.mxu0
    %v1613 = vadd.f32 %v1285, %v1612
    %v1614 = vpop.f32.mrf.mxu0
    %1615 = vmatprep.mubr.bf16.mxu0 0
    %1616 = vmatmul.mubr.bf16.gmra.mxu0 %v1378
    %v1617 = vpop.f32.mrf.mxu0
    %v1618 = vadd.f32 %v1285, %v1617
    %v1619 = vpop.f32.mrf.mxu0
    %v1620 = vpop.f32.mrf.mxu0
    %v1621 = vadd.f32 %v1285, %v1620
    %v1622 = vpop.f32.mrf.mxu0
    %1623 = vmatprep.mubr.bf16.mxu0 0
    %1624 = vmatmul.mubr.bf16.gmra.mxu0 %v1381
    %v1625 = vpop.f32.mrf.mxu0
    %v1626 = vadd.f32 %v1285, %v1625
    %v1627 = vpop.f32.mrf.mxu0
    %v1628 = vpop.f32.mrf.mxu0
    %v1629 = vadd.f32 %v1285, %v1628
    %v1630 = vpop.f32.mrf.mxu0
    %1631 = vmatprep.mubr.bf16.mxu0 0
    %1632 = vmatmul.mubr.bf16.gmra.mxu0 %v1384
    %v1633 = vpop.f32.mrf.mxu0
    %v1634 = vadd.f32 %v1285, %v1633
    %v1635 = vpop.f32.mrf.mxu0
    %v1636 = vpop.f32.mrf.mxu0
    %v1637 = vadd.f32 %v1285, %v1636
    %v1638 = vpop.f32.mrf.mxu0
    %1639 = vmatprep.mubr.bf16.mxu0 0
    %1640 = vmatmul.mubr.bf16.gmra.mxu0 %v1387
    %v1641 = vpop.f32.mrf.mxu0
    %v1642 = vadd.f32 %v1285, %v1641
    %v1643 = vpop.f32.mrf.mxu0
    %v1644 = vpop.f32.mrf.mxu0
    %v1645 = vadd.f32 %v1285, %v1644
    %v1646 = vpop.f32.mrf.mxu0
    %1647 = vmatprep.mubr.bf16.mxu0 0
    %1648 = vmatmul.mubr.bf16.gmra.mxu0 %v1390
    %v1649 = vpop.f32.mrf.mxu0
    %v1650 = vadd.f32 %v1285, %v1649
    %v1651 = vpop.f32.mrf.mxu0
    %v1652 = vpop.f32.mrf.mxu0
    %v1653 = vadd.f32 %v1285, %v1652
    %v1654 = vpop.f32.mrf.mxu0
    %1655 = vmatprep.mubr.bf16.mxu0 0
    %1656 = vmatmul.mubr.bf16.gmra.mxu0 %v1393
    %v1657 = vpop.f32.mrf.mxu0
    %v1658 = vadd.f32 %v1285, %v1657
    %v1659 = vpop.f32.mrf.mxu0
    %v1660 = vpop.f32.mrf.mxu0
    %v1661 = vadd.f32 %v1285, %v1660
    %v1662 = vpop.f32.mrf.mxu0
    %1663 = vmatprep.mubr.bf16.mxu0 0
    %1664 = vmatmul.mubr.bf16.gmra.mxu0 %v1396
    %v1665 = vpop.f32.mrf.mxu0
    %v1666 = vadd.f32 %v1285, %v1665
    %v1667 = vpop.f32.mrf.mxu0
    %v1668 = vpop.f32.mrf.mxu0
    %v1669 = vadd.f32 %v1285, %v1668
    %v1670 = vpop.f32.mrf.mxu0
    %1671 = vmatprep.mubr.bf16.mxu0 0
    %1672 = vmatmul.mubr.bf16.gmra.mxu0 %v1399
    %v1673 = vpop.f32.mrf.mxu0
    %v1674 = vadd.f32 %v1285, %v1673
    %v1675 = vpop.f32.mrf.mxu0
    %v1676 = vpop.f32.mrf.mxu0
    %v1677 = vadd.f32 %v1285, %v1676
    %v1678 = vpop.f32.mrf.mxu0
    %1679 = vmatprep.mubr.bf16.mxu0 0
    %1680 = vmatmul.mubr.bf16.gmra.mxu0 %v1402
    %v1681 = vpop.f32.mrf.mxu0
    %v1682 = vadd.f32 %v1285, %v1681
    %v1683 = vpop.f32.mrf.mxu0
    %v1684 = vpop.f32.mrf.mxu0
    %v1685 = vadd.f32 %v1285, %v1684
    %v1686 = vpop.f32.mrf.mxu0
    %1687 = vmatprep.mubr.bf16.mxu0 0
    %1688 = vmatmul.mubr.bf16.gmra.mxu0 %v1405
    %v1689 = vpop.f32.mrf.mxu0
    %v1690 = vadd.f32 %v1285, %v1689
    %v1691 = vpop.f32.mrf.mxu0
    %v1692 = vpop.f32.mrf.mxu0
    %v1693 = vadd.f32 %v1285, %v1692
    %v1694 = vpop.f32.mrf.mxu0
    %1695 = vdwg.mxu0
    %v1696 = vmul.f32 %v1442, 0.01
    %v1697 = vmul.f32 %v1445, 0.01
    %v1698 = vmul.f32 %v1450, 0.01
    %v1699 = vmul.f32 %v1453, 0.01
    %v1700 = vmul.f32 %v1458, 0.01
    %v1701 = vmul.f32 %v1461, 0.01
    %v1702 = vmul.f32 %v1466, 0.01
    %v1703 = vmul.f32 %v1469, 0.01
    %v1704 = vmul.f32 %v1474, 0.01
    %v1705 = vmul.f32 %v1477, 0.01
    %v1706 = vmul.f32 %v1482, 0.01
    %v1707 = vmul.f32 %v1485, 0.01
    %v1708 = vmul.f32 %v1490, 0.01
    %v1709 = vmul.f32 %v1493, 0.01
    %v1710 = vmul.f32 %v1498, 0.01
    %v1711 = vmul.f32 %v1501, 0.01
    %v1712 = vmul.f32 %v1506, 0.01
    %v1713 = vmul.f32 %v1509, 0.01
    %v1714 = vmul.f32 %v1514, 0.01
    %v1715 = vmul.f32 %v1517, 0.01
    %v1716 = vmul.f32 %v1522, 0.01
    %v1717 = vmul.f32 %v1525, 0.01
    %v1718 = vmul.f32 %v1530, 0.01
    %v1719 = vmul.f32 %v1533, 0.01
    %v1720 = vmul.f32 %v1538, 0.01
    %v1721 = vmul.f32 %v1541, 0.01
    %v1722 = vmul.f32 %v1546, 0.01
    %v1723 = vmul.f32 %v1549, 0.01
    %v1724 = vmul.f32 %v1554, 0.01
    %v1725 = vmul.f32 %v1557, 0.01
    %v1726 = vmul.f32 %v1562, 0.01
    %v1727 = vmul.f32 %v1565, 0.01
    %v1728 = vmul.f32 %v1570, 0.01
    %v1729 = vmul.f32 %v1573, 0.01
    %v1730 = vmul.f32 %v1578, 0.01
    %v1731 = vmul.f32 %v1581, 0.01
    %v1732 = vmul.f32 %v1586, 0.01
    %v1733 = vmul.f32 %v1589, 0.01
    %v1734 = vmul.f32 %v1594, 0.01
    %v1735 = vmul.f32 %v1597, 0.01
    %v1736 = vmul.f32 %v1602, 0.01
    %v1737 = vmul.f32 %v1605, 0.01
    %v1738 = vmul.f32 %v1610, 0.01
    %v1739 = vmul.f32 %v1613, 0.01
    %v1740 = vmul.f32 %v1618, 0.01
    %v1741 = vmul.f32 %v1621, 0.01
    %v1742 = vmul.f32 %v1626, 0.01
    %v1743 = vmul.f32 %v1629, 0.01
    %v1744 = vmul.f32 %v1634, 0.01
    %v1745 = vmul.f32 %v1637, 0.01
    %v1746 = vmul.f32 %v1642, 0.01
    %v1747 = vmul.f32 %v1645, 0.01
    %v1748 = vmul.f32 %v1650, 0.01
    %v1749 = vmul.f32 %v1653, 0.01
    %v1750 = vmul.f32 %v1658, 0.01
    %v1751 = vmul.f32 %v1661, 0.01
    %v1752 = vmul.f32 %v1666, 0.01
    %v1753 = vmul.f32 %v1669, 0.01
    %v1754 = vmul.f32 %v1674, 0.01
    %v1755 = vmul.f32 %v1677, 0.01
    %v1756 = vmul.f32 %v1682, 0.01
    %v1757 = vmul.f32 %v1685, 0.01
    %v1758 = vmul.f32 %v1690, 0.01
    %v1759 = vmul.f32 %v1693, 0.01
    %v1760 = vmax.f32 %v1442, %v1696
    %v1761 = vmax.f32 %v1445, %v1697
    %v1762 = vmax.f32 %v1450, %v1698
    %v1763 = vmax.f32 %v1453, %v1699
    %v1764 = vmax.f32 %v1458, %v1700
    %v1765 = vmax.f32 %v1461, %v1701
    %v1766 = vmax.f32 %v1466, %v1702
    %v1767 = vmax.f32 %v1469, %v1703
    %v1768 = vmax.f32 %v1474, %v1704
    %v1769 = vmax.f32 %v1477, %v1705
    %v1770 = vmax.f32 %v1482, %v1706
    %v1771 = vmax.f32 %v1485, %v1707
    %v1772 = vmax.f32 %v1490, %v1708
    %v1773 = vmax.f32 %v1493, %v1709
    %v1774 = vmax.f32 %v1498, %v1710
    %v1775 = vmax.f32 %v1501, %v1711
    %v1776 = vmax.f32 %v1506, %v1712
    %v1777 = vmax.f32 %v1509, %v1713
    %v1778 = vmax.f32 %v1514, %v1714
    %v1779 = vmax.f32 %v1517, %v1715
    %v1780 = vmax.f32 %v1522, %v1716
    %v1781 = vmax.f32 %v1525, %v1717
    %v1782 = vmax.f32 %v1530, %v1718
    %v1783 = vmax.f32 %v1533, %v1719
    %v1784 = vmax.f32 %v1538, %v1720
    %v1785 = vmax.f32 %v1541, %v1721
    %v1786 = vmax.f32 %v1546, %v1722
    %v1787 = vmax.f32 %v1549, %v1723
    %v1788 = vmax.f32 %v1554, %v1724
    %v1789 = vmax.f32 %v1557, %v1725
    %v1790 = vmax.f32 %v1562, %v1726
    %v1791 = vmax.f32 %v1565, %v1727
    %v1792 = vmax.f32 %v1570, %v1728
    %v1793 = vmax.f32 %v1573, %v1729
    %v1794 = vmax.f32 %v1578, %v1730
    %v1795 = vmax.f32 %v1581, %v1731
    %v1796 = vmax.f32 %v1586, %v1732
    %v1797 = vmax.f32 %v1589, %v1733
    %v1798 = vmax.f32 %v1594, %v1734
    %v1799 = vmax.f32 %v1597, %v1735
    %v1800 = vmax.f32 %v1602, %v1736
    %v1801 = vmax.f32 %v1605, %v1737
    %v1802 = vmax.f32 %v1610, %v1738
    %v1803 = vmax.f32 %v1613, %v1739
    %v1804 = vmax.f32 %v1618, %v1740
    %v1805 = vmax.f32 %v1621, %v1741
    %v1806 = vmax.f32 %v1626, %v1742
    %v1807 = vmax.f32 %v1629, %v1743
    %v1808 = vmax.f32 %v1634, %v1744
    %v1809 = vmax.f32 %v1637, %v1745
    %v1810 = vmax.f32 %v1642, %v1746
    %v1811 = vmax.f32 %v1645, %v1747
    %v1812 = vmax.f32 %v1650, %v1748
    %v1813 = vmax.f32 %v1653, %v1749
    %v1814 = vmax.f32 %v1658, %v1750
    %v1815 = vmax.f32 %v1661, %v1751
    %v1816 = vmax.f32 %v1666, %v1752
    %v1817 = vmax.f32 %v1669, %v1753
    %v1818 = vmax.f32 %v1674, %v1754
    %v1819 = vmax.f32 %v1677, %v1755
    %v1820 = vmax.f32 %v1682, %v1756
    %v1821 = vmax.f32 %v1685, %v1757
    %v1822 = vmax.f32 %v1690, %v1758
    %v1823 = vmax.f32 %v1693, %v1759
    %v1824 = vpack.c.bf16 %v1761, %v1760
    %v1825 = vpack.c.bf16 %v1763, %v1762
    %v1826 = vpack.c.bf16 %v1765, %v1764
    %v1827 = vpack.c.bf16 %v1767, %v1766
    %v1828 = vpack.c.bf16 %v1769, %v1768
    %v1829 = vpack.c.bf16 %v1771, %v1770
    %v1830 = vpack.c.bf16 %v1773, %v1772
    %v1831 = vpack.c.bf16 %v1775, %v1774
    %v1832 = vpack.c.bf16 %v1777, %v1776
    %v1833 = vpack.c.bf16 %v1779, %v1778
    %v1834 = vpack.c.bf16 %v1781, %v1780
    %v1835 = vpack.c.bf16 %v1783, %v1782
    %v1836 = vpack.c.bf16 %v1785, %v1784
    %v1837 = vpack.c.bf16 %v1787, %v1786
    %v1838 = vpack.c.bf16 %v1789, %v1788
    %v1839 = vpack.c.bf16 %v1791, %v1790
    %v1840 = vpack.c.bf16 %v1793, %v1792
    %v1841 = vpack.c.bf16 %v1795, %v1794
    %v1842 = vpack.c.bf16 %v1797, %v1796
    %v1843 = vpack.c.bf16 %v1799, %v1798
    %v1844 = vpack.c.bf16 %v1801, %v1800
    %v1845 = vpack.c.bf16 %v1803, %v1802
    %v1846 = vpack.c.bf16 %v1805, %v1804
    %v1847 = vpack.c.bf16 %v1807, %v1806
    %v1848 = vpack.c.bf16 %v1809, %v1808
    %v1849 = vpack.c.bf16 %v1811, %v1810
    %v1850 = vpack.c.bf16 %v1813, %v1812
    %v1851 = vpack.c.bf16 %v1815, %v1814
    %v1852 = vpack.c.bf16 %v1817, %v1816
    %v1853 = vpack.c.bf16 %v1819, %v1818
    %v1854 = vpack.c.bf16 %v1821, %v1820
    %v1855 = vpack.c.bf16 %v1823, %v1822
    %s1856 = scalar_lea.vmem %s3, 64
    %v1857 = vld [vmem:[%s1856] sm:$0xf]
    %v1858 = vld [vmem:[%s1856 + $0x4] sm:$0xf]
    %v1859 = vld [vmem:[%s1856 + $0x8] sm:$0xf]
    %v1860 = vld [vmem:[%s1856 + $0xc] sm:$0xf]
    %v1861 = vld [vmem:[%s1856 + $0x10] sm:$0xf]
    %v1862 = vld [vmem:[%s1856 + $0x14] sm:$0xf]
    %v1863 = vld [vmem:[%s1856 + $0x18] sm:$0xf]
    %v1864 = vld [vmem:[%s1856 + $0x1c] sm:$0xf]
    %s1865 = scalar_lea.vmem %s4, 2
    %v1866 = vld [vmem:[%s1865] sm:$0x1]
    %v1868 = vlaneseq
    %v1869 = vshrl.u32 %v1868, 7
    %v1870 = vsub.s32 0, %v1869
    %v1871 = vrot.slane %v1866, %v1870
    %v1881 = vunpack.c.l.b16 %v1857
    %v1882 = vunpack.c.l.b16 %v1858
    %v1883 = vunpack.c.l.b16 %v1859
    %v1884 = vunpack.c.l.b16 %v1860
    %v1885 = vunpack.c.l.b16 %v1861
    %v1886 = vunpack.c.l.b16 %v1862
    %v1887 = vunpack.c.l.b16 %v1863
    %v1888 = vunpack.c.l.b16 %v1864
    %v1889 = vpack.c.b16 %v1882, %v1881
    %v1890 = vpack.c.b16 %v1884, %v1883
    %v1891 = vpack.c.b16 %v1886, %v1885
    %v1892 = vpack.c.b16 %v1888, %v1887
    %v1898 = vsel %vm724, %v1824, 0
    %v1901 = vsel %vm724, %v1825, 0
    %v1904 = vsel %vm724, %v1826, 0
    %v1907 = vsel %vm724, %v1827, 0
    %v1910 = vsel %vm724, %v1828, 0
    %v1913 = vsel %vm724, %v1829, 0
    %v1916 = vsel %vm724, %v1830, 0
    %v1919 = vsel %vm724, %v1831, 0
    %v1922 = vsel %vm724, %v1832, 0
    %v1925 = vsel %vm724, %v1833, 0
    %v1928 = vsel %vm724, %v1834, 0
    %v1931 = vsel %vm724, %v1835, 0
    %v1934 = vsel %vm724, %v1836, 0
    %v1937 = vsel %vm724, %v1837, 0
    %v1940 = vsel %vm724, %v1838, 0
    %v1943 = vsel %vm724, %v1839, 0
    %v1946 = vsel %vm724, %v1840, 0
    %v1949 = vsel %vm724, %v1841, 0
    %v1952 = vsel %vm724, %v1842, 0
    %v1955 = vsel %vm724, %v1843, 0
    %v1958 = vsel %vm724, %v1844, 0
    %v1961 = vsel %vm724, %v1845, 0
    %v1964 = vsel %vm724, %v1846, 0
    %v1967 = vsel %vm724, %v1847, 0
    %v1970 = vsel %vm724, %v1848, 0
    %v1973 = vsel %vm724, %v1849, 0
    %v1976 = vsel %vm724, %v1850, 0
    %v1979 = vsel %vm724, %v1851, 0
    %v1982 = vsel %vm724, %v1852, 0
    %v1985 = vsel %vm724, %v1853, 0
    %v1988 = vsel %vm724, %v1854, 0
    %v1991 = vsel %vm724, %v1855, 0
    %1993 = vmatprep.subr.bf16.mxu0 0
    %1994 = vmatpush1.bf16.msra.mxu0 0
    %1995 = vmatprep.subr.bf16.mxu0 0
    %1996 = vmatpush1.bf16.msra.mxu0 0
    %1997 = vmatprep.subr.bf16.mxu0 0
    %1998 = vmatpush1.bf16.msra.mxu0 0
    %1999 = vmatprep.subr.bf16.mxu0 0
    %2000 = vmatpush1.bf16.msra.mxu0 0
    %2001 = vmatprep.subr.bf16.mxu0 0
    %2002 = vmatpush1.bf16.msra.mxu0 %v1892
    %2003 = vmatprep.subr.bf16.mxu0 0
    %2004 = vmatpush1.bf16.msra.mxu0 %v1891
    %2005 = vmatprep.subr.bf16.mxu0 0
    %2006 = vmatpush1.bf16.msra.mxu0 %v1890
    %2007 = vmatprep.subr.bf16.mxu0 0
    %2008 = vmatpush1.bf16.msra.mxu0 %v1889
    %2009 = vmatprep.subr.bf16.mxu0 0
    %2010 = vmatpush2.bf16.msra.mxu0 0
    %2011 = vmatprep.subr.bf16.mxu0 0
    %2012 = vmatpush2.bf16.msra.mxu0 0
    %2013 = vmatprep.subr.bf16.mxu0 0
    %2014 = vmatpush2.bf16.msra.mxu0 0
    %2015 = vmatprep.subr.bf16.mxu0 0
    %2016 = vmatpush2.bf16.msra.mxu0 0
    %2017 = vmatprep.subr.bf16.mxu0 0
    %2018 = vmatpush2.bf16.msra.mxu0 0
    %2019 = vmatprep.subr.bf16.mxu0 0
    %2020 = vmatpush2.bf16.msra.mxu0 0
    %2021 = vmatprep.subr.bf16.mxu0 0
    %2022 = vmatpush2.bf16.msra.mxu0 0
    %2023 = vmatprep.subr.bf16.mxu0 0
    %2024 = vmatpush2.bf16.msra.mxu0 0
    %2025 = vmatprep.mubr.bf16.mxu0 0
    %2026 = vmatmul.mubr.bf16.gmra.mxu0 %v1898
    %v2027 = vpop.f32.mrf.mxu0
    %v2028 = vadd.f32 %v1871, %v2027
    %v2029 = vpop.f32.mrf.mxu0
    %v2030 = vpop.f32.mrf.mxu0
    %v2031 = vadd.f32 %v1871, %v2030
    %v2032 = vpop.f32.mrf.mxu0
    %2033 = vmatprep.mubr.bf16.mxu0 0
    %2034 = vmatmul.mubr.bf16.gmra.mxu0 %v1901
    %v2035 = vpop.f32.mrf.mxu0
    %v2036 = vadd.f32 %v1871, %v2035
    %v2037 = vpop.f32.mrf.mxu0
    %v2038 = vpop.f32.mrf.mxu0
    %v2039 = vadd.f32 %v1871, %v2038
    %v2040 = vpop.f32.mrf.mxu0
    %2041 = vmatprep.mubr.bf16.mxu0 0
    %2042 = vmatmul.mubr.bf16.gmra.mxu0 %v1904
    %v2043 = vpop.f32.mrf.mxu0
    %v2044 = vadd.f32 %v1871, %v2043
    %v2045 = vpop.f32.mrf.mxu0
    %v2046 = vpop.f32.mrf.mxu0
    %v2047 = vadd.f32 %v1871, %v2046
    %v2048 = vpop.f32.mrf.mxu0
    %2049 = vmatprep.mubr.bf16.mxu0 0
    %2050 = vmatmul.mubr.bf16.gmra.mxu0 %v1907
    %v2051 = vpop.f32.mrf.mxu0
    %v2052 = vadd.f32 %v1871, %v2051
    %v2053 = vpop.f32.mrf.mxu0
    %v2054 = vpop.f32.mrf.mxu0
    %v2055 = vadd.f32 %v1871, %v2054
    %v2056 = vpop.f32.mrf.mxu0
    %2057 = vmatprep.mubr.bf16.mxu0 0
    %2058 = vmatmul.mubr.bf16.gmra.mxu0 %v1910
    %v2059 = vpop.f32.mrf.mxu0
    %v2060 = vadd.f32 %v1871, %v2059
    %v2061 = vpop.f32.mrf.mxu0
    %v2062 = vpop.f32.mrf.mxu0
    %v2063 = vadd.f32 %v1871, %v2062
    %v2064 = vpop.f32.mrf.mxu0
    %2065 = vmatprep.mubr.bf16.mxu0 0
    %2066 = vmatmul.mubr.bf16.gmra.mxu0 %v1913
    %v2067 = vpop.f32.mrf.mxu0
    %v2068 = vadd.f32 %v1871, %v2067
    %v2069 = vpop.f32.mrf.mxu0
    %v2070 = vpop.f32.mrf.mxu0
    %v2071 = vadd.f32 %v1871, %v2070
    %v2072 = vpop.f32.mrf.mxu0
    %2073 = vmatprep.mubr.bf16.mxu0 0
    %2074 = vmatmul.mubr.bf16.gmra.mxu0 %v1916
    %v2075 = vpop.f32.mrf.mxu0
    %v2076 = vadd.f32 %v1871, %v2075
    %v2077 = vpop.f32.mrf.mxu0
    %v2078 = vpop.f32.mrf.mxu0
    %v2079 = vadd.f32 %v1871, %v2078
    %v2080 = vpop.f32.mrf.mxu0
    %2081 = vmatprep.mubr.bf16.mxu0 0
    %2082 = vmatmul.mubr.bf16.gmra.mxu0 %v1919
    %v2083 = vpop.f32.mrf.mxu0
    %v2084 = vadd.f32 %v1871, %v2083
    %v2085 = vpop.f32.mrf.mxu0
    %v2086 = vpop.f32.mrf.mxu0
    %v2087 = vadd.f32 %v1871, %v2086
    %v2088 = vpop.f32.mrf.mxu0
    %2089 = vmatprep.mubr.bf16.mxu0 0
    %2090 = vmatmul.mubr.bf16.gmra.mxu0 %v1922
    %v2091 = vpop.f32.mrf.mxu0
    %v2092 = vadd.f32 %v1871, %v2091
    %v2093 = vpop.f32.mrf.mxu0
    %v2094 = vpop.f32.mrf.mxu0
    %v2095 = vadd.f32 %v1871, %v2094
    %v2096 = vpop.f32.mrf.mxu0
    %2097 = vmatprep.mubr.bf16.mxu0 0
    %2098 = vmatmul.mubr.bf16.gmra.mxu0 %v1925
    %v2099 = vpop.f32.mrf.mxu0
    %v2100 = vadd.f32 %v1871, %v2099
    %v2101 = vpop.f32.mrf.mxu0
    %v2102 = vpop.f32.mrf.mxu0
    %v2103 = vadd.f32 %v1871, %v2102
    %v2104 = vpop.f32.mrf.mxu0
    %2105 = vmatprep.mubr.bf16.mxu0 0
    %2106 = vmatmul.mubr.bf16.gmra.mxu0 %v1928
    %v2107 = vpop.f32.mrf.mxu0
    %v2108 = vadd.f32 %v1871, %v2107
    %v2109 = vpop.f32.mrf.mxu0
    %v2110 = vpop.f32.mrf.mxu0
    %v2111 = vadd.f32 %v1871, %v2110
    %v2112 = vpop.f32.mrf.mxu0
    %2113 = vmatprep.mubr.bf16.mxu0 0
    %2114 = vmatmul.mubr.bf16.gmra.mxu0 %v1931
    %v2115 = vpop.f32.mrf.mxu0
    %v2116 = vadd.f32 %v1871, %v2115
    %v2117 = vpop.f32.mrf.mxu0
    %v2118 = vpop.f32.mrf.mxu0
    %v2119 = vadd.f32 %v1871, %v2118
    %v2120 = vpop.f32.mrf.mxu0
    %2121 = vmatprep.mubr.bf16.mxu0 0
    %2122 = vmatmul.mubr.bf16.gmra.mxu0 %v1934
    %v2123 = vpop.f32.mrf.mxu0
    %v2124 = vadd.f32 %v1871, %v2123
    %v2125 = vpop.f32.mrf.mxu0
    %v2126 = vpop.f32.mrf.mxu0
    %v2127 = vadd.f32 %v1871, %v2126
    %v2128 = vpop.f32.mrf.mxu0
    %2129 = vmatprep.mubr.bf16.mxu0 0
    %2130 = vmatmul.mubr.bf16.gmra.mxu0 %v1937
    %v2131 = vpop.f32.mrf.mxu0
    %v2132 = vadd.f32 %v1871, %v2131
    %v2133 = vpop.f32.mrf.mxu0
    %v2134 = vpop.f32.mrf.mxu0
    %v2135 = vadd.f32 %v1871, %v2134
    %v2136 = vpop.f32.mrf.mxu0
    %2137 = vmatprep.mubr.bf16.mxu0 0
    %2138 = vmatmul.mubr.bf16.gmra.mxu0 %v1940
    %v2139 = vpop.f32.mrf.mxu0
    %v2140 = vadd.f32 %v1871, %v2139
    %v2141 = vpop.f32.mrf.mxu0
    %v2142 = vpop.f32.mrf.mxu0
    %v2143 = vadd.f32 %v1871, %v2142
    %v2144 = vpop.f32.mrf.mxu0
    %2145 = vmatprep.mubr.bf16.mxu0 0
    %2146 = vmatmul.mubr.bf16.gmra.mxu0 %v1943
    %v2147 = vpop.f32.mrf.mxu0
    %v2148 = vadd.f32 %v1871, %v2147
    %v2149 = vpop.f32.mrf.mxu0
    %v2150 = vpop.f32.mrf.mxu0
    %v2151 = vadd.f32 %v1871, %v2150
    %v2152 = vpop.f32.mrf.mxu0
    %2153 = vmatprep.mubr.bf16.mxu0 0
    %2154 = vmatmul.mubr.bf16.gmra.mxu0 %v1946
    %v2155 = vpop.f32.mrf.mxu0
    %v2156 = vadd.f32 %v1871, %v2155
    %v2157 = vpop.f32.mrf.mxu0
    %v2158 = vpop.f32.mrf.mxu0
    %v2159 = vadd.f32 %v1871, %v2158
    %v2160 = vpop.f32.mrf.mxu0
    %2161 = vmatprep.mubr.bf16.mxu0 0
    %2162 = vmatmul.mubr.bf16.gmra.mxu0 %v1949
    %v2163 = vpop.f32.mrf.mxu0
    %v2164 = vadd.f32 %v1871, %v2163
    %v2165 = vpop.f32.mrf.mxu0
    %v2166 = vpop.f32.mrf.mxu0
    %v2167 = vadd.f32 %v1871, %v2166
    %v2168 = vpop.f32.mrf.mxu0
    %2169 = vmatprep.mubr.bf16.mxu0 0
    %2170 = vmatmul.mubr.bf16.gmra.mxu0 %v1952
    %v2171 = vpop.f32.mrf.mxu0
    %v2172 = vadd.f32 %v1871, %v2171
    %v2173 = vpop.f32.mrf.mxu0
    %v2174 = vpop.f32.mrf.mxu0
    %v2175 = vadd.f32 %v1871, %v2174
    %v2176 = vpop.f32.mrf.mxu0
    %2177 = vmatprep.mubr.bf16.mxu0 0
    %2178 = vmatmul.mubr.bf16.gmra.mxu0 %v1955
    %v2179 = vpop.f32.mrf.mxu0
    %v2180 = vadd.f32 %v1871, %v2179
    %v2181 = vpop.f32.mrf.mxu0
    %v2182 = vpop.f32.mrf.mxu0
    %v2183 = vadd.f32 %v1871, %v2182
    %v2184 = vpop.f32.mrf.mxu0
    %2185 = vmatprep.mubr.bf16.mxu0 0
    %2186 = vmatmul.mubr.bf16.gmra.mxu0 %v1958
    %v2187 = vpop.f32.mrf.mxu0
    %v2188 = vadd.f32 %v1871, %v2187
    %v2189 = vpop.f32.mrf.mxu0
    %v2190 = vpop.f32.mrf.mxu0
    %v2191 = vadd.f32 %v1871, %v2190
    %v2192 = vpop.f32.mrf.mxu0
    %2193 = vmatprep.mubr.bf16.mxu0 0
    %2194 = vmatmul.mubr.bf16.gmra.mxu0 %v1961
    %v2195 = vpop.f32.mrf.mxu0
    %v2196 = vadd.f32 %v1871, %v2195
    %v2197 = vpop.f32.mrf.mxu0
    %v2198 = vpop.f32.mrf.mxu0
    %v2199 = vadd.f32 %v1871, %v2198
    %v2200 = vpop.f32.mrf.mxu0
    %2201 = vmatprep.mubr.bf16.mxu0 0
    %2202 = vmatmul.mubr.bf16.gmra.mxu0 %v1964
    %v2203 = vpop.f32.mrf.mxu0
    %v2204 = vadd.f32 %v1871, %v2203
    %v2205 = vpop.f32.mrf.mxu0
    %v2206 = vpop.f32.mrf.mxu0
    %v2207 = vadd.f32 %v1871, %v2206
    %v2208 = vpop.f32.mrf.mxu0
    %2209 = vmatprep.mubr.bf16.mxu0 0
    %2210 = vmatmul.mubr.bf16.gmra.mxu0 %v1967
    %v2211 = vpop.f32.mrf.mxu0
    %v2212 = vadd.f32 %v1871, %v2211
    %v2213 = vpop.f32.mrf.mxu0
    %v2214 = vpop.f32.mrf.mxu0
    %v2215 = vadd.f32 %v1871, %v2214
    %v2216 = vpop.f32.mrf.mxu0
    %2217 = vmatprep.mubr.bf16.mxu0 0
    %2218 = vmatmul.mubr.bf16.gmra.mxu0 %v1970
    %v2219 = vpop.f32.mrf.mxu0
    %v2220 = vadd.f32 %v1871, %v2219
    %v2221 = vpop.f32.mrf.mxu0
    %v2222 = vpop.f32.mrf.mxu0
    %v2223 = vadd.f32 %v1871, %v2222
    %v2224 = vpop.f32.mrf.mxu0
    %2225 = vmatprep.mubr.bf16.mxu0 0
    %2226 = vmatmul.mubr.bf16.gmra.mxu0 %v1973
    %v2227 = vpop.f32.mrf.mxu0
    %v2228 = vadd.f32 %v1871, %v2227
    %v2229 = vpop.f32.mrf.mxu0
    %v2230 = vpop.f32.mrf.mxu0
    %v2231 = vadd.f32 %v1871, %v2230
    %v2232 = vpop.f32.mrf.mxu0
    %2233 = vmatprep.mubr.bf16.mxu0 0
    %2234 = vmatmul.mubr.bf16.gmra.mxu0 %v1976
    %v2235 = vpop.f32.mrf.mxu0
    %v2236 = vadd.f32 %v1871, %v2235
    %v2237 = vpop.f32.mrf.mxu0
    %v2238 = vpop.f32.mrf.mxu0
    %v2239 = vadd.f32 %v1871, %v2238
    %v2240 = vpop.f32.mrf.mxu0
    %2241 = vmatprep.mubr.bf16.mxu0 0
    %2242 = vmatmul.mubr.bf16.gmra.mxu0 %v1979
    %v2243 = vpop.f32.mrf.mxu0
    %v2244 = vadd.f32 %v1871, %v2243
    %v2245 = vpop.f32.mrf.mxu0
    %v2246 = vpop.f32.mrf.mxu0
    %v2247 = vadd.f32 %v1871, %v2246
    %v2248 = vpop.f32.mrf.mxu0
    %2249 = vmatprep.mubr.bf16.mxu0 0
    %2250 = vmatmul.mubr.bf16.gmra.mxu0 %v1982
    %v2251 = vpop.f32.mrf.mxu0
    %v2252 = vadd.f32 %v1871, %v2251
    %v2253 = vpop.f32.mrf.mxu0
    %v2254 = vpop.f32.mrf.mxu0
    %v2255 = vadd.f32 %v1871, %v2254
    %v2256 = vpop.f32.mrf.mxu0
    %2257 = vmatprep.mubr.bf16.mxu0 0
    %2258 = vmatmul.mubr.bf16.gmra.mxu0 %v1985
    %v2259 = vpop.f32.mrf.mxu0
    %v2260 = vadd.f32 %v1871, %v2259
    %v2261 = vpop.f32.mrf.mxu0
    %v2262 = vpop.f32.mrf.mxu0
    %v2263 = vadd.f32 %v1871, %v2262
    %v2264 = vpop.f32.mrf.mxu0
    %2265 = vmatprep.mubr.bf16.mxu0 0
    %2266 = vmatmul.mubr.bf16.gmra.mxu0 %v1988
    %v2267 = vpop.f32.mrf.mxu0
    %v2268 = vadd.f32 %v1871, %v2267
    %v2269 = vpop.f32.mrf.mxu0
    %v2270 = vpop.f32.mrf.mxu0
    %v2271 = vadd.f32 %v1871, %v2270
    %v2272 = vpop.f32.mrf.mxu0
    %2273 = vmatprep.mubr.bf16.mxu0 0
    %2274 = vmatmul.mubr.bf16.gmra.mxu0 %v1991
    %v2275 = vpop.f32.mrf.mxu0
    %v2276 = vadd.f32 %v1871, %v2275
    %v2277 = vpop.f32.mrf.mxu0
    %v2278 = vpop.f32.mrf.mxu0
    %v2279 = vadd.f32 %v1871, %v2278
    %v2280 = vpop.f32.mrf.mxu0
    %2281 = vdwg.mxu0
    %v2282 = vmul.f32 %v2028, 0.01
    %v2283 = vmul.f32 %v2031, 0.01
    %v2284 = vmul.f32 %v2036, 0.01
    %v2285 = vmul.f32 %v2039, 0.01
    %v2286 = vmul.f32 %v2044, 0.01
    %v2287 = vmul.f32 %v2047, 0.01
    %v2288 = vmul.f32 %v2052, 0.01
    %v2289 = vmul.f32 %v2055, 0.01
    %v2290 = vmul.f32 %v2060, 0.01
    %v2291 = vmul.f32 %v2063, 0.01
    %v2292 = vmul.f32 %v2068, 0.01
    %v2293 = vmul.f32 %v2071, 0.01
    %v2294 = vmul.f32 %v2076, 0.01
    %v2295 = vmul.f32 %v2079, 0.01
    %v2296 = vmul.f32 %v2084, 0.01
    %v2297 = vmul.f32 %v2087, 0.01
    %v2298 = vmul.f32 %v2092, 0.01
    %v2299 = vmul.f32 %v2095, 0.01
    %v2300 = vmul.f32 %v2100, 0.01
    %v2301 = vmul.f32 %v2103, 0.01
    %v2302 = vmul.f32 %v2108, 0.01
    %v2303 = vmul.f32 %v2111, 0.01
    %v2304 = vmul.f32 %v2116, 0.01
    %v2305 = vmul.f32 %v2119, 0.01
    %v2306 = vmul.f32 %v2124, 0.01
    %v2307 = vmul.f32 %v2127, 0.01
    %v2308 = vmul.f32 %v2132, 0.01
    %v2309 = vmul.f32 %v2135, 0.01
    %v2310 = vmul.f32 %v2140, 0.01
    %v2311 = vmul.f32 %v2143, 0.01
    %v2312 = vmul.f32 %v2148, 0.01
    %v2313 = vmul.f32 %v2151, 0.01
    %v2314 = vmul.f32 %v2156, 0.01
    %v2315 = vmul.f32 %v2159, 0.01
    %v2316 = vmul.f32 %v2164, 0.01
    %v2317 = vmul.f32 %v2167, 0.01
    %v2318 = vmul.f32 %v2172, 0.01
    %v2319 = vmul.f32 %v2175, 0.01
    %v2320 = vmul.f32 %v2180, 0.01
    %v2321 = vmul.f32 %v2183, 0.01
    %v2322 = vmul.f32 %v2188, 0.01
    %v2323 = vmul.f32 %v2191, 0.01
    %v2324 = vmul.f32 %v2196, 0.01
    %v2325 = vmul.f32 %v2199, 0.01
    %v2326 = vmul.f32 %v2204, 0.01
    %v2327 = vmul.f32 %v2207, 0.01
    %v2328 = vmul.f32 %v2212, 0.01
    %v2329 = vmul.f32 %v2215, 0.01
    %v2330 = vmul.f32 %v2220, 0.01
    %v2331 = vmul.f32 %v2223, 0.01
    %v2332 = vmul.f32 %v2228, 0.01
    %v2333 = vmul.f32 %v2231, 0.01
    %v2334 = vmul.f32 %v2236, 0.01
    %v2335 = vmul.f32 %v2239, 0.01
    %v2336 = vmul.f32 %v2244, 0.01
    %v2337 = vmul.f32 %v2247, 0.01
    %v2338 = vmul.f32 %v2252, 0.01
    %v2339 = vmul.f32 %v2255, 0.01
    %v2340 = vmul.f32 %v2260, 0.01
    %v2341 = vmul.f32 %v2263, 0.01
    %v2342 = vmul.f32 %v2268, 0.01
    %v2343 = vmul.f32 %v2271, 0.01
    %v2344 = vmul.f32 %v2276, 0.01
    %v2345 = vmul.f32 %v2279, 0.01
    %v2346 = vmax.f32 %v2028, %v2282
    %v2347 = vmax.f32 %v2031, %v2283
    %v2348 = vmax.f32 %v2036, %v2284
    %v2349 = vmax.f32 %v2039, %v2285
    %v2350 = vmax.f32 %v2044, %v2286
    %v2351 = vmax.f32 %v2047, %v2287
    %v2352 = vmax.f32 %v2052, %v2288
    %v2353 = vmax.f32 %v2055, %v2289
    %v2354 = vmax.f32 %v2060, %v2290
    %v2355 = vmax.f32 %v2063, %v2291
    %v2356 = vmax.f32 %v2068, %v2292
    %v2357 = vmax.f32 %v2071, %v2293
    %v2358 = vmax.f32 %v2076, %v2294
    %v2359 = vmax.f32 %v2079, %v2295
    %v2360 = vmax.f32 %v2084, %v2296
    %v2361 = vmax.f32 %v2087, %v2297
    %v2362 = vmax.f32 %v2092, %v2298
    %v2363 = vmax.f32 %v2095, %v2299
    %v2364 = vmax.f32 %v2100, %v2300
    %v2365 = vmax.f32 %v2103, %v2301
    %v2366 = vmax.f32 %v2108, %v2302
    %v2367 = vmax.f32 %v2111, %v2303
    %v2368 = vmax.f32 %v2116, %v2304
    %v2369 = vmax.f32 %v2119, %v2305
    %v2370 = vmax.f32 %v2124, %v2306
    %v2371 = vmax.f32 %v2127, %v2307
    %v2372 = vmax.f32 %v2132, %v2308
    %v2373 = vmax.f32 %v2135, %v2309
    %v2374 = vmax.f32 %v2140, %v2310
    %v2375 = vmax.f32 %v2143, %v2311
    %v2376 = vmax.f32 %v2148, %v2312
    %v2377 = vmax.f32 %v2151, %v2313
    %v2378 = vmax.f32 %v2156, %v2314
    %v2379 = vmax.f32 %v2159, %v2315
    %v2380 = vmax.f32 %v2164, %v2316
    %v2381 = vmax.f32 %v2167, %v2317
    %v2382 = vmax.f32 %v2172, %v2318
    %v2383 = vmax.f32 %v2175, %v2319
    %v2384 = vmax.f32 %v2180, %v2320
    %v2385 = vmax.f32 %v2183, %v2321
    %v2386 = vmax.f32 %v2188, %v2322
    %v2387 = vmax.f32 %v2191, %v2323
    %v2388 = vmax.f32 %v2196, %v2324
    %v2389 = vmax.f32 %v2199, %v2325
    %v2390 = vmax.f32 %v2204, %v2326
    %v2391 = vmax.f32 %v2207, %v2327
    %v2392 = vmax.f32 %v2212, %v2328
    %v2393 = vmax.f32 %v2215, %v2329
    %v2394 = vmax.f32 %v2220, %v2330
    %v2395 = vmax.f32 %v2223, %v2331
    %v2396 = vmax.f32 %v2228, %v2332
    %v2397 = vmax.f32 %v2231, %v2333
    %v2398 = vmax.f32 %v2236, %v2334
    %v2399 = vmax.f32 %v2239, %v2335
    %v2400 = vmax.f32 %v2244, %v2336
    %v2401 = vmax.f32 %v2247, %v2337
    %v2402 = vmax.f32 %v2252, %v2338
    %v2403 = vmax.f32 %v2255, %v2339
    %v2404 = vmax.f32 %v2260, %v2340
    %v2405 = vmax.f32 %v2263, %v2341
    %v2406 = vmax.f32 %v2268, %v2342
    %v2407 = vmax.f32 %v2271, %v2343
    %v2408 = vmax.f32 %v2276, %v2344
    %v2409 = vmax.f32 %v2279, %v2345
    %v2410 = vpack.c.bf16 %v2347, %v2346
    %v2411 = vpack.c.bf16 %v2349, %v2348
    %v2412 = vpack.c.bf16 %v2351, %v2350
    %v2413 = vpack.c.bf16 %v2353, %v2352
    %v2414 = vpack.c.bf16 %v2355, %v2354
    %v2415 = vpack.c.bf16 %v2357, %v2356
    %v2416 = vpack.c.bf16 %v2359, %v2358
    %v2417 = vpack.c.bf16 %v2361, %v2360
    %v2418 = vpack.c.bf16 %v2363, %v2362
    %v2419 = vpack.c.bf16 %v2365, %v2364
    %v2420 = vpack.c.bf16 %v2367, %v2366
    %v2421 = vpack.c.bf16 %v2369, %v2368
    %v2422 = vpack.c.bf16 %v2371, %v2370
    %v2423 = vpack.c.bf16 %v2373, %v2372
    %v2424 = vpack.c.bf16 %v2375, %v2374
    %v2425 = vpack.c.bf16 %v2377, %v2376
    %v2426 = vpack.c.bf16 %v2379, %v2378
    %v2427 = vpack.c.bf16 %v2381, %v2380
    %v2428 = vpack.c.bf16 %v2383, %v2382
    %v2429 = vpack.c.bf16 %v2385, %v2384
    %v2430 = vpack.c.bf16 %v2387, %v2386
    %v2431 = vpack.c.bf16 %v2389, %v2388
    %v2432 = vpack.c.bf16 %v2391, %v2390
    %v2433 = vpack.c.bf16 %v2393, %v2392
    %v2434 = vpack.c.bf16 %v2395, %v2394
    %v2435 = vpack.c.bf16 %v2397, %v2396
    %v2436 = vpack.c.bf16 %v2399, %v2398
    %v2437 = vpack.c.bf16 %v2401, %v2400
    %v2438 = vpack.c.bf16 %v2403, %v2402
    %v2439 = vpack.c.bf16 %v2405, %v2404
    %v2440 = vpack.c.bf16 %v2407, %v2406
    %v2441 = vpack.c.bf16 %v2409, %v2408
    %s2442 = scalar_lea.vmem %s3, 96
    %v2443 = vld [vmem:[%s2442] sm:$0xf]
    %v2444 = vld [vmem:[%s2442 + $0x4] sm:$0xf]
    %v2445 = vld [vmem:[%s2442 + $0x8] sm:$0xf]
    %v2446 = vld [vmem:[%s2442 + $0xc] sm:$0xf]
    %v2447 = vld [vmem:[%s2442 + $0x10] sm:$0xf]
    %v2448 = vld [vmem:[%s2442 + $0x14] sm:$0xf]
    %v2449 = vld [vmem:[%s2442 + $0x18] sm:$0xf]
    %v2450 = vld [vmem:[%s2442 + $0x1c] sm:$0xf]
    %s2451 = scalar_lea.vmem %s4, 3
    %v2452 = vld [vmem:[%s2451] sm:$0x1]
    %v2454 = vlaneseq
    %v2455 = vshrl.u32 %v2454, 7
    %v2456 = vsub.s32 0, %v2455
    %v2457 = vrot.slane %v2452, %v2456
    %v2467 = vunpack.c.l.b16 %v2443
    %v2468 = vunpack.c.l.b16 %v2444
    %v2469 = vunpack.c.l.b16 %v2445
    %v2470 = vunpack.c.l.b16 %v2446
    %v2471 = vunpack.c.l.b16 %v2447
    %v2472 = vunpack.c.l.b16 %v2448
    %v2473 = vunpack.c.l.b16 %v2449
    %v2474 = vunpack.c.l.b16 %v2450
    %v2475 = vpack.c.b16 %v2468, %v2467
    %v2476 = vpack.c.b16 %v2470, %v2469
    %v2477 = vpack.c.b16 %v2472, %v2471
    %v2478 = vpack.c.b16 %v2474, %v2473
    %v2484 = vsel %vm724, %v2410, 0
    %v2487 = vsel %vm724, %v2411, 0
    %v2490 = vsel %vm724, %v2412, 0
    %v2493 = vsel %vm724, %v2413, 0
    %v2496 = vsel %vm724, %v2414, 0
    %v2499 = vsel %vm724, %v2415, 0
    %v2502 = vsel %vm724, %v2416, 0
    %v2505 = vsel %vm724, %v2417, 0
    %v2508 = vsel %vm724, %v2418, 0
    %v2511 = vsel %vm724, %v2419, 0
    %v2514 = vsel %vm724, %v2420, 0
    %v2517 = vsel %vm724, %v2421, 0
    %v2520 = vsel %vm724, %v2422, 0
    %v2523 = vsel %vm724, %v2423, 0
    %v2526 = vsel %vm724, %v2424, 0
    %v2529 = vsel %vm724, %v2425, 0
    %v2532 = vsel %vm724, %v2426, 0
    %v2535 = vsel %vm724, %v2427, 0
    %v2538 = vsel %vm724, %v2428, 0
    %v2541 = vsel %vm724, %v2429, 0
    %v2544 = vsel %vm724, %v2430, 0
    %v2547 = vsel %vm724, %v2431, 0
    %v2550 = vsel %vm724, %v2432, 0
    %v2553 = vsel %vm724, %v2433, 0
    %v2556 = vsel %vm724, %v2434, 0
    %v2559 = vsel %vm724, %v2435, 0
    %v2562 = vsel %vm724, %v2436, 0
    %v2565 = vsel %vm724, %v2437, 0
    %v2568 = vsel %vm724, %v2438, 0
    %v2571 = vsel %vm724, %v2439, 0
    %v2574 = vsel %vm724, %v2440, 0
    %v2577 = vsel %vm724, %v2441, 0
    %2579 = vmatprep.subr.bf16.mxu0 0
    %2580 = vmatpush1.bf16.msra.mxu0 0
    %2581 = vmatprep.subr.bf16.mxu0 0
    %2582 = vmatpush1.bf16.msra.mxu0 0
    %2583 = vmatprep.subr.bf16.mxu0 0
    %2584 = vmatpush1.bf16.msra.mxu0 0
    %2585 = vmatprep.subr.bf16.mxu0 0
    %2586 = vmatpush1.bf16.msra.mxu0 0
    %2587 = vmatprep.subr.bf16.mxu0 0
    %2588 = vmatpush1.bf16.msra.mxu0 %v2478
    %2589 = vmatprep.subr.bf16.mxu0 0
    %2590 = vmatpush1.bf16.msra.mxu0 %v2477
    %2591 = vmatprep.subr.bf16.mxu0 0
    %2592 = vmatpush1.bf16.msra.mxu0 %v2476
    %2593 = vmatprep.subr.bf16.mxu0 0
    %2594 = vmatpush1.bf16.msra.mxu0 %v2475
    %2595 = vmatprep.subr.bf16.mxu0 0
    %2596 = vmatpush2.bf16.msra.mxu0 0
    %2597 = vmatprep.subr.bf16.mxu0 0
    %2598 = vmatpush2.bf16.msra.mxu0 0
    %2599 = vmatprep.subr.bf16.mxu0 0
    %2600 = vmatpush2.bf16.msra.mxu0 0
    %2601 = vmatprep.subr.bf16.mxu0 0
    %2602 = vmatpush2.bf16.msra.mxu0 0
    %2603 = vmatprep.subr.bf16.mxu0 0
    %2604 = vmatpush2.bf16.msra.mxu0 0
    %2605 = vmatprep.subr.bf16.mxu0 0
    %2606 = vmatpush2.bf16.msra.mxu0 0
    %2607 = vmatprep.subr.bf16.mxu0 0
    %2608 = vmatpush2.bf16.msra.mxu0 0
    %2609 = vmatprep.subr.bf16.mxu0 0
    %2610 = vmatpush2.bf16.msra.mxu0 0
    %2611 = vmatprep.mubr.bf16.mxu0 0
    %2612 = vmatmul.mubr.bf16.gmra.mxu0 %v2484
    %v2613 = vpop.f32.mrf.mxu0
    %v2614 = vadd.f32 %v2457, %v2613
    %v2615 = vpop.f32.mrf.mxu0
    %v2616 = vpop.f32.mrf.mxu0
    %v2617 = vadd.f32 %v2457, %v2616
    %v2618 = vpop.f32.mrf.mxu0
    %2619 = vmatprep.mubr.bf16.mxu0 0
    %2620 = vmatmul.mubr.bf16.gmra.mxu0 %v2487
    %v2621 = vpop.f32.mrf.mxu0
    %v2622 = vadd.f32 %v2457, %v2621
    %v2623 = vpop.f32.mrf.mxu0
    %v2624 = vpop.f32.mrf.mxu0
    %v2625 = vadd.f32 %v2457, %v2624
    %v2626 = vpop.f32.mrf.mxu0
    %2627 = vmatprep.mubr.bf16.mxu0 0
    %2628 = vmatmul.mubr.bf16.gmra.mxu0 %v2490
    %v2629 = vpop.f32.mrf.mxu0
    %v2630 = vadd.f32 %v2457, %v2629
    %v2631 = vpop.f32.mrf.mxu0
    %v2632 = vpop.f32.mrf.mxu0
    %v2633 = vadd.f32 %v2457, %v2632
    %v2634 = vpop.f32.mrf.mxu0
    %2635 = vmatprep.mubr.bf16.mxu0 0
    %2636 = vmatmul.mubr.bf16.gmra.mxu0 %v2493
    %v2637 = vpop.f32.mrf.mxu0
    %v2638 = vadd.f32 %v2457, %v2637
    %v2639 = vpop.f32.mrf.mxu0
    %v2640 = vpop.f32.mrf.mxu0
    %v2641 = vadd.f32 %v2457, %v2640
    %v2642 = vpop.f32.mrf.mxu0
    %2643 = vmatprep.mubr.bf16.mxu0 0
    %2644 = vmatmul.mubr.bf16.gmra.mxu0 %v2496
    %v2645 = vpop.f32.mrf.mxu0
    %v2646 = vadd.f32 %v2457, %v2645
    %v2647 = vpop.f32.mrf.mxu0
    %v2648 = vpop.f32.mrf.mxu0
    %v2649 = vadd.f32 %v2457, %v2648
    %v2650 = vpop.f32.mrf.mxu0
    %2651 = vmatprep.mubr.bf16.mxu0 0
    %2652 = vmatmul.mubr.bf16.gmra.mxu0 %v2499
    %v2653 = vpop.f32.mrf.mxu0
    %v2654 = vadd.f32 %v2457, %v2653
    %v2655 = vpop.f32.mrf.mxu0
    %v2656 = vpop.f32.mrf.mxu0
    %v2657 = vadd.f32 %v2457, %v2656
    %v2658 = vpop.f32.mrf.mxu0
    %2659 = vmatprep.mubr.bf16.mxu0 0
    %2660 = vmatmul.mubr.bf16.gmra.mxu0 %v2502
    %v2661 = vpop.f32.mrf.mxu0
    %v2662 = vadd.f32 %v2457, %v2661
    %v2663 = vpop.f32.mrf.mxu0
    %v2664 = vpop.f32.mrf.mxu0
    %v2665 = vadd.f32 %v2457, %v2664
    %v2666 = vpop.f32.mrf.mxu0
    %2667 = vmatprep.mubr.bf16.mxu0 0
    %2668 = vmatmul.mubr.bf16.gmra.mxu0 %v2505
    %v2669 = vpop.f32.mrf.mxu0
    %v2670 = vadd.f32 %v2457, %v2669
    %v2671 = vpop.f32.mrf.mxu0
    %v2672 = vpop.f32.mrf.mxu0
    %v2673 = vadd.f32 %v2457, %v2672
    %v2674 = vpop.f32.mrf.mxu0
    %2675 = vmatprep.mubr.bf16.mxu0 0
    %2676 = vmatmul.mubr.bf16.gmra.mxu0 %v2508
    %v2677 = vpop.f32.mrf.mxu0
    %v2678 = vadd.f32 %v2457, %v2677
    %v2679 = vpop.f32.mrf.mxu0
    %v2680 = vpop.f32.mrf.mxu0
    %v2681 = vadd.f32 %v2457, %v2680
    %v2682 = vpop.f32.mrf.mxu0
    %2683 = vmatprep.mubr.bf16.mxu0 0
    %2684 = vmatmul.mubr.bf16.gmra.mxu0 %v2511
    %v2685 = vpop.f32.mrf.mxu0
    %v2686 = vadd.f32 %v2457, %v2685
    %v2687 = vpop.f32.mrf.mxu0
    %v2688 = vpop.f32.mrf.mxu0
    %v2689 = vadd.f32 %v2457, %v2688
    %v2690 = vpop.f32.mrf.mxu0
    %2691 = vmatprep.mubr.bf16.mxu0 0
    %2692 = vmatmul.mubr.bf16.gmra.mxu0 %v2514
    %v2693 = vpop.f32.mrf.mxu0
    %v2694 = vadd.f32 %v2457, %v2693
    %v2695 = vpop.f32.mrf.mxu0
    %v2696 = vpop.f32.mrf.mxu0
    %v2697 = vadd.f32 %v2457, %v2696
    %v2698 = vpop.f32.mrf.mxu0
    %2699 = vmatprep.mubr.bf16.mxu0 0
    %2700 = vmatmul.mubr.bf16.gmra.mxu0 %v2517
    %v2701 = vpop.f32.mrf.mxu0
    %v2702 = vadd.f32 %v2457, %v2701
    %v2703 = vpop.f32.mrf.mxu0
    %v2704 = vpop.f32.mrf.mxu0
    %v2705 = vadd.f32 %v2457, %v2704
    %v2706 = vpop.f32.mrf.mxu0
    %2707 = vmatprep.mubr.bf16.mxu0 0
    %2708 = vmatmul.mubr.bf16.gmra.mxu0 %v2520
    %v2709 = vpop.f32.mrf.mxu0
    %v2710 = vadd.f32 %v2457, %v2709
    %v2711 = vpop.f32.mrf.mxu0
    %v2712 = vpop.f32.mrf.mxu0
    %v2713 = vadd.f32 %v2457, %v2712
    %v2714 = vpop.f32.mrf.mxu0
    %2715 = vmatprep.mubr.bf16.mxu0 0
    %2716 = vmatmul.mubr.bf16.gmra.mxu0 %v2523
    %v2717 = vpop.f32.mrf.mxu0
    %v2718 = vadd.f32 %v2457, %v2717
    %v2719 = vpop.f32.mrf.mxu0
    %v2720 = vpop.f32.mrf.mxu0
    %v2721 = vadd.f32 %v2457, %v2720
    %v2722 = vpop.f32.mrf.mxu0
    %2723 = vmatprep.mubr.bf16.mxu0 0
    %2724 = vmatmul.mubr.bf16.gmra.mxu0 %v2526
    %v2725 = vpop.f32.mrf.mxu0
    %v2726 = vadd.f32 %v2457, %v2725
    %v2727 = vpop.f32.mrf.mxu0
    %v2728 = vpop.f32.mrf.mxu0
    %v2729 = vadd.f32 %v2457, %v2728
    %v2730 = vpop.f32.mrf.mxu0
    %2731 = vmatprep.mubr.bf16.mxu0 0
    %2732 = vmatmul.mubr.bf16.gmra.mxu0 %v2529
    %v2733 = vpop.f32.mrf.mxu0
    %v2734 = vadd.f32 %v2457, %v2733
    %v2735 = vpop.f32.mrf.mxu0
    %v2736 = vpop.f32.mrf.mxu0
    %v2737 = vadd.f32 %v2457, %v2736
    %v2738 = vpop.f32.mrf.mxu0
    %2739 = vmatprep.mubr.bf16.mxu0 0
    %2740 = vmatmul.mubr.bf16.gmra.mxu0 %v2532
    %v2741 = vpop.f32.mrf.mxu0
    %v2742 = vadd.f32 %v2457, %v2741
    %v2743 = vpop.f32.mrf.mxu0
    %v2744 = vpop.f32.mrf.mxu0
    %v2745 = vadd.f32 %v2457, %v2744
    %v2746 = vpop.f32.mrf.mxu0
    %2747 = vmatprep.mubr.bf16.mxu0 0
    %2748 = vmatmul.mubr.bf16.gmra.mxu0 %v2535
    %v2749 = vpop.f32.mrf.mxu0
    %v2750 = vadd.f32 %v2457, %v2749
    %v2751 = vpop.f32.mrf.mxu0
    %v2752 = vpop.f32.mrf.mxu0
    %v2753 = vadd.f32 %v2457, %v2752
    %v2754 = vpop.f32.mrf.mxu0
    %2755 = vmatprep.mubr.bf16.mxu0 0
    %2756 = vmatmul.mubr.bf16.gmra.mxu0 %v2538
    %v2757 = vpop.f32.mrf.mxu0
    %v2758 = vadd.f32 %v2457, %v2757
    %v2759 = vpop.f32.mrf.mxu0
    %v2760 = vpop.f32.mrf.mxu0
    %v2761 = vadd.f32 %v2457, %v2760
    %v2762 = vpop.f32.mrf.mxu0
    %2763 = vmatprep.mubr.bf16.mxu0 0
    %2764 = vmatmul.mubr.bf16.gmra.mxu0 %v2541
    %v2765 = vpop.f32.mrf.mxu0
    %v2766 = vadd.f32 %v2457, %v2765
    %v2767 = vpop.f32.mrf.mxu0
    %v2768 = vpop.f32.mrf.mxu0
    %v2769 = vadd.f32 %v2457, %v2768
    %v2770 = vpop.f32.mrf.mxu0
    %2771 = vmatprep.mubr.bf16.mxu0 0
    %2772 = vmatmul.mubr.bf16.gmra.mxu0 %v2544
    %v2773 = vpop.f32.mrf.mxu0
    %v2774 = vadd.f32 %v2457, %v2773
    %v2775 = vpop.f32.mrf.mxu0
    %v2776 = vpop.f32.mrf.mxu0
    %v2777 = vadd.f32 %v2457, %v2776
    %v2778 = vpop.f32.mrf.mxu0
    %2779 = vmatprep.mubr.bf16.mxu0 0
    %2780 = vmatmul.mubr.bf16.gmra.mxu0 %v2547
    %v2781 = vpop.f32.mrf.mxu0
    %v2782 = vadd.f32 %v2457, %v2781
    %v2783 = vpop.f32.mrf.mxu0
    %v2784 = vpop.f32.mrf.mxu0
    %v2785 = vadd.f32 %v2457, %v2784
    %v2786 = vpop.f32.mrf.mxu0
    %2787 = vmatprep.mubr.bf16.mxu0 0
    %2788 = vmatmul.mubr.bf16.gmra.mxu0 %v2550
    %v2789 = vpop.f32.mrf.mxu0
    %v2790 = vadd.f32 %v2457, %v2789
    %v2791 = vpop.f32.mrf.mxu0
    %v2792 = vpop.f32.mrf.mxu0
    %v2793 = vadd.f32 %v2457, %v2792
    %v2794 = vpop.f32.mrf.mxu0
    %2795 = vmatprep.mubr.bf16.mxu0 0
    %2796 = vmatmul.mubr.bf16.gmra.mxu0 %v2553
    %v2797 = vpop.f32.mrf.mxu0
    %v2798 = vadd.f32 %v2457, %v2797
    %v2799 = vpop.f32.mrf.mxu0
    %v2800 = vpop.f32.mrf.mxu0
    %v2801 = vadd.f32 %v2457, %v2800
    %v2802 = vpop.f32.mrf.mxu0
    %2803 = vmatprep.mubr.bf16.mxu0 0
    %2804 = vmatmul.mubr.bf16.gmra.mxu0 %v2556
    %v2805 = vpop.f32.mrf.mxu0
    %v2806 = vadd.f32 %v2457, %v2805
    %v2807 = vpop.f32.mrf.mxu0
    %v2808 = vpop.f32.mrf.mxu0
    %v2809 = vadd.f32 %v2457, %v2808
    %v2810 = vpop.f32.mrf.mxu0
    %2811 = vmatprep.mubr.bf16.mxu0 0
    %2812 = vmatmul.mubr.bf16.gmra.mxu0 %v2559
    %v2813 = vpop.f32.mrf.mxu0
    %v2814 = vadd.f32 %v2457, %v2813
    %v2815 = vpop.f32.mrf.mxu0
    %v2816 = vpop.f32.mrf.mxu0
    %v2817 = vadd.f32 %v2457, %v2816
    %v2818 = vpop.f32.mrf.mxu0
    %2819 = vmatprep.mubr.bf16.mxu0 0
    %2820 = vmatmul.mubr.bf16.gmra.mxu0 %v2562
    %v2821 = vpop.f32.mrf.mxu0
    %v2822 = vadd.f32 %v2457, %v2821
    %v2823 = vpop.f32.mrf.mxu0
    %v2824 = vpop.f32.mrf.mxu0
    %v2825 = vadd.f32 %v2457, %v2824
    %v2826 = vpop.f32.mrf.mxu0
    %2827 = vmatprep.mubr.bf16.mxu0 0
    %2828 = vmatmul.mubr.bf16.gmra.mxu0 %v2565
    %v2829 = vpop.f32.mrf.mxu0
    %v2830 = vadd.f32 %v2457, %v2829
    %v2831 = vpop.f32.mrf.mxu0
    %v2832 = vpop.f32.mrf.mxu0
    %v2833 = vadd.f32 %v2457, %v2832
    %v2834 = vpop.f32.mrf.mxu0
    %2835 = vmatprep.mubr.bf16.mxu0 0
    %2836 = vmatmul.mubr.bf16.gmra.mxu0 %v2568
    %v2837 = vpop.f32.mrf.mxu0
    %v2838 = vadd.f32 %v2457, %v2837
    %v2839 = vpop.f32.mrf.mxu0
    %v2840 = vpop.f32.mrf.mxu0
    %v2841 = vadd.f32 %v2457, %v2840
    %v2842 = vpop.f32.mrf.mxu0
    %2843 = vmatprep.mubr.bf16.mxu0 0
    %2844 = vmatmul.mubr.bf16.gmra.mxu0 %v2571
    %v2845 = vpop.f32.mrf.mxu0
    %v2846 = vadd.f32 %v2457, %v2845
    %v2847 = vpop.f32.mrf.mxu0
    %v2848 = vpop.f32.mrf.mxu0
    %v2849 = vadd.f32 %v2457, %v2848
    %v2850 = vpop.f32.mrf.mxu0
    %2851 = vmatprep.mubr.bf16.mxu0 0
    %2852 = vmatmul.mubr.bf16.gmra.mxu0 %v2574
    %v2853 = vpop.f32.mrf.mxu0
    %v2854 = vadd.f32 %v2457, %v2853
    %v2855 = vpop.f32.mrf.mxu0
    %v2856 = vpop.f32.mrf.mxu0
    %v2857 = vadd.f32 %v2457, %v2856
    %v2858 = vpop.f32.mrf.mxu0
    %2859 = vmatprep.mubr.bf16.mxu0 0
    %2860 = vmatmul.mubr.bf16.gmra.mxu0 %v2577
    %v2861 = vpop.f32.mrf.mxu0
    %v2862 = vadd.f32 %v2457, %v2861
    %v2863 = vpop.f32.mrf.mxu0
    %v2864 = vpop.f32.mrf.mxu0
    %v2865 = vadd.f32 %v2457, %v2864
    %v2866 = vpop.f32.mrf.mxu0
    %2867 = vdwg.mxu0
    %v2868 = vmul.f32 %v2614, 0.01
    %v2869 = vmul.f32 %v2617, 0.01
    %v2870 = vmul.f32 %v2622, 0.01
    %v2871 = vmul.f32 %v2625, 0.01
    %v2872 = vmul.f32 %v2630, 0.01
    %v2873 = vmul.f32 %v2633, 0.01
    %v2874 = vmul.f32 %v2638, 0.01
    %v2875 = vmul.f32 %v2641, 0.01
    %v2876 = vmul.f32 %v2646, 0.01
    %v2877 = vmul.f32 %v2649, 0.01
    %v2878 = vmul.f32 %v2654, 0.01
    %v2879 = vmul.f32 %v2657, 0.01
    %v2880 = vmul.f32 %v2662, 0.01
    %v2881 = vmul.f32 %v2665, 0.01
    %v2882 = vmul.f32 %v2670, 0.01
    %v2883 = vmul.f32 %v2673, 0.01
    %v2884 = vmul.f32 %v2678, 0.01
    %v2885 = vmul.f32 %v2681, 0.01
    %v2886 = vmul.f32 %v2686, 0.01
    %v2887 = vmul.f32 %v2689, 0.01
    %v2888 = vmul.f32 %v2694, 0.01
    %v2889 = vmul.f32 %v2697, 0.01
    %v2890 = vmul.f32 %v2702, 0.01
    %v2891 = vmul.f32 %v2705, 0.01
    %v2892 = vmul.f32 %v2710, 0.01
    %v2893 = vmul.f32 %v2713, 0.01
    %v2894 = vmul.f32 %v2718, 0.01
    %v2895 = vmul.f32 %v2721, 0.01
    %v2896 = vmul.f32 %v2726, 0.01
    %v2897 = vmul.f32 %v2729, 0.01
    %v2898 = vmul.f32 %v2734, 0.01
    %v2899 = vmul.f32 %v2737, 0.01
    %v2900 = vmul.f32 %v2742, 0.01
    %v2901 = vmul.f32 %v2745, 0.01
    %v2902 = vmul.f32 %v2750, 0.01
    %v2903 = vmul.f32 %v2753, 0.01
    %v2904 = vmul.f32 %v2758, 0.01
    %v2905 = vmul.f32 %v2761, 0.01
    %v2906 = vmul.f32 %v2766, 0.01
    %v2907 = vmul.f32 %v2769, 0.01
    %v2908 = vmul.f32 %v2774, 0.01
    %v2909 = vmul.f32 %v2777, 0.01
    %v2910 = vmul.f32 %v2782, 0.01
    %v2911 = vmul.f32 %v2785, 0.01
    %v2912 = vmul.f32 %v2790, 0.01
    %v2913 = vmul.f32 %v2793, 0.01
    %v2914 = vmul.f32 %v2798, 0.01
    %v2915 = vmul.f32 %v2801, 0.01
    %v2916 = vmul.f32 %v2806, 0.01
    %v2917 = vmul.f32 %v2809, 0.01
    %v2918 = vmul.f32 %v2814, 0.01
    %v2919 = vmul.f32 %v2817, 0.01
    %v2920 = vmul.f32 %v2822, 0.01
    %v2921 = vmul.f32 %v2825, 0.01
    %v2922 = vmul.f32 %v2830, 0.01
    %v2923 = vmul.f32 %v2833, 0.01
    %v2924 = vmul.f32 %v2838, 0.01
    %v2925 = vmul.f32 %v2841, 0.01
    %v2926 = vmul.f32 %v2846, 0.01
    %v2927 = vmul.f32 %v2849, 0.01
    %v2928 = vmul.f32 %v2854, 0.01
    %v2929 = vmul.f32 %v2857, 0.01
    %v2930 = vmul.f32 %v2862, 0.01
    %v2931 = vmul.f32 %v2865, 0.01
    %v2932 = vmax.f32 %v2614, %v2868
    %v2933 = vmax.f32 %v2617, %v2869
    %v2934 = vmax.f32 %v2622, %v2870
    %v2935 = vmax.f32 %v2625, %v2871
    %v2936 = vmax.f32 %v2630, %v2872
    %v2937 = vmax.f32 %v2633, %v2873
    %v2938 = vmax.f32 %v2638, %v2874
    %v2939 = vmax.f32 %v2641, %v2875
    %v2940 = vmax.f32 %v2646, %v2876
    %v2941 = vmax.f32 %v2649, %v2877
    %v2942 = vmax.f32 %v2654, %v2878
    %v2943 = vmax.f32 %v2657, %v2879
    %v2944 = vmax.f32 %v2662, %v2880
    %v2945 = vmax.f32 %v2665, %v2881
    %v2946 = vmax.f32 %v2670, %v2882
    %v2947 = vmax.f32 %v2673, %v2883
    %v2948 = vmax.f32 %v2678, %v2884
    %v2949 = vmax.f32 %v2681, %v2885
    %v2950 = vmax.f32 %v2686, %v2886
    %v2951 = vmax.f32 %v2689, %v2887
    %v2952 = vmax.f32 %v2694, %v2888
    %v2953 = vmax.f32 %v2697, %v2889
    %v2954 = vmax.f32 %v2702, %v2890
    %v2955 = vmax.f32 %v2705, %v2891
    %v2956 = vmax.f32 %v2710, %v2892
    %v2957 = vmax.f32 %v2713, %v2893
    %v2958 = vmax.f32 %v2718, %v2894
    %v2959 = vmax.f32 %v2721, %v2895
    %v2960 = vmax.f32 %v2726, %v2896
    %v2961 = vmax.f32 %v2729, %v2897
    %v2962 = vmax.f32 %v2734, %v2898
    %v2963 = vmax.f32 %v2737, %v2899
    %v2964 = vmax.f32 %v2742, %v2900
    %v2965 = vmax.f32 %v2745, %v2901
    %v2966 = vmax.f32 %v2750, %v2902
    %v2967 = vmax.f32 %v2753, %v2903
    %v2968 = vmax.f32 %v2758, %v2904
    %v2969 = vmax.f32 %v2761, %v2905
    %v2970 = vmax.f32 %v2766, %v2906
    %v2971 = vmax.f32 %v2769, %v2907
    %v2972 = vmax.f32 %v2774, %v2908
    %v2973 = vmax.f32 %v2777, %v2909
    %v2974 = vmax.f32 %v2782, %v2910
    %v2975 = vmax.f32 %v2785, %v2911
    %v2976 = vmax.f32 %v2790, %v2912
    %v2977 = vmax.f32 %v2793, %v2913
    %v2978 = vmax.f32 %v2798, %v2914
    %v2979 = vmax.f32 %v2801, %v2915
    %v2980 = vmax.f32 %v2806, %v2916
    %v2981 = vmax.f32 %v2809, %v2917
    %v2982 = vmax.f32 %v2814, %v2918
    %v2983 = vmax.f32 %v2817, %v2919
    %v2984 = vmax.f32 %v2822, %v2920
    %v2985 = vmax.f32 %v2825, %v2921
    %v2986 = vmax.f32 %v2830, %v2922
    %v2987 = vmax.f32 %v2833, %v2923
    %v2988 = vmax.f32 %v2838, %v2924
    %v2989 = vmax.f32 %v2841, %v2925
    %v2990 = vmax.f32 %v2846, %v2926
    %v2991 = vmax.f32 %v2849, %v2927
    %v2992 = vmax.f32 %v2854, %v2928
    %v2993 = vmax.f32 %v2857, %v2929
    %v2994 = vmax.f32 %v2862, %v2930
    %v2995 = vmax.f32 %v2865, %v2931
    %v2996 = vpack.c.bf16 %v2933, %v2932
    %v2997 = vpack.c.bf16 %v2935, %v2934
    %v2998 = vpack.c.bf16 %v2937, %v2936
    %v2999 = vpack.c.bf16 %v2939, %v2938
    %v3000 = vpack.c.bf16 %v2941, %v2940
    %v3001 = vpack.c.bf16 %v2943, %v2942
    %v3002 = vpack.c.bf16 %v2945, %v2944
    %v3003 = vpack.c.bf16 %v2947, %v2946
    %v3004 = vpack.c.bf16 %v2949, %v2948
    %v3005 = vpack.c.bf16 %v2951, %v2950
    %v3006 = vpack.c.bf16 %v2953, %v2952
    %v3007 = vpack.c.bf16 %v2955, %v2954
    %v3008 = vpack.c.bf16 %v2957, %v2956
    %v3009 = vpack.c.bf16 %v2959, %v2958
    %v3010 = vpack.c.bf16 %v2961, %v2960
    %v3011 = vpack.c.bf16 %v2963, %v2962
    %v3012 = vpack.c.bf16 %v2965, %v2964
    %v3013 = vpack.c.bf16 %v2967, %v2966
    %v3014 = vpack.c.bf16 %v2969, %v2968
    %v3015 = vpack.c.bf16 %v2971, %v2970
    %v3016 = vpack.c.bf16 %v2973, %v2972
    %v3017 = vpack.c.bf16 %v2975, %v2974
    %v3018 = vpack.c.bf16 %v2977, %v2976
    %v3019 = vpack.c.bf16 %v2979, %v2978
    %v3020 = vpack.c.bf16 %v2981, %v2980
    %v3021 = vpack.c.bf16 %v2983, %v2982
    %v3022 = vpack.c.bf16 %v2985, %v2984
    %v3023 = vpack.c.bf16 %v2987, %v2986
    %v3024 = vpack.c.bf16 %v2989, %v2988
    %v3025 = vpack.c.bf16 %v2991, %v2990
    %v3026 = vpack.c.bf16 %v2993, %v2992
    %v3027 = vpack.c.bf16 %v2995, %v2994
    %s3028 = scalar_lea.vmem %s3, 128
    %v3029 = vld [vmem:[%s3028] sm:$0xf]
    %v3030 = vld [vmem:[%s3028 + $0x4] sm:$0xf]
    %v3031 = vld [vmem:[%s3028 + $0x8] sm:$0xf]
    %v3032 = vld [vmem:[%s3028 + $0xc] sm:$0xf]
    %v3033 = vld [vmem:[%s3028 + $0x10] sm:$0xf]
    %v3034 = vld [vmem:[%s3028 + $0x14] sm:$0xf]
    %v3035 = vld [vmem:[%s3028 + $0x18] sm:$0xf]
    %v3036 = vld [vmem:[%s3028 + $0x1c] sm:$0xf]
    %s3037 = scalar_lea.vmem %s4, 4
    %v3038 = vld [vmem:[%s3037] sm:$0x1]
    %v3040 = vlaneseq
    %v3041 = vshrl.u32 %v3040, 7
    %v3042 = vsub.s32 0, %v3041
    %v3043 = vrot.slane %v3038, %v3042
    %v3053 = vunpack.c.l.b16 %v3029
    %v3054 = vunpack.c.l.b16 %v3030
    %v3055 = vunpack.c.l.b16 %v3031
    %v3056 = vunpack.c.l.b16 %v3032
    %v3057 = vunpack.c.l.b16 %v3033
    %v3058 = vunpack.c.l.b16 %v3034
    %v3059 = vunpack.c.l.b16 %v3035
    %v3060 = vunpack.c.l.b16 %v3036
    %v3061 = vpack.c.b16 %v3054, %v3053
    %v3062 = vpack.c.b16 %v3056, %v3055
    %v3063 = vpack.c.b16 %v3058, %v3057
    %v3064 = vpack.c.b16 %v3060, %v3059
    %v3070 = vsel %vm724, %v2996, 0
    %v3073 = vsel %vm724, %v2997, 0
    %v3076 = vsel %vm724, %v2998, 0
    %v3079 = vsel %vm724, %v2999, 0
    %v3082 = vsel %vm724, %v3000, 0
    %v3085 = vsel %vm724, %v3001, 0
    %v3088 = vsel %vm724, %v3002, 0
    %v3091 = vsel %vm724, %v3003, 0
    %v3094 = vsel %vm724, %v3004, 0
    %v3097 = vsel %vm724, %v3005, 0
    %v3100 = vsel %vm724, %v3006, 0
    %v3103 = vsel %vm724, %v3007, 0
    %v3106 = vsel %vm724, %v3008, 0
    %v3109 = vsel %vm724, %v3009, 0
    %v3112 = vsel %vm724, %v3010, 0
    %v3115 = vsel %vm724, %v3011, 0
    %v3118 = vsel %vm724, %v3012, 0
    %v3121 = vsel %vm724, %v3013, 0
    %v3124 = vsel %vm724, %v3014, 0
    %v3127 = vsel %vm724, %v3015, 0
    %v3130 = vsel %vm724, %v3016, 0
    %v3133 = vsel %vm724, %v3017, 0
    %v3136 = vsel %vm724, %v3018, 0
    %v3139 = vsel %vm724, %v3019, 0
    %v3142 = vsel %vm724, %v3020, 0
    %v3145 = vsel %vm724, %v3021, 0
    %v3148 = vsel %vm724, %v3022, 0
    %v3151 = vsel %vm724, %v3023, 0
    %v3154 = vsel %vm724, %v3024, 0
    %v3157 = vsel %vm724, %v3025, 0
    %v3160 = vsel %vm724, %v3026, 0
    %v3163 = vsel %vm724, %v3027, 0
    %3165 = vmatprep.subr.bf16.mxu0 0
    %3166 = vmatpush1.bf16.msra.mxu0 0
    %3167 = vmatprep.subr.bf16.mxu0 0
    %3168 = vmatpush1.bf16.msra.mxu0 0
    %3169 = vmatprep.subr.bf16.mxu0 0
    %3170 = vmatpush1.bf16.msra.mxu0 0
    %3171 = vmatprep.subr.bf16.mxu0 0
    %3172 = vmatpush1.bf16.msra.mxu0 0
    %3173 = vmatprep.subr.bf16.mxu0 0
    %3174 = vmatpush1.bf16.msra.mxu0 %v3064
    %3175 = vmatprep.subr.bf16.mxu0 0
    %3176 = vmatpush1.bf16.msra.mxu0 %v3063
    %3177 = vmatprep.subr.bf16.mxu0 0
    %3178 = vmatpush1.bf16.msra.mxu0 %v3062
    %3179 = vmatprep.subr.bf16.mxu0 0
    %3180 = vmatpush1.bf16.msra.mxu0 %v3061
    %3181 = vmatprep.subr.bf16.mxu0 0
    %3182 = vmatpush2.bf16.msra.mxu0 0
    %3183 = vmatprep.subr.bf16.mxu0 0
    %3184 = vmatpush2.bf16.msra.mxu0 0
    %3185 = vmatprep.subr.bf16.mxu0 0
    %3186 = vmatpush2.bf16.msra.mxu0 0
    %3187 = vmatprep.subr.bf16.mxu0 0
    %3188 = vmatpush2.bf16.msra.mxu0 0
    %3189 = vmatprep.subr.bf16.mxu0 0
    %3190 = vmatpush2.bf16.msra.mxu0 0
    %3191 = vmatprep.subr.bf16.mxu0 0
    %3192 = vmatpush2.bf16.msra.mxu0 0
    %3193 = vmatprep.subr.bf16.mxu0 0
    %3194 = vmatpush2.bf16.msra.mxu0 0
    %3195 = vmatprep.subr.bf16.mxu0 0
    %3196 = vmatpush2.bf16.msra.mxu0 0
    %3197 = vmatprep.mubr.bf16.mxu0 0
    %3198 = vmatmul.mubr.bf16.gmra.mxu0 %v3070
    %v3199 = vpop.f32.mrf.mxu0
    %v3200 = vadd.f32 %v3043, %v3199
    %v3201 = vpop.f32.mrf.mxu0
    %v3202 = vpop.f32.mrf.mxu0
    %v3203 = vadd.f32 %v3043, %v3202
    %v3204 = vpop.f32.mrf.mxu0
    %3205 = vmatprep.mubr.bf16.mxu0 0
    %3206 = vmatmul.mubr.bf16.gmra.mxu0 %v3073
    %v3207 = vpop.f32.mrf.mxu0
    %v3208 = vadd.f32 %v3043, %v3207
    %v3209 = vpop.f32.mrf.mxu0
    %v3210 = vpop.f32.mrf.mxu0
    %v3211 = vadd.f32 %v3043, %v3210
    %v3212 = vpop.f32.mrf.mxu0
    %3213 = vmatprep.mubr.bf16.mxu0 0
    %3214 = vmatmul.mubr.bf16.gmra.mxu0 %v3076
    %v3215 = vpop.f32.mrf.mxu0
    %v3216 = vadd.f32 %v3043, %v3215
    %v3217 = vpop.f32.mrf.mxu0
    %v3218 = vpop.f32.mrf.mxu0
    %v3219 = vadd.f32 %v3043, %v3218
    %v3220 = vpop.f32.mrf.mxu0
    %3221 = vmatprep.mubr.bf16.mxu0 0
    %3222 = vmatmul.mubr.bf16.gmra.mxu0 %v3079
    %v3223 = vpop.f32.mrf.mxu0
    %v3224 = vadd.f32 %v3043, %v3223
    %v3225 = vpop.f32.mrf.mxu0
    %v3226 = vpop.f32.mrf.mxu0
    %v3227 = vadd.f32 %v3043, %v3226
    %v3228 = vpop.f32.mrf.mxu0
    %3229 = vmatprep.mubr.bf16.mxu0 0
    %3230 = vmatmul.mubr.bf16.gmra.mxu0 %v3082
    %v3231 = vpop.f32.mrf.mxu0
    %v3232 = vadd.f32 %v3043, %v3231
    %v3233 = vpop.f32.mrf.mxu0
    %v3234 = vpop.f32.mrf.mxu0
    %v3235 = vadd.f32 %v3043, %v3234
    %v3236 = vpop.f32.mrf.mxu0
    %3237 = vmatprep.mubr.bf16.mxu0 0
    %3238 = vmatmul.mubr.bf16.gmra.mxu0 %v3085
    %v3239 = vpop.f32.mrf.mxu0
    %v3240 = vadd.f32 %v3043, %v3239
    %v3241 = vpop.f32.mrf.mxu0
    %v3242 = vpop.f32.mrf.mxu0
    %v3243 = vadd.f32 %v3043, %v3242
    %v3244 = vpop.f32.mrf.mxu0
    %3245 = vmatprep.mubr.bf16.mxu0 0
    %3246 = vmatmul.mubr.bf16.gmra.mxu0 %v3088
    %v3247 = vpop.f32.mrf.mxu0
    %v3248 = vadd.f32 %v3043, %v3247
    %v3249 = vpop.f32.mrf.mxu0
    %v3250 = vpop.f32.mrf.mxu0
    %v3251 = vadd.f32 %v3043, %v3250
    %v3252 = vpop.f32.mrf.mxu0
    %3253 = vmatprep.mubr.bf16.mxu0 0
    %3254 = vmatmul.mubr.bf16.gmra.mxu0 %v3091
    %v3255 = vpop.f32.mrf.mxu0
    %v3256 = vadd.f32 %v3043, %v3255
    %v3257 = vpop.f32.mrf.mxu0
    %v3258 = vpop.f32.mrf.mxu0
    %v3259 = vadd.f32 %v3043, %v3258
    %v3260 = vpop.f32.mrf.mxu0
    %3261 = vmatprep.mubr.bf16.mxu0 0
    %3262 = vmatmul.mubr.bf16.gmra.mxu0 %v3094
    %v3263 = vpop.f32.mrf.mxu0
    %v3264 = vadd.f32 %v3043, %v3263
    %v3265 = vpop.f32.mrf.mxu0
    %v3266 = vpop.f32.mrf.mxu0
    %v3267 = vadd.f32 %v3043, %v3266
    %v3268 = vpop.f32.mrf.mxu0
    %3269 = vmatprep.mubr.bf16.mxu0 0
    %3270 = vmatmul.mubr.bf16.gmra.mxu0 %v3097
    %v3271 = vpop.f32.mrf.mxu0
    %v3272 = vadd.f32 %v3043, %v3271
    %v3273 = vpop.f32.mrf.mxu0
    %v3274 = vpop.f32.mrf.mxu0
    %v3275 = vadd.f32 %v3043, %v3274
    %v3276 = vpop.f32.mrf.mxu0
    %3277 = vmatprep.mubr.bf16.mxu0 0
    %3278 = vmatmul.mubr.bf16.gmra.mxu0 %v3100
    %v3279 = vpop.f32.mrf.mxu0
    %v3280 = vadd.f32 %v3043, %v3279
    %v3281 = vpop.f32.mrf.mxu0
    %v3282 = vpop.f32.mrf.mxu0
    %v3283 = vadd.f32 %v3043, %v3282
    %v3284 = vpop.f32.mrf.mxu0
    %3285 = vmatprep.mubr.bf16.mxu0 0
    %3286 = vmatmul.mubr.bf16.gmra.mxu0 %v3103
    %v3287 = vpop.f32.mrf.mxu0
    %v3288 = vadd.f32 %v3043, %v3287
    %v3289 = vpop.f32.mrf.mxu0
    %v3290 = vpop.f32.mrf.mxu0
    %v3291 = vadd.f32 %v3043, %v3290
    %v3292 = vpop.f32.mrf.mxu0
    %3293 = vmatprep.mubr.bf16.mxu0 0
    %3294 = vmatmul.mubr.bf16.gmra.mxu0 %v3106
    %v3295 = vpop.f32.mrf.mxu0
    %v3296 = vadd.f32 %v3043, %v3295
    %v3297 = vpop.f32.mrf.mxu0
    %v3298 = vpop.f32.mrf.mxu0
    %v3299 = vadd.f32 %v3043, %v3298
    %v3300 = vpop.f32.mrf.mxu0
    %3301 = vmatprep.mubr.bf16.mxu0 0
    %3302 = vmatmul.mubr.bf16.gmra.mxu0 %v3109
    %v3303 = vpop.f32.mrf.mxu0
    %v3304 = vadd.f32 %v3043, %v3303
    %v3305 = vpop.f32.mrf.mxu0
    %v3306 = vpop.f32.mrf.mxu0
    %v3307 = vadd.f32 %v3043, %v3306
    %v3308 = vpop.f32.mrf.mxu0
    %3309 = vmatprep.mubr.bf16.mxu0 0
    %3310 = vmatmul.mubr.bf16.gmra.mxu0 %v3112
    %v3311 = vpop.f32.mrf.mxu0
    %v3312 = vadd.f32 %v3043, %v3311
    %v3313 = vpop.f32.mrf.mxu0
    %v3314 = vpop.f32.mrf.mxu0
    %v3315 = vadd.f32 %v3043, %v3314
    %v3316 = vpop.f32.mrf.mxu0
    %3317 = vmatprep.mubr.bf16.mxu0 0
    %3318 = vmatmul.mubr.bf16.gmra.mxu0 %v3115
    %v3319 = vpop.f32.mrf.mxu0
    %v3320 = vadd.f32 %v3043, %v3319
    %v3321 = vpop.f32.mrf.mxu0
    %v3322 = vpop.f32.mrf.mxu0
    %v3323 = vadd.f32 %v3043, %v3322
    %v3324 = vpop.f32.mrf.mxu0
    %3325 = vmatprep.mubr.bf16.mxu0 0
    %3326 = vmatmul.mubr.bf16.gmra.mxu0 %v3118
    %v3327 = vpop.f32.mrf.mxu0
    %v3328 = vadd.f32 %v3043, %v3327
    %v3329 = vpop.f32.mrf.mxu0
    %v3330 = vpop.f32.mrf.mxu0
    %v3331 = vadd.f32 %v3043, %v3330
    %v3332 = vpop.f32.mrf.mxu0
    %3333 = vmatprep.mubr.bf16.mxu0 0
    %3334 = vmatmul.mubr.bf16.gmra.mxu0 %v3121
    %v3335 = vpop.f32.mrf.mxu0
    %v3336 = vadd.f32 %v3043, %v3335
    %v3337 = vpop.f32.mrf.mxu0
    %v3338 = vpop.f32.mrf.mxu0
    %v3339 = vadd.f32 %v3043, %v3338
    %v3340 = vpop.f32.mrf.mxu0
    %3341 = vmatprep.mubr.bf16.mxu0 0
    %3342 = vmatmul.mubr.bf16.gmra.mxu0 %v3124
    %v3343 = vpop.f32.mrf.mxu0
    %v3344 = vadd.f32 %v3043, %v3343
    %v3345 = vpop.f32.mrf.mxu0
    %v3346 = vpop.f32.mrf.mxu0
    %v3347 = vadd.f32 %v3043, %v3346
    %v3348 = vpop.f32.mrf.mxu0
    %3349 = vmatprep.mubr.bf16.mxu0 0
    %3350 = vmatmul.mubr.bf16.gmra.mxu0 %v3127
    %v3351 = vpop.f32.mrf.mxu0
    %v3352 = vadd.f32 %v3043, %v3351
    %v3353 = vpop.f32.mrf.mxu0
    %v3354 = vpop.f32.mrf.mxu0
    %v3355 = vadd.f32 %v3043, %v3354
    %v3356 = vpop.f32.mrf.mxu0
    %3357 = vmatprep.mubr.bf16.mxu0 0
    %3358 = vmatmul.mubr.bf16.gmra.mxu0 %v3130
    %v3359 = vpop.f32.mrf.mxu0
    %v3360 = vadd.f32 %v3043, %v3359
    %v3361 = vpop.f32.mrf.mxu0
    %v3362 = vpop.f32.mrf.mxu0
    %v3363 = vadd.f32 %v3043, %v3362
    %v3364 = vpop.f32.mrf.mxu0
    %3365 = vmatprep.mubr.bf16.mxu0 0
    %3366 = vmatmul.mubr.bf16.gmra.mxu0 %v3133
    %v3367 = vpop.f32.mrf.mxu0
    %v3368 = vadd.f32 %v3043, %v3367
    %v3369 = vpop.f32.mrf.mxu0
    %v3370 = vpop.f32.mrf.mxu0
    %v3371 = vadd.f32 %v3043, %v3370
    %v3372 = vpop.f32.mrf.mxu0
    %3373 = vmatprep.mubr.bf16.mxu0 0
    %3374 = vmatmul.mubr.bf16.gmra.mxu0 %v3136
    %v3375 = vpop.f32.mrf.mxu0
    %v3376 = vadd.f32 %v3043, %v3375
    %v3377 = vpop.f32.mrf.mxu0
    %v3378 = vpop.f32.mrf.mxu0
    %v3379 = vadd.f32 %v3043, %v3378
    %v3380 = vpop.f32.mrf.mxu0
    %3381 = vmatprep.mubr.bf16.mxu0 0
    %3382 = vmatmul.mubr.bf16.gmra.mxu0 %v3139
    %v3383 = vpop.f32.mrf.mxu0
    %v3384 = vadd.f32 %v3043, %v3383
    %v3385 = vpop.f32.mrf.mxu0
    %v3386 = vpop.f32.mrf.mxu0
    %v3387 = vadd.f32 %v3043, %v3386
    %v3388 = vpop.f32.mrf.mxu0
    %3389 = vmatprep.mubr.bf16.mxu0 0
    %3390 = vmatmul.mubr.bf16.gmra.mxu0 %v3142
    %v3391 = vpop.f32.mrf.mxu0
    %v3392 = vadd.f32 %v3043, %v3391
    %v3393 = vpop.f32.mrf.mxu0
    %v3394 = vpop.f32.mrf.mxu0
    %v3395 = vadd.f32 %v3043, %v3394
    %v3396 = vpop.f32.mrf.mxu0
    %3397 = vmatprep.mubr.bf16.mxu0 0
    %3398 = vmatmul.mubr.bf16.gmra.mxu0 %v3145
    %v3399 = vpop.f32.mrf.mxu0
    %v3400 = vadd.f32 %v3043, %v3399
    %v3401 = vpop.f32.mrf.mxu0
    %v3402 = vpop.f32.mrf.mxu0
    %v3403 = vadd.f32 %v3043, %v3402
    %v3404 = vpop.f32.mrf.mxu0
    %3405 = vmatprep.mubr.bf16.mxu0 0
    %3406 = vmatmul.mubr.bf16.gmra.mxu0 %v3148
    %v3407 = vpop.f32.mrf.mxu0
    %v3408 = vadd.f32 %v3043, %v3407
    %v3409 = vpop.f32.mrf.mxu0
    %v3410 = vpop.f32.mrf.mxu0
    %v3411 = vadd.f32 %v3043, %v3410
    %v3412 = vpop.f32.mrf.mxu0
    %3413 = vmatprep.mubr.bf16.mxu0 0
    %3414 = vmatmul.mubr.bf16.gmra.mxu0 %v3151
    %v3415 = vpop.f32.mrf.mxu0
    %v3416 = vadd.f32 %v3043, %v3415
    %v3417 = vpop.f32.mrf.mxu0
    %v3418 = vpop.f32.mrf.mxu0
    %v3419 = vadd.f32 %v3043, %v3418
    %v3420 = vpop.f32.mrf.mxu0
    %3421 = vmatprep.mubr.bf16.mxu0 0
    %3422 = vmatmul.mubr.bf16.gmra.mxu0 %v3154
    %v3423 = vpop.f32.mrf.mxu0
    %v3424 = vadd.f32 %v3043, %v3423
    %v3425 = vpop.f32.mrf.mxu0
    %v3426 = vpop.f32.mrf.mxu0
    %v3427 = vadd.f32 %v3043, %v3426
    %v3428 = vpop.f32.mrf.mxu0
    %3429 = vmatprep.mubr.bf16.mxu0 0
    %3430 = vmatmul.mubr.bf16.gmra.mxu0 %v3157
    %v3431 = vpop.f32.mrf.mxu0
    %v3432 = vadd.f32 %v3043, %v3431
    %v3433 = vpop.f32.mrf.mxu0
    %v3434 = vpop.f32.mrf.mxu0
    %v3435 = vadd.f32 %v3043, %v3434
    %v3436 = vpop.f32.mrf.mxu0
    %3437 = vmatprep.mubr.bf16.mxu0 0
    %3438 = vmatmul.mubr.bf16.gmra.mxu0 %v3160
    %v3439 = vpop.f32.mrf.mxu0
    %v3440 = vadd.f32 %v3043, %v3439
    %v3441 = vpop.f32.mrf.mxu0
    %v3442 = vpop.f32.mrf.mxu0
    %v3443 = vadd.f32 %v3043, %v3442
    %v3444 = vpop.f32.mrf.mxu0
    %3445 = vmatprep.mubr.bf16.mxu0 0
    %3446 = vmatmul.mubr.bf16.gmra.mxu0 %v3163
    %v3447 = vpop.f32.mrf.mxu0
    %v3448 = vadd.f32 %v3043, %v3447
    %v3449 = vpop.f32.mrf.mxu0
    %v3450 = vpop.f32.mrf.mxu0
    %v3451 = vadd.f32 %v3043, %v3450
    %v3452 = vpop.f32.mrf.mxu0
    %3453 = vdwg.mxu0
    %v3454 = vmul.f32 %v3200, 0.01
    %v3455 = vmul.f32 %v3203, 0.01
    %v3456 = vmul.f32 %v3208, 0.01
    %v3457 = vmul.f32 %v3211, 0.01
    %v3458 = vmul.f32 %v3216, 0.01
    %v3459 = vmul.f32 %v3219, 0.01
    %v3460 = vmul.f32 %v3224, 0.01
    %v3461 = vmul.f32 %v3227, 0.01
    %v3462 = vmul.f32 %v3232, 0.01
    %v3463 = vmul.f32 %v3235, 0.01
    %v3464 = vmul.f32 %v3240, 0.01
    %v3465 = vmul.f32 %v3243, 0.01
    %v3466 = vmul.f32 %v3248, 0.01
    %v3467 = vmul.f32 %v3251, 0.01
    %v3468 = vmul.f32 %v3256, 0.01
    %v3469 = vmul.f32 %v3259, 0.01
    %v3470 = vmul.f32 %v3264, 0.01
    %v3471 = vmul.f32 %v3267, 0.01
    %v3472 = vmul.f32 %v3272, 0.01
    %v3473 = vmul.f32 %v3275, 0.01
    %v3474 = vmul.f32 %v3280, 0.01
    %v3475 = vmul.f32 %v3283, 0.01
    %v3476 = vmul.f32 %v3288, 0.01
    %v3477 = vmul.f32 %v3291, 0.01
    %v3478 = vmul.f32 %v3296, 0.01
    %v3479 = vmul.f32 %v3299, 0.01
    %v3480 = vmul.f32 %v3304, 0.01
    %v3481 = vmul.f32 %v3307, 0.01
    %v3482 = vmul.f32 %v3312, 0.01
    %v3483 = vmul.f32 %v3315, 0.01
    %v3484 = vmul.f32 %v3320, 0.01
    %v3485 = vmul.f32 %v3323, 0.01
    %v3486 = vmul.f32 %v3328, 0.01
    %v3487 = vmul.f32 %v3331, 0.01
    %v3488 = vmul.f32 %v3336, 0.01
    %v3489 = vmul.f32 %v3339, 0.01
    %v3490 = vmul.f32 %v3344, 0.01
    %v3491 = vmul.f32 %v3347, 0.01
    %v3492 = vmul.f32 %v3352, 0.01
    %v3493 = vmul.f32 %v3355, 0.01
    %v3494 = vmul.f32 %v3360, 0.01
    %v3495 = vmul.f32 %v3363, 0.01
    %v3496 = vmul.f32 %v3368, 0.01
    %v3497 = vmul.f32 %v3371, 0.01
    %v3498 = vmul.f32 %v3376, 0.01
    %v3499 = vmul.f32 %v3379, 0.01
    %v3500 = vmul.f32 %v3384, 0.01
    %v3501 = vmul.f32 %v3387, 0.01
    %v3502 = vmul.f32 %v3392, 0.01
    %v3503 = vmul.f32 %v3395, 0.01
    %v3504 = vmul.f32 %v3400, 0.01
    %v3505 = vmul.f32 %v3403, 0.01
    %v3506 = vmul.f32 %v3408, 0.01
    %v3507 = vmul.f32 %v3411, 0.01
    %v3508 = vmul.f32 %v3416, 0.01
    %v3509 = vmul.f32 %v3419, 0.01
    %v3510 = vmul.f32 %v3424, 0.01
    %v3511 = vmul.f32 %v3427, 0.01
    %v3512 = vmul.f32 %v3432, 0.01
    %v3513 = vmul.f32 %v3435, 0.01
    %v3514 = vmul.f32 %v3440, 0.01
    %v3515 = vmul.f32 %v3443, 0.01
    %v3516 = vmul.f32 %v3448, 0.01
    %v3517 = vmul.f32 %v3451, 0.01
    %v3518 = vmax.f32 %v3200, %v3454
    %v3519 = vmax.f32 %v3203, %v3455
    %v3520 = vmax.f32 %v3208, %v3456
    %v3521 = vmax.f32 %v3211, %v3457
    %v3522 = vmax.f32 %v3216, %v3458
    %v3523 = vmax.f32 %v3219, %v3459
    %v3524 = vmax.f32 %v3224, %v3460
    %v3525 = vmax.f32 %v3227, %v3461
    %v3526 = vmax.f32 %v3232, %v3462
    %v3527 = vmax.f32 %v3235, %v3463
    %v3528 = vmax.f32 %v3240, %v3464
    %v3529 = vmax.f32 %v3243, %v3465
    %v3530 = vmax.f32 %v3248, %v3466
    %v3531 = vmax.f32 %v3251, %v3467
    %v3532 = vmax.f32 %v3256, %v3468
    %v3533 = vmax.f32 %v3259, %v3469
    %v3534 = vmax.f32 %v3264, %v3470
    %v3535 = vmax.f32 %v3267, %v3471
    %v3536 = vmax.f32 %v3272, %v3472
    %v3537 = vmax.f32 %v3275, %v3473
    %v3538 = vmax.f32 %v3280, %v3474
    %v3539 = vmax.f32 %v3283, %v3475
    %v3540 = vmax.f32 %v3288, %v3476
    %v3541 = vmax.f32 %v3291, %v3477
    %v3542 = vmax.f32 %v3296, %v3478
    %v3543 = vmax.f32 %v3299, %v3479
    %v3544 = vmax.f32 %v3304, %v3480
    %v3545 = vmax.f32 %v3307, %v3481
    %v3546 = vmax.f32 %v3312, %v3482
    %v3547 = vmax.f32 %v3315, %v3483
    %v3548 = vmax.f32 %v3320, %v3484
    %v3549 = vmax.f32 %v3323, %v3485
    %v3550 = vmax.f32 %v3328, %v3486
    %v3551 = vmax.f32 %v3331, %v3487
    %v3552 = vmax.f32 %v3336, %v3488
    %v3553 = vmax.f32 %v3339, %v3489
    %v3554 = vmax.f32 %v3344, %v3490
    %v3555 = vmax.f32 %v3347, %v3491
    %v3556 = vmax.f32 %v3352, %v3492
    %v3557 = vmax.f32 %v3355, %v3493
    %v3558 = vmax.f32 %v3360, %v3494
    %v3559 = vmax.f32 %v3363, %v3495
    %v3560 = vmax.f32 %v3368, %v3496
    %v3561 = vmax.f32 %v3371, %v3497
    %v3562 = vmax.f32 %v3376, %v3498
    %v3563 = vmax.f32 %v3379, %v3499
    %v3564 = vmax.f32 %v3384, %v3500
    %v3565 = vmax.f32 %v3387, %v3501
    %v3566 = vmax.f32 %v3392, %v3502
    %v3567 = vmax.f32 %v3395, %v3503
    %v3568 = vmax.f32 %v3400, %v3504
    %v3569 = vmax.f32 %v3403, %v3505
    %v3570 = vmax.f32 %v3408, %v3506
    %v3571 = vmax.f32 %v3411, %v3507
    %v3572 = vmax.f32 %v3416, %v3508
    %v3573 = vmax.f32 %v3419, %v3509
    %v3574 = vmax.f32 %v3424, %v3510
    %v3575 = vmax.f32 %v3427, %v3511
    %v3576 = vmax.f32 %v3432, %v3512
    %v3577 = vmax.f32 %v3435, %v3513
    %v3578 = vmax.f32 %v3440, %v3514
    %v3579 = vmax.f32 %v3443, %v3515
    %v3580 = vmax.f32 %v3448, %v3516
    %v3581 = vmax.f32 %v3451, %v3517
    %v3582 = vpack.c.bf16 %v3519, %v3518
    %v3583 = vpack.c.bf16 %v3521, %v3520
    %v3584 = vpack.c.bf16 %v3523, %v3522
    %v3585 = vpack.c.bf16 %v3525, %v3524
    %v3586 = vpack.c.bf16 %v3527, %v3526
    %v3587 = vpack.c.bf16 %v3529, %v3528
    %v3588 = vpack.c.bf16 %v3531, %v3530
    %v3589 = vpack.c.bf16 %v3533, %v3532
    %v3590 = vpack.c.bf16 %v3535, %v3534
    %v3591 = vpack.c.bf16 %v3537, %v3536
    %v3592 = vpack.c.bf16 %v3539, %v3538
    %v3593 = vpack.c.bf16 %v3541, %v3540
    %v3594 = vpack.c.bf16 %v3543, %v3542
    %v3595 = vpack.c.bf16 %v3545, %v3544
    %v3596 = vpack.c.bf16 %v3547, %v3546
    %v3597 = vpack.c.bf16 %v3549, %v3548
    %v3598 = vpack.c.bf16 %v3551, %v3550
    %v3599 = vpack.c.bf16 %v3553, %v3552
    %v3600 = vpack.c.bf16 %v3555, %v3554
    %v3601 = vpack.c.bf16 %v3557, %v3556
    %v3602 = vpack.c.bf16 %v3559, %v3558
    %v3603 = vpack.c.bf16 %v3561, %v3560
    %v3604 = vpack.c.bf16 %v3563, %v3562
    %v3605 = vpack.c.bf16 %v3565, %v3564
    %v3606 = vpack.c.bf16 %v3567, %v3566
    %v3607 = vpack.c.bf16 %v3569, %v3568
    %v3608 = vpack.c.bf16 %v3571, %v3570
    %v3609 = vpack.c.bf16 %v3573, %v3572
    %v3610 = vpack.c.bf16 %v3575, %v3574
    %v3611 = vpack.c.bf16 %v3577, %v3576
    %v3612 = vpack.c.bf16 %v3579, %v3578
    %v3613 = vpack.c.bf16 %v3581, %v3580
    %s3614 = scalar_lea.vmem %s3, 160
    %v3615 = vld [vmem:[%s3614] sm:$0xf]
    %v3616 = vld [vmem:[%s3614 + $0x4] sm:$0xf]
    %v3617 = vld [vmem:[%s3614 + $0x8] sm:$0xf]
    %v3618 = vld [vmem:[%s3614 + $0xc] sm:$0xf]
    %v3619 = vld [vmem:[%s3614 + $0x10] sm:$0xf]
    %v3620 = vld [vmem:[%s3614 + $0x14] sm:$0xf]
    %v3621 = vld [vmem:[%s3614 + $0x18] sm:$0xf]
    %v3622 = vld [vmem:[%s3614 + $0x1c] sm:$0xf]
    %s3623 = scalar_lea.vmem %s4, 5
    %v3624 = vld [vmem:[%s3623] sm:$0x1]
    %v3626 = vlaneseq
    %v3627 = vshrl.u32 %v3626, 7
    %v3628 = vsub.s32 0, %v3627
    %v3629 = vrot.slane %v3624, %v3628
    %v3639 = vunpack.c.l.b16 %v3615
    %v3640 = vunpack.c.l.b16 %v3616
    %v3641 = vunpack.c.l.b16 %v3617
    %v3642 = vunpack.c.l.b16 %v3618
    %v3643 = vunpack.c.l.b16 %v3619
    %v3644 = vunpack.c.l.b16 %v3620
    %v3645 = vunpack.c.l.b16 %v3621
    %v3646 = vunpack.c.l.b16 %v3622
    %v3647 = vpack.c.b16 %v3640, %v3639
    %v3648 = vpack.c.b16 %v3642, %v3641
    %v3649 = vpack.c.b16 %v3644, %v3643
    %v3650 = vpack.c.b16 %v3646, %v3645
    %v3656 = vsel %vm724, %v3582, 0
    %v3659 = vsel %vm724, %v3583, 0
    %v3662 = vsel %vm724, %v3584, 0
    %v3665 = vsel %vm724, %v3585, 0
    %v3668 = vsel %vm724, %v3586, 0
    %v3671 = vsel %vm724, %v3587, 0
    %v3674 = vsel %vm724, %v3588, 0
    %v3677 = vsel %vm724, %v3589, 0
    %v3680 = vsel %vm724, %v3590, 0
    %v3683 = vsel %vm724, %v3591, 0
    %v3686 = vsel %vm724, %v3592, 0
    %v3689 = vsel %vm724, %v3593, 0
    %v3692 = vsel %vm724, %v3594, 0
    %v3695 = vsel %vm724, %v3595, 0
    %v3698 = vsel %vm724, %v3596, 0
    %v3701 = vsel %vm724, %v3597, 0
    %v3704 = vsel %vm724, %v3598, 0
    %v3707 = vsel %vm724, %v3599, 0
    %v3710 = vsel %vm724, %v3600, 0
    %v3713 = vsel %vm724, %v3601, 0
    %v3716 = vsel %vm724, %v3602, 0
    %v3719 = vsel %vm724, %v3603, 0
    %v3722 = vsel %vm724, %v3604, 0
    %v3725 = vsel %vm724, %v3605, 0
    %v3728 = vsel %vm724, %v3606, 0
    %v3731 = vsel %vm724, %v3607, 0
    %v3734 = vsel %vm724, %v3608, 0
    %v3737 = vsel %vm724, %v3609, 0
    %v3740 = vsel %vm724, %v3610, 0
    %v3743 = vsel %vm724, %v3611, 0
    %v3746 = vsel %vm724, %v3612, 0
    %v3749 = vsel %vm724, %v3613, 0
    %3751 = vmatprep.subr.bf16.mxu0 0
    %3752 = vmatpush1.bf16.msra.mxu0 0
    %3753 = vmatprep.subr.bf16.mxu0 0
    %3754 = vmatpush1.bf16.msra.mxu0 0
    %3755 = vmatprep.subr.bf16.mxu0 0
    %3756 = vmatpush1.bf16.msra.mxu0 0
    %3757 = vmatprep.subr.bf16.mxu0 0
    %3758 = vmatpush1.bf16.msra.mxu0 0
    %3759 = vmatprep.subr.bf16.mxu0 0
    %3760 = vmatpush1.bf16.msra.mxu0 %v3650
    %3761 = vmatprep.subr.bf16.mxu0 0
    %3762 = vmatpush1.bf16.msra.mxu0 %v3649
    %3763 = vmatprep.subr.bf16.mxu0 0
    %3764 = vmatpush1.bf16.msra.mxu0 %v3648
    %3765 = vmatprep.subr.bf16.mxu0 0
    %3766 = vmatpush1.bf16.msra.mxu0 %v3647
    %3767 = vmatprep.subr.bf16.mxu0 0
    %3768 = vmatpush2.bf16.msra.mxu0 0
    %3769 = vmatprep.subr.bf16.mxu0 0
    %3770 = vmatpush2.bf16.msra.mxu0 0
    %3771 = vmatprep.subr.bf16.mxu0 0
    %3772 = vmatpush2.bf16.msra.mxu0 0
    %3773 = vmatprep.subr.bf16.mxu0 0
    %3774 = vmatpush2.bf16.msra.mxu0 0
    %3775 = vmatprep.subr.bf16.mxu0 0
    %3776 = vmatpush2.bf16.msra.mxu0 0
    %3777 = vmatprep.subr.bf16.mxu0 0
    %3778 = vmatpush2.bf16.msra.mxu0 0
    %3779 = vmatprep.subr.bf16.mxu0 0
    %3780 = vmatpush2.bf16.msra.mxu0 0
    %3781 = vmatprep.subr.bf16.mxu0 0
    %3782 = vmatpush2.bf16.msra.mxu0 0
    %3783 = vmatprep.mubr.bf16.mxu0 0
    %3784 = vmatmul.mubr.bf16.gmra.mxu0 %v3656
    %v3785 = vpop.f32.mrf.mxu0
    %v3786 = vadd.f32 %v3629, %v3785
    %v3787 = vpop.f32.mrf.mxu0
    %v3788 = vpop.f32.mrf.mxu0
    %v3789 = vadd.f32 %v3629, %v3788
    %v3790 = vpop.f32.mrf.mxu0
    %3791 = vmatprep.mubr.bf16.mxu0 0
    %3792 = vmatmul.mubr.bf16.gmra.mxu0 %v3659
    %v3793 = vpop.f32.mrf.mxu0
    %v3794 = vadd.f32 %v3629, %v3793
    %v3795 = vpop.f32.mrf.mxu0
    %v3796 = vpop.f32.mrf.mxu0
    %v3797 = vadd.f32 %v3629, %v3796
    %v3798 = vpop.f32.mrf.mxu0
    %3799 = vmatprep.mubr.bf16.mxu0 0
    %3800 = vmatmul.mubr.bf16.gmra.mxu0 %v3662
    %v3801 = vpop.f32.mrf.mxu0
    %v3802 = vadd.f32 %v3629, %v3801
    %v3803 = vpop.f32.mrf.mxu0
    %v3804 = vpop.f32.mrf.mxu0
    %v3805 = vadd.f32 %v3629, %v3804
    %v3806 = vpop.f32.mrf.mxu0
    %3807 = vmatprep.mubr.bf16.mxu0 0
    %3808 = vmatmul.mubr.bf16.gmra.mxu0 %v3665
    %v3809 = vpop.f32.mrf.mxu0
    %v3810 = vadd.f32 %v3629, %v3809
    %v3811 = vpop.f32.mrf.mxu0
    %v3812 = vpop.f32.mrf.mxu0
    %v3813 = vadd.f32 %v3629, %v3812
    %v3814 = vpop.f32.mrf.mxu0
    %3815 = vmatprep.mubr.bf16.mxu0 0
    %3816 = vmatmul.mubr.bf16.gmra.mxu0 %v3668
    %v3817 = vpop.f32.mrf.mxu0
    %v3818 = vadd.f32 %v3629, %v3817
    %v3819 = vpop.f32.mrf.mxu0
    %v3820 = vpop.f32.mrf.mxu0
    %v3821 = vadd.f32 %v3629, %v3820
    %v3822 = vpop.f32.mrf.mxu0
    %3823 = vmatprep.mubr.bf16.mxu0 0
    %3824 = vmatmul.mubr.bf16.gmra.mxu0 %v3671
    %v3825 = vpop.f32.mrf.mxu0
    %v3826 = vadd.f32 %v3629, %v3825
    %v3827 = vpop.f32.mrf.mxu0
    %v3828 = vpop.f32.mrf.mxu0
    %v3829 = vadd.f32 %v3629, %v3828
    %v3830 = vpop.f32.mrf.mxu0
    %3831 = vmatprep.mubr.bf16.mxu0 0
    %3832 = vmatmul.mubr.bf16.gmra.mxu0 %v3674
    %v3833 = vpop.f32.mrf.mxu0
    %v3834 = vadd.f32 %v3629, %v3833
    %v3835 = vpop.f32.mrf.mxu0
    %v3836 = vpop.f32.mrf.mxu0
    %v3837 = vadd.f32 %v3629, %v3836
    %v3838 = vpop.f32.mrf.mxu0
    %3839 = vmatprep.mubr.bf16.mxu0 0
    %3840 = vmatmul.mubr.bf16.gmra.mxu0 %v3677
    %v3841 = vpop.f32.mrf.mxu0
    %v3842 = vadd.f32 %v3629, %v3841
    %v3843 = vpop.f32.mrf.mxu0
    %v3844 = vpop.f32.mrf.mxu0
    %v3845 = vadd.f32 %v3629, %v3844
    %v3846 = vpop.f32.mrf.mxu0
    %3847 = vmatprep.mubr.bf16.mxu0 0
    %3848 = vmatmul.mubr.bf16.gmra.mxu0 %v3680
    %v3849 = vpop.f32.mrf.mxu0
    %v3850 = vadd.f32 %v3629, %v3849
    %v3851 = vpop.f32.mrf.mxu0
    %v3852 = vpop.f32.mrf.mxu0
    %v3853 = vadd.f32 %v3629, %v3852
    %v3854 = vpop.f32.mrf.mxu0
    %3855 = vmatprep.mubr.bf16.mxu0 0
    %3856 = vmatmul.mubr.bf16.gmra.mxu0 %v3683
    %v3857 = vpop.f32.mrf.mxu0
    %v3858 = vadd.f32 %v3629, %v3857
    %v3859 = vpop.f32.mrf.mxu0
    %v3860 = vpop.f32.mrf.mxu0
    %v3861 = vadd.f32 %v3629, %v3860
    %v3862 = vpop.f32.mrf.mxu0
    %3863 = vmatprep.mubr.bf16.mxu0 0
    %3864 = vmatmul.mubr.bf16.gmra.mxu0 %v3686
    %v3865 = vpop.f32.mrf.mxu0
    %v3866 = vadd.f32 %v3629, %v3865
    %v3867 = vpop.f32.mrf.mxu0
    %v3868 = vpop.f32.mrf.mxu0
    %v3869 = vadd.f32 %v3629, %v3868
    %v3870 = vpop.f32.mrf.mxu0
    %3871 = vmatprep.mubr.bf16.mxu0 0
    %3872 = vmatmul.mubr.bf16.gmra.mxu0 %v3689
    %v3873 = vpop.f32.mrf.mxu0
    %v3874 = vadd.f32 %v3629, %v3873
    %v3875 = vpop.f32.mrf.mxu0
    %v3876 = vpop.f32.mrf.mxu0
    %v3877 = vadd.f32 %v3629, %v3876
    %v3878 = vpop.f32.mrf.mxu0
    %3879 = vmatprep.mubr.bf16.mxu0 0
    %3880 = vmatmul.mubr.bf16.gmra.mxu0 %v3692
    %v3881 = vpop.f32.mrf.mxu0
    %v3882 = vadd.f32 %v3629, %v3881
    %v3883 = vpop.f32.mrf.mxu0
    %v3884 = vpop.f32.mrf.mxu0
    %v3885 = vadd.f32 %v3629, %v3884
    %v3886 = vpop.f32.mrf.mxu0
    %3887 = vmatprep.mubr.bf16.mxu0 0
    %3888 = vmatmul.mubr.bf16.gmra.mxu0 %v3695
    %v3889 = vpop.f32.mrf.mxu0
    %v3890 = vadd.f32 %v3629, %v3889
    %v3891 = vpop.f32.mrf.mxu0
    %v3892 = vpop.f32.mrf.mxu0
    %v3893 = vadd.f32 %v3629, %v3892
    %v3894 = vpop.f32.mrf.mxu0
    %3895 = vmatprep.mubr.bf16.mxu0 0
    %3896 = vmatmul.mubr.bf16.gmra.mxu0 %v3698
    %v3897 = vpop.f32.mrf.mxu0
    %v3898 = vadd.f32 %v3629, %v3897
    %v3899 = vpop.f32.mrf.mxu0
    %v3900 = vpop.f32.mrf.mxu0
    %v3901 = vadd.f32 %v3629, %v3900
    %v3902 = vpop.f32.mrf.mxu0
    %3903 = vmatprep.mubr.bf16.mxu0 0
    %3904 = vmatmul.mubr.bf16.gmra.mxu0 %v3701
    %v3905 = vpop.f32.mrf.mxu0
    %v3906 = vadd.f32 %v3629, %v3905
    %v3907 = vpop.f32.mrf.mxu0
    %v3908 = vpop.f32.mrf.mxu0
    %v3909 = vadd.f32 %v3629, %v3908
    %v3910 = vpop.f32.mrf.mxu0
    %3911 = vmatprep.mubr.bf16.mxu0 0
    %3912 = vmatmul.mubr.bf16.gmra.mxu0 %v3704
    %v3913 = vpop.f32.mrf.mxu0
    %v3914 = vadd.f32 %v3629, %v3913
    %v3915 = vpop.f32.mrf.mxu0
    %v3916 = vpop.f32.mrf.mxu0
    %v3917 = vadd.f32 %v3629, %v3916
    %v3918 = vpop.f32.mrf.mxu0
    %3919 = vmatprep.mubr.bf16.mxu0 0
    %3920 = vmatmul.mubr.bf16.gmra.mxu0 %v3707
    %v3921 = vpop.f32.mrf.mxu0
    %v3922 = vadd.f32 %v3629, %v3921
    %v3923 = vpop.f32.mrf.mxu0
    %v3924 = vpop.f32.mrf.mxu0
    %v3925 = vadd.f32 %v3629, %v3924
    %v3926 = vpop.f32.mrf.mxu0
    %3927 = vmatprep.mubr.bf16.mxu0 0
    %3928 = vmatmul.mubr.bf16.gmra.mxu0 %v3710
    %v3929 = vpop.f32.mrf.mxu0
    %v3930 = vadd.f32 %v3629, %v3929
    %v3931 = vpop.f32.mrf.mxu0
    %v3932 = vpop.f32.mrf.mxu0
    %v3933 = vadd.f32 %v3629, %v3932
    %v3934 = vpop.f32.mrf.mxu0
    %3935 = vmatprep.mubr.bf16.mxu0 0
    %3936 = vmatmul.mubr.bf16.gmra.mxu0 %v3713
    %v3937 = vpop.f32.mrf.mxu0
    %v3938 = vadd.f32 %v3629, %v3937
    %v3939 = vpop.f32.mrf.mxu0
    %v3940 = vpop.f32.mrf.mxu0
    %v3941 = vadd.f32 %v3629, %v3940
    %v3942 = vpop.f32.mrf.mxu0
    %3943 = vmatprep.mubr.bf16.mxu0 0
    %3944 = vmatmul.mubr.bf16.gmra.mxu0 %v3716
    %v3945 = vpop.f32.mrf.mxu0
    %v3946 = vadd.f32 %v3629, %v3945
    %v3947 = vpop.f32.mrf.mxu0
    %v3948 = vpop.f32.mrf.mxu0
    %v3949 = vadd.f32 %v3629, %v3948
    %v3950 = vpop.f32.mrf.mxu0
    %3951 = vmatprep.mubr.bf16.mxu0 0
    %3952 = vmatmul.mubr.bf16.gmra.mxu0 %v3719
    %v3953 = vpop.f32.mrf.mxu0
    %v3954 = vadd.f32 %v3629, %v3953
    %v3955 = vpop.f32.mrf.mxu0
    %v3956 = vpop.f32.mrf.mxu0
    %v3957 = vadd.f32 %v3629, %v3956
    %v3958 = vpop.f32.mrf.mxu0
    %3959 = vmatprep.mubr.bf16.mxu0 0
    %3960 = vmatmul.mubr.bf16.gmra.mxu0 %v3722
    %v3961 = vpop.f32.mrf.mxu0
    %v3962 = vadd.f32 %v3629, %v3961
    %v3963 = vpop.f32.mrf.mxu0
    %v3964 = vpop.f32.mrf.mxu0
    %v3965 = vadd.f32 %v3629, %v3964
    %v3966 = vpop.f32.mrf.mxu0
    %3967 = vmatprep.mubr.bf16.mxu0 0
    %3968 = vmatmul.mubr.bf16.gmra.mxu0 %v3725
    %v3969 = vpop.f32.mrf.mxu0
    %v3970 = vadd.f32 %v3629, %v3969
    %v3971 = vpop.f32.mrf.mxu0
    %v3972 = vpop.f32.mrf.mxu0
    %v3973 = vadd.f32 %v3629, %v3972
    %v3974 = vpop.f32.mrf.mxu0
    %3975 = vmatprep.mubr.bf16.mxu0 0
    %3976 = vmatmul.mubr.bf16.gmra.mxu0 %v3728
    %v3977 = vpop.f32.mrf.mxu0
    %v3978 = vadd.f32 %v3629, %v3977
    %v3979 = vpop.f32.mrf.mxu0
    %v3980 = vpop.f32.mrf.mxu0
    %v3981 = vadd.f32 %v3629, %v3980
    %v3982 = vpop.f32.mrf.mxu0
    %3983 = vmatprep.mubr.bf16.mxu0 0
    %3984 = vmatmul.mubr.bf16.gmra.mxu0 %v3731
    %v3985 = vpop.f32.mrf.mxu0
    %v3986 = vadd.f32 %v3629, %v3985
    %v3987 = vpop.f32.mrf.mxu0
    %v3988 = vpop.f32.mrf.mxu0
    %v3989 = vadd.f32 %v3629, %v3988
    %v3990 = vpop.f32.mrf.mxu0
    %3991 = vmatprep.mubr.bf16.mxu0 0
    %3992 = vmatmul.mubr.bf16.gmra.mxu0 %v3734
    %v3993 = vpop.f32.mrf.mxu0
    %v3994 = vadd.f32 %v3629, %v3993
    %v3995 = vpop.f32.mrf.mxu0
    %v3996 = vpop.f32.mrf.mxu0
    %v3997 = vadd.f32 %v3629, %v3996
    %v3998 = vpop.f32.mrf.mxu0
    %3999 = vmatprep.mubr.bf16.mxu0 0
    %4000 = vmatmul.mubr.bf16.gmra.mxu0 %v3737
    %v4001 = vpop.f32.mrf.mxu0
    %v4002 = vadd.f32 %v3629, %v4001
    %v4003 = vpop.f32.mrf.mxu0
    %v4004 = vpop.f32.mrf.mxu0
    %v4005 = vadd.f32 %v3629, %v4004
    %v4006 = vpop.f32.mrf.mxu0
    %4007 = vmatprep.mubr.bf16.mxu0 0
    %4008 = vmatmul.mubr.bf16.gmra.mxu0 %v3740
    %v4009 = vpop.f32.mrf.mxu0
    %v4010 = vadd.f32 %v3629, %v4009
    %v4011 = vpop.f32.mrf.mxu0
    %v4012 = vpop.f32.mrf.mxu0
    %v4013 = vadd.f32 %v3629, %v4012
    %v4014 = vpop.f32.mrf.mxu0
    %4015 = vmatprep.mubr.bf16.mxu0 0
    %4016 = vmatmul.mubr.bf16.gmra.mxu0 %v3743
    %v4017 = vpop.f32.mrf.mxu0
    %v4018 = vadd.f32 %v3629, %v4017
    %v4019 = vpop.f32.mrf.mxu0
    %v4020 = vpop.f32.mrf.mxu0
    %v4021 = vadd.f32 %v3629, %v4020
    %v4022 = vpop.f32.mrf.mxu0
    %4023 = vmatprep.mubr.bf16.mxu0 0
    %4024 = vmatmul.mubr.bf16.gmra.mxu0 %v3746
    %v4025 = vpop.f32.mrf.mxu0
    %v4026 = vadd.f32 %v3629, %v4025
    %v4027 = vpop.f32.mrf.mxu0
    %v4028 = vpop.f32.mrf.mxu0
    %v4029 = vadd.f32 %v3629, %v4028
    %v4030 = vpop.f32.mrf.mxu0
    %4031 = vmatprep.mubr.bf16.mxu0 0
    %4032 = vmatmul.mubr.bf16.gmra.mxu0 %v3749
    %v4033 = vpop.f32.mrf.mxu0
    %v4034 = vadd.f32 %v3629, %v4033
    %v4035 = vpop.f32.mrf.mxu0
    %v4036 = vpop.f32.mrf.mxu0
    %v4037 = vadd.f32 %v3629, %v4036
    %v4038 = vpop.f32.mrf.mxu0
    %4039 = vdwg.mxu0
    %v4040 = vmul.f32 %v3786, 0.01
    %v4041 = vmul.f32 %v3789, 0.01
    %v4042 = vmul.f32 %v3794, 0.01
    %v4043 = vmul.f32 %v3797, 0.01
    %v4044 = vmul.f32 %v3802, 0.01
    %v4045 = vmul.f32 %v3805, 0.01
    %v4046 = vmul.f32 %v3810, 0.01
    %v4047 = vmul.f32 %v3813, 0.01
    %v4048 = vmul.f32 %v3818, 0.01
    %v4049 = vmul.f32 %v3821, 0.01
    %v4050 = vmul.f32 %v3826, 0.01
    %v4051 = vmul.f32 %v3829, 0.01
    %v4052 = vmul.f32 %v3834, 0.01
    %v4053 = vmul.f32 %v3837, 0.01
    %v4054 = vmul.f32 %v3842, 0.01
    %v4055 = vmul.f32 %v3845, 0.01
    %v4056 = vmul.f32 %v3850, 0.01
    %v4057 = vmul.f32 %v3853, 0.01
    %v4058 = vmul.f32 %v3858, 0.01
    %v4059 = vmul.f32 %v3861, 0.01
    %v4060 = vmul.f32 %v3866, 0.01
    %v4061 = vmul.f32 %v3869, 0.01
    %v4062 = vmul.f32 %v3874, 0.01
    %v4063 = vmul.f32 %v3877, 0.01
    %v4064 = vmul.f32 %v3882, 0.01
    %v4065 = vmul.f32 %v3885, 0.01
    %v4066 = vmul.f32 %v3890, 0.01
    %v4067 = vmul.f32 %v3893, 0.01
    %v4068 = vmul.f32 %v3898, 0.01
    %v4069 = vmul.f32 %v3901, 0.01
    %v4070 = vmul.f32 %v3906, 0.01
    %v4071 = vmul.f32 %v3909, 0.01
    %v4072 = vmul.f32 %v3914, 0.01
    %v4073 = vmul.f32 %v3917, 0.01
    %v4074 = vmul.f32 %v3922, 0.01
    %v4075 = vmul.f32 %v3925, 0.01
    %v4076 = vmul.f32 %v3930, 0.01
    %v4077 = vmul.f32 %v3933, 0.01
    %v4078 = vmul.f32 %v3938, 0.01
    %v4079 = vmul.f32 %v3941, 0.01
    %v4080 = vmul.f32 %v3946, 0.01
    %v4081 = vmul.f32 %v3949, 0.01
    %v4082 = vmul.f32 %v3954, 0.01
    %v4083 = vmul.f32 %v3957, 0.01
    %v4084 = vmul.f32 %v3962, 0.01
    %v4085 = vmul.f32 %v3965, 0.01
    %v4086 = vmul.f32 %v3970, 0.01
    %v4087 = vmul.f32 %v3973, 0.01
    %v4088 = vmul.f32 %v3978, 0.01
    %v4089 = vmul.f32 %v3981, 0.01
    %v4090 = vmul.f32 %v3986, 0.01
    %v4091 = vmul.f32 %v3989, 0.01
    %v4092 = vmul.f32 %v3994, 0.01
    %v4093 = vmul.f32 %v3997, 0.01
    %v4094 = vmul.f32 %v4002, 0.01
    %v4095 = vmul.f32 %v4005, 0.01
    %v4096 = vmul.f32 %v4010, 0.01
    %v4097 = vmul.f32 %v4013, 0.01
    %v4098 = vmul.f32 %v4018, 0.01
    %v4099 = vmul.f32 %v4021, 0.01
    %v4100 = vmul.f32 %v4026, 0.01
    %v4101 = vmul.f32 %v4029, 0.01
    %v4102 = vmul.f32 %v4034, 0.01
    %v4103 = vmul.f32 %v4037, 0.01
    %v4104 = vmax.f32 %v3786, %v4040
    %v4105 = vmax.f32 %v3789, %v4041
    %v4106 = vmax.f32 %v3794, %v4042
    %v4107 = vmax.f32 %v3797, %v4043
    %v4108 = vmax.f32 %v3802, %v4044
    %v4109 = vmax.f32 %v3805, %v4045
    %v4110 = vmax.f32 %v3810, %v4046
    %v4111 = vmax.f32 %v3813, %v4047
    %v4112 = vmax.f32 %v3818, %v4048
    %v4113 = vmax.f32 %v3821, %v4049
    %v4114 = vmax.f32 %v3826, %v4050
    %v4115 = vmax.f32 %v3829, %v4051
    %v4116 = vmax.f32 %v3834, %v4052
    %v4117 = vmax.f32 %v3837, %v4053
    %v4118 = vmax.f32 %v3842, %v4054
    %v4119 = vmax.f32 %v3845, %v4055
    %v4120 = vmax.f32 %v3850, %v4056
    %v4121 = vmax.f32 %v3853, %v4057
    %v4122 = vmax.f32 %v3858, %v4058
    %v4123 = vmax.f32 %v3861, %v4059
    %v4124 = vmax.f32 %v3866, %v4060
    %v4125 = vmax.f32 %v3869, %v4061
    %v4126 = vmax.f32 %v3874, %v4062
    %v4127 = vmax.f32 %v3877, %v4063
    %v4128 = vmax.f32 %v3882, %v4064
    %v4129 = vmax.f32 %v3885, %v4065
    %v4130 = vmax.f32 %v3890, %v4066
    %v4131 = vmax.f32 %v3893, %v4067
    %v4132 = vmax.f32 %v3898, %v4068
    %v4133 = vmax.f32 %v3901, %v4069
    %v4134 = vmax.f32 %v3906, %v4070
    %v4135 = vmax.f32 %v3909, %v4071
    %v4136 = vmax.f32 %v3914, %v4072
    %v4137 = vmax.f32 %v3917, %v4073
    %v4138 = vmax.f32 %v3922, %v4074
    %v4139 = vmax.f32 %v3925, %v4075
    %v4140 = vmax.f32 %v3930, %v4076
    %v4141 = vmax.f32 %v3933, %v4077
    %v4142 = vmax.f32 %v3938, %v4078
    %v4143 = vmax.f32 %v3941, %v4079
    %v4144 = vmax.f32 %v3946, %v4080
    %v4145 = vmax.f32 %v3949, %v4081
    %v4146 = vmax.f32 %v3954, %v4082
    %v4147 = vmax.f32 %v3957, %v4083
    %v4148 = vmax.f32 %v3962, %v4084
    %v4149 = vmax.f32 %v3965, %v4085
    %v4150 = vmax.f32 %v3970, %v4086
    %v4151 = vmax.f32 %v3973, %v4087
    %v4152 = vmax.f32 %v3978, %v4088
    %v4153 = vmax.f32 %v3981, %v4089
    %v4154 = vmax.f32 %v3986, %v4090
    %v4155 = vmax.f32 %v3989, %v4091
    %v4156 = vmax.f32 %v3994, %v4092
    %v4157 = vmax.f32 %v3997, %v4093
    %v4158 = vmax.f32 %v4002, %v4094
    %v4159 = vmax.f32 %v4005, %v4095
    %v4160 = vmax.f32 %v4010, %v4096
    %v4161 = vmax.f32 %v4013, %v4097
    %v4162 = vmax.f32 %v4018, %v4098
    %v4163 = vmax.f32 %v4021, %v4099
    %v4164 = vmax.f32 %v4026, %v4100
    %v4165 = vmax.f32 %v4029, %v4101
    %v4166 = vmax.f32 %v4034, %v4102
    %v4167 = vmax.f32 %v4037, %v4103
    %v4168 = vpack.c.bf16 %v4105, %v4104
    %v4169 = vpack.c.bf16 %v4107, %v4106
    %v4170 = vpack.c.bf16 %v4109, %v4108
    %v4171 = vpack.c.bf16 %v4111, %v4110
    %v4172 = vpack.c.bf16 %v4113, %v4112
    %v4173 = vpack.c.bf16 %v4115, %v4114
    %v4174 = vpack.c.bf16 %v4117, %v4116
    %v4175 = vpack.c.bf16 %v4119, %v4118
    %v4176 = vpack.c.bf16 %v4121, %v4120
    %v4177 = vpack.c.bf16 %v4123, %v4122
    %v4178 = vpack.c.bf16 %v4125, %v4124
    %v4179 = vpack.c.bf16 %v4127, %v4126
    %v4180 = vpack.c.bf16 %v4129, %v4128
    %v4181 = vpack.c.bf16 %v4131, %v4130
    %v4182 = vpack.c.bf16 %v4133, %v4132
    %v4183 = vpack.c.bf16 %v4135, %v4134
    %v4184 = vpack.c.bf16 %v4137, %v4136
    %v4185 = vpack.c.bf16 %v4139, %v4138
    %v4186 = vpack.c.bf16 %v4141, %v4140
    %v4187 = vpack.c.bf16 %v4143, %v4142
    %v4188 = vpack.c.bf16 %v4145, %v4144
    %v4189 = vpack.c.bf16 %v4147, %v4146
    %v4190 = vpack.c.bf16 %v4149, %v4148
    %v4191 = vpack.c.bf16 %v4151, %v4150
    %v4192 = vpack.c.bf16 %v4153, %v4152
    %v4193 = vpack.c.bf16 %v4155, %v4154
    %v4194 = vpack.c.bf16 %v4157, %v4156
    %v4195 = vpack.c.bf16 %v4159, %v4158
    %v4196 = vpack.c.bf16 %v4161, %v4160
    %v4197 = vpack.c.bf16 %v4163, %v4162
    %v4198 = vpack.c.bf16 %v4165, %v4164
    %v4199 = vpack.c.bf16 %v4167, %v4166
    %s4200 = scalar_lea.vmem %s3, 192
    %v4201 = vld [vmem:[%s4200] sm:$0xf]
    %v4202 = vld [vmem:[%s4200 + $0x4] sm:$0xf]
    %v4203 = vld [vmem:[%s4200 + $0x8] sm:$0xf]
    %v4204 = vld [vmem:[%s4200 + $0xc] sm:$0xf]
    %v4205 = vld [vmem:[%s4200 + $0x10] sm:$0xf]
    %v4206 = vld [vmem:[%s4200 + $0x14] sm:$0xf]
    %v4207 = vld [vmem:[%s4200 + $0x18] sm:$0xf]
    %v4208 = vld [vmem:[%s4200 + $0x1c] sm:$0xf]
    %s4209 = scalar_lea.vmem %s4, 6
    %v4210 = vld [vmem:[%s4209] sm:$0x1]
    %v4212 = vlaneseq
    %v4213 = vshrl.u32 %v4212, 7
    %v4214 = vsub.s32 0, %v4213
    %v4215 = vrot.slane %v4210, %v4214
    %v4225 = vunpack.c.l.b16 %v4201
    %v4226 = vunpack.c.l.b16 %v4202
    %v4227 = vunpack.c.l.b16 %v4203
    %v4228 = vunpack.c.l.b16 %v4204
    %v4229 = vunpack.c.l.b16 %v4205
    %v4230 = vunpack.c.l.b16 %v4206
    %v4231 = vunpack.c.l.b16 %v4207
    %v4232 = vunpack.c.l.b16 %v4208
    %v4233 = vpack.c.b16 %v4226, %v4225
    %v4234 = vpack.c.b16 %v4228, %v4227
    %v4235 = vpack.c.b16 %v4230, %v4229
    %v4236 = vpack.c.b16 %v4232, %v4231
    %v4242 = vsel %vm724, %v4168, 0
    %v4245 = vsel %vm724, %v4169, 0
    %v4248 = vsel %vm724, %v4170, 0
    %v4251 = vsel %vm724, %v4171, 0
    %v4254 = vsel %vm724, %v4172, 0
    %v4257 = vsel %vm724, %v4173, 0
    %v4260 = vsel %vm724, %v4174, 0
    %v4263 = vsel %vm724, %v4175, 0
    %v4266 = vsel %vm724, %v4176, 0
    %v4269 = vsel %vm724, %v4177, 0
    %v4272 = vsel %vm724, %v4178, 0
    %v4275 = vsel %vm724, %v4179, 0
    %v4278 = vsel %vm724, %v4180, 0
    %v4281 = vsel %vm724, %v4181, 0
    %v4284 = vsel %vm724, %v4182, 0
    %v4287 = vsel %vm724, %v4183, 0
    %v4290 = vsel %vm724, %v4184, 0
    %v4293 = vsel %vm724, %v4185, 0
    %v4296 = vsel %vm724, %v4186, 0
    %v4299 = vsel %vm724, %v4187, 0
    %v4302 = vsel %vm724, %v4188, 0
    %v4305 = vsel %vm724, %v4189, 0
    %v4308 = vsel %vm724, %v4190, 0
    %v4311 = vsel %vm724, %v4191, 0
    %v4314 = vsel %vm724, %v4192, 0
    %v4317 = vsel %vm724, %v4193, 0
    %v4320 = vsel %vm724, %v4194, 0
    %v4323 = vsel %vm724, %v4195, 0
    %v4326 = vsel %vm724, %v4196, 0
    %v4329 = vsel %vm724, %v4197, 0
    %v4332 = vsel %vm724, %v4198, 0
    %v4335 = vsel %vm724, %v4199, 0
    %4337 = vmatprep.subr.bf16.mxu0 0
    %4338 = vmatpush1.bf16.msra.mxu0 0
    %4339 = vmatprep.subr.bf16.mxu0 0
    %4340 = vmatpush1.bf16.msra.mxu0 0
    %4341 = vmatprep.subr.bf16.mxu0 0
    %4342 = vmatpush1.bf16.msra.mxu0 0
    %4343 = vmatprep.subr.bf16.mxu0 0
    %4344 = vmatpush1.bf16.msra.mxu0 0
    %4345 = vmatprep.subr.bf16.mxu0 0
    %4346 = vmatpush1.bf16.msra.mxu0 %v4236
    %4347 = vmatprep.subr.bf16.mxu0 0
    %4348 = vmatpush1.bf16.msra.mxu0 %v4235
    %4349 = vmatprep.subr.bf16.mxu0 0
    %4350 = vmatpush1.bf16.msra.mxu0 %v4234
    %4351 = vmatprep.subr.bf16.mxu0 0
    %4352 = vmatpush1.bf16.msra.mxu0 %v4233
    %4353 = vmatprep.subr.bf16.mxu0 0
    %4354 = vmatpush2.bf16.msra.mxu0 0
    %4355 = vmatprep.subr.bf16.mxu0 0
    %4356 = vmatpush2.bf16.msra.mxu0 0
    %4357 = vmatprep.subr.bf16.mxu0 0
    %4358 = vmatpush2.bf16.msra.mxu0 0
    %4359 = vmatprep.subr.bf16.mxu0 0
    %4360 = vmatpush2.bf16.msra.mxu0 0
    %4361 = vmatprep.subr.bf16.mxu0 0
    %4362 = vmatpush2.bf16.msra.mxu0 0
    %4363 = vmatprep.subr.bf16.mxu0 0
    %4364 = vmatpush2.bf16.msra.mxu0 0
    %4365 = vmatprep.subr.bf16.mxu0 0
    %4366 = vmatpush2.bf16.msra.mxu0 0
    %4367 = vmatprep.subr.bf16.mxu0 0
    %4368 = vmatpush2.bf16.msra.mxu0 0
    %4369 = vmatprep.mubr.bf16.mxu0 0
    %4370 = vmatmul.mubr.bf16.gmra.mxu0 %v4242
    %v4371 = vpop.f32.mrf.mxu0
    %v4372 = vadd.f32 %v4215, %v4371
    %v4373 = vpop.f32.mrf.mxu0
    %v4374 = vpop.f32.mrf.mxu0
    %v4375 = vadd.f32 %v4215, %v4374
    %v4376 = vpop.f32.mrf.mxu0
    %4377 = vmatprep.mubr.bf16.mxu0 0
    %4378 = vmatmul.mubr.bf16.gmra.mxu0 %v4245
    %v4379 = vpop.f32.mrf.mxu0
    %v4380 = vadd.f32 %v4215, %v4379
    %v4381 = vpop.f32.mrf.mxu0
    %v4382 = vpop.f32.mrf.mxu0
    %v4383 = vadd.f32 %v4215, %v4382
    %v4384 = vpop.f32.mrf.mxu0
    %4385 = vmatprep.mubr.bf16.mxu0 0
    %4386 = vmatmul.mubr.bf16.gmra.mxu0 %v4248
    %v4387 = vpop.f32.mrf.mxu0
    %v4388 = vadd.f32 %v4215, %v4387
    %v4389 = vpop.f32.mrf.mxu0
    %v4390 = vpop.f32.mrf.mxu0
    %v4391 = vadd.f32 %v4215, %v4390
    %v4392 = vpop.f32.mrf.mxu0
    %4393 = vmatprep.mubr.bf16.mxu0 0
    %4394 = vmatmul.mubr.bf16.gmra.mxu0 %v4251
    %v4395 = vpop.f32.mrf.mxu0
    %v4396 = vadd.f32 %v4215, %v4395
    %v4397 = vpop.f32.mrf.mxu0
    %v4398 = vpop.f32.mrf.mxu0
    %v4399 = vadd.f32 %v4215, %v4398
    %v4400 = vpop.f32.mrf.mxu0
    %4401 = vmatprep.mubr.bf16.mxu0 0
    %4402 = vmatmul.mubr.bf16.gmra.mxu0 %v4254
    %v4403 = vpop.f32.mrf.mxu0
    %v4404 = vadd.f32 %v4215, %v4403
    %v4405 = vpop.f32.mrf.mxu0
    %v4406 = vpop.f32.mrf.mxu0
    %v4407 = vadd.f32 %v4215, %v4406
    %v4408 = vpop.f32.mrf.mxu0
    %4409 = vmatprep.mubr.bf16.mxu0 0
    %4410 = vmatmul.mubr.bf16.gmra.mxu0 %v4257
    %v4411 = vpop.f32.mrf.mxu0
    %v4412 = vadd.f32 %v4215, %v4411
    %v4413 = vpop.f32.mrf.mxu0
    %v4414 = vpop.f32.mrf.mxu0
    %v4415 = vadd.f32 %v4215, %v4414
    %v4416 = vpop.f32.mrf.mxu0
    %4417 = vmatprep.mubr.bf16.mxu0 0
    %4418 = vmatmul.mubr.bf16.gmra.mxu0 %v4260
    %v4419 = vpop.f32.mrf.mxu0
    %v4420 = vadd.f32 %v4215, %v4419
    %v4421 = vpop.f32.mrf.mxu0
    %v4422 = vpop.f32.mrf.mxu0
    %v4423 = vadd.f32 %v4215, %v4422
    %v4424 = vpop.f32.mrf.mxu0
    %4425 = vmatprep.mubr.bf16.mxu0 0
    %4426 = vmatmul.mubr.bf16.gmra.mxu0 %v4263
    %v4427 = vpop.f32.mrf.mxu0
    %v4428 = vadd.f32 %v4215, %v4427
    %v4429 = vpop.f32.mrf.mxu0
    %v4430 = vpop.f32.mrf.mxu0
    %v4431 = vadd.f32 %v4215, %v4430
    %v4432 = vpop.f32.mrf.mxu0
    %4433 = vmatprep.mubr.bf16.mxu0 0
    %4434 = vmatmul.mubr.bf16.gmra.mxu0 %v4266
    %v4435 = vpop.f32.mrf.mxu0
    %v4436 = vadd.f32 %v4215, %v4435
    %v4437 = vpop.f32.mrf.mxu0
    %v4438 = vpop.f32.mrf.mxu0
    %v4439 = vadd.f32 %v4215, %v4438
    %v4440 = vpop.f32.mrf.mxu0
    %4441 = vmatprep.mubr.bf16.mxu0 0
    %4442 = vmatmul.mubr.bf16.gmra.mxu0 %v4269
    %v4443 = vpop.f32.mrf.mxu0
    %v4444 = vadd.f32 %v4215, %v4443
    %v4445 = vpop.f32.mrf.mxu0
    %v4446 = vpop.f32.mrf.mxu0
    %v4447 = vadd.f32 %v4215, %v4446
    %v4448 = vpop.f32.mrf.mxu0
    %4449 = vmatprep.mubr.bf16.mxu0 0
    %4450 = vmatmul.mubr.bf16.gmra.mxu0 %v4272
    %v4451 = vpop.f32.mrf.mxu0
    %v4452 = vadd.f32 %v4215, %v4451
    %v4453 = vpop.f32.mrf.mxu0
    %v4454 = vpop.f32.mrf.mxu0
    %v4455 = vadd.f32 %v4215, %v4454
    %v4456 = vpop.f32.mrf.mxu0
    %4457 = vmatprep.mubr.bf16.mxu0 0
    %4458 = vmatmul.mubr.bf16.gmra.mxu0 %v4275
    %v4459 = vpop.f32.mrf.mxu0
    %v4460 = vadd.f32 %v4215, %v4459
    %v4461 = vpop.f32.mrf.mxu0
    %v4462 = vpop.f32.mrf.mxu0
    %v4463 = vadd.f32 %v4215, %v4462
    %v4464 = vpop.f32.mrf.mxu0
    %4465 = vmatprep.mubr.bf16.mxu0 0
    %4466 = vmatmul.mubr.bf16.gmra.mxu0 %v4278
    %v4467 = vpop.f32.mrf.mxu0
    %v4468 = vadd.f32 %v4215, %v4467
    %v4469 = vpop.f32.mrf.mxu0
    %v4470 = vpop.f32.mrf.mxu0
    %v4471 = vadd.f32 %v4215, %v4470
    %v4472 = vpop.f32.mrf.mxu0
    %4473 = vmatprep.mubr.bf16.mxu0 0
    %4474 = vmatmul.mubr.bf16.gmra.mxu0 %v4281
    %v4475 = vpop.f32.mrf.mxu0
    %v4476 = vadd.f32 %v4215, %v4475
    %v4477 = vpop.f32.mrf.mxu0
    %v4478 = vpop.f32.mrf.mxu0
    %v4479 = vadd.f32 %v4215, %v4478
    %v4480 = vpop.f32.mrf.mxu0
    %4481 = vmatprep.mubr.bf16.mxu0 0
    %4482 = vmatmul.mubr.bf16.gmra.mxu0 %v4284
    %v4483 = vpop.f32.mrf.mxu0
    %v4484 = vadd.f32 %v4215, %v4483
    %v4485 = vpop.f32.mrf.mxu0
    %v4486 = vpop.f32.mrf.mxu0
    %v4487 = vadd.f32 %v4215, %v4486
    %v4488 = vpop.f32.mrf.mxu0
    %4489 = vmatprep.mubr.bf16.mxu0 0
    %4490 = vmatmul.mubr.bf16.gmra.mxu0 %v4287
    %v4491 = vpop.f32.mrf.mxu0
    %v4492 = vadd.f32 %v4215, %v4491
    %v4493 = vpop.f32.mrf.mxu0
    %v4494 = vpop.f32.mrf.mxu0
    %v4495 = vadd.f32 %v4215, %v4494
    %v4496 = vpop.f32.mrf.mxu0
    %4497 = vmatprep.mubr.bf16.mxu0 0
    %4498 = vmatmul.mubr.bf16.gmra.mxu0 %v4290
    %v4499 = vpop.f32.mrf.mxu0
    %v4500 = vadd.f32 %v4215, %v4499
    %v4501 = vpop.f32.mrf.mxu0
    %v4502 = vpop.f32.mrf.mxu0
    %v4503 = vadd.f32 %v4215, %v4502
    %v4504 = vpop.f32.mrf.mxu0
    %4505 = vmatprep.mubr.bf16.mxu0 0
    %4506 = vmatmul.mubr.bf16.gmra.mxu0 %v4293
    %v4507 = vpop.f32.mrf.mxu0
    %v4508 = vadd.f32 %v4215, %v4507
    %v4509 = vpop.f32.mrf.mxu0
    %v4510 = vpop.f32.mrf.mxu0
    %v4511 = vadd.f32 %v4215, %v4510
    %v4512 = vpop.f32.mrf.mxu0
    %4513 = vmatprep.mubr.bf16.mxu0 0
    %4514 = vmatmul.mubr.bf16.gmra.mxu0 %v4296
    %v4515 = vpop.f32.mrf.mxu0
    %v4516 = vadd.f32 %v4215, %v4515
    %v4517 = vpop.f32.mrf.mxu0
    %v4518 = vpop.f32.mrf.mxu0
    %v4519 = vadd.f32 %v4215, %v4518
    %v4520 = vpop.f32.mrf.mxu0
    %4521 = vmatprep.mubr.bf16.mxu0 0
    %4522 = vmatmul.mubr.bf16.gmra.mxu0 %v4299
    %v4523 = vpop.f32.mrf.mxu0
    %v4524 = vadd.f32 %v4215, %v4523
    %v4525 = vpop.f32.mrf.mxu0
    %v4526 = vpop.f32.mrf.mxu0
    %v4527 = vadd.f32 %v4215, %v4526
    %v4528 = vpop.f32.mrf.mxu0
    %4529 = vmatprep.mubr.bf16.mxu0 0
    %4530 = vmatmul.mubr.bf16.gmra.mxu0 %v4302
    %v4531 = vpop.f32.mrf.mxu0
    %v4532 = vadd.f32 %v4215, %v4531
    %v4533 = vpop.f32.mrf.mxu0
    %v4534 = vpop.f32.mrf.mxu0
    %v4535 = vadd.f32 %v4215, %v4534
    %v4536 = vpop.f32.mrf.mxu0
    %4537 = vmatprep.mubr.bf16.mxu0 0
    %4538 = vmatmul.mubr.bf16.gmra.mxu0 %v4305
    %v4539 = vpop.f32.mrf.mxu0
    %v4540 = vadd.f32 %v4215, %v4539
    %v4541 = vpop.f32.mrf.mxu0
    %v4542 = vpop.f32.mrf.mxu0
    %v4543 = vadd.f32 %v4215, %v4542
    %v4544 = vpop.f32.mrf.mxu0
    %4545 = vmatprep.mubr.bf16.mxu0 0
    %4546 = vmatmul.mubr.bf16.gmra.mxu0 %v4308
    %v4547 = vpop.f32.mrf.mxu0
    %v4548 = vadd.f32 %v4215, %v4547
    %v4549 = vpop.f32.mrf.mxu0
    %v4550 = vpop.f32.mrf.mxu0
    %v4551 = vadd.f32 %v4215, %v4550
    %v4552 = vpop.f32.mrf.mxu0
    %4553 = vmatprep.mubr.bf16.mxu0 0
    %4554 = vmatmul.mubr.bf16.gmra.mxu0 %v4311
    %v4555 = vpop.f32.mrf.mxu0
    %v4556 = vadd.f32 %v4215, %v4555
    %v4557 = vpop.f32.mrf.mxu0
    %v4558 = vpop.f32.mrf.mxu0
    %v4559 = vadd.f32 %v4215, %v4558
    %v4560 = vpop.f32.mrf.mxu0
    %4561 = vmatprep.mubr.bf16.mxu0 0
    %4562 = vmatmul.mubr.bf16.gmra.mxu0 %v4314
    %v4563 = vpop.f32.mrf.mxu0
    %v4564 = vadd.f32 %v4215, %v4563
    %v4565 = vpop.f32.mrf.mxu0
    %v4566 = vpop.f32.mrf.mxu0
    %v4567 = vadd.f32 %v4215, %v4566
    %v4568 = vpop.f32.mrf.mxu0
    %4569 = vmatprep.mubr.bf16.mxu0 0
    %4570 = vmatmul.mubr.bf16.gmra.mxu0 %v4317
    %v4571 = vpop.f32.mrf.mxu0
    %v4572 = vadd.f32 %v4215, %v4571
    %v4573 = vpop.f32.mrf.mxu0
    %v4574 = vpop.f32.mrf.mxu0
    %v4575 = vadd.f32 %v4215, %v4574
    %v4576 = vpop.f32.mrf.mxu0
    %4577 = vmatprep.mubr.bf16.mxu0 0
    %4578 = vmatmul.mubr.bf16.gmra.mxu0 %v4320
    %v4579 = vpop.f32.mrf.mxu0
    %v4580 = vadd.f32 %v4215, %v4579
    %v4581 = vpop.f32.mrf.mxu0
    %v4582 = vpop.f32.mrf.mxu0
    %v4583 = vadd.f32 %v4215, %v4582
    %v4584 = vpop.f32.mrf.mxu0
    %4585 = vmatprep.mubr.bf16.mxu0 0
    %4586 = vmatmul.mubr.bf16.gmra.mxu0 %v4323
    %v4587 = vpop.f32.mrf.mxu0
    %v4588 = vadd.f32 %v4215, %v4587
    %v4589 = vpop.f32.mrf.mxu0
    %v4590 = vpop.f32.mrf.mxu0
    %v4591 = vadd.f32 %v4215, %v4590
    %v4592 = vpop.f32.mrf.mxu0
    %4593 = vmatprep.mubr.bf16.mxu0 0
    %4594 = vmatmul.mubr.bf16.gmra.mxu0 %v4326
    %v4595 = vpop.f32.mrf.mxu0
    %v4596 = vadd.f32 %v4215, %v4595
    %v4597 = vpop.f32.mrf.mxu0
    %v4598 = vpop.f32.mrf.mxu0
    %v4599 = vadd.f32 %v4215, %v4598
    %v4600 = vpop.f32.mrf.mxu0
    %4601 = vmatprep.mubr.bf16.mxu0 0
    %4602 = vmatmul.mubr.bf16.gmra.mxu0 %v4329
    %v4603 = vpop.f32.mrf.mxu0
    %v4604 = vadd.f32 %v4215, %v4603
    %v4605 = vpop.f32.mrf.mxu0
    %v4606 = vpop.f32.mrf.mxu0
    %v4607 = vadd.f32 %v4215, %v4606
    %v4608 = vpop.f32.mrf.mxu0
    %4609 = vmatprep.mubr.bf16.mxu0 0
    %4610 = vmatmul.mubr.bf16.gmra.mxu0 %v4332
    %v4611 = vpop.f32.mrf.mxu0
    %v4612 = vadd.f32 %v4215, %v4611
    %v4613 = vpop.f32.mrf.mxu0
    %v4614 = vpop.f32.mrf.mxu0
    %v4615 = vadd.f32 %v4215, %v4614
    %v4616 = vpop.f32.mrf.mxu0
    %4617 = vmatprep.mubr.bf16.mxu0 0
    %4618 = vmatmul.mubr.bf16.gmra.mxu0 %v4335
    %v4619 = vpop.f32.mrf.mxu0
    %v4620 = vadd.f32 %v4215, %v4619
    %v4621 = vpop.f32.mrf.mxu0
    %v4622 = vpop.f32.mrf.mxu0
    %v4623 = vadd.f32 %v4215, %v4622
    %v4624 = vpop.f32.mrf.mxu0
    %4625 = vdwg.mxu0
    %v4626 = vmul.f32 %v4372, 0.01
    %v4627 = vmul.f32 %v4375, 0.01
    %v4628 = vmul.f32 %v4380, 0.01
    %v4629 = vmul.f32 %v4383, 0.01
    %v4630 = vmul.f32 %v4388, 0.01
    %v4631 = vmul.f32 %v4391, 0.01
    %v4632 = vmul.f32 %v4396, 0.01
    %v4633 = vmul.f32 %v4399, 0.01
    %v4634 = vmul.f32 %v4404, 0.01
    %v4635 = vmul.f32 %v4407, 0.01
    %v4636 = vmul.f32 %v4412, 0.01
    %v4637 = vmul.f32 %v4415, 0.01
    %v4638 = vmul.f32 %v4420, 0.01
    %v4639 = vmul.f32 %v4423, 0.01
    %v4640 = vmul.f32 %v4428, 0.01
    %v4641 = vmul.f32 %v4431, 0.01
    %v4642 = vmul.f32 %v4436, 0.01
    %v4643 = vmul.f32 %v4439, 0.01
    %v4644 = vmul.f32 %v4444, 0.01
    %v4645 = vmul.f32 %v4447, 0.01
    %v4646 = vmul.f32 %v4452, 0.01
    %v4647 = vmul.f32 %v4455, 0.01
    %v4648 = vmul.f32 %v4460, 0.01
    %v4649 = vmul.f32 %v4463, 0.01
    %v4650 = vmul.f32 %v4468, 0.01
    %v4651 = vmul.f32 %v4471, 0.01
    %v4652 = vmul.f32 %v4476, 0.01
    %v4653 = vmul.f32 %v4479, 0.01
    %v4654 = vmul.f32 %v4484, 0.01
    %v4655 = vmul.f32 %v4487, 0.01
    %v4656 = vmul.f32 %v4492, 0.01
    %v4657 = vmul.f32 %v4495, 0.01
    %v4658 = vmul.f32 %v4500, 0.01
    %v4659 = vmul.f32 %v4503, 0.01
    %v4660 = vmul.f32 %v4508, 0.01
    %v4661 = vmul.f32 %v4511, 0.01
    %v4662 = vmul.f32 %v4516, 0.01
    %v4663 = vmul.f32 %v4519, 0.01
    %v4664 = vmul.f32 %v4524, 0.01
    %v4665 = vmul.f32 %v4527, 0.01
    %v4666 = vmul.f32 %v4532, 0.01
    %v4667 = vmul.f32 %v4535, 0.01
    %v4668 = vmul.f32 %v4540, 0.01
    %v4669 = vmul.f32 %v4543, 0.01
    %v4670 = vmul.f32 %v4548, 0.01
    %v4671 = vmul.f32 %v4551, 0.01
    %v4672 = vmul.f32 %v4556, 0.01
    %v4673 = vmul.f32 %v4559, 0.01
    %v4674 = vmul.f32 %v4564, 0.01
    %v4675 = vmul.f32 %v4567, 0.01
    %v4676 = vmul.f32 %v4572, 0.01
    %v4677 = vmul.f32 %v4575, 0.01
    %v4678 = vmul.f32 %v4580, 0.01
    %v4679 = vmul.f32 %v4583, 0.01
    %v4680 = vmul.f32 %v4588, 0.01
    %v4681 = vmul.f32 %v4591, 0.01
    %v4682 = vmul.f32 %v4596, 0.01
    %v4683 = vmul.f32 %v4599, 0.01
    %v4684 = vmul.f32 %v4604, 0.01
    %v4685 = vmul.f32 %v4607, 0.01
    %v4686 = vmul.f32 %v4612, 0.01
    %v4687 = vmul.f32 %v4615, 0.01
    %v4688 = vmul.f32 %v4620, 0.01
    %v4689 = vmul.f32 %v4623, 0.01
    %v4690 = vmax.f32 %v4372, %v4626
    %v4691 = vmax.f32 %v4375, %v4627
    %v4692 = vmax.f32 %v4380, %v4628
    %v4693 = vmax.f32 %v4383, %v4629
    %v4694 = vmax.f32 %v4388, %v4630
    %v4695 = vmax.f32 %v4391, %v4631
    %v4696 = vmax.f32 %v4396, %v4632
    %v4697 = vmax.f32 %v4399, %v4633
    %v4698 = vmax.f32 %v4404, %v4634
    %v4699 = vmax.f32 %v4407, %v4635
    %v4700 = vmax.f32 %v4412, %v4636
    %v4701 = vmax.f32 %v4415, %v4637
    %v4702 = vmax.f32 %v4420, %v4638
    %v4703 = vmax.f32 %v4423, %v4639
    %v4704 = vmax.f32 %v4428, %v4640
    %v4705 = vmax.f32 %v4431, %v4641
    %v4706 = vmax.f32 %v4436, %v4642
    %v4707 = vmax.f32 %v4439, %v4643
    %v4708 = vmax.f32 %v4444, %v4644
    %v4709 = vmax.f32 %v4447, %v4645
    %v4710 = vmax.f32 %v4452, %v4646
    %v4711 = vmax.f32 %v4455, %v4647
    %v4712 = vmax.f32 %v4460, %v4648
    %v4713 = vmax.f32 %v4463, %v4649
    %v4714 = vmax.f32 %v4468, %v4650
    %v4715 = vmax.f32 %v4471, %v4651
    %v4716 = vmax.f32 %v4476, %v4652
    %v4717 = vmax.f32 %v4479, %v4653
    %v4718 = vmax.f32 %v4484, %v4654
    %v4719 = vmax.f32 %v4487, %v4655
    %v4720 = vmax.f32 %v4492, %v4656
    %v4721 = vmax.f32 %v4495, %v4657
    %v4722 = vmax.f32 %v4500, %v4658
    %v4723 = vmax.f32 %v4503, %v4659
    %v4724 = vmax.f32 %v4508, %v4660
    %v4725 = vmax.f32 %v4511, %v4661
    %v4726 = vmax.f32 %v4516, %v4662
    %v4727 = vmax.f32 %v4519, %v4663
    %v4728 = vmax.f32 %v4524, %v4664
    %v4729 = vmax.f32 %v4527, %v4665
    %v4730 = vmax.f32 %v4532, %v4666
    %v4731 = vmax.f32 %v4535, %v4667
    %v4732 = vmax.f32 %v4540, %v4668
    %v4733 = vmax.f32 %v4543, %v4669
    %v4734 = vmax.f32 %v4548, %v4670
    %v4735 = vmax.f32 %v4551, %v4671
    %v4736 = vmax.f32 %v4556, %v4672
    %v4737 = vmax.f32 %v4559, %v4673
    %v4738 = vmax.f32 %v4564, %v4674
    %v4739 = vmax.f32 %v4567, %v4675
    %v4740 = vmax.f32 %v4572, %v4676
    %v4741 = vmax.f32 %v4575, %v4677
    %v4742 = vmax.f32 %v4580, %v4678
    %v4743 = vmax.f32 %v4583, %v4679
    %v4744 = vmax.f32 %v4588, %v4680
    %v4745 = vmax.f32 %v4591, %v4681
    %v4746 = vmax.f32 %v4596, %v4682
    %v4747 = vmax.f32 %v4599, %v4683
    %v4748 = vmax.f32 %v4604, %v4684
    %v4749 = vmax.f32 %v4607, %v4685
    %v4750 = vmax.f32 %v4612, %v4686
    %v4751 = vmax.f32 %v4615, %v4687
    %v4752 = vmax.f32 %v4620, %v4688
    %v4753 = vmax.f32 %v4623, %v4689
    %v4754 = vpack.c.bf16 %v4691, %v4690
    %v4755 = vpack.c.bf16 %v4693, %v4692
    %v4756 = vpack.c.bf16 %v4695, %v4694
    %v4757 = vpack.c.bf16 %v4697, %v4696
    %v4758 = vpack.c.bf16 %v4699, %v4698
    %v4759 = vpack.c.bf16 %v4701, %v4700
    %v4760 = vpack.c.bf16 %v4703, %v4702
    %v4761 = vpack.c.bf16 %v4705, %v4704
    %v4762 = vpack.c.bf16 %v4707, %v4706
    %v4763 = vpack.c.bf16 %v4709, %v4708
    %v4764 = vpack.c.bf16 %v4711, %v4710
    %v4765 = vpack.c.bf16 %v4713, %v4712
    %v4766 = vpack.c.bf16 %v4715, %v4714
    %v4767 = vpack.c.bf16 %v4717, %v4716
    %v4768 = vpack.c.bf16 %v4719, %v4718
    %v4769 = vpack.c.bf16 %v4721, %v4720
    %v4770 = vpack.c.bf16 %v4723, %v4722
    %v4771 = vpack.c.bf16 %v4725, %v4724
    %v4772 = vpack.c.bf16 %v4727, %v4726
    %v4773 = vpack.c.bf16 %v4729, %v4728
    %v4774 = vpack.c.bf16 %v4731, %v4730
    %v4775 = vpack.c.bf16 %v4733, %v4732
    %v4776 = vpack.c.bf16 %v4735, %v4734
    %v4777 = vpack.c.bf16 %v4737, %v4736
    %v4778 = vpack.c.bf16 %v4739, %v4738
    %v4779 = vpack.c.bf16 %v4741, %v4740
    %v4780 = vpack.c.bf16 %v4743, %v4742
    %v4781 = vpack.c.bf16 %v4745, %v4744
    %v4782 = vpack.c.bf16 %v4747, %v4746
    %v4783 = vpack.c.bf16 %v4749, %v4748
    %v4784 = vpack.c.bf16 %v4751, %v4750
    %v4785 = vpack.c.bf16 %v4753, %v4752
    %s4786 = scalar_lea.vmem %s3, 224
    %v4787 = vld [vmem:[%s4786] sm:$0xf]
    %v4788 = vld [vmem:[%s4786 + $0x4] sm:$0xf]
    %v4789 = vld [vmem:[%s4786 + $0x8] sm:$0xf]
    %v4790 = vld [vmem:[%s4786 + $0xc] sm:$0xf]
    %v4791 = vld [vmem:[%s4786 + $0x10] sm:$0xf]
    %v4792 = vld [vmem:[%s4786 + $0x14] sm:$0xf]
    %v4793 = vld [vmem:[%s4786 + $0x18] sm:$0xf]
    %v4794 = vld [vmem:[%s4786 + $0x1c] sm:$0xf]
    %s4795 = scalar_lea.vmem %s4, 7
    %v4796 = vld [vmem:[%s4795] sm:$0x1]
    %v4798 = vlaneseq
    %v4799 = vshrl.u32 %v4798, 7
    %v4800 = vsub.s32 0, %v4799
    %v4801 = vrot.slane %v4796, %v4800
    %v4811 = vunpack.c.l.b16 %v4787
    %v4812 = vunpack.c.l.b16 %v4788
    %v4813 = vunpack.c.l.b16 %v4789
    %v4814 = vunpack.c.l.b16 %v4790
    %v4815 = vunpack.c.l.b16 %v4791
    %v4816 = vunpack.c.l.b16 %v4792
    %v4817 = vunpack.c.l.b16 %v4793
    %v4818 = vunpack.c.l.b16 %v4794
    %v4819 = vpack.c.b16 %v4812, %v4811
    %v4820 = vpack.c.b16 %v4814, %v4813
    %v4821 = vpack.c.b16 %v4816, %v4815
    %v4822 = vpack.c.b16 %v4818, %v4817
    %v4828 = vsel %vm724, %v4754, 0
    %v4831 = vsel %vm724, %v4755, 0
    %v4834 = vsel %vm724, %v4756, 0
    %v4837 = vsel %vm724, %v4757, 0
    %v4840 = vsel %vm724, %v4758, 0
    %v4843 = vsel %vm724, %v4759, 0
    %v4846 = vsel %vm724, %v4760, 0
    %v4849 = vsel %vm724, %v4761, 0
    %v4852 = vsel %vm724, %v4762, 0
    %v4855 = vsel %vm724, %v4763, 0
    %v4858 = vsel %vm724, %v4764, 0
    %v4861 = vsel %vm724, %v4765, 0
    %v4864 = vsel %vm724, %v4766, 0
    %v4867 = vsel %vm724, %v4767, 0
    %v4870 = vsel %vm724, %v4768, 0
    %v4873 = vsel %vm724, %v4769, 0
    %v4876 = vsel %vm724, %v4770, 0
    %v4879 = vsel %vm724, %v4771, 0
    %v4882 = vsel %vm724, %v4772, 0
    %v4885 = vsel %vm724, %v4773, 0
    %v4888 = vsel %vm724, %v4774, 0
    %v4891 = vsel %vm724, %v4775, 0
    %v4894 = vsel %vm724, %v4776, 0
    %v4897 = vsel %vm724, %v4777, 0
    %v4900 = vsel %vm724, %v4778, 0
    %v4903 = vsel %vm724, %v4779, 0
    %v4906 = vsel %vm724, %v4780, 0
    %v4909 = vsel %vm724, %v4781, 0
    %v4912 = vsel %vm724, %v4782, 0
    %v4915 = vsel %vm724, %v4783, 0
    %v4918 = vsel %vm724, %v4784, 0
    %v4921 = vsel %vm724, %v4785, 0
    %4923 = vmatprep.subr.bf16.mxu0 0
    %4924 = vmatpush1.bf16.msra.mxu0 0
    %4925 = vmatprep.subr.bf16.mxu0 0
    %4926 = vmatpush1.bf16.msra.mxu0 0
    %4927 = vmatprep.subr.bf16.mxu0 0
    %4928 = vmatpush1.bf16.msra.mxu0 0
    %4929 = vmatprep.subr.bf16.mxu0 0
    %4930 = vmatpush1.bf16.msra.mxu0 0
    %4931 = vmatprep.subr.bf16.mxu0 0
    %4932 = vmatpush1.bf16.msra.mxu0 %v4822
    %4933 = vmatprep.subr.bf16.mxu0 0
    %4934 = vmatpush1.bf16.msra.mxu0 %v4821
    %4935 = vmatprep.subr.bf16.mxu0 0
    %4936 = vmatpush1.bf16.msra.mxu0 %v4820
    %4937 = vmatprep.subr.bf16.mxu0 0
    %4938 = vmatpush1.bf16.msra.mxu0 %v4819
    %4939 = vmatprep.subr.bf16.mxu0 0
    %4940 = vmatpush2.bf16.msra.mxu0 0
    %4941 = vmatprep.subr.bf16.mxu0 0
    %4942 = vmatpush2.bf16.msra.mxu0 0
    %4943 = vmatprep.subr.bf16.mxu0 0
    %4944 = vmatpush2.bf16.msra.mxu0 0
    %4945 = vmatprep.subr.bf16.mxu0 0
    %4946 = vmatpush2.bf16.msra.mxu0 0
    %4947 = vmatprep.subr.bf16.mxu0 0
    %4948 = vmatpush2.bf16.msra.mxu0 0
    %4949 = vmatprep.subr.bf16.mxu0 0
    %4950 = vmatpush2.bf16.msra.mxu0 0
    %4951 = vmatprep.subr.bf16.mxu0 0
    %4952 = vmatpush2.bf16.msra.mxu0 0
    %4953 = vmatprep.subr.bf16.mxu0 0
    %4954 = vmatpush2.bf16.msra.mxu0 0
    %4955 = vmatprep.mubr.bf16.mxu0 0
    %4956 = vmatmul.mubr.bf16.gmra.mxu0 %v4828
    %v4957 = vpop.f32.mrf.mxu0
    %v4958 = vadd.f32 %v4801, %v4957
    %v4959 = vpop.f32.mrf.mxu0
    %v4960 = vpop.f32.mrf.mxu0
    %v4961 = vadd.f32 %v4801, %v4960
    %v4962 = vpop.f32.mrf.mxu0
    %4963 = vmatprep.mubr.bf16.mxu0 0
    %4964 = vmatmul.mubr.bf16.gmra.mxu0 %v4831
    %v4965 = vpop.f32.mrf.mxu0
    %v4966 = vadd.f32 %v4801, %v4965
    %v4967 = vpop.f32.mrf.mxu0
    %v4968 = vpop.f32.mrf.mxu0
    %v4969 = vadd.f32 %v4801, %v4968
    %v4970 = vpop.f32.mrf.mxu0
    %4971 = vmatprep.mubr.bf16.mxu0 0
    %4972 = vmatmul.mubr.bf16.gmra.mxu0 %v4834
    %v4973 = vpop.f32.mrf.mxu0
    %v4974 = vadd.f32 %v4801, %v4973
    %v4975 = vpop.f32.mrf.mxu0
    %v4976 = vpop.f32.mrf.mxu0
    %v4977 = vadd.f32 %v4801, %v4976
    %v4978 = vpop.f32.mrf.mxu0
    %4979 = vmatprep.mubr.bf16.mxu0 0
    %4980 = vmatmul.mubr.bf16.gmra.mxu0 %v4837
    %v4981 = vpop.f32.mrf.mxu0
    %v4982 = vadd.f32 %v4801, %v4981
    %v4983 = vpop.f32.mrf.mxu0
    %v4984 = vpop.f32.mrf.mxu0
    %v4985 = vadd.f32 %v4801, %v4984
    %v4986 = vpop.f32.mrf.mxu0
    %4987 = vmatprep.mubr.bf16.mxu0 0
    %4988 = vmatmul.mubr.bf16.gmra.mxu0 %v4840
    %v4989 = vpop.f32.mrf.mxu0
    %v4990 = vadd.f32 %v4801, %v4989
    %v4991 = vpop.f32.mrf.mxu0
    %v4992 = vpop.f32.mrf.mxu0
    %v4993 = vadd.f32 %v4801, %v4992
    %v4994 = vpop.f32.mrf.mxu0
    %4995 = vmatprep.mubr.bf16.mxu0 0
    %4996 = vmatmul.mubr.bf16.gmra.mxu0 %v4843
    %v4997 = vpop.f32.mrf.mxu0
    %v4998 = vadd.f32 %v4801, %v4997
    %v4999 = vpop.f32.mrf.mxu0
    %v5000 = vpop.f32.mrf.mxu0
    %v5001 = vadd.f32 %v4801, %v5000
    %v5002 = vpop.f32.mrf.mxu0
    %5003 = vmatprep.mubr.bf16.mxu0 0
    %5004 = vmatmul.mubr.bf16.gmra.mxu0 %v4846
    %v5005 = vpop.f32.mrf.mxu0
    %v5006 = vadd.f32 %v4801, %v5005
    %v5007 = vpop.f32.mrf.mxu0
    %v5008 = vpop.f32.mrf.mxu0
    %v5009 = vadd.f32 %v4801, %v5008
    %v5010 = vpop.f32.mrf.mxu0
    %5011 = vmatprep.mubr.bf16.mxu0 0
    %5012 = vmatmul.mubr.bf16.gmra.mxu0 %v4849
    %v5013 = vpop.f32.mrf.mxu0
    %v5014 = vadd.f32 %v4801, %v5013
    %v5015 = vpop.f32.mrf.mxu0
    %v5016 = vpop.f32.mrf.mxu0
    %v5017 = vadd.f32 %v4801, %v5016
    %v5018 = vpop.f32.mrf.mxu0
    %5019 = vmatprep.mubr.bf16.mxu0 0
    %5020 = vmatmul.mubr.bf16.gmra.mxu0 %v4852
    %v5021 = vpop.f32.mrf.mxu0
    %v5022 = vadd.f32 %v4801, %v5021
    %v5023 = vpop.f32.mrf.mxu0
    %v5024 = vpop.f32.mrf.mxu0
    %v5025 = vadd.f32 %v4801, %v5024
    %v5026 = vpop.f32.mrf.mxu0
    %5027 = vmatprep.mubr.bf16.mxu0 0
    %5028 = vmatmul.mubr.bf16.gmra.mxu0 %v4855
    %v5029 = vpop.f32.mrf.mxu0
    %v5030 = vadd.f32 %v4801, %v5029
    %v5031 = vpop.f32.mrf.mxu0
    %v5032 = vpop.f32.mrf.mxu0
    %v5033 = vadd.f32 %v4801, %v5032
    %v5034 = vpop.f32.mrf.mxu0
    %5035 = vmatprep.mubr.bf16.mxu0 0
    %5036 = vmatmul.mubr.bf16.gmra.mxu0 %v4858
    %v5037 = vpop.f32.mrf.mxu0
    %v5038 = vadd.f32 %v4801, %v5037
    %v5039 = vpop.f32.mrf.mxu0
    %v5040 = vpop.f32.mrf.mxu0
    %v5041 = vadd.f32 %v4801, %v5040
    %v5042 = vpop.f32.mrf.mxu0
    %5043 = vmatprep.mubr.bf16.mxu0 0
    %5044 = vmatmul.mubr.bf16.gmra.mxu0 %v4861
    %v5045 = vpop.f32.mrf.mxu0
    %v5046 = vadd.f32 %v4801, %v5045
    %v5047 = vpop.f32.mrf.mxu0
    %v5048 = vpop.f32.mrf.mxu0
    %v5049 = vadd.f32 %v4801, %v5048
    %v5050 = vpop.f32.mrf.mxu0
    %5051 = vmatprep.mubr.bf16.mxu0 0
    %5052 = vmatmul.mubr.bf16.gmra.mxu0 %v4864
    %v5053 = vpop.f32.mrf.mxu0
    %v5054 = vadd.f32 %v4801, %v5053
    %v5055 = vpop.f32.mrf.mxu0
    %v5056 = vpop.f32.mrf.mxu0
    %v5057 = vadd.f32 %v4801, %v5056
    %v5058 = vpop.f32.mrf.mxu0
    %5059 = vmatprep.mubr.bf16.mxu0 0
    %5060 = vmatmul.mubr.bf16.gmra.mxu0 %v4867
    %v5061 = vpop.f32.mrf.mxu0
    %v5062 = vadd.f32 %v4801, %v5061
    %v5063 = vpop.f32.mrf.mxu0
    %v5064 = vpop.f32.mrf.mxu0
    %v5065 = vadd.f32 %v4801, %v5064
    %v5066 = vpop.f32.mrf.mxu0
    %5067 = vmatprep.mubr.bf16.mxu0 0
    %5068 = vmatmul.mubr.bf16.gmra.mxu0 %v4870
    %v5069 = vpop.f32.mrf.mxu0
    %v5070 = vadd.f32 %v4801, %v5069
    %v5071 = vpop.f32.mrf.mxu0
    %v5072 = vpop.f32.mrf.mxu0
    %v5073 = vadd.f32 %v4801, %v5072
    %v5074 = vpop.f32.mrf.mxu0
    %5075 = vmatprep.mubr.bf16.mxu0 0
    %5076 = vmatmul.mubr.bf16.gmra.mxu0 %v4873
    %v5077 = vpop.f32.mrf.mxu0
    %v5078 = vadd.f32 %v4801, %v5077
    %v5079 = vpop.f32.mrf.mxu0
    %v5080 = vpop.f32.mrf.mxu0
    %v5081 = vadd.f32 %v4801, %v5080
    %v5082 = vpop.f32.mrf.mxu0
    %5083 = vmatprep.mubr.bf16.mxu0 0
    %5084 = vmatmul.mubr.bf16.gmra.mxu0 %v4876
    %v5085 = vpop.f32.mrf.mxu0
    %v5086 = vadd.f32 %v4801, %v5085
    %v5087 = vpop.f32.mrf.mxu0
    %v5088 = vpop.f32.mrf.mxu0
    %v5089 = vadd.f32 %v4801, %v5088
    %v5090 = vpop.f32.mrf.mxu0
    %5091 = vmatprep.mubr.bf16.mxu0 0
    %5092 = vmatmul.mubr.bf16.gmra.mxu0 %v4879
    %v5093 = vpop.f32.mrf.mxu0
    %v5094 = vadd.f32 %v4801, %v5093
    %v5095 = vpop.f32.mrf.mxu0
    %v5096 = vpop.f32.mrf.mxu0
    %v5097 = vadd.f32 %v4801, %v5096
    %v5098 = vpop.f32.mrf.mxu0
    %5099 = vmatprep.mubr.bf16.mxu0 0
    %5100 = vmatmul.mubr.bf16.gmra.mxu0 %v4882
    %v5101 = vpop.f32.mrf.mxu0
    %v5102 = vadd.f32 %v4801, %v5101
    %v5103 = vpop.f32.mrf.mxu0
    %v5104 = vpop.f32.mrf.mxu0
    %v5105 = vadd.f32 %v4801, %v5104
    %v5106 = vpop.f32.mrf.mxu0
    %5107 = vmatprep.mubr.bf16.mxu0 0
    %5108 = vmatmul.mubr.bf16.gmra.mxu0 %v4885
    %v5109 = vpop.f32.mrf.mxu0
    %v5110 = vadd.f32 %v4801, %v5109
    %v5111 = vpop.f32.mrf.mxu0
    %v5112 = vpop.f32.mrf.mxu0
    %v5113 = vadd.f32 %v4801, %v5112
    %v5114 = vpop.f32.mrf.mxu0
    %5115 = vmatprep.mubr.bf16.mxu0 0
    %5116 = vmatmul.mubr.bf16.gmra.mxu0 %v4888
    %v5117 = vpop.f32.mrf.mxu0
    %v5118 = vadd.f32 %v4801, %v5117
    %v5119 = vpop.f32.mrf.mxu0
    %v5120 = vpop.f32.mrf.mxu0
    %v5121 = vadd.f32 %v4801, %v5120
    %v5122 = vpop.f32.mrf.mxu0
    %5123 = vmatprep.mubr.bf16.mxu0 0
    %5124 = vmatmul.mubr.bf16.gmra.mxu0 %v4891
    %v5125 = vpop.f32.mrf.mxu0
    %v5126 = vadd.f32 %v4801, %v5125
    %v5127 = vpop.f32.mrf.mxu0
    %v5128 = vpop.f32.mrf.mxu0
    %v5129 = vadd.f32 %v4801, %v5128
    %v5130 = vpop.f32.mrf.mxu0
    %5131 = vmatprep.mubr.bf16.mxu0 0
    %5132 = vmatmul.mubr.bf16.gmra.mxu0 %v4894
    %v5133 = vpop.f32.mrf.mxu0
    %v5134 = vadd.f32 %v4801, %v5133
    %v5135 = vpop.f32.mrf.mxu0
    %v5136 = vpop.f32.mrf.mxu0
    %v5137 = vadd.f32 %v4801, %v5136
    %v5138 = vpop.f32.mrf.mxu0
    %5139 = vmatprep.mubr.bf16.mxu0 0
    %5140 = vmatmul.mubr.bf16.gmra.mxu0 %v4897
    %v5141 = vpop.f32.mrf.mxu0
    %v5142 = vadd.f32 %v4801, %v5141
    %v5143 = vpop.f32.mrf.mxu0
    %v5144 = vpop.f32.mrf.mxu0
    %v5145 = vadd.f32 %v4801, %v5144
    %v5146 = vpop.f32.mrf.mxu0
    %5147 = vmatprep.mubr.bf16.mxu0 0
    %5148 = vmatmul.mubr.bf16.gmra.mxu0 %v4900
    %v5149 = vpop.f32.mrf.mxu0
    %v5150 = vadd.f32 %v4801, %v5149
    %v5151 = vpop.f32.mrf.mxu0
    %v5152 = vpop.f32.mrf.mxu0
    %v5153 = vadd.f32 %v4801, %v5152
    %v5154 = vpop.f32.mrf.mxu0
    %5155 = vmatprep.mubr.bf16.mxu0 0
    %5156 = vmatmul.mubr.bf16.gmra.mxu0 %v4903
    %v5157 = vpop.f32.mrf.mxu0
    %v5158 = vadd.f32 %v4801, %v5157
    %v5159 = vpop.f32.mrf.mxu0
    %v5160 = vpop.f32.mrf.mxu0
    %v5161 = vadd.f32 %v4801, %v5160
    %v5162 = vpop.f32.mrf.mxu0
    %5163 = vmatprep.mubr.bf16.mxu0 0
    %5164 = vmatmul.mubr.bf16.gmra.mxu0 %v4906
    %v5165 = vpop.f32.mrf.mxu0
    %v5166 = vadd.f32 %v4801, %v5165
    %v5167 = vpop.f32.mrf.mxu0
    %v5168 = vpop.f32.mrf.mxu0
    %v5169 = vadd.f32 %v4801, %v5168
    %v5170 = vpop.f32.mrf.mxu0
    %5171 = vmatprep.mubr.bf16.mxu0 0
    %5172 = vmatmul.mubr.bf16.gmra.mxu0 %v4909
    %v5173 = vpop.f32.mrf.mxu0
    %v5174 = vadd.f32 %v4801, %v5173
    %v5175 = vpop.f32.mrf.mxu0
    %v5176 = vpop.f32.mrf.mxu0
    %v5177 = vadd.f32 %v4801, %v5176
    %v5178 = vpop.f32.mrf.mxu0
    %5179 = vmatprep.mubr.bf16.mxu0 0
    %5180 = vmatmul.mubr.bf16.gmra.mxu0 %v4912
    %v5181 = vpop.f32.mrf.mxu0
    %v5182 = vadd.f32 %v4801, %v5181
    %v5183 = vpop.f32.mrf.mxu0
    %v5184 = vpop.f32.mrf.mxu0
    %v5185 = vadd.f32 %v4801, %v5184
    %v5186 = vpop.f32.mrf.mxu0
    %5187 = vmatprep.mubr.bf16.mxu0 0
    %5188 = vmatmul.mubr.bf16.gmra.mxu0 %v4915
    %v5189 = vpop.f32.mrf.mxu0
    %v5190 = vadd.f32 %v4801, %v5189
    %v5191 = vpop.f32.mrf.mxu0
    %v5192 = vpop.f32.mrf.mxu0
    %v5193 = vadd.f32 %v4801, %v5192
    %v5194 = vpop.f32.mrf.mxu0
    %5195 = vmatprep.mubr.bf16.mxu0 0
    %5196 = vmatmul.mubr.bf16.gmra.mxu0 %v4918
    %v5197 = vpop.f32.mrf.mxu0
    %v5198 = vadd.f32 %v4801, %v5197
    %v5199 = vpop.f32.mrf.mxu0
    %v5200 = vpop.f32.mrf.mxu0
    %v5201 = vadd.f32 %v4801, %v5200
    %v5202 = vpop.f32.mrf.mxu0
    %5203 = vmatprep.mubr.bf16.mxu0 0
    %5204 = vmatmul.mubr.bf16.gmra.mxu0 %v4921
    %v5205 = vpop.f32.mrf.mxu0
    %v5206 = vadd.f32 %v4801, %v5205
    %v5207 = vpop.f32.mrf.mxu0
    %v5208 = vpop.f32.mrf.mxu0
    %v5209 = vadd.f32 %v4801, %v5208
    %v5210 = vpop.f32.mrf.mxu0
    %5211 = vdwg.mxu0
    %v5212 = vmul.f32 %v4958, 0.01
    %v5213 = vmul.f32 %v4961, 0.01
    %v5214 = vmul.f32 %v4966, 0.01
    %v5215 = vmul.f32 %v4969, 0.01
    %v5216 = vmul.f32 %v4974, 0.01
    %v5217 = vmul.f32 %v4977, 0.01
    %v5218 = vmul.f32 %v4982, 0.01
    %v5219 = vmul.f32 %v4985, 0.01
    %v5220 = vmul.f32 %v4990, 0.01
    %v5221 = vmul.f32 %v4993, 0.01
    %v5222 = vmul.f32 %v4998, 0.01
    %v5223 = vmul.f32 %v5001, 0.01
    %v5224 = vmul.f32 %v5006, 0.01
    %v5225 = vmul.f32 %v5009, 0.01
    %v5226 = vmul.f32 %v5014, 0.01
    %v5227 = vmul.f32 %v5017, 0.01
    %v5228 = vmul.f32 %v5022, 0.01
    %v5229 = vmul.f32 %v5025, 0.01
    %v5230 = vmul.f32 %v5030, 0.01
    %v5231 = vmul.f32 %v5033, 0.01
    %v5232 = vmul.f32 %v5038, 0.01
    %v5233 = vmul.f32 %v5041, 0.01
    %v5234 = vmul.f32 %v5046, 0.01
    %v5235 = vmul.f32 %v5049, 0.01
    %v5236 = vmul.f32 %v5054, 0.01
    %v5237 = vmul.f32 %v5057, 0.01
    %v5238 = vmul.f32 %v5062, 0.01
    %v5239 = vmul.f32 %v5065, 0.01
    %v5240 = vmul.f32 %v5070, 0.01
    %v5241 = vmul.f32 %v5073, 0.01
    %v5242 = vmul.f32 %v5078, 0.01
    %v5243 = vmul.f32 %v5081, 0.01
    %v5244 = vmul.f32 %v5086, 0.01
    %v5245 = vmul.f32 %v5089, 0.01
    %v5246 = vmul.f32 %v5094, 0.01
    %v5247 = vmul.f32 %v5097, 0.01
    %v5248 = vmul.f32 %v5102, 0.01
    %v5249 = vmul.f32 %v5105, 0.01
    %v5250 = vmul.f32 %v5110, 0.01
    %v5251 = vmul.f32 %v5113, 0.01
    %v5252 = vmul.f32 %v5118, 0.01
    %v5253 = vmul.f32 %v5121, 0.01
    %v5254 = vmul.f32 %v5126, 0.01
    %v5255 = vmul.f32 %v5129, 0.01
    %v5256 = vmul.f32 %v5134, 0.01
    %v5257 = vmul.f32 %v5137, 0.01
    %v5258 = vmul.f32 %v5142, 0.01
    %v5259 = vmul.f32 %v5145, 0.01
    %v5260 = vmul.f32 %v5150, 0.01
    %v5261 = vmul.f32 %v5153, 0.01
    %v5262 = vmul.f32 %v5158, 0.01
    %v5263 = vmul.f32 %v5161, 0.01
    %v5264 = vmul.f32 %v5166, 0.01
    %v5265 = vmul.f32 %v5169, 0.01
    %v5266 = vmul.f32 %v5174, 0.01
    %v5267 = vmul.f32 %v5177, 0.01
    %v5268 = vmul.f32 %v5182, 0.01
    %v5269 = vmul.f32 %v5185, 0.01
    %v5270 = vmul.f32 %v5190, 0.01
    %v5271 = vmul.f32 %v5193, 0.01
    %v5272 = vmul.f32 %v5198, 0.01
    %v5273 = vmul.f32 %v5201, 0.01
    %v5274 = vmul.f32 %v5206, 0.01
    %v5275 = vmul.f32 %v5209, 0.01
    %v5276 = vmax.f32 %v4958, %v5212
    %v5277 = vmax.f32 %v4961, %v5213
    %v5278 = vmax.f32 %v4966, %v5214
    %v5279 = vmax.f32 %v4969, %v5215
    %v5280 = vmax.f32 %v4974, %v5216
    %v5281 = vmax.f32 %v4977, %v5217
    %v5282 = vmax.f32 %v4982, %v5218
    %v5283 = vmax.f32 %v4985, %v5219
    %v5284 = vmax.f32 %v4990, %v5220
    %v5285 = vmax.f32 %v4993, %v5221
    %v5286 = vmax.f32 %v4998, %v5222
    %v5287 = vmax.f32 %v5001, %v5223
    %v5288 = vmax.f32 %v5006, %v5224
    %v5289 = vmax.f32 %v5009, %v5225
    %v5290 = vmax.f32 %v5014, %v5226
    %v5291 = vmax.f32 %v5017, %v5227
    %v5292 = vmax.f32 %v5022, %v5228
    %v5293 = vmax.f32 %v5025, %v5229
    %v5294 = vmax.f32 %v5030, %v5230
    %v5295 = vmax.f32 %v5033, %v5231
    %v5296 = vmax.f32 %v5038, %v5232
    %v5297 = vmax.f32 %v5041, %v5233
    %v5298 = vmax.f32 %v5046, %v5234
    %v5299 = vmax.f32 %v5049, %v5235
    %v5300 = vmax.f32 %v5054, %v5236
    %v5301 = vmax.f32 %v5057, %v5237
    %v5302 = vmax.f32 %v5062, %v5238
    %v5303 = vmax.f32 %v5065, %v5239
    %v5304 = vmax.f32 %v5070, %v5240
    %v5305 = vmax.f32 %v5073, %v5241
    %v5306 = vmax.f32 %v5078, %v5242
    %v5307 = vmax.f32 %v5081, %v5243
    %v5308 = vmax.f32 %v5086, %v5244
    %v5309 = vmax.f32 %v5089, %v5245
    %v5310 = vmax.f32 %v5094, %v5246
    %v5311 = vmax.f32 %v5097, %v5247
    %v5312 = vmax.f32 %v5102, %v5248
    %v5313 = vmax.f32 %v5105, %v5249
    %v5314 = vmax.f32 %v5110, %v5250
    %v5315 = vmax.f32 %v5113, %v5251
    %v5316 = vmax.f32 %v5118, %v5252
    %v5317 = vmax.f32 %v5121, %v5253
    %v5318 = vmax.f32 %v5126, %v5254
    %v5319 = vmax.f32 %v5129, %v5255
    %v5320 = vmax.f32 %v5134, %v5256
    %v5321 = vmax.f32 %v5137, %v5257
    %v5322 = vmax.f32 %v5142, %v5258
    %v5323 = vmax.f32 %v5145, %v5259
    %v5324 = vmax.f32 %v5150, %v5260
    %v5325 = vmax.f32 %v5153, %v5261
    %v5326 = vmax.f32 %v5158, %v5262
    %v5327 = vmax.f32 %v5161, %v5263
    %v5328 = vmax.f32 %v5166, %v5264
    %v5329 = vmax.f32 %v5169, %v5265
    %v5330 = vmax.f32 %v5174, %v5266
    %v5331 = vmax.f32 %v5177, %v5267
    %v5332 = vmax.f32 %v5182, %v5268
    %v5333 = vmax.f32 %v5185, %v5269
    %v5334 = vmax.f32 %v5190, %v5270
    %v5335 = vmax.f32 %v5193, %v5271
    %v5336 = vmax.f32 %v5198, %v5272
    %v5337 = vmax.f32 %v5201, %v5273
    %v5338 = vmax.f32 %v5206, %v5274
    %v5339 = vmax.f32 %v5209, %v5275
    %v5340 = vpack.c.bf16 %v5277, %v5276
    %v5341 = vpack.c.bf16 %v5279, %v5278
    %v5342 = vpack.c.bf16 %v5281, %v5280
    %v5343 = vpack.c.bf16 %v5283, %v5282
    %v5344 = vpack.c.bf16 %v5285, %v5284
    %v5345 = vpack.c.bf16 %v5287, %v5286
    %v5346 = vpack.c.bf16 %v5289, %v5288
    %v5347 = vpack.c.bf16 %v5291, %v5290
    %v5348 = vpack.c.bf16 %v5293, %v5292
    %v5349 = vpack.c.bf16 %v5295, %v5294
    %v5350 = vpack.c.bf16 %v5297, %v5296
    %v5351 = vpack.c.bf16 %v5299, %v5298
    %v5352 = vpack.c.bf16 %v5301, %v5300
    %v5353 = vpack.c.bf16 %v5303, %v5302
    %v5354 = vpack.c.bf16 %v5305, %v5304
    %v5355 = vpack.c.bf16 %v5307, %v5306
    %v5356 = vpack.c.bf16 %v5309, %v5308
    %v5357 = vpack.c.bf16 %v5311, %v5310
    %v5358 = vpack.c.bf16 %v5313, %v5312
    %v5359 = vpack.c.bf16 %v5315, %v5314
    %v5360 = vpack.c.bf16 %v5317, %v5316
    %v5361 = vpack.c.bf16 %v5319, %v5318
    %v5362 = vpack.c.bf16 %v5321, %v5320
    %v5363 = vpack.c.bf16 %v5323, %v5322
    %v5364 = vpack.c.bf16 %v5325, %v5324
    %v5365 = vpack.c.bf16 %v5327, %v5326
    %v5366 = vpack.c.bf16 %v5329, %v5328
    %v5367 = vpack.c.bf16 %v5331, %v5330
    %v5368 = vpack.c.bf16 %v5333, %v5332
    %v5369 = vpack.c.bf16 %v5335, %v5334
    %v5370 = vpack.c.bf16 %v5337, %v5336
    %v5371 = vpack.c.bf16 %v5339, %v5338
    %s5372 = scalar_lea.vmem %s3, 256
    %v5373 = vld [vmem:[%s5372] sm:$0xf]
    %v5374 = vld [vmem:[%s5372 + $0x4] sm:$0xf]
    %v5375 = vld [vmem:[%s5372 + $0x8] sm:$0xf]
    %v5376 = vld [vmem:[%s5372 + $0xc] sm:$0xf]
    %v5377 = vld [vmem:[%s5372 + $0x10] sm:$0xf]
    %v5378 = vld [vmem:[%s5372 + $0x14] sm:$0xf]
    %v5379 = vld [vmem:[%s5372 + $0x18] sm:$0xf]
    %v5380 = vld [vmem:[%s5372 + $0x1c] sm:$0xf]
    %s5381 = scalar_lea.vmem %s4, 8
    %v5382 = vld [vmem:[%s5381] sm:$0x1]
    %v5384 = vlaneseq
    %v5385 = vshrl.u32 %v5384, 7
    %v5386 = vsub.s32 0, %v5385
    %v5387 = vrot.slane %v5382, %v5386
    %v5397 = vunpack.c.l.b16 %v5373
    %v5398 = vunpack.c.l.b16 %v5374
    %v5399 = vunpack.c.l.b16 %v5375
    %v5400 = vunpack.c.l.b16 %v5376
    %v5401 = vunpack.c.l.b16 %v5377
    %v5402 = vunpack.c.l.b16 %v5378
    %v5403 = vunpack.c.l.b16 %v5379
    %v5404 = vunpack.c.l.b16 %v5380
    %v5405 = vpack.c.b16 %v5398, %v5397
    %v5406 = vpack.c.b16 %v5400, %v5399
    %v5407 = vpack.c.b16 %v5402, %v5401
    %v5408 = vpack.c.b16 %v5404, %v5403
    %v5414 = vsel %vm724, %v5340, 0
    %v5417 = vsel %vm724, %v5341, 0
    %v5420 = vsel %vm724, %v5342, 0
    %v5423 = vsel %vm724, %v5343, 0
    %v5426 = vsel %vm724, %v5344, 0
    %v5429 = vsel %vm724, %v5345, 0
    %v5432 = vsel %vm724, %v5346, 0
    %v5435 = vsel %vm724, %v5347, 0
    %v5438 = vsel %vm724, %v5348, 0
    %v5441 = vsel %vm724, %v5349, 0
    %v5444 = vsel %vm724, %v5350, 0
    %v5447 = vsel %vm724, %v5351, 0
    %v5450 = vsel %vm724, %v5352, 0
    %v5453 = vsel %vm724, %v5353, 0
    %v5456 = vsel %vm724, %v5354, 0
    %v5459 = vsel %vm724, %v5355, 0
    %v5462 = vsel %vm724, %v5356, 0
    %v5465 = vsel %vm724, %v5357, 0
    %v5468 = vsel %vm724, %v5358, 0
    %v5471 = vsel %vm724, %v5359, 0
    %v5474 = vsel %vm724, %v5360, 0
    %v5477 = vsel %vm724, %v5361, 0
    %v5480 = vsel %vm724, %v5362, 0
    %v5483 = vsel %vm724, %v5363, 0
    %v5486 = vsel %vm724, %v5364, 0
    %v5489 = vsel %vm724, %v5365, 0
    %v5492 = vsel %vm724, %v5366, 0
    %v5495 = vsel %vm724, %v5367, 0
    %v5498 = vsel %vm724, %v5368, 0
    %v5501 = vsel %vm724, %v5369, 0
    %v5504 = vsel %vm724, %v5370, 0
    %v5507 = vsel %vm724, %v5371, 0
    %5509 = vmatprep.subr.bf16.mxu0 0
    %5510 = vmatpush1.bf16.msra.mxu0 0
    %5511 = vmatprep.subr.bf16.mxu0 0
    %5512 = vmatpush1.bf16.msra.mxu0 0
    %5513 = vmatprep.subr.bf16.mxu0 0
    %5514 = vmatpush1.bf16.msra.mxu0 0
    %5515 = vmatprep.subr.bf16.mxu0 0
    %5516 = vmatpush1.bf16.msra.mxu0 0
    %5517 = vmatprep.subr.bf16.mxu0 0
    %5518 = vmatpush1.bf16.msra.mxu0 %v5408
    %5519 = vmatprep.subr.bf16.mxu0 0
    %5520 = vmatpush1.bf16.msra.mxu0 %v5407
    %5521 = vmatprep.subr.bf16.mxu0 0
    %5522 = vmatpush1.bf16.msra.mxu0 %v5406
    %5523 = vmatprep.subr.bf16.mxu0 0
    %5524 = vmatpush1.bf16.msra.mxu0 %v5405
    %5525 = vmatprep.subr.bf16.mxu0 0
    %5526 = vmatpush2.bf16.msra.mxu0 0
    %5527 = vmatprep.subr.bf16.mxu0 0
    %5528 = vmatpush2.bf16.msra.mxu0 0
    %5529 = vmatprep.subr.bf16.mxu0 0
    %5530 = vmatpush2.bf16.msra.mxu0 0
    %5531 = vmatprep.subr.bf16.mxu0 0
    %5532 = vmatpush2.bf16.msra.mxu0 0
    %5533 = vmatprep.subr.bf16.mxu0 0
    %5534 = vmatpush2.bf16.msra.mxu0 0
    %5535 = vmatprep.subr.bf16.mxu0 0
    %5536 = vmatpush2.bf16.msra.mxu0 0
    %5537 = vmatprep.subr.bf16.mxu0 0
    %5538 = vmatpush2.bf16.msra.mxu0 0
    %5539 = vmatprep.subr.bf16.mxu0 0
    %5540 = vmatpush2.bf16.msra.mxu0 0
    %5541 = vmatprep.mubr.bf16.mxu0 0
    %5542 = vmatmul.mubr.bf16.gmra.mxu0 %v5414
    %v5543 = vpop.f32.mrf.mxu0
    %v5544 = vadd.f32 %v5387, %v5543
    %v5545 = vpop.f32.mrf.mxu0
    %v5546 = vpop.f32.mrf.mxu0
    %v5547 = vadd.f32 %v5387, %v5546
    %v5548 = vpop.f32.mrf.mxu0
    %5549 = vmatprep.mubr.bf16.mxu0 0
    %5550 = vmatmul.mubr.bf16.gmra.mxu0 %v5417
    %v5551 = vpop.f32.mrf.mxu0
    %v5552 = vadd.f32 %v5387, %v5551
    %v5553 = vpop.f32.mrf.mxu0
    %v5554 = vpop.f32.mrf.mxu0
    %v5555 = vadd.f32 %v5387, %v5554
    %v5556 = vpop.f32.mrf.mxu0
    %5557 = vmatprep.mubr.bf16.mxu0 0
    %5558 = vmatmul.mubr.bf16.gmra.mxu0 %v5420
    %v5559 = vpop.f32.mrf.mxu0
    %v5560 = vadd.f32 %v5387, %v5559
    %v5561 = vpop.f32.mrf.mxu0
    %v5562 = vpop.f32.mrf.mxu0
    %v5563 = vadd.f32 %v5387, %v5562
    %v5564 = vpop.f32.mrf.mxu0
    %5565 = vmatprep.mubr.bf16.mxu0 0
    %5566 = vmatmul.mubr.bf16.gmra.mxu0 %v5423
    %v5567 = vpop.f32.mrf.mxu0
    %v5568 = vadd.f32 %v5387, %v5567
    %v5569 = vpop.f32.mrf.mxu0
    %v5570 = vpop.f32.mrf.mxu0
    %v5571 = vadd.f32 %v5387, %v5570
    %v5572 = vpop.f32.mrf.mxu0
    %5573 = vmatprep.mubr.bf16.mxu0 0
    %5574 = vmatmul.mubr.bf16.gmra.mxu0 %v5426
    %v5575 = vpop.f32.mrf.mxu0
    %v5576 = vadd.f32 %v5387, %v5575
    %v5577 = vpop.f32.mrf.mxu0
    %v5578 = vpop.f32.mrf.mxu0
    %v5579 = vadd.f32 %v5387, %v5578
    %v5580 = vpop.f32.mrf.mxu0
    %5581 = vmatprep.mubr.bf16.mxu0 0
    %5582 = vmatmul.mubr.bf16.gmra.mxu0 %v5429
    %v5583 = vpop.f32.mrf.mxu0
    %v5584 = vadd.f32 %v5387, %v5583
    %v5585 = vpop.f32.mrf.mxu0
    %v5586 = vpop.f32.mrf.mxu0
    %v5587 = vadd.f32 %v5387, %v5586
    %v5588 = vpop.f32.mrf.mxu0
    %5589 = vmatprep.mubr.bf16.mxu0 0
    %5590 = vmatmul.mubr.bf16.gmra.mxu0 %v5432
    %v5591 = vpop.f32.mrf.mxu0
    %v5592 = vadd.f32 %v5387, %v5591
    %v5593 = vpop.f32.mrf.mxu0
    %v5594 = vpop.f32.mrf.mxu0
    %v5595 = vadd.f32 %v5387, %v5594
    %v5596 = vpop.f32.mrf.mxu0
    %5597 = vmatprep.mubr.bf16.mxu0 0
    %5598 = vmatmul.mubr.bf16.gmra.mxu0 %v5435
    %v5599 = vpop.f32.mrf.mxu0
    %v5600 = vadd.f32 %v5387, %v5599
    %v5601 = vpop.f32.mrf.mxu0
    %v5602 = vpop.f32.mrf.mxu0
    %v5603 = vadd.f32 %v5387, %v5602
    %v5604 = vpop.f32.mrf.mxu0
    %5605 = vmatprep.mubr.bf16.mxu0 0
    %5606 = vmatmul.mubr.bf16.gmra.mxu0 %v5438
    %v5607 = vpop.f32.mrf.mxu0
    %v5608 = vadd.f32 %v5387, %v5607
    %v5609 = vpop.f32.mrf.mxu0
    %v5610 = vpop.f32.mrf.mxu0
    %v5611 = vadd.f32 %v5387, %v5610
    %v5612 = vpop.f32.mrf.mxu0
    %5613 = vmatprep.mubr.bf16.mxu0 0
    %5614 = vmatmul.mubr.bf16.gmra.mxu0 %v5441
    %v5615 = vpop.f32.mrf.mxu0
    %v5616 = vadd.f32 %v5387, %v5615
    %v5617 = vpop.f32.mrf.mxu0
    %v5618 = vpop.f32.mrf.mxu0
    %v5619 = vadd.f32 %v5387, %v5618
    %v5620 = vpop.f32.mrf.mxu0
    %5621 = vmatprep.mubr.bf16.mxu0 0
    %5622 = vmatmul.mubr.bf16.gmra.mxu0 %v5444
    %v5623 = vpop.f32.mrf.mxu0
    %v5624 = vadd.f32 %v5387, %v5623
    %v5625 = vpop.f32.mrf.mxu0
    %v5626 = vpop.f32.mrf.mxu0
    %v5627 = vadd.f32 %v5387, %v5626
    %v5628 = vpop.f32.mrf.mxu0
    %5629 = vmatprep.mubr.bf16.mxu0 0
    %5630 = vmatmul.mubr.bf16.gmra.mxu0 %v5447
    %v5631 = vpop.f32.mrf.mxu0
    %v5632 = vadd.f32 %v5387, %v5631
    %v5633 = vpop.f32.mrf.mxu0
    %v5634 = vpop.f32.mrf.mxu0
    %v5635 = vadd.f32 %v5387, %v5634
    %v5636 = vpop.f32.mrf.mxu0
    %5637 = vmatprep.mubr.bf16.mxu0 0
    %5638 = vmatmul.mubr.bf16.gmra.mxu0 %v5450
    %v5639 = vpop.f32.mrf.mxu0
    %v5640 = vadd.f32 %v5387, %v5639
    %v5641 = vpop.f32.mrf.mxu0
    %v5642 = vpop.f32.mrf.mxu0
    %v5643 = vadd.f32 %v5387, %v5642
    %v5644 = vpop.f32.mrf.mxu0
    %5645 = vmatprep.mubr.bf16.mxu0 0
    %5646 = vmatmul.mubr.bf16.gmra.mxu0 %v5453
    %v5647 = vpop.f32.mrf.mxu0
    %v5648 = vadd.f32 %v5387, %v5647
    %v5649 = vpop.f32.mrf.mxu0
    %v5650 = vpop.f32.mrf.mxu0
    %v5651 = vadd.f32 %v5387, %v5650
    %v5652 = vpop.f32.mrf.mxu0
    %5653 = vmatprep.mubr.bf16.mxu0 0
    %5654 = vmatmul.mubr.bf16.gmra.mxu0 %v5456
    %v5655 = vpop.f32.mrf.mxu0
    %v5656 = vadd.f32 %v5387, %v5655
    %v5657 = vpop.f32.mrf.mxu0
    %v5658 = vpop.f32.mrf.mxu0
    %v5659 = vadd.f32 %v5387, %v5658
    %v5660 = vpop.f32.mrf.mxu0
    %5661 = vmatprep.mubr.bf16.mxu0 0
    %5662 = vmatmul.mubr.bf16.gmra.mxu0 %v5459
    %v5663 = vpop.f32.mrf.mxu0
    %v5664 = vadd.f32 %v5387, %v5663
    %v5665 = vpop.f32.mrf.mxu0
    %v5666 = vpop.f32.mrf.mxu0
    %v5667 = vadd.f32 %v5387, %v5666
    %v5668 = vpop.f32.mrf.mxu0
    %5669 = vmatprep.mubr.bf16.mxu0 0
    %5670 = vmatmul.mubr.bf16.gmra.mxu0 %v5462
    %v5671 = vpop.f32.mrf.mxu0
    %v5672 = vadd.f32 %v5387, %v5671
    %v5673 = vpop.f32.mrf.mxu0
    %v5674 = vpop.f32.mrf.mxu0
    %v5675 = vadd.f32 %v5387, %v5674
    %v5676 = vpop.f32.mrf.mxu0
    %5677 = vmatprep.mubr.bf16.mxu0 0
    %5678 = vmatmul.mubr.bf16.gmra.mxu0 %v5465
    %v5679 = vpop.f32.mrf.mxu0
    %v5680 = vadd.f32 %v5387, %v5679
    %v5681 = vpop.f32.mrf.mxu0
    %v5682 = vpop.f32.mrf.mxu0
    %v5683 = vadd.f32 %v5387, %v5682
    %v5684 = vpop.f32.mrf.mxu0
    %5685 = vmatprep.mubr.bf16.mxu0 0
    %5686 = vmatmul.mubr.bf16.gmra.mxu0 %v5468
    %v5687 = vpop.f32.mrf.mxu0
    %v5688 = vadd.f32 %v5387, %v5687
    %v5689 = vpop.f32.mrf.mxu0
    %v5690 = vpop.f32.mrf.mxu0
    %v5691 = vadd.f32 %v5387, %v5690
    %v5692 = vpop.f32.mrf.mxu0
    %5693 = vmatprep.mubr.bf16.mxu0 0
    %5694 = vmatmul.mubr.bf16.gmra.mxu0 %v5471
    %v5695 = vpop.f32.mrf.mxu0
    %v5696 = vadd.f32 %v5387, %v5695
    %v5697 = vpop.f32.mrf.mxu0
    %v5698 = vpop.f32.mrf.mxu0
    %v5699 = vadd.f32 %v5387, %v5698
    %v5700 = vpop.f32.mrf.mxu0
    %5701 = vmatprep.mubr.bf16.mxu0 0
    %5702 = vmatmul.mubr.bf16.gmra.mxu0 %v5474
    %v5703 = vpop.f32.mrf.mxu0
    %v5704 = vadd.f32 %v5387, %v5703
    %v5705 = vpop.f32.mrf.mxu0
    %v5706 = vpop.f32.mrf.mxu0
    %v5707 = vadd.f32 %v5387, %v5706
    %v5708 = vpop.f32.mrf.mxu0
    %5709 = vmatprep.mubr.bf16.mxu0 0
    %5710 = vmatmul.mubr.bf16.gmra.mxu0 %v5477
    %v5711 = vpop.f32.mrf.mxu0
    %v5712 = vadd.f32 %v5387, %v5711
    %v5713 = vpop.f32.mrf.mxu0
    %v5714 = vpop.f32.mrf.mxu0
    %v5715 = vadd.f32 %v5387, %v5714
    %v5716 = vpop.f32.mrf.mxu0
    %5717 = vmatprep.mubr.bf16.mxu0 0
    %5718 = vmatmul.mubr.bf16.gmra.mxu0 %v5480
    %v5719 = vpop.f32.mrf.mxu0
    %v5720 = vadd.f32 %v5387, %v5719
    %v5721 = vpop.f32.mrf.mxu0
    %v5722 = vpop.f32.mrf.mxu0
    %v5723 = vadd.f32 %v5387, %v5722
    %v5724 = vpop.f32.mrf.mxu0
    %5725 = vmatprep.mubr.bf16.mxu0 0
    %5726 = vmatmul.mubr.bf16.gmra.mxu0 %v5483
    %v5727 = vpop.f32.mrf.mxu0
    %v5728 = vadd.f32 %v5387, %v5727
    %v5729 = vpop.f32.mrf.mxu0
    %v5730 = vpop.f32.mrf.mxu0
    %v5731 = vadd.f32 %v5387, %v5730
    %v5732 = vpop.f32.mrf.mxu0
    %5733 = vmatprep.mubr.bf16.mxu0 0
    %5734 = vmatmul.mubr.bf16.gmra.mxu0 %v5486
    %v5735 = vpop.f32.mrf.mxu0
    %v5736 = vadd.f32 %v5387, %v5735
    %v5737 = vpop.f32.mrf.mxu0
    %v5738 = vpop.f32.mrf.mxu0
    %v5739 = vadd.f32 %v5387, %v5738
    %v5740 = vpop.f32.mrf.mxu0
    %5741 = vmatprep.mubr.bf16.mxu0 0
    %5742 = vmatmul.mubr.bf16.gmra.mxu0 %v5489
    %v5743 = vpop.f32.mrf.mxu0
    %v5744 = vadd.f32 %v5387, %v5743
    %v5745 = vpop.f32.mrf.mxu0
    %v5746 = vpop.f32.mrf.mxu0
    %v5747 = vadd.f32 %v5387, %v5746
    %v5748 = vpop.f32.mrf.mxu0
    %5749 = vmatprep.mubr.bf16.mxu0 0
    %5750 = vmatmul.mubr.bf16.gmra.mxu0 %v5492
    %v5751 = vpop.f32.mrf.mxu0
    %v5752 = vadd.f32 %v5387, %v5751
    %v5753 = vpop.f32.mrf.mxu0
    %v5754 = vpop.f32.mrf.mxu0
    %v5755 = vadd.f32 %v5387, %v5754
    %v5756 = vpop.f32.mrf.mxu0
    %5757 = vmatprep.mubr.bf16.mxu0 0
    %5758 = vmatmul.mubr.bf16.gmra.mxu0 %v5495
    %v5759 = vpop.f32.mrf.mxu0
    %v5760 = vadd.f32 %v5387, %v5759
    %v5761 = vpop.f32.mrf.mxu0
    %v5762 = vpop.f32.mrf.mxu0
    %v5763 = vadd.f32 %v5387, %v5762
    %v5764 = vpop.f32.mrf.mxu0
    %5765 = vmatprep.mubr.bf16.mxu0 0
    %5766 = vmatmul.mubr.bf16.gmra.mxu0 %v5498
    %v5767 = vpop.f32.mrf.mxu0
    %v5768 = vadd.f32 %v5387, %v5767
    %v5769 = vpop.f32.mrf.mxu0
    %v5770 = vpop.f32.mrf.mxu0
    %v5771 = vadd.f32 %v5387, %v5770
    %v5772 = vpop.f32.mrf.mxu0
    %5773 = vmatprep.mubr.bf16.mxu0 0
    %5774 = vmatmul.mubr.bf16.gmra.mxu0 %v5501
    %v5775 = vpop.f32.mrf.mxu0
    %v5776 = vadd.f32 %v5387, %v5775
    %v5777 = vpop.f32.mrf.mxu0
    %v5778 = vpop.f32.mrf.mxu0
    %v5779 = vadd.f32 %v5387, %v5778
    %v5780 = vpop.f32.mrf.mxu0
    %5781 = vmatprep.mubr.bf16.mxu0 0
    %5782 = vmatmul.mubr.bf16.gmra.mxu0 %v5504
    %v5783 = vpop.f32.mrf.mxu0
    %v5784 = vadd.f32 %v5387, %v5783
    %v5785 = vpop.f32.mrf.mxu0
    %v5786 = vpop.f32.mrf.mxu0
    %v5787 = vadd.f32 %v5387, %v5786
    %v5788 = vpop.f32.mrf.mxu0
    %5789 = vmatprep.mubr.bf16.mxu0 0
    %5790 = vmatmul.mubr.bf16.gmra.mxu0 %v5507
    %v5791 = vpop.f32.mrf.mxu0
    %v5792 = vadd.f32 %v5387, %v5791
    %v5793 = vpop.f32.mrf.mxu0
    %v5794 = vpop.f32.mrf.mxu0
    %v5795 = vadd.f32 %v5387, %v5794
    %v5796 = vpop.f32.mrf.mxu0
    %5797 = vdwg.mxu0
    %v5798 = vmul.f32 %v5544, 0.01
    %v5799 = vmul.f32 %v5547, 0.01
    %v5800 = vmul.f32 %v5552, 0.01
    %v5801 = vmul.f32 %v5555, 0.01
    %v5802 = vmul.f32 %v5560, 0.01
    %v5803 = vmul.f32 %v5563, 0.01
    %v5804 = vmul.f32 %v5568, 0.01
    %v5805 = vmul.f32 %v5571, 0.01
    %v5806 = vmul.f32 %v5576, 0.01
    %v5807 = vmul.f32 %v5579, 0.01
    %v5808 = vmul.f32 %v5584, 0.01
    %v5809 = vmul.f32 %v5587, 0.01
    %v5810 = vmul.f32 %v5592, 0.01
    %v5811 = vmul.f32 %v5595, 0.01
    %v5812 = vmul.f32 %v5600, 0.01
    %v5813 = vmul.f32 %v5603, 0.01
    %v5814 = vmul.f32 %v5608, 0.01
    %v5815 = vmul.f32 %v5611, 0.01
    %v5816 = vmul.f32 %v5616, 0.01
    %v5817 = vmul.f32 %v5619, 0.01
    %v5818 = vmul.f32 %v5624, 0.01
    %v5819 = vmul.f32 %v5627, 0.01
    %v5820 = vmul.f32 %v5632, 0.01
    %v5821 = vmul.f32 %v5635, 0.01
    %v5822 = vmul.f32 %v5640, 0.01
    %v5823 = vmul.f32 %v5643, 0.01
    %v5824 = vmul.f32 %v5648, 0.01
    %v5825 = vmul.f32 %v5651, 0.01
    %v5826 = vmul.f32 %v5656, 0.01
    %v5827 = vmul.f32 %v5659, 0.01
    %v5828 = vmul.f32 %v5664, 0.01
    %v5829 = vmul.f32 %v5667, 0.01
    %v5830 = vmul.f32 %v5672, 0.01
    %v5831 = vmul.f32 %v5675, 0.01
    %v5832 = vmul.f32 %v5680, 0.01
    %v5833 = vmul.f32 %v5683, 0.01
    %v5834 = vmul.f32 %v5688, 0.01
    %v5835 = vmul.f32 %v5691, 0.01
    %v5836 = vmul.f32 %v5696, 0.01
    %v5837 = vmul.f32 %v5699, 0.01
    %v5838 = vmul.f32 %v5704, 0.01
    %v5839 = vmul.f32 %v5707, 0.01
    %v5840 = vmul.f32 %v5712, 0.01
    %v5841 = vmul.f32 %v5715, 0.01
    %v5842 = vmul.f32 %v5720, 0.01
    %v5843 = vmul.f32 %v5723, 0.01
    %v5844 = vmul.f32 %v5728, 0.01
    %v5845 = vmul.f32 %v5731, 0.01
    %v5846 = vmul.f32 %v5736, 0.01
    %v5847 = vmul.f32 %v5739, 0.01
    %v5848 = vmul.f32 %v5744, 0.01
    %v5849 = vmul.f32 %v5747, 0.01
    %v5850 = vmul.f32 %v5752, 0.01
    %v5851 = vmul.f32 %v5755, 0.01
    %v5852 = vmul.f32 %v5760, 0.01
    %v5853 = vmul.f32 %v5763, 0.01
    %v5854 = vmul.f32 %v5768, 0.01
    %v5855 = vmul.f32 %v5771, 0.01
    %v5856 = vmul.f32 %v5776, 0.01
    %v5857 = vmul.f32 %v5779, 0.01
    %v5858 = vmul.f32 %v5784, 0.01
    %v5859 = vmul.f32 %v5787, 0.01
    %v5860 = vmul.f32 %v5792, 0.01
    %v5861 = vmul.f32 %v5795, 0.01
    %v5862 = vmax.f32 %v5544, %v5798
    %v5863 = vmax.f32 %v5547, %v5799
    %v5864 = vmax.f32 %v5552, %v5800
    %v5865 = vmax.f32 %v5555, %v5801
    %v5866 = vmax.f32 %v5560, %v5802
    %v5867 = vmax.f32 %v5563, %v5803
    %v5868 = vmax.f32 %v5568, %v5804
    %v5869 = vmax.f32 %v5571, %v5805
    %v5870 = vmax.f32 %v5576, %v5806
    %v5871 = vmax.f32 %v5579, %v5807
    %v5872 = vmax.f32 %v5584, %v5808
    %v5873 = vmax.f32 %v5587, %v5809
    %v5874 = vmax.f32 %v5592, %v5810
    %v5875 = vmax.f32 %v5595, %v5811
    %v5876 = vmax.f32 %v5600, %v5812
    %v5877 = vmax.f32 %v5603, %v5813
    %v5878 = vmax.f32 %v5608, %v5814
    %v5879 = vmax.f32 %v5611, %v5815
    %v5880 = vmax.f32 %v5616, %v5816
    %v5881 = vmax.f32 %v5619, %v5817
    %v5882 = vmax.f32 %v5624, %v5818
    %v5883 = vmax.f32 %v5627, %v5819
    %v5884 = vmax.f32 %v5632, %v5820
    %v5885 = vmax.f32 %v5635, %v5821
    %v5886 = vmax.f32 %v5640, %v5822
    %v5887 = vmax.f32 %v5643, %v5823
    %v5888 = vmax.f32 %v5648, %v5824
    %v5889 = vmax.f32 %v5651, %v5825
    %v5890 = vmax.f32 %v5656, %v5826
    %v5891 = vmax.f32 %v5659, %v5827
    %v5892 = vmax.f32 %v5664, %v5828
    %v5893 = vmax.f32 %v5667, %v5829
    %v5894 = vmax.f32 %v5672, %v5830
    %v5895 = vmax.f32 %v5675, %v5831
    %v5896 = vmax.f32 %v5680, %v5832
    %v5897 = vmax.f32 %v5683, %v5833
    %v5898 = vmax.f32 %v5688, %v5834
    %v5899 = vmax.f32 %v5691, %v5835
    %v5900 = vmax.f32 %v5696, %v5836
    %v5901 = vmax.f32 %v5699, %v5837
    %v5902 = vmax.f32 %v5704, %v5838
    %v5903 = vmax.f32 %v5707, %v5839
    %v5904 = vmax.f32 %v5712, %v5840
    %v5905 = vmax.f32 %v5715, %v5841
    %v5906 = vmax.f32 %v5720, %v5842
    %v5907 = vmax.f32 %v5723, %v5843
    %v5908 = vmax.f32 %v5728, %v5844
    %v5909 = vmax.f32 %v5731, %v5845
    %v5910 = vmax.f32 %v5736, %v5846
    %v5911 = vmax.f32 %v5739, %v5847
    %v5912 = vmax.f32 %v5744, %v5848
    %v5913 = vmax.f32 %v5747, %v5849
    %v5914 = vmax.f32 %v5752, %v5850
    %v5915 = vmax.f32 %v5755, %v5851
    %v5916 = vmax.f32 %v5760, %v5852
    %v5917 = vmax.f32 %v5763, %v5853
    %v5918 = vmax.f32 %v5768, %v5854
    %v5919 = vmax.f32 %v5771, %v5855
    %v5920 = vmax.f32 %v5776, %v5856
    %v5921 = vmax.f32 %v5779, %v5857
    %v5922 = vmax.f32 %v5784, %v5858
    %v5923 = vmax.f32 %v5787, %v5859
    %v5924 = vmax.f32 %v5792, %v5860
    %v5925 = vmax.f32 %v5795, %v5861
    %v5926 = vpack.c.bf16 %v5863, %v5862
    %v5927 = vpack.c.bf16 %v5865, %v5864
    %v5928 = vpack.c.bf16 %v5867, %v5866
    %v5929 = vpack.c.bf16 %v5869, %v5868
    %v5930 = vpack.c.bf16 %v5871, %v5870
    %v5931 = vpack.c.bf16 %v5873, %v5872
    %v5932 = vpack.c.bf16 %v5875, %v5874
    %v5933 = vpack.c.bf16 %v5877, %v5876
    %v5934 = vpack.c.bf16 %v5879, %v5878
    %v5935 = vpack.c.bf16 %v5881, %v5880
    %v5936 = vpack.c.bf16 %v5883, %v5882
    %v5937 = vpack.c.bf16 %v5885, %v5884
    %v5938 = vpack.c.bf16 %v5887, %v5886
    %v5939 = vpack.c.bf16 %v5889, %v5888
    %v5940 = vpack.c.bf16 %v5891, %v5890
    %v5941 = vpack.c.bf16 %v5893, %v5892
    %v5942 = vpack.c.bf16 %v5895, %v5894
    %v5943 = vpack.c.bf16 %v5897, %v5896
    %v5944 = vpack.c.bf16 %v5899, %v5898
    %v5945 = vpack.c.bf16 %v5901, %v5900
    %v5946 = vpack.c.bf16 %v5903, %v5902
    %v5947 = vpack.c.bf16 %v5905, %v5904
    %v5948 = vpack.c.bf16 %v5907, %v5906
    %v5949 = vpack.c.bf16 %v5909, %v5908
    %v5950 = vpack.c.bf16 %v5911, %v5910
    %v5951 = vpack.c.bf16 %v5913, %v5912
    %v5952 = vpack.c.bf16 %v5915, %v5914
    %v5953 = vpack.c.bf16 %v5917, %v5916
    %v5954 = vpack.c.bf16 %v5919, %v5918
    %v5955 = vpack.c.bf16 %v5921, %v5920
    %v5956 = vpack.c.bf16 %v5923, %v5922
    %v5957 = vpack.c.bf16 %v5925, %v5924
    %s5958 = scalar_lea.vmem %s3, 288
    %v5959 = vld [vmem:[%s5958] sm:$0xf]
    %v5960 = vld [vmem:[%s5958 + $0x4] sm:$0xf]
    %v5961 = vld [vmem:[%s5958 + $0x8] sm:$0xf]
    %v5962 = vld [vmem:[%s5958 + $0xc] sm:$0xf]
    %v5963 = vld [vmem:[%s5958 + $0x10] sm:$0xf]
    %v5964 = vld [vmem:[%s5958 + $0x14] sm:$0xf]
    %v5965 = vld [vmem:[%s5958 + $0x18] sm:$0xf]
    %v5966 = vld [vmem:[%s5958 + $0x1c] sm:$0xf]
    %s5967 = scalar_lea.vmem %s4, 9
    %v5968 = vld [vmem:[%s5967] sm:$0x1]
    %v5970 = vlaneseq
    %v5971 = vshrl.u32 %v5970, 7
    %v5972 = vsub.s32 0, %v5971
    %v5973 = vrot.slane %v5968, %v5972
    %v5983 = vunpack.c.l.b16 %v5959
    %v5984 = vunpack.c.l.b16 %v5960
    %v5985 = vunpack.c.l.b16 %v5961
    %v5986 = vunpack.c.l.b16 %v5962
    %v5987 = vunpack.c.l.b16 %v5963
    %v5988 = vunpack.c.l.b16 %v5964
    %v5989 = vunpack.c.l.b16 %v5965
    %v5990 = vunpack.c.l.b16 %v5966
    %v5991 = vpack.c.b16 %v5984, %v5983
    %v5992 = vpack.c.b16 %v5986, %v5985
    %v5993 = vpack.c.b16 %v5988, %v5987
    %v5994 = vpack.c.b16 %v5990, %v5989
    %v6000 = vsel %vm724, %v5926, 0
    %v6003 = vsel %vm724, %v5927, 0
    %v6006 = vsel %vm724, %v5928, 0
    %v6009 = vsel %vm724, %v5929, 0
    %v6012 = vsel %vm724, %v5930, 0
    %v6015 = vsel %vm724, %v5931, 0
    %v6018 = vsel %vm724, %v5932, 0
    %v6021 = vsel %vm724, %v5933, 0
    %v6024 = vsel %vm724, %v5934, 0
    %v6027 = vsel %vm724, %v5935, 0
    %v6030 = vsel %vm724, %v5936, 0
    %v6033 = vsel %vm724, %v5937, 0
    %v6036 = vsel %vm724, %v5938, 0
    %v6039 = vsel %vm724, %v5939, 0
    %v6042 = vsel %vm724, %v5940, 0
    %v6045 = vsel %vm724, %v5941, 0
    %v6048 = vsel %vm724, %v5942, 0
    %v6051 = vsel %vm724, %v5943, 0
    %v6054 = vsel %vm724, %v5944, 0
    %v6057 = vsel %vm724, %v5945, 0
    %v6060 = vsel %vm724, %v5946, 0
    %v6063 = vsel %vm724, %v5947, 0
    %v6066 = vsel %vm724, %v5948, 0
    %v6069 = vsel %vm724, %v5949, 0
    %v6072 = vsel %vm724, %v5950, 0
    %v6075 = vsel %vm724, %v5951, 0
    %v6078 = vsel %vm724, %v5952, 0
    %v6081 = vsel %vm724, %v5953, 0
    %v6084 = vsel %vm724, %v5954, 0
    %v6087 = vsel %vm724, %v5955, 0
    %v6090 = vsel %vm724, %v5956, 0
    %v6093 = vsel %vm724, %v5957, 0
    %6095 = vmatprep.subr.bf16.mxu0 0
    %6096 = vmatpush1.bf16.msra.mxu0 0
    %6097 = vmatprep.subr.bf16.mxu0 0
    %6098 = vmatpush1.bf16.msra.mxu0 0
    %6099 = vmatprep.subr.bf16.mxu0 0
    %6100 = vmatpush1.bf16.msra.mxu0 0
    %6101 = vmatprep.subr.bf16.mxu0 0
    %6102 = vmatpush1.bf16.msra.mxu0 0
    %6103 = vmatprep.subr.bf16.mxu0 0
    %6104 = vmatpush1.bf16.msra.mxu0 %v5994
    %6105 = vmatprep.subr.bf16.mxu0 0
    %6106 = vmatpush1.bf16.msra.mxu0 %v5993
    %6107 = vmatprep.subr.bf16.mxu0 0
    %6108 = vmatpush1.bf16.msra.mxu0 %v5992
    %6109 = vmatprep.subr.bf16.mxu0 0
    %6110 = vmatpush1.bf16.msra.mxu0 %v5991
    %6111 = vmatprep.subr.bf16.mxu0 0
    %6112 = vmatpush2.bf16.msra.mxu0 0
    %6113 = vmatprep.subr.bf16.mxu0 0
    %6114 = vmatpush2.bf16.msra.mxu0 0
    %6115 = vmatprep.subr.bf16.mxu0 0
    %6116 = vmatpush2.bf16.msra.mxu0 0
    %6117 = vmatprep.subr.bf16.mxu0 0
    %6118 = vmatpush2.bf16.msra.mxu0 0
    %6119 = vmatprep.subr.bf16.mxu0 0
    %6120 = vmatpush2.bf16.msra.mxu0 0
    %6121 = vmatprep.subr.bf16.mxu0 0
    %6122 = vmatpush2.bf16.msra.mxu0 0
    %6123 = vmatprep.subr.bf16.mxu0 0
    %6124 = vmatpush2.bf16.msra.mxu0 0
    %6125 = vmatprep.subr.bf16.mxu0 0
    %6126 = vmatpush2.bf16.msra.mxu0 0
    %6127 = vmatprep.mubr.bf16.mxu0 0
    %6128 = vmatmul.mubr.bf16.gmra.mxu0 %v6000
    %v6129 = vpop.f32.mrf.mxu0
    %v6130 = vadd.f32 %v5973, %v6129
    %v6131 = vpop.f32.mrf.mxu0
    %v6132 = vpop.f32.mrf.mxu0
    %v6133 = vadd.f32 %v5973, %v6132
    %v6134 = vpop.f32.mrf.mxu0
    %6135 = vmatprep.mubr.bf16.mxu0 0
    %6136 = vmatmul.mubr.bf16.gmra.mxu0 %v6003
    %v6137 = vpop.f32.mrf.mxu0
    %v6138 = vadd.f32 %v5973, %v6137
    %v6139 = vpop.f32.mrf.mxu0
    %v6140 = vpop.f32.mrf.mxu0
    %v6141 = vadd.f32 %v5973, %v6140
    %v6142 = vpop.f32.mrf.mxu0
    %6143 = vmatprep.mubr.bf16.mxu0 0
    %6144 = vmatmul.mubr.bf16.gmra.mxu0 %v6006
    %v6145 = vpop.f32.mrf.mxu0
    %v6146 = vadd.f32 %v5973, %v6145
    %v6147 = vpop.f32.mrf.mxu0
    %v6148 = vpop.f32.mrf.mxu0
    %v6149 = vadd.f32 %v5973, %v6148
    %v6150 = vpop.f32.mrf.mxu0
    %6151 = vmatprep.mubr.bf16.mxu0 0
    %6152 = vmatmul.mubr.bf16.gmra.mxu0 %v6009
    %v6153 = vpop.f32.mrf.mxu0
    %v6154 = vadd.f32 %v5973, %v6153
    %v6155 = vpop.f32.mrf.mxu0
    %v6156 = vpop.f32.mrf.mxu0
    %v6157 = vadd.f32 %v5973, %v6156
    %v6158 = vpop.f32.mrf.mxu0
    %6159 = vmatprep.mubr.bf16.mxu0 0
    %6160 = vmatmul.mubr.bf16.gmra.mxu0 %v6012
    %v6161 = vpop.f32.mrf.mxu0
    %v6162 = vadd.f32 %v5973, %v6161
    %v6163 = vpop.f32.mrf.mxu0
    %v6164 = vpop.f32.mrf.mxu0
    %v6165 = vadd.f32 %v5973, %v6164
    %v6166 = vpop.f32.mrf.mxu0
    %6167 = vmatprep.mubr.bf16.mxu0 0
    %6168 = vmatmul.mubr.bf16.gmra.mxu0 %v6015
    %v6169 = vpop.f32.mrf.mxu0
    %v6170 = vadd.f32 %v5973, %v6169
    %v6171 = vpop.f32.mrf.mxu0
    %v6172 = vpop.f32.mrf.mxu0
    %v6173 = vadd.f32 %v5973, %v6172
    %v6174 = vpop.f32.mrf.mxu0
    %6175 = vmatprep.mubr.bf16.mxu0 0
    %6176 = vmatmul.mubr.bf16.gmra.mxu0 %v6018
    %v6177 = vpop.f32.mrf.mxu0
    %v6178 = vadd.f32 %v5973, %v6177
    %v6179 = vpop.f32.mrf.mxu0
    %v6180 = vpop.f32.mrf.mxu0
    %v6181 = vadd.f32 %v5973, %v6180
    %v6182 = vpop.f32.mrf.mxu0
    %6183 = vmatprep.mubr.bf16.mxu0 0
    %6184 = vmatmul.mubr.bf16.gmra.mxu0 %v6021
    %v6185 = vpop.f32.mrf.mxu0
    %v6186 = vadd.f32 %v5973, %v6185
    %v6187 = vpop.f32.mrf.mxu0
    %v6188 = vpop.f32.mrf.mxu0
    %v6189 = vadd.f32 %v5973, %v6188
    %v6190 = vpop.f32.mrf.mxu0
    %6191 = vmatprep.mubr.bf16.mxu0 0
    %6192 = vmatmul.mubr.bf16.gmra.mxu0 %v6024
    %v6193 = vpop.f32.mrf.mxu0
    %v6194 = vadd.f32 %v5973, %v6193
    %v6195 = vpop.f32.mrf.mxu0
    %v6196 = vpop.f32.mrf.mxu0
    %v6197 = vadd.f32 %v5973, %v6196
    %v6198 = vpop.f32.mrf.mxu0
    %6199 = vmatprep.mubr.bf16.mxu0 0
    %6200 = vmatmul.mubr.bf16.gmra.mxu0 %v6027
    %v6201 = vpop.f32.mrf.mxu0
    %v6202 = vadd.f32 %v5973, %v6201
    %v6203 = vpop.f32.mrf.mxu0
    %v6204 = vpop.f32.mrf.mxu0
    %v6205 = vadd.f32 %v5973, %v6204
    %v6206 = vpop.f32.mrf.mxu0
    %6207 = vmatprep.mubr.bf16.mxu0 0
    %6208 = vmatmul.mubr.bf16.gmra.mxu0 %v6030
    %v6209 = vpop.f32.mrf.mxu0
    %v6210 = vadd.f32 %v5973, %v6209
    %v6211 = vpop.f32.mrf.mxu0
    %v6212 = vpop.f32.mrf.mxu0
    %v6213 = vadd.f32 %v5973, %v6212
    %v6214 = vpop.f32.mrf.mxu0
    %6215 = vmatprep.mubr.bf16.mxu0 0
    %6216 = vmatmul.mubr.bf16.gmra.mxu0 %v6033
    %v6217 = vpop.f32.mrf.mxu0
    %v6218 = vadd.f32 %v5973, %v6217
    %v6219 = vpop.f32.mrf.mxu0
    %v6220 = vpop.f32.mrf.mxu0
    %v6221 = vadd.f32 %v5973, %v6220
    %v6222 = vpop.f32.mrf.mxu0
    %6223 = vmatprep.mubr.bf16.mxu0 0
    %6224 = vmatmul.mubr.bf16.gmra.mxu0 %v6036
    %v6225 = vpop.f32.mrf.mxu0
    %v6226 = vadd.f32 %v5973, %v6225
    %v6227 = vpop.f32.mrf.mxu0
    %v6228 = vpop.f32.mrf.mxu0
    %v6229 = vadd.f32 %v5973, %v6228
    %v6230 = vpop.f32.mrf.mxu0
    %6231 = vmatprep.mubr.bf16.mxu0 0
    %6232 = vmatmul.mubr.bf16.gmra.mxu0 %v6039
    %v6233 = vpop.f32.mrf.mxu0
    %v6234 = vadd.f32 %v5973, %v6233
    %v6235 = vpop.f32.mrf.mxu0
    %v6236 = vpop.f32.mrf.mxu0
    %v6237 = vadd.f32 %v5973, %v6236
    %v6238 = vpop.f32.mrf.mxu0
    %6239 = vmatprep.mubr.bf16.mxu0 0
    %6240 = vmatmul.mubr.bf16.gmra.mxu0 %v6042
    %v6241 = vpop.f32.mrf.mxu0
    %v6242 = vadd.f32 %v5973, %v6241
    %v6243 = vpop.f32.mrf.mxu0
    %v6244 = vpop.f32.mrf.mxu0
    %v6245 = vadd.f32 %v5973, %v6244
    %v6246 = vpop.f32.mrf.mxu0
    %6247 = vmatprep.mubr.bf16.mxu0 0
    %6248 = vmatmul.mubr.bf16.gmra.mxu0 %v6045
    %v6249 = vpop.f32.mrf.mxu0
    %v6250 = vadd.f32 %v5973, %v6249
    %v6251 = vpop.f32.mrf.mxu0
    %v6252 = vpop.f32.mrf.mxu0
    %v6253 = vadd.f32 %v5973, %v6252
    %v6254 = vpop.f32.mrf.mxu0
    %6255 = vmatprep.mubr.bf16.mxu0 0
    %6256 = vmatmul.mubr.bf16.gmra.mxu0 %v6048
    %v6257 = vpop.f32.mrf.mxu0
    %v6258 = vadd.f32 %v5973, %v6257
    %v6259 = vpop.f32.mrf.mxu0
    %v6260 = vpop.f32.mrf.mxu0
    %v6261 = vadd.f32 %v5973, %v6260
    %v6262 = vpop.f32.mrf.mxu0
    %6263 = vmatprep.mubr.bf16.mxu0 0
    %6264 = vmatmul.mubr.bf16.gmra.mxu0 %v6051
    %v6265 = vpop.f32.mrf.mxu0
    %v6266 = vadd.f32 %v5973, %v6265
    %v6267 = vpop.f32.mrf.mxu0
    %v6268 = vpop.f32.mrf.mxu0
    %v6269 = vadd.f32 %v5973, %v6268
    %v6270 = vpop.f32.mrf.mxu0
    %6271 = vmatprep.mubr.bf16.mxu0 0
    %6272 = vmatmul.mubr.bf16.gmra.mxu0 %v6054
    %v6273 = vpop.f32.mrf.mxu0
    %v6274 = vadd.f32 %v5973, %v6273
    %v6275 = vpop.f32.mrf.mxu0
    %v6276 = vpop.f32.mrf.mxu0
    %v6277 = vadd.f32 %v5973, %v6276
    %v6278 = vpop.f32.mrf.mxu0
    %6279 = vmatprep.mubr.bf16.mxu0 0
    %6280 = vmatmul.mubr.bf16.gmra.mxu0 %v6057
    %v6281 = vpop.f32.mrf.mxu0
    %v6282 = vadd.f32 %v5973, %v6281
    %v6283 = vpop.f32.mrf.mxu0
    %v6284 = vpop.f32.mrf.mxu0
    %v6285 = vadd.f32 %v5973, %v6284
    %v6286 = vpop.f32.mrf.mxu0
    %6287 = vmatprep.mubr.bf16.mxu0 0
    %6288 = vmatmul.mubr.bf16.gmra.mxu0 %v6060
    %v6289 = vpop.f32.mrf.mxu0
    %v6290 = vadd.f32 %v5973, %v6289
    %v6291 = vpop.f32.mrf.mxu0
    %v6292 = vpop.f32.mrf.mxu0
    %v6293 = vadd.f32 %v5973, %v6292
    %v6294 = vpop.f32.mrf.mxu0
    %6295 = vmatprep.mubr.bf16.mxu0 0
    %6296 = vmatmul.mubr.bf16.gmra.mxu0 %v6063
    %v6297 = vpop.f32.mrf.mxu0
    %v6298 = vadd.f32 %v5973, %v6297
    %v6299 = vpop.f32.mrf.mxu0
    %v6300 = vpop.f32.mrf.mxu0
    %v6301 = vadd.f32 %v5973, %v6300
    %v6302 = vpop.f32.mrf.mxu0
    %6303 = vmatprep.mubr.bf16.mxu0 0
    %6304 = vmatmul.mubr.bf16.gmra.mxu0 %v6066
    %v6305 = vpop.f32.mrf.mxu0
    %v6306 = vadd.f32 %v5973, %v6305
    %v6307 = vpop.f32.mrf.mxu0
    %v6308 = vpop.f32.mrf.mxu0
    %v6309 = vadd.f32 %v5973, %v6308
    %v6310 = vpop.f32.mrf.mxu0
    %6311 = vmatprep.mubr.bf16.mxu0 0
    %6312 = vmatmul.mubr.bf16.gmra.mxu0 %v6069
    %v6313 = vpop.f32.mrf.mxu0
    %v6314 = vadd.f32 %v5973, %v6313
    %v6315 = vpop.f32.mrf.mxu0
    %v6316 = vpop.f32.mrf.mxu0
    %v6317 = vadd.f32 %v5973, %v6316
    %v6318 = vpop.f32.mrf.mxu0
    %6319 = vmatprep.mubr.bf16.mxu0 0
    %6320 = vmatmul.mubr.bf16.gmra.mxu0 %v6072
    %v6321 = vpop.f32.mrf.mxu0
    %v6322 = vadd.f32 %v5973, %v6321
    %v6323 = vpop.f32.mrf.mxu0
    %v6324 = vpop.f32.mrf.mxu0
    %v6325 = vadd.f32 %v5973, %v6324
    %v6326 = vpop.f32.mrf.mxu0
    %6327 = vmatprep.mubr.bf16.mxu0 0
    %6328 = vmatmul.mubr.bf16.gmra.mxu0 %v6075
    %v6329 = vpop.f32.mrf.mxu0
    %v6330 = vadd.f32 %v5973, %v6329
    %v6331 = vpop.f32.mrf.mxu0
    %v6332 = vpop.f32.mrf.mxu0
    %v6333 = vadd.f32 %v5973, %v6332
    %v6334 = vpop.f32.mrf.mxu0
    %6335 = vmatprep.mubr.bf16.mxu0 0
    %6336 = vmatmul.mubr.bf16.gmra.mxu0 %v6078
    %v6337 = vpop.f32.mrf.mxu0
    %v6338 = vadd.f32 %v5973, %v6337
    %v6339 = vpop.f32.mrf.mxu0
    %v6340 = vpop.f32.mrf.mxu0
    %v6341 = vadd.f32 %v5973, %v6340
    %v6342 = vpop.f32.mrf.mxu0
    %6343 = vmatprep.mubr.bf16.mxu0 0
    %6344 = vmatmul.mubr.bf16.gmra.mxu0 %v6081
    %v6345 = vpop.f32.mrf.mxu0
    %v6346 = vadd.f32 %v5973, %v6345
    %v6347 = vpop.f32.mrf.mxu0
    %v6348 = vpop.f32.mrf.mxu0
    %v6349 = vadd.f32 %v5973, %v6348
    %v6350 = vpop.f32.mrf.mxu0
    %6351 = vmatprep.mubr.bf16.mxu0 0
    %6352 = vmatmul.mubr.bf16.gmra.mxu0 %v6084
    %v6353 = vpop.f32.mrf.mxu0
    %v6354 = vadd.f32 %v5973, %v6353
    %v6355 = vpop.f32.mrf.mxu0
    %v6356 = vpop.f32.mrf.mxu0
    %v6357 = vadd.f32 %v5973, %v6356
    %v6358 = vpop.f32.mrf.mxu0
    %6359 = vmatprep.mubr.bf16.mxu0 0
    %6360 = vmatmul.mubr.bf16.gmra.mxu0 %v6087
    %v6361 = vpop.f32.mrf.mxu0
    %v6362 = vadd.f32 %v5973, %v6361
    %v6363 = vpop.f32.mrf.mxu0
    %v6364 = vpop.f32.mrf.mxu0
    %v6365 = vadd.f32 %v5973, %v6364
    %v6366 = vpop.f32.mrf.mxu0
    %6367 = vmatprep.mubr.bf16.mxu0 0
    %6368 = vmatmul.mubr.bf16.gmra.mxu0 %v6090
    %v6369 = vpop.f32.mrf.mxu0
    %v6370 = vadd.f32 %v5973, %v6369
    %v6371 = vpop.f32.mrf.mxu0
    %v6372 = vpop.f32.mrf.mxu0
    %v6373 = vadd.f32 %v5973, %v6372
    %v6374 = vpop.f32.mrf.mxu0
    %6375 = vmatprep.mubr.bf16.mxu0 0
    %6376 = vmatmul.mubr.bf16.gmra.mxu0 %v6093
    %v6377 = vpop.f32.mrf.mxu0
    %v6378 = vadd.f32 %v5973, %v6377
    %v6379 = vpop.f32.mrf.mxu0
    %v6380 = vpop.f32.mrf.mxu0
    %v6381 = vadd.f32 %v5973, %v6380
    %v6382 = vpop.f32.mrf.mxu0
    %6383 = vdwg.mxu0
    %v6384 = vmul.f32 %v6130, 0.01
    %v6385 = vmul.f32 %v6133, 0.01
    %v6386 = vmul.f32 %v6138, 0.01
    %v6387 = vmul.f32 %v6141, 0.01
    %v6388 = vmul.f32 %v6146, 0.01
    %v6389 = vmul.f32 %v6149, 0.01
    %v6390 = vmul.f32 %v6154, 0.01
    %v6391 = vmul.f32 %v6157, 0.01
    %v6392 = vmul.f32 %v6162, 0.01
    %v6393 = vmul.f32 %v6165, 0.01
    %v6394 = vmul.f32 %v6170, 0.01
    %v6395 = vmul.f32 %v6173, 0.01
    %v6396 = vmul.f32 %v6178, 0.01
    %v6397 = vmul.f32 %v6181, 0.01
    %v6398 = vmul.f32 %v6186, 0.01
    %v6399 = vmul.f32 %v6189, 0.01
    %v6400 = vmul.f32 %v6194, 0.01
    %v6401 = vmul.f32 %v6197, 0.01
    %v6402 = vmul.f32 %v6202, 0.01
    %v6403 = vmul.f32 %v6205, 0.01
    %v6404 = vmul.f32 %v6210, 0.01
    %v6405 = vmul.f32 %v6213, 0.01
    %v6406 = vmul.f32 %v6218, 0.01
    %v6407 = vmul.f32 %v6221, 0.01
    %v6408 = vmul.f32 %v6226, 0.01
    %v6409 = vmul.f32 %v6229, 0.01
    %v6410 = vmul.f32 %v6234, 0.01
    %v6411 = vmul.f32 %v6237, 0.01
    %v6412 = vmul.f32 %v6242, 0.01
    %v6413 = vmul.f32 %v6245, 0.01
    %v6414 = vmul.f32 %v6250, 0.01
    %v6415 = vmul.f32 %v6253, 0.01
    %v6416 = vmul.f32 %v6258, 0.01
    %v6417 = vmul.f32 %v6261, 0.01
    %v6418 = vmul.f32 %v6266, 0.01
    %v6419 = vmul.f32 %v6269, 0.01
    %v6420 = vmul.f32 %v6274, 0.01
    %v6421 = vmul.f32 %v6277, 0.01
    %v6422 = vmul.f32 %v6282, 0.01
    %v6423 = vmul.f32 %v6285, 0.01
    %v6424 = vmul.f32 %v6290, 0.01
    %v6425 = vmul.f32 %v6293, 0.01
    %v6426 = vmul.f32 %v6298, 0.01
    %v6427 = vmul.f32 %v6301, 0.01
    %v6428 = vmul.f32 %v6306, 0.01
    %v6429 = vmul.f32 %v6309, 0.01
    %v6430 = vmul.f32 %v6314, 0.01
    %v6431 = vmul.f32 %v6317, 0.01
    %v6432 = vmul.f32 %v6322, 0.01
    %v6433 = vmul.f32 %v6325, 0.01
    %v6434 = vmul.f32 %v6330, 0.01
    %v6435 = vmul.f32 %v6333, 0.01
    %v6436 = vmul.f32 %v6338, 0.01
    %v6437 = vmul.f32 %v6341, 0.01
    %v6438 = vmul.f32 %v6346, 0.01
    %v6439 = vmul.f32 %v6349, 0.01
    %v6440 = vmul.f32 %v6354, 0.01
    %v6441 = vmul.f32 %v6357, 0.01
    %v6442 = vmul.f32 %v6362, 0.01
    %v6443 = vmul.f32 %v6365, 0.01
    %v6444 = vmul.f32 %v6370, 0.01
    %v6445 = vmul.f32 %v6373, 0.01
    %v6446 = vmul.f32 %v6378, 0.01
    %v6447 = vmul.f32 %v6381, 0.01
    %v6448 = vmax.f32 %v6130, %v6384
    %v6449 = vmax.f32 %v6133, %v6385
    %v6450 = vmax.f32 %v6138, %v6386
    %v6451 = vmax.f32 %v6141, %v6387
    %v6452 = vmax.f32 %v6146, %v6388
    %v6453 = vmax.f32 %v6149, %v6389
    %v6454 = vmax.f32 %v6154, %v6390
    %v6455 = vmax.f32 %v6157, %v6391
    %v6456 = vmax.f32 %v6162, %v6392
    %v6457 = vmax.f32 %v6165, %v6393
    %v6458 = vmax.f32 %v6170, %v6394
    %v6459 = vmax.f32 %v6173, %v6395
    %v6460 = vmax.f32 %v6178, %v6396
    %v6461 = vmax.f32 %v6181, %v6397
    %v6462 = vmax.f32 %v6186, %v6398
    %v6463 = vmax.f32 %v6189, %v6399
    %v6464 = vmax.f32 %v6194, %v6400
    %v6465 = vmax.f32 %v6197, %v6401
    %v6466 = vmax.f32 %v6202, %v6402
    %v6467 = vmax.f32 %v6205, %v6403
    %v6468 = vmax.f32 %v6210, %v6404
    %v6469 = vmax.f32 %v6213, %v6405
    %v6470 = vmax.f32 %v6218, %v6406
    %v6471 = vmax.f32 %v6221, %v6407
    %v6472 = vmax.f32 %v6226, %v6408
    %v6473 = vmax.f32 %v6229, %v6409
    %v6474 = vmax.f32 %v6234, %v6410
    %v6475 = vmax.f32 %v6237, %v6411
    %v6476 = vmax.f32 %v6242, %v6412
    %v6477 = vmax.f32 %v6245, %v6413
    %v6478 = vmax.f32 %v6250, %v6414
    %v6479 = vmax.f32 %v6253, %v6415
    %v6480 = vmax.f32 %v6258, %v6416
    %v6481 = vmax.f32 %v6261, %v6417
    %v6482 = vmax.f32 %v6266, %v6418
    %v6483 = vmax.f32 %v6269, %v6419
    %v6484 = vmax.f32 %v6274, %v6420
    %v6485 = vmax.f32 %v6277, %v6421
    %v6486 = vmax.f32 %v6282, %v6422
    %v6487 = vmax.f32 %v6285, %v6423
    %v6488 = vmax.f32 %v6290, %v6424
    %v6489 = vmax.f32 %v6293, %v6425
    %v6490 = vmax.f32 %v6298, %v6426
    %v6491 = vmax.f32 %v6301, %v6427
    %v6492 = vmax.f32 %v6306, %v6428
    %v6493 = vmax.f32 %v6309, %v6429
    %v6494 = vmax.f32 %v6314, %v6430
    %v6495 = vmax.f32 %v6317, %v6431
    %v6496 = vmax.f32 %v6322, %v6432
    %v6497 = vmax.f32 %v6325, %v6433
    %v6498 = vmax.f32 %v6330, %v6434
    %v6499 = vmax.f32 %v6333, %v6435
    %v6500 = vmax.f32 %v6338, %v6436
    %v6501 = vmax.f32 %v6341, %v6437
    %v6502 = vmax.f32 %v6346, %v6438
    %v6503 = vmax.f32 %v6349, %v6439
    %v6504 = vmax.f32 %v6354, %v6440
    %v6505 = vmax.f32 %v6357, %v6441
    %v6506 = vmax.f32 %v6362, %v6442
    %v6507 = vmax.f32 %v6365, %v6443
    %v6508 = vmax.f32 %v6370, %v6444
    %v6509 = vmax.f32 %v6373, %v6445
    %v6510 = vmax.f32 %v6378, %v6446
    %v6511 = vmax.f32 %v6381, %v6447
    %v6512 = vpack.c.bf16 %v6449, %v6448
    %v6513 = vpack.c.bf16 %v6451, %v6450
    %v6514 = vpack.c.bf16 %v6453, %v6452
    %v6515 = vpack.c.bf16 %v6455, %v6454
    %v6516 = vpack.c.bf16 %v6457, %v6456
    %v6517 = vpack.c.bf16 %v6459, %v6458
    %v6518 = vpack.c.bf16 %v6461, %v6460
    %v6519 = vpack.c.bf16 %v6463, %v6462
    %v6520 = vpack.c.bf16 %v6465, %v6464
    %v6521 = vpack.c.bf16 %v6467, %v6466
    %v6522 = vpack.c.bf16 %v6469, %v6468
    %v6523 = vpack.c.bf16 %v6471, %v6470
    %v6524 = vpack.c.bf16 %v6473, %v6472
    %v6525 = vpack.c.bf16 %v6475, %v6474
    %v6526 = vpack.c.bf16 %v6477, %v6476
    %v6527 = vpack.c.bf16 %v6479, %v6478
    %v6528 = vpack.c.bf16 %v6481, %v6480
    %v6529 = vpack.c.bf16 %v6483, %v6482
    %v6530 = vpack.c.bf16 %v6485, %v6484
    %v6531 = vpack.c.bf16 %v6487, %v6486
    %v6532 = vpack.c.bf16 %v6489, %v6488
    %v6533 = vpack.c.bf16 %v6491, %v6490
    %v6534 = vpack.c.bf16 %v6493, %v6492
    %v6535 = vpack.c.bf16 %v6495, %v6494
    %v6536 = vpack.c.bf16 %v6497, %v6496
    %v6537 = vpack.c.bf16 %v6499, %v6498
    %v6538 = vpack.c.bf16 %v6501, %v6500
    %v6539 = vpack.c.bf16 %v6503, %v6502
    %v6540 = vpack.c.bf16 %v6505, %v6504
    %v6541 = vpack.c.bf16 %v6507, %v6506
    %v6542 = vpack.c.bf16 %v6509, %v6508
    %v6543 = vpack.c.bf16 %v6511, %v6510
    %s6544 = scalar_lea.vmem %s3, 320
    %v6545 = vld [vmem:[%s6544] sm:$0xf]
    %v6546 = vld [vmem:[%s6544 + $0x4] sm:$0xf]
    %v6547 = vld [vmem:[%s6544 + $0x8] sm:$0xf]
    %v6548 = vld [vmem:[%s6544 + $0xc] sm:$0xf]
    %v6549 = vld [vmem:[%s6544 + $0x10] sm:$0xf]
    %v6550 = vld [vmem:[%s6544 + $0x14] sm:$0xf]
    %v6551 = vld [vmem:[%s6544 + $0x18] sm:$0xf]
    %v6552 = vld [vmem:[%s6544 + $0x1c] sm:$0xf]
    %s6553 = scalar_lea.vmem %s4, 10
    %v6554 = vld [vmem:[%s6553] sm:$0x1]
    %v6556 = vlaneseq
    %v6557 = vshrl.u32 %v6556, 7
    %v6558 = vsub.s32 0, %v6557
    %v6559 = vrot.slane %v6554, %v6558
    %v6569 = vunpack.c.l.b16 %v6545
    %v6570 = vunpack.c.l.b16 %v6546
    %v6571 = vunpack.c.l.b16 %v6547
    %v6572 = vunpack.c.l.b16 %v6548
    %v6573 = vunpack.c.l.b16 %v6549
    %v6574 = vunpack.c.l.b16 %v6550
    %v6575 = vunpack.c.l.b16 %v6551
    %v6576 = vunpack.c.l.b16 %v6552
    %v6577 = vpack.c.b16 %v6570, %v6569
    %v6578 = vpack.c.b16 %v6572, %v6571
    %v6579 = vpack.c.b16 %v6574, %v6573
    %v6580 = vpack.c.b16 %v6576, %v6575
    %v6586 = vsel %vm724, %v6512, 0
    %v6589 = vsel %vm724, %v6513, 0
    %v6592 = vsel %vm724, %v6514, 0
    %v6595 = vsel %vm724, %v6515, 0
    %v6598 = vsel %vm724, %v6516, 0
    %v6601 = vsel %vm724, %v6517, 0
    %v6604 = vsel %vm724, %v6518, 0
    %v6607 = vsel %vm724, %v6519, 0
    %v6610 = vsel %vm724, %v6520, 0
    %v6613 = vsel %vm724, %v6521, 0
    %v6616 = vsel %vm724, %v6522, 0
    %v6619 = vsel %vm724, %v6523, 0
    %v6622 = vsel %vm724, %v6524, 0
    %v6625 = vsel %vm724, %v6525, 0
    %v6628 = vsel %vm724, %v6526, 0
    %v6631 = vsel %vm724, %v6527, 0
    %v6634 = vsel %vm724, %v6528, 0
    %v6637 = vsel %vm724, %v6529, 0
    %v6640 = vsel %vm724, %v6530, 0
    %v6643 = vsel %vm724, %v6531, 0
    %v6646 = vsel %vm724, %v6532, 0
    %v6649 = vsel %vm724, %v6533, 0
    %v6652 = vsel %vm724, %v6534, 0
    %v6655 = vsel %vm724, %v6535, 0
    %v6658 = vsel %vm724, %v6536, 0
    %v6661 = vsel %vm724, %v6537, 0
    %v6664 = vsel %vm724, %v6538, 0
    %v6667 = vsel %vm724, %v6539, 0
    %v6670 = vsel %vm724, %v6540, 0
    %v6673 = vsel %vm724, %v6541, 0
    %v6676 = vsel %vm724, %v6542, 0
    %v6679 = vsel %vm724, %v6543, 0
    %6681 = vmatprep.subr.bf16.mxu0 0
    %6682 = vmatpush1.bf16.msra.mxu0 0
    %6683 = vmatprep.subr.bf16.mxu0 0
    %6684 = vmatpush1.bf16.msra.mxu0 0
    %6685 = vmatprep.subr.bf16.mxu0 0
    %6686 = vmatpush1.bf16.msra.mxu0 0
    %6687 = vmatprep.subr.bf16.mxu0 0
    %6688 = vmatpush1.bf16.msra.mxu0 0
    %6689 = vmatprep.subr.bf16.mxu0 0
    %6690 = vmatpush1.bf16.msra.mxu0 %v6580
    %6691 = vmatprep.subr.bf16.mxu0 0
    %6692 = vmatpush1.bf16.msra.mxu0 %v6579
    %6693 = vmatprep.subr.bf16.mxu0 0
    %6694 = vmatpush1.bf16.msra.mxu0 %v6578
    %6695 = vmatprep.subr.bf16.mxu0 0
    %6696 = vmatpush1.bf16.msra.mxu0 %v6577
    %6697 = vmatprep.subr.bf16.mxu0 0
    %6698 = vmatpush2.bf16.msra.mxu0 0
    %6699 = vmatprep.subr.bf16.mxu0 0
    %6700 = vmatpush2.bf16.msra.mxu0 0
    %6701 = vmatprep.subr.bf16.mxu0 0
    %6702 = vmatpush2.bf16.msra.mxu0 0
    %6703 = vmatprep.subr.bf16.mxu0 0
    %6704 = vmatpush2.bf16.msra.mxu0 0
    %6705 = vmatprep.subr.bf16.mxu0 0
    %6706 = vmatpush2.bf16.msra.mxu0 0
    %6707 = vmatprep.subr.bf16.mxu0 0
    %6708 = vmatpush2.bf16.msra.mxu0 0
    %6709 = vmatprep.subr.bf16.mxu0 0
    %6710 = vmatpush2.bf16.msra.mxu0 0
    %6711 = vmatprep.subr.bf16.mxu0 0
    %6712 = vmatpush2.bf16.msra.mxu0 0
    %6713 = vmatprep.mubr.bf16.mxu0 0
    %6714 = vmatmul.mubr.bf16.gmra.mxu0 %v6586
    %v6715 = vpop.f32.mrf.mxu0
    %v6716 = vadd.f32 %v6559, %v6715
    %v6717 = vpop.f32.mrf.mxu0
    %v6718 = vpop.f32.mrf.mxu0
    %v6719 = vadd.f32 %v6559, %v6718
    %v6720 = vpop.f32.mrf.mxu0
    %6721 = vmatprep.mubr.bf16.mxu0 0
    %6722 = vmatmul.mubr.bf16.gmra.mxu0 %v6589
    %v6723 = vpop.f32.mrf.mxu0
    %v6724 = vadd.f32 %v6559, %v6723
    %v6725 = vpop.f32.mrf.mxu0
    %v6726 = vpop.f32.mrf.mxu0
    %v6727 = vadd.f32 %v6559, %v6726
    %v6728 = vpop.f32.mrf.mxu0
    %6729 = vmatprep.mubr.bf16.mxu0 0
    %6730 = vmatmul.mubr.bf16.gmra.mxu0 %v6592
    %v6731 = vpop.f32.mrf.mxu0
    %v6732 = vadd.f32 %v6559, %v6731
    %v6733 = vpop.f32.mrf.mxu0
    %v6734 = vpop.f32.mrf.mxu0
    %v6735 = vadd.f32 %v6559, %v6734
    %v6736 = vpop.f32.mrf.mxu0
    %6737 = vmatprep.mubr.bf16.mxu0 0
    %6738 = vmatmul.mubr.bf16.gmra.mxu0 %v6595
    %v6739 = vpop.f32.mrf.mxu0
    %v6740 = vadd.f32 %v6559, %v6739
    %v6741 = vpop.f32.mrf.mxu0
    %v6742 = vpop.f32.mrf.mxu0
    %v6743 = vadd.f32 %v6559, %v6742
    %v6744 = vpop.f32.mrf.mxu0
    %6745 = vmatprep.mubr.bf16.mxu0 0
    %6746 = vmatmul.mubr.bf16.gmra.mxu0 %v6598
    %v6747 = vpop.f32.mrf.mxu0
    %v6748 = vadd.f32 %v6559, %v6747
    %v6749 = vpop.f32.mrf.mxu0
    %v6750 = vpop.f32.mrf.mxu0
    %v6751 = vadd.f32 %v6559, %v6750
    %v6752 = vpop.f32.mrf.mxu0
    %6753 = vmatprep.mubr.bf16.mxu0 0
    %6754 = vmatmul.mubr.bf16.gmra.mxu0 %v6601
    %v6755 = vpop.f32.mrf.mxu0
    %v6756 = vadd.f32 %v6559, %v6755
    %v6757 = vpop.f32.mrf.mxu0
    %v6758 = vpop.f32.mrf.mxu0
    %v6759 = vadd.f32 %v6559, %v6758
    %v6760 = vpop.f32.mrf.mxu0
    %6761 = vmatprep.mubr.bf16.mxu0 0
    %6762 = vmatmul.mubr.bf16.gmra.mxu0 %v6604
    %v6763 = vpop.f32.mrf.mxu0
    %v6764 = vadd.f32 %v6559, %v6763
    %v6765 = vpop.f32.mrf.mxu0
    %v6766 = vpop.f32.mrf.mxu0
    %v6767 = vadd.f32 %v6559, %v6766
    %v6768 = vpop.f32.mrf.mxu0
    %6769 = vmatprep.mubr.bf16.mxu0 0
    %6770 = vmatmul.mubr.bf16.gmra.mxu0 %v6607
    %v6771 = vpop.f32.mrf.mxu0
    %v6772 = vadd.f32 %v6559, %v6771
    %v6773 = vpop.f32.mrf.mxu0
    %v6774 = vpop.f32.mrf.mxu0
    %v6775 = vadd.f32 %v6559, %v6774
    %v6776 = vpop.f32.mrf.mxu0
    %6777 = vmatprep.mubr.bf16.mxu0 0
    %6778 = vmatmul.mubr.bf16.gmra.mxu0 %v6610
    %v6779 = vpop.f32.mrf.mxu0
    %v6780 = vadd.f32 %v6559, %v6779
    %v6781 = vpop.f32.mrf.mxu0
    %v6782 = vpop.f32.mrf.mxu0
    %v6783 = vadd.f32 %v6559, %v6782
    %v6784 = vpop.f32.mrf.mxu0
    %6785 = vmatprep.mubr.bf16.mxu0 0
    %6786 = vmatmul.mubr.bf16.gmra.mxu0 %v6613
    %v6787 = vpop.f32.mrf.mxu0
    %v6788 = vadd.f32 %v6559, %v6787
    %v6789 = vpop.f32.mrf.mxu0
    %v6790 = vpop.f32.mrf.mxu0
    %v6791 = vadd.f32 %v6559, %v6790
    %v6792 = vpop.f32.mrf.mxu0
    %6793 = vmatprep.mubr.bf16.mxu0 0
    %6794 = vmatmul.mubr.bf16.gmra.mxu0 %v6616
    %v6795 = vpop.f32.mrf.mxu0
    %v6796 = vadd.f32 %v6559, %v6795
    %v6797 = vpop.f32.mrf.mxu0
    %v6798 = vpop.f32.mrf.mxu0
    %v6799 = vadd.f32 %v6559, %v6798
    %v6800 = vpop.f32.mrf.mxu0
    %6801 = vmatprep.mubr.bf16.mxu0 0
    %6802 = vmatmul.mubr.bf16.gmra.mxu0 %v6619
    %v6803 = vpop.f32.mrf.mxu0
    %v6804 = vadd.f32 %v6559, %v6803
    %v6805 = vpop.f32.mrf.mxu0
    %v6806 = vpop.f32.mrf.mxu0
    %v6807 = vadd.f32 %v6559, %v6806
    %v6808 = vpop.f32.mrf.mxu0
    %6809 = vmatprep.mubr.bf16.mxu0 0
    %6810 = vmatmul.mubr.bf16.gmra.mxu0 %v6622
    %v6811 = vpop.f32.mrf.mxu0
    %v6812 = vadd.f32 %v6559, %v6811
    %v6813 = vpop.f32.mrf.mxu0
    %v6814 = vpop.f32.mrf.mxu0
    %v6815 = vadd.f32 %v6559, %v6814
    %v6816 = vpop.f32.mrf.mxu0
    %6817 = vmatprep.mubr.bf16.mxu0 0
    %6818 = vmatmul.mubr.bf16.gmra.mxu0 %v6625
    %v6819 = vpop.f32.mrf.mxu0
    %v6820 = vadd.f32 %v6559, %v6819
    %v6821 = vpop.f32.mrf.mxu0
    %v6822 = vpop.f32.mrf.mxu0
    %v6823 = vadd.f32 %v6559, %v6822
    %v6824 = vpop.f32.mrf.mxu0
    %6825 = vmatprep.mubr.bf16.mxu0 0
    %6826 = vmatmul.mubr.bf16.gmra.mxu0 %v6628
    %v6827 = vpop.f32.mrf.mxu0
    %v6828 = vadd.f32 %v6559, %v6827
    %v6829 = vpop.f32.mrf.mxu0
    %v6830 = vpop.f32.mrf.mxu0
    %v6831 = vadd.f32 %v6559, %v6830
    %v6832 = vpop.f32.mrf.mxu0
    %6833 = vmatprep.mubr.bf16.mxu0 0
    %6834 = vmatmul.mubr.bf16.gmra.mxu0 %v6631
    %v6835 = vpop.f32.mrf.mxu0
    %v6836 = vadd.f32 %v6559, %v6835
    %v6837 = vpop.f32.mrf.mxu0
    %v6838 = vpop.f32.mrf.mxu0
    %v6839 = vadd.f32 %v6559, %v6838
    %v6840 = vpop.f32.mrf.mxu0
    %6841 = vmatprep.mubr.bf16.mxu0 0
    %6842 = vmatmul.mubr.bf16.gmra.mxu0 %v6634
    %v6843 = vpop.f32.mrf.mxu0
    %v6844 = vadd.f32 %v6559, %v6843
    %v6845 = vpop.f32.mrf.mxu0
    %v6846 = vpop.f32.mrf.mxu0
    %v6847 = vadd.f32 %v6559, %v6846
    %v6848 = vpop.f32.mrf.mxu0
    %6849 = vmatprep.mubr.bf16.mxu0 0
    %6850 = vmatmul.mubr.bf16.gmra.mxu0 %v6637
    %v6851 = vpop.f32.mrf.mxu0
    %v6852 = vadd.f32 %v6559, %v6851
    %v6853 = vpop.f32.mrf.mxu0
    %v6854 = vpop.f32.mrf.mxu0
    %v6855 = vadd.f32 %v6559, %v6854
    %v6856 = vpop.f32.mrf.mxu0
    %6857 = vmatprep.mubr.bf16.mxu0 0
    %6858 = vmatmul.mubr.bf16.gmra.mxu0 %v6640
    %v6859 = vpop.f32.mrf.mxu0
    %v6860 = vadd.f32 %v6559, %v6859
    %v6861 = vpop.f32.mrf.mxu0
    %v6862 = vpop.f32.mrf.mxu0
    %v6863 = vadd.f32 %v6559, %v6862
    %v6864 = vpop.f32.mrf.mxu0
    %6865 = vmatprep.mubr.bf16.mxu0 0
    %6866 = vmatmul.mubr.bf16.gmra.mxu0 %v6643
    %v6867 = vpop.f32.mrf.mxu0
    %v6868 = vadd.f32 %v6559, %v6867
    %v6869 = vpop.f32.mrf.mxu0
    %v6870 = vpop.f32.mrf.mxu0
    %v6871 = vadd.f32 %v6559, %v6870
    %v6872 = vpop.f32.mrf.mxu0
    %6873 = vmatprep.mubr.bf16.mxu0 0
    %6874 = vmatmul.mubr.bf16.gmra.mxu0 %v6646
    %v6875 = vpop.f32.mrf.mxu0
    %v6876 = vadd.f32 %v6559, %v6875
    %v6877 = vpop.f32.mrf.mxu0
    %v6878 = vpop.f32.mrf.mxu0
    %v6879 = vadd.f32 %v6559, %v6878
    %v6880 = vpop.f32.mrf.mxu0
    %6881 = vmatprep.mubr.bf16.mxu0 0
    %6882 = vmatmul.mubr.bf16.gmra.mxu0 %v6649
    %v6883 = vpop.f32.mrf.mxu0
    %v6884 = vadd.f32 %v6559, %v6883
    %v6885 = vpop.f32.mrf.mxu0
    %v6886 = vpop.f32.mrf.mxu0
    %v6887 = vadd.f32 %v6559, %v6886
    %v6888 = vpop.f32.mrf.mxu0
    %6889 = vmatprep.mubr.bf16.mxu0 0
    %6890 = vmatmul.mubr.bf16.gmra.mxu0 %v6652
    %v6891 = vpop.f32.mrf.mxu0
    %v6892 = vadd.f32 %v6559, %v6891
    %v6893 = vpop.f32.mrf.mxu0
    %v6894 = vpop.f32.mrf.mxu0
    %v6895 = vadd.f32 %v6559, %v6894
    %v6896 = vpop.f32.mrf.mxu0
    %6897 = vmatprep.mubr.bf16.mxu0 0
    %6898 = vmatmul.mubr.bf16.gmra.mxu0 %v6655
    %v6899 = vpop.f32.mrf.mxu0
    %v6900 = vadd.f32 %v6559, %v6899
    %v6901 = vpop.f32.mrf.mxu0
    %v6902 = vpop.f32.mrf.mxu0
    %v6903 = vadd.f32 %v6559, %v6902
    %v6904 = vpop.f32.mrf.mxu0
    %6905 = vmatprep.mubr.bf16.mxu0 0
    %6906 = vmatmul.mubr.bf16.gmra.mxu0 %v6658
    %v6907 = vpop.f32.mrf.mxu0
    %v6908 = vadd.f32 %v6559, %v6907
    %v6909 = vpop.f32.mrf.mxu0
    %v6910 = vpop.f32.mrf.mxu0
    %v6911 = vadd.f32 %v6559, %v6910
    %v6912 = vpop.f32.mrf.mxu0
    %6913 = vmatprep.mubr.bf16.mxu0 0
    %6914 = vmatmul.mubr.bf16.gmra.mxu0 %v6661
    %v6915 = vpop.f32.mrf.mxu0
    %v6916 = vadd.f32 %v6559, %v6915
    %v6917 = vpop.f32.mrf.mxu0
    %v6918 = vpop.f32.mrf.mxu0
    %v6919 = vadd.f32 %v6559, %v6918
    %v6920 = vpop.f32.mrf.mxu0
    %6921 = vmatprep.mubr.bf16.mxu0 0
    %6922 = vmatmul.mubr.bf16.gmra.mxu0 %v6664
    %v6923 = vpop.f32.mrf.mxu0
    %v6924 = vadd.f32 %v6559, %v6923
    %v6925 = vpop.f32.mrf.mxu0
    %v6926 = vpop.f32.mrf.mxu0
    %v6927 = vadd.f32 %v6559, %v6926
    %v6928 = vpop.f32.mrf.mxu0
    %6929 = vmatprep.mubr.bf16.mxu0 0
    %6930 = vmatmul.mubr.bf16.gmra.mxu0 %v6667
    %v6931 = vpop.f32.mrf.mxu0
    %v6932 = vadd.f32 %v6559, %v6931
    %v6933 = vpop.f32.mrf.mxu0
    %v6934 = vpop.f32.mrf.mxu0
    %v6935 = vadd.f32 %v6559, %v6934
    %v6936 = vpop.f32.mrf.mxu0
    %6937 = vmatprep.mubr.bf16.mxu0 0
    %6938 = vmatmul.mubr.bf16.gmra.mxu0 %v6670
    %v6939 = vpop.f32.mrf.mxu0
    %v6940 = vadd.f32 %v6559, %v6939
    %v6941 = vpop.f32.mrf.mxu0
    %v6942 = vpop.f32.mrf.mxu0
    %v6943 = vadd.f32 %v6559, %v6942
    %v6944 = vpop.f32.mrf.mxu0
    %6945 = vmatprep.mubr.bf16.mxu0 0
    %6946 = vmatmul.mubr.bf16.gmra.mxu0 %v6673
    %v6947 = vpop.f32.mrf.mxu0
    %v6948 = vadd.f32 %v6559, %v6947
    %v6949 = vpop.f32.mrf.mxu0
    %v6950 = vpop.f32.mrf.mxu0
    %v6951 = vadd.f32 %v6559, %v6950
    %v6952 = vpop.f32.mrf.mxu0
    %6953 = vmatprep.mubr.bf16.mxu0 0
    %6954 = vmatmul.mubr.bf16.gmra.mxu0 %v6676
    %v6955 = vpop.f32.mrf.mxu0
    %v6956 = vadd.f32 %v6559, %v6955
    %v6957 = vpop.f32.mrf.mxu0
    %v6958 = vpop.f32.mrf.mxu0
    %v6959 = vadd.f32 %v6559, %v6958
    %v6960 = vpop.f32.mrf.mxu0
    %6961 = vmatprep.mubr.bf16.mxu0 0
    %6962 = vmatmul.mubr.bf16.gmra.mxu0 %v6679
    %v6963 = vpop.f32.mrf.mxu0
    %v6964 = vadd.f32 %v6559, %v6963
    %v6965 = vpop.f32.mrf.mxu0
    %v6966 = vpop.f32.mrf.mxu0
    %v6967 = vadd.f32 %v6559, %v6966
    %v6968 = vpop.f32.mrf.mxu0
    %6969 = vdwg.mxu0
    %v6970 = vmul.f32 %v6716, 0.01
    %v6971 = vmul.f32 %v6719, 0.01
    %v6972 = vmul.f32 %v6724, 0.01
    %v6973 = vmul.f32 %v6727, 0.01
    %v6974 = vmul.f32 %v6732, 0.01
    %v6975 = vmul.f32 %v6735, 0.01
    %v6976 = vmul.f32 %v6740, 0.01
    %v6977 = vmul.f32 %v6743, 0.01
    %v6978 = vmul.f32 %v6748, 0.01
    %v6979 = vmul.f32 %v6751, 0.01
    %v6980 = vmul.f32 %v6756, 0.01
    %v6981 = vmul.f32 %v6759, 0.01
    %v6982 = vmul.f32 %v6764, 0.01
    %v6983 = vmul.f32 %v6767, 0.01
    %v6984 = vmul.f32 %v6772, 0.01
    %v6985 = vmul.f32 %v6775, 0.01
    %v6986 = vmul.f32 %v6780, 0.01
    %v6987 = vmul.f32 %v6783, 0.01
    %v6988 = vmul.f32 %v6788, 0.01
    %v6989 = vmul.f32 %v6791, 0.01
    %v6990 = vmul.f32 %v6796, 0.01
    %v6991 = vmul.f32 %v6799, 0.01
    %v6992 = vmul.f32 %v6804, 0.01
    %v6993 = vmul.f32 %v6807, 0.01
    %v6994 = vmul.f32 %v6812, 0.01
    %v6995 = vmul.f32 %v6815, 0.01
    %v6996 = vmul.f32 %v6820, 0.01
    %v6997 = vmul.f32 %v6823, 0.01
    %v6998 = vmul.f32 %v6828, 0.01
    %v6999 = vmul.f32 %v6831, 0.01
    %v7000 = vmul.f32 %v6836, 0.01
    %v7001 = vmul.f32 %v6839, 0.01
    %v7002 = vmul.f32 %v6844, 0.01
    %v7003 = vmul.f32 %v6847, 0.01
    %v7004 = vmul.f32 %v6852, 0.01
    %v7005 = vmul.f32 %v6855, 0.01
    %v7006 = vmul.f32 %v6860, 0.01
    %v7007 = vmul.f32 %v6863, 0.01
    %v7008 = vmul.f32 %v6868, 0.01
    %v7009 = vmul.f32 %v6871, 0.01
    %v7010 = vmul.f32 %v6876, 0.01
    %v7011 = vmul.f32 %v6879, 0.01
    %v7012 = vmul.f32 %v6884, 0.01
    %v7013 = vmul.f32 %v6887, 0.01
    %v7014 = vmul.f32 %v6892, 0.01
    %v7015 = vmul.f32 %v6895, 0.01
    %v7016 = vmul.f32 %v6900, 0.01
    %v7017 = vmul.f32 %v6903, 0.01
    %v7018 = vmul.f32 %v6908, 0.01
    %v7019 = vmul.f32 %v6911, 0.01
    %v7020 = vmul.f32 %v6916, 0.01
    %v7021 = vmul.f32 %v6919, 0.01
    %v7022 = vmul.f32 %v6924, 0.01
    %v7023 = vmul.f32 %v6927, 0.01
    %v7024 = vmul.f32 %v6932, 0.01
    %v7025 = vmul.f32 %v6935, 0.01
    %v7026 = vmul.f32 %v6940, 0.01
    %v7027 = vmul.f32 %v6943, 0.01
    %v7028 = vmul.f32 %v6948, 0.01
    %v7029 = vmul.f32 %v6951, 0.01
    %v7030 = vmul.f32 %v6956, 0.01
    %v7031 = vmul.f32 %v6959, 0.01
    %v7032 = vmul.f32 %v6964, 0.01
    %v7033 = vmul.f32 %v6967, 0.01
    %v7034 = vmax.f32 %v6716, %v6970
    %v7035 = vmax.f32 %v6719, %v6971
    %v7036 = vmax.f32 %v6724, %v6972
    %v7037 = vmax.f32 %v6727, %v6973
    %v7038 = vmax.f32 %v6732, %v6974
    %v7039 = vmax.f32 %v6735, %v6975
    %v7040 = vmax.f32 %v6740, %v6976
    %v7041 = vmax.f32 %v6743, %v6977
    %v7042 = vmax.f32 %v6748, %v6978
    %v7043 = vmax.f32 %v6751, %v6979
    %v7044 = vmax.f32 %v6756, %v6980
    %v7045 = vmax.f32 %v6759, %v6981
    %v7046 = vmax.f32 %v6764, %v6982
    %v7047 = vmax.f32 %v6767, %v6983
    %v7048 = vmax.f32 %v6772, %v6984
    %v7049 = vmax.f32 %v6775, %v6985
    %v7050 = vmax.f32 %v6780, %v6986
    %v7051 = vmax.f32 %v6783, %v6987
    %v7052 = vmax.f32 %v6788, %v6988
    %v7053 = vmax.f32 %v6791, %v6989
    %v7054 = vmax.f32 %v6796, %v6990
    %v7055 = vmax.f32 %v6799, %v6991
    %v7056 = vmax.f32 %v6804, %v6992
    %v7057 = vmax.f32 %v6807, %v6993
    %v7058 = vmax.f32 %v6812, %v6994
    %v7059 = vmax.f32 %v6815, %v6995
    %v7060 = vmax.f32 %v6820, %v6996
    %v7061 = vmax.f32 %v6823, %v6997
    %v7062 = vmax.f32 %v6828, %v6998
    %v7063 = vmax.f32 %v6831, %v6999
    %v7064 = vmax.f32 %v6836, %v7000
    %v7065 = vmax.f32 %v6839, %v7001
    %v7066 = vmax.f32 %v6844, %v7002
    %v7067 = vmax.f32 %v6847, %v7003
    %v7068 = vmax.f32 %v6852, %v7004
    %v7069 = vmax.f32 %v6855, %v7005
    %v7070 = vmax.f32 %v6860, %v7006
    %v7071 = vmax.f32 %v6863, %v7007
    %v7072 = vmax.f32 %v6868, %v7008
    %v7073 = vmax.f32 %v6871, %v7009
    %v7074 = vmax.f32 %v6876, %v7010
    %v7075 = vmax.f32 %v6879, %v7011
    %v7076 = vmax.f32 %v6884, %v7012
    %v7077 = vmax.f32 %v6887, %v7013
    %v7078 = vmax.f32 %v6892, %v7014
    %v7079 = vmax.f32 %v6895, %v7015
    %v7080 = vmax.f32 %v6900, %v7016
    %v7081 = vmax.f32 %v6903, %v7017
    %v7082 = vmax.f32 %v6908, %v7018
    %v7083 = vmax.f32 %v6911, %v7019
    %v7084 = vmax.f32 %v6916, %v7020
    %v7085 = vmax.f32 %v6919, %v7021
    %v7086 = vmax.f32 %v6924, %v7022
    %v7087 = vmax.f32 %v6927, %v7023
    %v7088 = vmax.f32 %v6932, %v7024
    %v7089 = vmax.f32 %v6935, %v7025
    %v7090 = vmax.f32 %v6940, %v7026
    %v7091 = vmax.f32 %v6943, %v7027
    %v7092 = vmax.f32 %v6948, %v7028
    %v7093 = vmax.f32 %v6951, %v7029
    %v7094 = vmax.f32 %v6956, %v7030
    %v7095 = vmax.f32 %v6959, %v7031
    %v7096 = vmax.f32 %v6964, %v7032
    %v7097 = vmax.f32 %v6967, %v7033
    %v7098 = vpack.c.bf16 %v7035, %v7034
    %v7099 = vpack.c.bf16 %v7037, %v7036
    %v7100 = vpack.c.bf16 %v7039, %v7038
    %v7101 = vpack.c.bf16 %v7041, %v7040
    %v7102 = vpack.c.bf16 %v7043, %v7042
    %v7103 = vpack.c.bf16 %v7045, %v7044
    %v7104 = vpack.c.bf16 %v7047, %v7046
    %v7105 = vpack.c.bf16 %v7049, %v7048
    %v7106 = vpack.c.bf16 %v7051, %v7050
    %v7107 = vpack.c.bf16 %v7053, %v7052
    %v7108 = vpack.c.bf16 %v7055, %v7054
    %v7109 = vpack.c.bf16 %v7057, %v7056
    %v7110 = vpack.c.bf16 %v7059, %v7058
    %v7111 = vpack.c.bf16 %v7061, %v7060
    %v7112 = vpack.c.bf16 %v7063, %v7062
    %v7113 = vpack.c.bf16 %v7065, %v7064
    %v7114 = vpack.c.bf16 %v7067, %v7066
    %v7115 = vpack.c.bf16 %v7069, %v7068
    %v7116 = vpack.c.bf16 %v7071, %v7070
    %v7117 = vpack.c.bf16 %v7073, %v7072
    %v7118 = vpack.c.bf16 %v7075, %v7074
    %v7119 = vpack.c.bf16 %v7077, %v7076
    %v7120 = vpack.c.bf16 %v7079, %v7078
    %v7121 = vpack.c.bf16 %v7081, %v7080
    %v7122 = vpack.c.bf16 %v7083, %v7082
    %v7123 = vpack.c.bf16 %v7085, %v7084
    %v7124 = vpack.c.bf16 %v7087, %v7086
    %v7125 = vpack.c.bf16 %v7089, %v7088
    %v7126 = vpack.c.bf16 %v7091, %v7090
    %v7127 = vpack.c.bf16 %v7093, %v7092
    %v7128 = vpack.c.bf16 %v7095, %v7094
    %v7129 = vpack.c.bf16 %v7097, %v7096
    %s7130 = scalar_lea.vmem %s3, 352
    %v7131 = vld [vmem:[%s7130] sm:$0xf]
    %v7132 = vld [vmem:[%s7130 + $0x4] sm:$0xf]
    %v7133 = vld [vmem:[%s7130 + $0x8] sm:$0xf]
    %v7134 = vld [vmem:[%s7130 + $0xc] sm:$0xf]
    %v7135 = vld [vmem:[%s7130 + $0x10] sm:$0xf]
    %v7136 = vld [vmem:[%s7130 + $0x14] sm:$0xf]
    %v7137 = vld [vmem:[%s7130 + $0x18] sm:$0xf]
    %v7138 = vld [vmem:[%s7130 + $0x1c] sm:$0xf]
    %s7139 = scalar_lea.vmem %s4, 11
    %v7140 = vld [vmem:[%s7139] sm:$0x1]
    %v7142 = vlaneseq
    %v7143 = vshrl.u32 %v7142, 7
    %v7144 = vsub.s32 0, %v7143
    %v7145 = vrot.slane %v7140, %v7144
    %v7155 = vunpack.c.l.b16 %v7131
    %v7156 = vunpack.c.l.b16 %v7132
    %v7157 = vunpack.c.l.b16 %v7133
    %v7158 = vunpack.c.l.b16 %v7134
    %v7159 = vunpack.c.l.b16 %v7135
    %v7160 = vunpack.c.l.b16 %v7136
    %v7161 = vunpack.c.l.b16 %v7137
    %v7162 = vunpack.c.l.b16 %v7138
    %v7163 = vpack.c.b16 %v7156, %v7155
    %v7164 = vpack.c.b16 %v7158, %v7157
    %v7165 = vpack.c.b16 %v7160, %v7159
    %v7166 = vpack.c.b16 %v7162, %v7161
    %v7172 = vsel %vm724, %v7098, 0
    %v7175 = vsel %vm724, %v7099, 0
    %v7178 = vsel %vm724, %v7100, 0
    %v7181 = vsel %vm724, %v7101, 0
    %v7184 = vsel %vm724, %v7102, 0
    %v7187 = vsel %vm724, %v7103, 0
    %v7190 = vsel %vm724, %v7104, 0
    %v7193 = vsel %vm724, %v7105, 0
    %v7196 = vsel %vm724, %v7106, 0
    %v7199 = vsel %vm724, %v7107, 0
    %v7202 = vsel %vm724, %v7108, 0
    %v7205 = vsel %vm724, %v7109, 0
    %v7208 = vsel %vm724, %v7110, 0
    %v7211 = vsel %vm724, %v7111, 0
    %v7214 = vsel %vm724, %v7112, 0
    %v7217 = vsel %vm724, %v7113, 0
    %v7220 = vsel %vm724, %v7114, 0
    %v7223 = vsel %vm724, %v7115, 0
    %v7226 = vsel %vm724, %v7116, 0
    %v7229 = vsel %vm724, %v7117, 0
    %v7232 = vsel %vm724, %v7118, 0
    %v7235 = vsel %vm724, %v7119, 0
    %v7238 = vsel %vm724, %v7120, 0
    %v7241 = vsel %vm724, %v7121, 0
    %v7244 = vsel %vm724, %v7122, 0
    %v7247 = vsel %vm724, %v7123, 0
    %v7250 = vsel %vm724, %v7124, 0
    %v7253 = vsel %vm724, %v7125, 0
    %v7256 = vsel %vm724, %v7126, 0
    %v7259 = vsel %vm724, %v7127, 0
    %v7262 = vsel %vm724, %v7128, 0
    %v7265 = vsel %vm724, %v7129, 0
    %7267 = vmatprep.subr.bf16.mxu0 0
    %7268 = vmatpush1.bf16.msra.mxu0 0
    %7269 = vmatprep.subr.bf16.mxu0 0
    %7270 = vmatpush1.bf16.msra.mxu0 0
    %7271 = vmatprep.subr.bf16.mxu0 0
    %7272 = vmatpush1.bf16.msra.mxu0 0
    %7273 = vmatprep.subr.bf16.mxu0 0
    %7274 = vmatpush1.bf16.msra.mxu0 0
    %7275 = vmatprep.subr.bf16.mxu0 0
    %7276 = vmatpush1.bf16.msra.mxu0 %v7166
    %7277 = vmatprep.subr.bf16.mxu0 0
    %7278 = vmatpush1.bf16.msra.mxu0 %v7165
    %7279 = vmatprep.subr.bf16.mxu0 0
    %7280 = vmatpush1.bf16.msra.mxu0 %v7164
    %7281 = vmatprep.subr.bf16.mxu0 0
    %7282 = vmatpush1.bf16.msra.mxu0 %v7163
    %7283 = vmatprep.subr.bf16.mxu0 0
    %7284 = vmatpush2.bf16.msra.mxu0 0
    %7285 = vmatprep.subr.bf16.mxu0 0
    %7286 = vmatpush2.bf16.msra.mxu0 0
    %7287 = vmatprep.subr.bf16.mxu0 0
    %7288 = vmatpush2.bf16.msra.mxu0 0
    %7289 = vmatprep.subr.bf16.mxu0 0
    %7290 = vmatpush2.bf16.msra.mxu0 0
    %7291 = vmatprep.subr.bf16.mxu0 0
    %7292 = vmatpush2.bf16.msra.mxu0 0
    %7293 = vmatprep.subr.bf16.mxu0 0
    %7294 = vmatpush2.bf16.msra.mxu0 0
    %7295 = vmatprep.subr.bf16.mxu0 0
    %7296 = vmatpush2.bf16.msra.mxu0 0
    %7297 = vmatprep.subr.bf16.mxu0 0
    %7298 = vmatpush2.bf16.msra.mxu0 0
    %7299 = vmatprep.mubr.bf16.mxu0 0
    %7300 = vmatmul.mubr.bf16.gmra.mxu0 %v7172
    %v7301 = vpop.f32.mrf.mxu0
    %v7302 = vadd.f32 %v7145, %v7301
    %v7303 = vpop.f32.mrf.mxu0
    %v7304 = vpop.f32.mrf.mxu0
    %v7305 = vadd.f32 %v7145, %v7304
    %v7306 = vpop.f32.mrf.mxu0
    %7307 = vmatprep.mubr.bf16.mxu0 0
    %7308 = vmatmul.mubr.bf16.gmra.mxu0 %v7175
    %v7309 = vpop.f32.mrf.mxu0
    %v7310 = vadd.f32 %v7145, %v7309
    %v7311 = vpop.f32.mrf.mxu0
    %v7312 = vpop.f32.mrf.mxu0
    %v7313 = vadd.f32 %v7145, %v7312
    %v7314 = vpop.f32.mrf.mxu0
    %7315 = vmatprep.mubr.bf16.mxu0 0
    %7316 = vmatmul.mubr.bf16.gmra.mxu0 %v7178
    %v7317 = vpop.f32.mrf.mxu0
    %v7318 = vadd.f32 %v7145, %v7317
    %v7319 = vpop.f32.mrf.mxu0
    %v7320 = vpop.f32.mrf.mxu0
    %v7321 = vadd.f32 %v7145, %v7320
    %v7322 = vpop.f32.mrf.mxu0
    %7323 = vmatprep.mubr.bf16.mxu0 0
    %7324 = vmatmul.mubr.bf16.gmra.mxu0 %v7181
    %v7325 = vpop.f32.mrf.mxu0
    %v7326 = vadd.f32 %v7145, %v7325
    %v7327 = vpop.f32.mrf.mxu0
    %v7328 = vpop.f32.mrf.mxu0
    %v7329 = vadd.f32 %v7145, %v7328
    %v7330 = vpop.f32.mrf.mxu0
    %7331 = vmatprep.mubr.bf16.mxu0 0
    %7332 = vmatmul.mubr.bf16.gmra.mxu0 %v7184
    %v7333 = vpop.f32.mrf.mxu0
    %v7334 = vadd.f32 %v7145, %v7333
    %v7335 = vpop.f32.mrf.mxu0
    %v7336 = vpop.f32.mrf.mxu0
    %v7337 = vadd.f32 %v7145, %v7336
    %v7338 = vpop.f32.mrf.mxu0
    %7339 = vmatprep.mubr.bf16.mxu0 0
    %7340 = vmatmul.mubr.bf16.gmra.mxu0 %v7187
    %v7341 = vpop.f32.mrf.mxu0
    %v7342 = vadd.f32 %v7145, %v7341
    %v7343 = vpop.f32.mrf.mxu0
    %v7344 = vpop.f32.mrf.mxu0
    %v7345 = vadd.f32 %v7145, %v7344
    %v7346 = vpop.f32.mrf.mxu0
    %7347 = vmatprep.mubr.bf16.mxu0 0
    %7348 = vmatmul.mubr.bf16.gmra.mxu0 %v7190
    %v7349 = vpop.f32.mrf.mxu0
    %v7350 = vadd.f32 %v7145, %v7349
    %v7351 = vpop.f32.mrf.mxu0
    %v7352 = vpop.f32.mrf.mxu0
    %v7353 = vadd.f32 %v7145, %v7352
    %v7354 = vpop.f32.mrf.mxu0
    %7355 = vmatprep.mubr.bf16.mxu0 0
    %7356 = vmatmul.mubr.bf16.gmra.mxu0 %v7193
    %v7357 = vpop.f32.mrf.mxu0
    %v7358 = vadd.f32 %v7145, %v7357
    %v7359 = vpop.f32.mrf.mxu0
    %v7360 = vpop.f32.mrf.mxu0
    %v7361 = vadd.f32 %v7145, %v7360
    %v7362 = vpop.f32.mrf.mxu0
    %7363 = vmatprep.mubr.bf16.mxu0 0
    %7364 = vmatmul.mubr.bf16.gmra.mxu0 %v7196
    %v7365 = vpop.f32.mrf.mxu0
    %v7366 = vadd.f32 %v7145, %v7365
    %v7367 = vpop.f32.mrf.mxu0
    %v7368 = vpop.f32.mrf.mxu0
    %v7369 = vadd.f32 %v7145, %v7368
    %v7370 = vpop.f32.mrf.mxu0
    %7371 = vmatprep.mubr.bf16.mxu0 0
    %7372 = vmatmul.mubr.bf16.gmra.mxu0 %v7199
    %v7373 = vpop.f32.mrf.mxu0
    %v7374 = vadd.f32 %v7145, %v7373
    %v7375 = vpop.f32.mrf.mxu0
    %v7376 = vpop.f32.mrf.mxu0
    %v7377 = vadd.f32 %v7145, %v7376
    %v7378 = vpop.f32.mrf.mxu0
    %7379 = vmatprep.mubr.bf16.mxu0 0
    %7380 = vmatmul.mubr.bf16.gmra.mxu0 %v7202
    %v7381 = vpop.f32.mrf.mxu0
    %v7382 = vadd.f32 %v7145, %v7381
    %v7383 = vpop.f32.mrf.mxu0
    %v7384 = vpop.f32.mrf.mxu0
    %v7385 = vadd.f32 %v7145, %v7384
    %v7386 = vpop.f32.mrf.mxu0
    %7387 = vmatprep.mubr.bf16.mxu0 0
    %7388 = vmatmul.mubr.bf16.gmra.mxu0 %v7205
    %v7389 = vpop.f32.mrf.mxu0
    %v7390 = vadd.f32 %v7145, %v7389
    %v7391 = vpop.f32.mrf.mxu0
    %v7392 = vpop.f32.mrf.mxu0
    %v7393 = vadd.f32 %v7145, %v7392
    %v7394 = vpop.f32.mrf.mxu0
    %7395 = vmatprep.mubr.bf16.mxu0 0
    %7396 = vmatmul.mubr.bf16.gmra.mxu0 %v7208
    %v7397 = vpop.f32.mrf.mxu0
    %v7398 = vadd.f32 %v7145, %v7397
    %v7399 = vpop.f32.mrf.mxu0
    %v7400 = vpop.f32.mrf.mxu0
    %v7401 = vadd.f32 %v7145, %v7400
    %v7402 = vpop.f32.mrf.mxu0
    %7403 = vmatprep.mubr.bf16.mxu0 0
    %7404 = vmatmul.mubr.bf16.gmra.mxu0 %v7211
    %v7405 = vpop.f32.mrf.mxu0
    %v7406 = vadd.f32 %v7145, %v7405
    %v7407 = vpop.f32.mrf.mxu0
    %v7408 = vpop.f32.mrf.mxu0
    %v7409 = vadd.f32 %v7145, %v7408
    %v7410 = vpop.f32.mrf.mxu0
    %7411 = vmatprep.mubr.bf16.mxu0 0
    %7412 = vmatmul.mubr.bf16.gmra.mxu0 %v7214
    %v7413 = vpop.f32.mrf.mxu0
    %v7414 = vadd.f32 %v7145, %v7413
    %v7415 = vpop.f32.mrf.mxu0
    %v7416 = vpop.f32.mrf.mxu0
    %v7417 = vadd.f32 %v7145, %v7416
    %v7418 = vpop.f32.mrf.mxu0
    %7419 = vmatprep.mubr.bf16.mxu0 0
    %7420 = vmatmul.mubr.bf16.gmra.mxu0 %v7217
    %v7421 = vpop.f32.mrf.mxu0
    %v7422 = vadd.f32 %v7145, %v7421
    %v7423 = vpop.f32.mrf.mxu0
    %v7424 = vpop.f32.mrf.mxu0
    %v7425 = vadd.f32 %v7145, %v7424
    %v7426 = vpop.f32.mrf.mxu0
    %7427 = vmatprep.mubr.bf16.mxu0 0
    %7428 = vmatmul.mubr.bf16.gmra.mxu0 %v7220
    %v7429 = vpop.f32.mrf.mxu0
    %v7430 = vadd.f32 %v7145, %v7429
    %v7431 = vpop.f32.mrf.mxu0
    %v7432 = vpop.f32.mrf.mxu0
    %v7433 = vadd.f32 %v7145, %v7432
    %v7434 = vpop.f32.mrf.mxu0
    %7435 = vmatprep.mubr.bf16.mxu0 0
    %7436 = vmatmul.mubr.bf16.gmra.mxu0 %v7223
    %v7437 = vpop.f32.mrf.mxu0
    %v7438 = vadd.f32 %v7145, %v7437
    %v7439 = vpop.f32.mrf.mxu0
    %v7440 = vpop.f32.mrf.mxu0
    %v7441 = vadd.f32 %v7145, %v7440
    %v7442 = vpop.f32.mrf.mxu0
    %7443 = vmatprep.mubr.bf16.mxu0 0
    %7444 = vmatmul.mubr.bf16.gmra.mxu0 %v7226
    %v7445 = vpop.f32.mrf.mxu0
    %v7446 = vadd.f32 %v7145, %v7445
    %v7447 = vpop.f32.mrf.mxu0
    %v7448 = vpop.f32.mrf.mxu0
    %v7449 = vadd.f32 %v7145, %v7448
    %v7450 = vpop.f32.mrf.mxu0
    %7451 = vmatprep.mubr.bf16.mxu0 0
    %7452 = vmatmul.mubr.bf16.gmra.mxu0 %v7229
    %v7453 = vpop.f32.mrf.mxu0
    %v7454 = vadd.f32 %v7145, %v7453
    %v7455 = vpop.f32.mrf.mxu0
    %v7456 = vpop.f32.mrf.mxu0
    %v7457 = vadd.f32 %v7145, %v7456
    %v7458 = vpop.f32.mrf.mxu0
    %7459 = vmatprep.mubr.bf16.mxu0 0
    %7460 = vmatmul.mubr.bf16.gmra.mxu0 %v7232
    %v7461 = vpop.f32.mrf.mxu0
    %v7462 = vadd.f32 %v7145, %v7461
    %v7463 = vpop.f32.mrf.mxu0
    %v7464 = vpop.f32.mrf.mxu0
    %v7465 = vadd.f32 %v7145, %v7464
    %v7466 = vpop.f32.mrf.mxu0
    %7467 = vmatprep.mubr.bf16.mxu0 0
    %7468 = vmatmul.mubr.bf16.gmra.mxu0 %v7235
    %v7469 = vpop.f32.mrf.mxu0
    %v7470 = vadd.f32 %v7145, %v7469
    %v7471 = vpop.f32.mrf.mxu0
    %v7472 = vpop.f32.mrf.mxu0
    %v7473 = vadd.f32 %v7145, %v7472
    %v7474 = vpop.f32.mrf.mxu0
    %7475 = vmatprep.mubr.bf16.mxu0 0
    %7476 = vmatmul.mubr.bf16.gmra.mxu0 %v7238
    %v7477 = vpop.f32.mrf.mxu0
    %v7478 = vadd.f32 %v7145, %v7477
    %v7479 = vpop.f32.mrf.mxu0
    %v7480 = vpop.f32.mrf.mxu0
    %v7481 = vadd.f32 %v7145, %v7480
    %v7482 = vpop.f32.mrf.mxu0
    %7483 = vmatprep.mubr.bf16.mxu0 0
    %7484 = vmatmul.mubr.bf16.gmra.mxu0 %v7241
    %v7485 = vpop.f32.mrf.mxu0
    %v7486 = vadd.f32 %v7145, %v7485
    %v7487 = vpop.f32.mrf.mxu0
    %v7488 = vpop.f32.mrf.mxu0
    %v7489 = vadd.f32 %v7145, %v7488
    %v7490 = vpop.f32.mrf.mxu0
    %7491 = vmatprep.mubr.bf16.mxu0 0
    %7492 = vmatmul.mubr.bf16.gmra.mxu0 %v7244
    %v7493 = vpop.f32.mrf.mxu0
    %v7494 = vadd.f32 %v7145, %v7493
    %v7495 = vpop.f32.mrf.mxu0
    %v7496 = vpop.f32.mrf.mxu0
    %v7497 = vadd.f32 %v7145, %v7496
    %v7498 = vpop.f32.mrf.mxu0
    %7499 = vmatprep.mubr.bf16.mxu0 0
    %7500 = vmatmul.mubr.bf16.gmra.mxu0 %v7247
    %v7501 = vpop.f32.mrf.mxu0
    %v7502 = vadd.f32 %v7145, %v7501
    %v7503 = vpop.f32.mrf.mxu0
    %v7504 = vpop.f32.mrf.mxu0
    %v7505 = vadd.f32 %v7145, %v7504
    %v7506 = vpop.f32.mrf.mxu0
    %7507 = vmatprep.mubr.bf16.mxu0 0
    %7508 = vmatmul.mubr.bf16.gmra.mxu0 %v7250
    %v7509 = vpop.f32.mrf.mxu0
    %v7510 = vadd.f32 %v7145, %v7509
    %v7511 = vpop.f32.mrf.mxu0
    %v7512 = vpop.f32.mrf.mxu0
    %v7513 = vadd.f32 %v7145, %v7512
    %v7514 = vpop.f32.mrf.mxu0
    %7515 = vmatprep.mubr.bf16.mxu0 0
    %7516 = vmatmul.mubr.bf16.gmra.mxu0 %v7253
    %v7517 = vpop.f32.mrf.mxu0
    %v7518 = vadd.f32 %v7145, %v7517
    %v7519 = vpop.f32.mrf.mxu0
    %v7520 = vpop.f32.mrf.mxu0
    %v7521 = vadd.f32 %v7145, %v7520
    %v7522 = vpop.f32.mrf.mxu0
    %7523 = vmatprep.mubr.bf16.mxu0 0
    %7524 = vmatmul.mubr.bf16.gmra.mxu0 %v7256
    %v7525 = vpop.f32.mrf.mxu0
    %v7526 = vadd.f32 %v7145, %v7525
    %v7527 = vpop.f32.mrf.mxu0
    %v7528 = vpop.f32.mrf.mxu0
    %v7529 = vadd.f32 %v7145, %v7528
    %v7530 = vpop.f32.mrf.mxu0
    %7531 = vmatprep.mubr.bf16.mxu0 0
    %7532 = vmatmul.mubr.bf16.gmra.mxu0 %v7259
    %v7533 = vpop.f32.mrf.mxu0
    %v7534 = vadd.f32 %v7145, %v7533
    %v7535 = vpop.f32.mrf.mxu0
    %v7536 = vpop.f32.mrf.mxu0
    %v7537 = vadd.f32 %v7145, %v7536
    %v7538 = vpop.f32.mrf.mxu0
    %7539 = vmatprep.mubr.bf16.mxu0 0
    %7540 = vmatmul.mubr.bf16.gmra.mxu0 %v7262
    %v7541 = vpop.f32.mrf.mxu0
    %v7542 = vadd.f32 %v7145, %v7541
    %v7543 = vpop.f32.mrf.mxu0
    %v7544 = vpop.f32.mrf.mxu0
    %v7545 = vadd.f32 %v7145, %v7544
    %v7546 = vpop.f32.mrf.mxu0
    %7547 = vmatprep.mubr.bf16.mxu0 0
    %7548 = vmatmul.mubr.bf16.gmra.mxu0 %v7265
    %v7549 = vpop.f32.mrf.mxu0
    %v7550 = vadd.f32 %v7145, %v7549
    %v7551 = vpop.f32.mrf.mxu0
    %v7552 = vpop.f32.mrf.mxu0
    %v7553 = vadd.f32 %v7145, %v7552
    %v7554 = vpop.f32.mrf.mxu0
    %7555 = vdwg.mxu0
    %v7556 = vmul.f32 %v7302, 0.01
    %v7557 = vmul.f32 %v7305, 0.01
    %v7558 = vmul.f32 %v7310, 0.01
    %v7559 = vmul.f32 %v7313, 0.01
    %v7560 = vmul.f32 %v7318, 0.01
    %v7561 = vmul.f32 %v7321, 0.01
    %v7562 = vmul.f32 %v7326, 0.01
    %v7563 = vmul.f32 %v7329, 0.01
    %v7564 = vmul.f32 %v7334, 0.01
    %v7565 = vmul.f32 %v7337, 0.01
    %v7566 = vmul.f32 %v7342, 0.01
    %v7567 = vmul.f32 %v7345, 0.01
    %v7568 = vmul.f32 %v7350, 0.01
    %v7569 = vmul.f32 %v7353, 0.01
    %v7570 = vmul.f32 %v7358, 0.01
    %v7571 = vmul.f32 %v7361, 0.01
    %v7572 = vmul.f32 %v7366, 0.01
    %v7573 = vmul.f32 %v7369, 0.01
    %v7574 = vmul.f32 %v7374, 0.01
    %v7575 = vmul.f32 %v7377, 0.01
    %v7576 = vmul.f32 %v7382, 0.01
    %v7577 = vmul.f32 %v7385, 0.01
    %v7578 = vmul.f32 %v7390, 0.01
    %v7579 = vmul.f32 %v7393, 0.01
    %v7580 = vmul.f32 %v7398, 0.01
    %v7581 = vmul.f32 %v7401, 0.01
    %v7582 = vmul.f32 %v7406, 0.01
    %v7583 = vmul.f32 %v7409, 0.01
    %v7584 = vmul.f32 %v7414, 0.01
    %v7585 = vmul.f32 %v7417, 0.01
    %v7586 = vmul.f32 %v7422, 0.01
    %v7587 = vmul.f32 %v7425, 0.01
    %v7588 = vmul.f32 %v7430, 0.01
    %v7589 = vmul.f32 %v7433, 0.01
    %v7590 = vmul.f32 %v7438, 0.01
    %v7591 = vmul.f32 %v7441, 0.01
    %v7592 = vmul.f32 %v7446, 0.01
    %v7593 = vmul.f32 %v7449, 0.01
    %v7594 = vmul.f32 %v7454, 0.01
    %v7595 = vmul.f32 %v7457, 0.01
    %v7596 = vmul.f32 %v7462, 0.01
    %v7597 = vmul.f32 %v7465, 0.01
    %v7598 = vmul.f32 %v7470, 0.01
    %v7599 = vmul.f32 %v7473, 0.01
    %v7600 = vmul.f32 %v7478, 0.01
    %v7601 = vmul.f32 %v7481, 0.01
    %v7602 = vmul.f32 %v7486, 0.01
    %v7603 = vmul.f32 %v7489, 0.01
    %v7604 = vmul.f32 %v7494, 0.01
    %v7605 = vmul.f32 %v7497, 0.01
    %v7606 = vmul.f32 %v7502, 0.01
    %v7607 = vmul.f32 %v7505, 0.01
    %v7608 = vmul.f32 %v7510, 0.01
    %v7609 = vmul.f32 %v7513, 0.01
    %v7610 = vmul.f32 %v7518, 0.01
    %v7611 = vmul.f32 %v7521, 0.01
    %v7612 = vmul.f32 %v7526, 0.01
    %v7613 = vmul.f32 %v7529, 0.01
    %v7614 = vmul.f32 %v7534, 0.01
    %v7615 = vmul.f32 %v7537, 0.01
    %v7616 = vmul.f32 %v7542, 0.01
    %v7617 = vmul.f32 %v7545, 0.01
    %v7618 = vmul.f32 %v7550, 0.01
    %v7619 = vmul.f32 %v7553, 0.01
    %v7620 = vmax.f32 %v7302, %v7556
    %v7621 = vmax.f32 %v7305, %v7557
    %v7622 = vmax.f32 %v7310, %v7558
    %v7623 = vmax.f32 %v7313, %v7559
    %v7624 = vmax.f32 %v7318, %v7560
    %v7625 = vmax.f32 %v7321, %v7561
    %v7626 = vmax.f32 %v7326, %v7562
    %v7627 = vmax.f32 %v7329, %v7563
    %v7628 = vmax.f32 %v7334, %v7564
    %v7629 = vmax.f32 %v7337, %v7565
    %v7630 = vmax.f32 %v7342, %v7566
    %v7631 = vmax.f32 %v7345, %v7567
    %v7632 = vmax.f32 %v7350, %v7568
    %v7633 = vmax.f32 %v7353, %v7569
    %v7634 = vmax.f32 %v7358, %v7570
    %v7635 = vmax.f32 %v7361, %v7571
    %v7636 = vmax.f32 %v7366, %v7572
    %v7637 = vmax.f32 %v7369, %v7573
    %v7638 = vmax.f32 %v7374, %v7574
    %v7639 = vmax.f32 %v7377, %v7575
    %v7640 = vmax.f32 %v7382, %v7576
    %v7641 = vmax.f32 %v7385, %v7577
    %v7642 = vmax.f32 %v7390, %v7578
    %v7643 = vmax.f32 %v7393, %v7579
    %v7644 = vmax.f32 %v7398, %v7580
    %v7645 = vmax.f32 %v7401, %v7581
    %v7646 = vmax.f32 %v7406, %v7582
    %v7647 = vmax.f32 %v7409, %v7583
    %v7648 = vmax.f32 %v7414, %v7584
    %v7649 = vmax.f32 %v7417, %v7585
    %v7650 = vmax.f32 %v7422, %v7586
    %v7651 = vmax.f32 %v7425, %v7587
    %v7652 = vmax.f32 %v7430, %v7588
    %v7653 = vmax.f32 %v7433, %v7589
    %v7654 = vmax.f32 %v7438, %v7590
    %v7655 = vmax.f32 %v7441, %v7591
    %v7656 = vmax.f32 %v7446, %v7592
    %v7657 = vmax.f32 %v7449, %v7593
    %v7658 = vmax.f32 %v7454, %v7594
    %v7659 = vmax.f32 %v7457, %v7595
    %v7660 = vmax.f32 %v7462, %v7596
    %v7661 = vmax.f32 %v7465, %v7597
    %v7662 = vmax.f32 %v7470, %v7598
    %v7663 = vmax.f32 %v7473, %v7599
    %v7664 = vmax.f32 %v7478, %v7600
    %v7665 = vmax.f32 %v7481, %v7601
    %v7666 = vmax.f32 %v7486, %v7602
    %v7667 = vmax.f32 %v7489, %v7603
    %v7668 = vmax.f32 %v7494, %v7604
    %v7669 = vmax.f32 %v7497, %v7605
    %v7670 = vmax.f32 %v7502, %v7606
    %v7671 = vmax.f32 %v7505, %v7607
    %v7672 = vmax.f32 %v7510, %v7608
    %v7673 = vmax.f32 %v7513, %v7609
    %v7674 = vmax.f32 %v7518, %v7610
    %v7675 = vmax.f32 %v7521, %v7611
    %v7676 = vmax.f32 %v7526, %v7612
    %v7677 = vmax.f32 %v7529, %v7613
    %v7678 = vmax.f32 %v7534, %v7614
    %v7679 = vmax.f32 %v7537, %v7615
    %v7680 = vmax.f32 %v7542, %v7616
    %v7681 = vmax.f32 %v7545, %v7617
    %v7682 = vmax.f32 %v7550, %v7618
    %v7683 = vmax.f32 %v7553, %v7619
    %v7684 = vpack.c.bf16 %v7621, %v7620
    %v7685 = vpack.c.bf16 %v7623, %v7622
    %v7686 = vpack.c.bf16 %v7625, %v7624
    %v7687 = vpack.c.bf16 %v7627, %v7626
    %v7688 = vpack.c.bf16 %v7629, %v7628
    %v7689 = vpack.c.bf16 %v7631, %v7630
    %v7690 = vpack.c.bf16 %v7633, %v7632
    %v7691 = vpack.c.bf16 %v7635, %v7634
    %v7692 = vpack.c.bf16 %v7637, %v7636
    %v7693 = vpack.c.bf16 %v7639, %v7638
    %v7694 = vpack.c.bf16 %v7641, %v7640
    %v7695 = vpack.c.bf16 %v7643, %v7642
    %v7696 = vpack.c.bf16 %v7645, %v7644
    %v7697 = vpack.c.bf16 %v7647, %v7646
    %v7698 = vpack.c.bf16 %v7649, %v7648
    %v7699 = vpack.c.bf16 %v7651, %v7650
    %v7700 = vpack.c.bf16 %v7653, %v7652
    %v7701 = vpack.c.bf16 %v7655, %v7654
    %v7702 = vpack.c.bf16 %v7657, %v7656
    %v7703 = vpack.c.bf16 %v7659, %v7658
    %v7704 = vpack.c.bf16 %v7661, %v7660
    %v7705 = vpack.c.bf16 %v7663, %v7662
    %v7706 = vpack.c.bf16 %v7665, %v7664
    %v7707 = vpack.c.bf16 %v7667, %v7666
    %v7708 = vpack.c.bf16 %v7669, %v7668
    %v7709 = vpack.c.bf16 %v7671, %v7670
    %v7710 = vpack.c.bf16 %v7673, %v7672
    %v7711 = vpack.c.bf16 %v7675, %v7674
    %v7712 = vpack.c.bf16 %v7677, %v7676
    %v7713 = vpack.c.bf16 %v7679, %v7678
    %v7714 = vpack.c.bf16 %v7681, %v7680
    %v7715 = vpack.c.bf16 %v7683, %v7682
    %v7716 = vld [vmem:[%s5] sm:$0xf]
    %v7717 = vld [vmem:[%s5 + $0x4] sm:$0xf]
    %v7718 = vld [vmem:[%s5 + $0x8] sm:$0xf]
    %v7719 = vld [vmem:[%s5 + $0xc] sm:$0xf]
    %v7720 = vld [vmem:[%s5 + $0x10] sm:$0xf]
    %v7721 = vld [vmem:[%s5 + $0x14] sm:$0xf]
    %v7722 = vld [vmem:[%s5 + $0x18] sm:$0xf]
    %v7723 = vld [vmem:[%s5 + $0x1c] sm:$0xf]
    %v7724 = vld [vmem:[%s6] sm:$0x1]
    %v7726 = vlaneseq
    %v7727 = vshrl.u32 %v7726, 7
    %v7728 = vsub.s32 0, %v7727
    %v7729 = vrot.slane %v7724, %v7728
    %v7739 = vunpack.c.l.b16 %v7716
    %v7740 = vunpack.c.l.b16 %v7717
    %v7741 = vunpack.c.l.b16 %v7718
    %v7742 = vunpack.c.l.b16 %v7719
    %v7743 = vunpack.c.l.b16 %v7720
    %v7744 = vunpack.c.l.b16 %v7721
    %v7745 = vunpack.c.l.b16 %v7722
    %v7746 = vunpack.c.l.b16 %v7723
    %v7747 = vpack.c.b16 %v7740, %v7739
    %v7748 = vpack.c.b16 %v7742, %v7741
    %v7749 = vpack.c.b16 %v7744, %v7743
    %v7750 = vpack.c.b16 %v7746, %v7745
    %v7756 = vsel %vm724, %v7684, 0
    %v7759 = vsel %vm724, %v7685, 0
    %v7762 = vsel %vm724, %v7686, 0
    %v7765 = vsel %vm724, %v7687, 0
    %v7768 = vsel %vm724, %v7688, 0
    %v7771 = vsel %vm724, %v7689, 0
    %v7774 = vsel %vm724, %v7690, 0
    %v7777 = vsel %vm724, %v7691, 0
    %v7780 = vsel %vm724, %v7692, 0
    %v7783 = vsel %vm724, %v7693, 0
    %v7786 = vsel %vm724, %v7694, 0
    %v7789 = vsel %vm724, %v7695, 0
    %v7792 = vsel %vm724, %v7696, 0
    %v7795 = vsel %vm724, %v7697, 0
    %v7798 = vsel %vm724, %v7698, 0
    %v7801 = vsel %vm724, %v7699, 0
    %v7804 = vsel %vm724, %v7700, 0
    %v7807 = vsel %vm724, %v7701, 0
    %v7810 = vsel %vm724, %v7702, 0
    %v7813 = vsel %vm724, %v7703, 0
    %v7816 = vsel %vm724, %v7704, 0
    %v7819 = vsel %vm724, %v7705, 0
    %v7822 = vsel %vm724, %v7706, 0
    %v7825 = vsel %vm724, %v7707, 0
    %v7828 = vsel %vm724, %v7708, 0
    %v7831 = vsel %vm724, %v7709, 0
    %v7834 = vsel %vm724, %v7710, 0
    %v7837 = vsel %vm724, %v7711, 0
    %v7840 = vsel %vm724, %v7712, 0
    %v7843 = vsel %vm724, %v7713, 0
    %v7846 = vsel %vm724, %v7714, 0
    %v7849 = vsel %vm724, %v7715, 0
    %7851 = vmatprep.subr.bf16.mxu0 0
    %7852 = vmatpush1.bf16.msra.mxu0 0
    %7853 = vmatprep.subr.bf16.mxu0 0
    %7854 = vmatpush1.bf16.msra.mxu0 0
    %7855 = vmatprep.subr.bf16.mxu0 0
    %7856 = vmatpush1.bf16.msra.mxu0 0
    %7857 = vmatprep.subr.bf16.mxu0 0
    %7858 = vmatpush1.bf16.msra.mxu0 0
    %7859 = vmatprep.subr.bf16.mxu0 0
    %7860 = vmatpush1.bf16.msra.mxu0 %v7750
    %7861 = vmatprep.subr.bf16.mxu0 0
    %7862 = vmatpush1.bf16.msra.mxu0 %v7749
    %7863 = vmatprep.subr.bf16.mxu0 0
    %7864 = vmatpush1.bf16.msra.mxu0 %v7748
    %7865 = vmatprep.subr.bf16.mxu0 0
    %7866 = vmatpush1.bf16.msra.mxu0 %v7747
    %7867 = vmatprep.subr.bf16.mxu0 0
    %7868 = vmatpush2.bf16.msra.mxu0 0
    %7869 = vmatprep.subr.bf16.mxu0 0
    %7870 = vmatpush2.bf16.msra.mxu0 0
    %7871 = vmatprep.subr.bf16.mxu0 0
    %7872 = vmatpush2.bf16.msra.mxu0 0
    %7873 = vmatprep.subr.bf16.mxu0 0
    %7874 = vmatpush2.bf16.msra.mxu0 0
    %7875 = vmatprep.subr.bf16.mxu0 0
    %7876 = vmatpush2.bf16.msra.mxu0 0
    %7877 = vmatprep.subr.bf16.mxu0 0
    %7878 = vmatpush2.bf16.msra.mxu0 0
    %7879 = vmatprep.subr.bf16.mxu0 0
    %7880 = vmatpush2.bf16.msra.mxu0 0
    %7881 = vmatprep.subr.bf16.mxu0 0
    %7882 = vmatpush2.bf16.msra.mxu0 0
    %7883 = vmatprep.mubr.bf16.mxu0 0
    %7884 = vmatmul.mubr.bf16.gmra.mxu0 %v7756
    %v7885 = vpop.f32.mrf.mxu0
    %v7886 = vadd.f32 %v7729, %v7885
    %v7887 = vpop.f32.mrf.mxu0
    %v7888 = vpop.f32.mrf.mxu0
    %v7889 = vadd.f32 %v7729, %v7888
    %v7890 = vpop.f32.mrf.mxu0
    %7891 = vmatprep.mubr.bf16.mxu0 0
    %7892 = vmatmul.mubr.bf16.gmra.mxu0 %v7759
    %v7893 = vpop.f32.mrf.mxu0
    %v7894 = vadd.f32 %v7729, %v7893
    %v7895 = vpop.f32.mrf.mxu0
    %v7896 = vpop.f32.mrf.mxu0
    %v7897 = vadd.f32 %v7729, %v7896
    %v7898 = vpop.f32.mrf.mxu0
    %7899 = vmatprep.mubr.bf16.mxu0 0
    %7900 = vmatmul.mubr.bf16.gmra.mxu0 %v7762
    %v7901 = vpop.f32.mrf.mxu0
    %v7902 = vadd.f32 %v7729, %v7901
    %v7903 = vpop.f32.mrf.mxu0
    %v7904 = vpop.f32.mrf.mxu0
    %v7905 = vadd.f32 %v7729, %v7904
    %v7906 = vpop.f32.mrf.mxu0
    %7907 = vmatprep.mubr.bf16.mxu0 0
    %7908 = vmatmul.mubr.bf16.gmra.mxu0 %v7765
    %v7909 = vpop.f32.mrf.mxu0
    %v7910 = vadd.f32 %v7729, %v7909
    %v7911 = vpop.f32.mrf.mxu0
    %v7912 = vpop.f32.mrf.mxu0
    %v7913 = vadd.f32 %v7729, %v7912
    %v7914 = vpop.f32.mrf.mxu0
    %7915 = vmatprep.mubr.bf16.mxu0 0
    %7916 = vmatmul.mubr.bf16.gmra.mxu0 %v7768
    %v7917 = vpop.f32.mrf.mxu0
    %v7918 = vadd.f32 %v7729, %v7917
    %v7919 = vpop.f32.mrf.mxu0
    %v7920 = vpop.f32.mrf.mxu0
    %v7921 = vadd.f32 %v7729, %v7920
    %v7922 = vpop.f32.mrf.mxu0
    %7923 = vmatprep.mubr.bf16.mxu0 0
    %7924 = vmatmul.mubr.bf16.gmra.mxu0 %v7771
    %v7925 = vpop.f32.mrf.mxu0
    %v7926 = vadd.f32 %v7729, %v7925
    %v7927 = vpop.f32.mrf.mxu0
    %v7928 = vpop.f32.mrf.mxu0
    %v7929 = vadd.f32 %v7729, %v7928
    %v7930 = vpop.f32.mrf.mxu0
    %7931 = vmatprep.mubr.bf16.mxu0 0
    %7932 = vmatmul.mubr.bf16.gmra.mxu0 %v7774
    %v7933 = vpop.f32.mrf.mxu0
    %v7934 = vadd.f32 %v7729, %v7933
    %v7935 = vpop.f32.mrf.mxu0
    %v7936 = vpop.f32.mrf.mxu0
    %v7937 = vadd.f32 %v7729, %v7936
    %v7938 = vpop.f32.mrf.mxu0
    %7939 = vmatprep.mubr.bf16.mxu0 0
    %7940 = vmatmul.mubr.bf16.gmra.mxu0 %v7777
    %v7941 = vpop.f32.mrf.mxu0
    %v7942 = vadd.f32 %v7729, %v7941
    %v7943 = vpop.f32.mrf.mxu0
    %v7944 = vpop.f32.mrf.mxu0
    %v7945 = vadd.f32 %v7729, %v7944
    %v7946 = vpop.f32.mrf.mxu0
    %7947 = vmatprep.mubr.bf16.mxu0 0
    %7948 = vmatmul.mubr.bf16.gmra.mxu0 %v7780
    %v7949 = vpop.f32.mrf.mxu0
    %v7950 = vadd.f32 %v7729, %v7949
    %v7951 = vpop.f32.mrf.mxu0
    %v7952 = vpop.f32.mrf.mxu0
    %v7953 = vadd.f32 %v7729, %v7952
    %v7954 = vpop.f32.mrf.mxu0
    %7955 = vmatprep.mubr.bf16.mxu0 0
    %7956 = vmatmul.mubr.bf16.gmra.mxu0 %v7783
    %v7957 = vpop.f32.mrf.mxu0
    %v7958 = vadd.f32 %v7729, %v7957
    %v7959 = vpop.f32.mrf.mxu0
    %v7960 = vpop.f32.mrf.mxu0
    %v7961 = vadd.f32 %v7729, %v7960
    %v7962 = vpop.f32.mrf.mxu0
    %7963 = vmatprep.mubr.bf16.mxu0 0
    %7964 = vmatmul.mubr.bf16.gmra.mxu0 %v7786
    %v7965 = vpop.f32.mrf.mxu0
    %v7966 = vadd.f32 %v7729, %v7965
    %v7967 = vpop.f32.mrf.mxu0
    %v7968 = vpop.f32.mrf.mxu0
    %v7969 = vadd.f32 %v7729, %v7968
    %v7970 = vpop.f32.mrf.mxu0
    %7971 = vmatprep.mubr.bf16.mxu0 0
    %7972 = vmatmul.mubr.bf16.gmra.mxu0 %v7789
    %v7973 = vpop.f32.mrf.mxu0
    %v7974 = vadd.f32 %v7729, %v7973
    %v7975 = vpop.f32.mrf.mxu0
    %v7976 = vpop.f32.mrf.mxu0
    %v7977 = vadd.f32 %v7729, %v7976
    %v7978 = vpop.f32.mrf.mxu0
    %7979 = vmatprep.mubr.bf16.mxu0 0
    %7980 = vmatmul.mubr.bf16.gmra.mxu0 %v7792
    %v7981 = vpop.f32.mrf.mxu0
    %v7982 = vadd.f32 %v7729, %v7981
    %v7983 = vpop.f32.mrf.mxu0
    %v7984 = vpop.f32.mrf.mxu0
    %v7985 = vadd.f32 %v7729, %v7984
    %v7986 = vpop.f32.mrf.mxu0
    %7987 = vmatprep.mubr.bf16.mxu0 0
    %7988 = vmatmul.mubr.bf16.gmra.mxu0 %v7795
    %v7989 = vpop.f32.mrf.mxu0
    %v7990 = vadd.f32 %v7729, %v7989
    %v7991 = vpop.f32.mrf.mxu0
    %v7992 = vpop.f32.mrf.mxu0
    %v7993 = vadd.f32 %v7729, %v7992
    %v7994 = vpop.f32.mrf.mxu0
    %7995 = vmatprep.mubr.bf16.mxu0 0
    %7996 = vmatmul.mubr.bf16.gmra.mxu0 %v7798
    %v7997 = vpop.f32.mrf.mxu0
    %v7998 = vadd.f32 %v7729, %v7997
    %v7999 = vpop.f32.mrf.mxu0
    %v8000 = vpop.f32.mrf.mxu0
    %v8001 = vadd.f32 %v7729, %v8000
    %v8002 = vpop.f32.mrf.mxu0
    %8003 = vmatprep.mubr.bf16.mxu0 0
    %8004 = vmatmul.mubr.bf16.gmra.mxu0 %v7801
    %v8005 = vpop.f32.mrf.mxu0
    %v8006 = vadd.f32 %v7729, %v8005
    %v8007 = vpop.f32.mrf.mxu0
    %v8008 = vpop.f32.mrf.mxu0
    %v8009 = vadd.f32 %v7729, %v8008
    %v8010 = vpop.f32.mrf.mxu0
    %8011 = vmatprep.mubr.bf16.mxu0 0
    %8012 = vmatmul.mubr.bf16.gmra.mxu0 %v7804
    %v8013 = vpop.f32.mrf.mxu0
    %v8014 = vadd.f32 %v7729, %v8013
    %v8015 = vpop.f32.mrf.mxu0
    %v8016 = vpop.f32.mrf.mxu0
    %v8017 = vadd.f32 %v7729, %v8016
    %v8018 = vpop.f32.mrf.mxu0
    %8019 = vmatprep.mubr.bf16.mxu0 0
    %8020 = vmatmul.mubr.bf16.gmra.mxu0 %v7807
    %v8021 = vpop.f32.mrf.mxu0
    %v8022 = vadd.f32 %v7729, %v8021
    %v8023 = vpop.f32.mrf.mxu0
    %v8024 = vpop.f32.mrf.mxu0
    %v8025 = vadd.f32 %v7729, %v8024
    %v8026 = vpop.f32.mrf.mxu0
    %8027 = vmatprep.mubr.bf16.mxu0 0
    %8028 = vmatmul.mubr.bf16.gmra.mxu0 %v7810
    %v8029 = vpop.f32.mrf.mxu0
    %v8030 = vadd.f32 %v7729, %v8029
    %v8031 = vpop.f32.mrf.mxu0
    %v8032 = vpop.f32.mrf.mxu0
    %v8033 = vadd.f32 %v7729, %v8032
    %v8034 = vpop.f32.mrf.mxu0
    %8035 = vmatprep.mubr.bf16.mxu0 0
    %8036 = vmatmul.mubr.bf16.gmra.mxu0 %v7813
    %v8037 = vpop.f32.mrf.mxu0
    %v8038 = vadd.f32 %v7729, %v8037
    %v8039 = vpop.f32.mrf.mxu0
    %v8040 = vpop.f32.mrf.mxu0
    %v8041 = vadd.f32 %v7729, %v8040
    %v8042 = vpop.f32.mrf.mxu0
    %8043 = vmatprep.mubr.bf16.mxu0 0
    %8044 = vmatmul.mubr.bf16.gmra.mxu0 %v7816
    %v8045 = vpop.f32.mrf.mxu0
    %v8046 = vadd.f32 %v7729, %v8045
    %v8047 = vpop.f32.mrf.mxu0
    %v8048 = vpop.f32.mrf.mxu0
    %v8049 = vadd.f32 %v7729, %v8048
    %v8050 = vpop.f32.mrf.mxu0
    %8051 = vmatprep.mubr.bf16.mxu0 0
    %8052 = vmatmul.mubr.bf16.gmra.mxu0 %v7819
    %v8053 = vpop.f32.mrf.mxu0
    %v8054 = vadd.f32 %v7729, %v8053
    %v8055 = vpop.f32.mrf.mxu0
    %v8056 = vpop.f32.mrf.mxu0
    %v8057 = vadd.f32 %v7729, %v8056
    %v8058 = vpop.f32.mrf.mxu0
    %8059 = vmatprep.mubr.bf16.mxu0 0
    %8060 = vmatmul.mubr.bf16.gmra.mxu0 %v7822
    %v8061 = vpop.f32.mrf.mxu0
    %v8062 = vadd.f32 %v7729, %v8061
    %v8063 = vpop.f32.mrf.mxu0
    %v8064 = vpop.f32.mrf.mxu0
    %v8065 = vadd.f32 %v7729, %v8064
    %v8066 = vpop.f32.mrf.mxu0
    %8067 = vmatprep.mubr.bf16.mxu0 0
    %8068 = vmatmul.mubr.bf16.gmra.mxu0 %v7825
    %v8069 = vpop.f32.mrf.mxu0
    %v8070 = vadd.f32 %v7729, %v8069
    %v8071 = vpop.f32.mrf.mxu0
    %v8072 = vpop.f32.mrf.mxu0
    %v8073 = vadd.f32 %v7729, %v8072
    %v8074 = vpop.f32.mrf.mxu0
    %8075 = vmatprep.mubr.bf16.mxu0 0
    %8076 = vmatmul.mubr.bf16.gmra.mxu0 %v7828
    %v8077 = vpop.f32.mrf.mxu0
    %v8078 = vadd.f32 %v7729, %v8077
    %v8079 = vpop.f32.mrf.mxu0
    %v8080 = vpop.f32.mrf.mxu0
    %v8081 = vadd.f32 %v7729, %v8080
    %v8082 = vpop.f32.mrf.mxu0
    %8083 = vmatprep.mubr.bf16.mxu0 0
    %8084 = vmatmul.mubr.bf16.gmra.mxu0 %v7831
    %v8085 = vpop.f32.mrf.mxu0
    %v8086 = vadd.f32 %v7729, %v8085
    %v8087 = vpop.f32.mrf.mxu0
    %v8088 = vpop.f32.mrf.mxu0
    %v8089 = vadd.f32 %v7729, %v8088
    %v8090 = vpop.f32.mrf.mxu0
    %8091 = vmatprep.mubr.bf16.mxu0 0
    %8092 = vmatmul.mubr.bf16.gmra.mxu0 %v7834
    %v8093 = vpop.f32.mrf.mxu0
    %v8094 = vadd.f32 %v7729, %v8093
    %v8095 = vpop.f32.mrf.mxu0
    %v8096 = vpop.f32.mrf.mxu0
    %v8097 = vadd.f32 %v7729, %v8096
    %v8098 = vpop.f32.mrf.mxu0
    %8099 = vmatprep.mubr.bf16.mxu0 0
    %8100 = vmatmul.mubr.bf16.gmra.mxu0 %v7837
    %v8101 = vpop.f32.mrf.mxu0
    %v8102 = vadd.f32 %v7729, %v8101
    %v8103 = vpop.f32.mrf.mxu0
    %v8104 = vpop.f32.mrf.mxu0
    %v8105 = vadd.f32 %v7729, %v8104
    %v8106 = vpop.f32.mrf.mxu0
    %8107 = vmatprep.mubr.bf16.mxu0 0
    %8108 = vmatmul.mubr.bf16.gmra.mxu0 %v7840
    %v8109 = vpop.f32.mrf.mxu0
    %v8110 = vadd.f32 %v7729, %v8109
    %v8111 = vpop.f32.mrf.mxu0
    %v8112 = vpop.f32.mrf.mxu0
    %v8113 = vadd.f32 %v7729, %v8112
    %v8114 = vpop.f32.mrf.mxu0
    %8115 = vmatprep.mubr.bf16.mxu0 0
    %8116 = vmatmul.mubr.bf16.gmra.mxu0 %v7843
    %v8117 = vpop.f32.mrf.mxu0
    %v8118 = vadd.f32 %v7729, %v8117
    %v8119 = vpop.f32.mrf.mxu0
    %v8120 = vpop.f32.mrf.mxu0
    %v8121 = vadd.f32 %v7729, %v8120
    %v8122 = vpop.f32.mrf.mxu0
    %8123 = vmatprep.mubr.bf16.mxu0 0
    %8124 = vmatmul.mubr.bf16.gmra.mxu0 %v7846
    %v8125 = vpop.f32.mrf.mxu0
    %v8126 = vadd.f32 %v7729, %v8125
    %v8127 = vpop.f32.mrf.mxu0
    %v8128 = vpop.f32.mrf.mxu0
    %v8129 = vadd.f32 %v7729, %v8128
    %v8130 = vpop.f32.mrf.mxu0
    %8131 = vmatprep.mubr.bf16.mxu0 0
    %8132 = vmatmul.mubr.bf16.gmra.mxu0 %v7849
    %v8133 = vpop.f32.mrf.mxu0
    %v8134 = vadd.f32 %v7729, %v8133
    %v8135 = vpop.f32.mrf.mxu0
    %v8136 = vpop.f32.mrf.mxu0
    %v8137 = vadd.f32 %v7729, %v8136
    %v8138 = vpop.f32.mrf.mxu0
    %8139 = vdwg.mxu0
    %8140 = vst [vmem:[#allocation2] sm:$0xff] %v7886
    %8141 = vst [vmem:[#allocation2 + $0x8] sm:$0xff] %v7889
    %8142 = vst [vmem:[#allocation2 + $0x10] sm:$0xff] %v7894
    %8143 = vst [vmem:[#allocation2 + $0x18] sm:$0xff] %v7897
    %8144 = vst [vmem:[#allocation2 + $0x20] sm:$0xff] %v7902
    %8145 = vst [vmem:[#allocation2 + $0x28] sm:$0xff] %v7905
    %8146 = vst [vmem:[#allocation2 + $0x30] sm:$0xff] %v7910
    %8147 = vst [vmem:[#allocation2 + $0x38] sm:$0xff] %v7913
    %8148 = vst [vmem:[#allocation2 + $0x40] sm:$0xff] %v7918
    %8149 = vst [vmem:[#allocation2 + $0x48] sm:$0xff] %v7921
    %8150 = vst [vmem:[#allocation2 + $0x50] sm:$0xff] %v7926
    %8151 = vst [vmem:[#allocation2 + $0x58] sm:$0xff] %v7929
    %8152 = vst [vmem:[#allocation2 + $0x60] sm:$0xff] %v7934
    %8153 = vst [vmem:[#allocation2 + $0x68] sm:$0xff] %v7937
    %8154 = vst [vmem:[#allocation2 + $0x70] sm:$0xff] %v7942
    %8155 = vst [vmem:[#allocation2 + $0x78] sm:$0xff] %v7945
    %8156 = vst [vmem:[#allocation2 + $0x80] sm:$0xff] %v7950
    %8157 = vst [vmem:[#allocation2 + $0x88] sm:$0xff] %v7953
    %8158 = vst [vmem:[#allocation2 + $0x90] sm:$0xff] %v7958
    %8159 = vst [vmem:[#allocation2 + $0x98] sm:$0xff] %v7961
    %8160 = vst [vmem:[#allocation2 + $0xa0] sm:$0xff] %v7966
    %8161 = vst [vmem:[#allocation2 + $0xa8] sm:$0xff] %v7969
    %8162 = vst [vmem:[#allocation2 + $0xb0] sm:$0xff] %v7974
    %8163 = vst [vmem:[#allocation2 + $0xb8] sm:$0xff] %v7977
    %8164 = vst [vmem:[#allocation2 + $0xc0] sm:$0xff] %v7982
    %8165 = vst [vmem:[#allocation2 + $0xc8] sm:$0xff] %v7985
    %8166 = vst [vmem:[#allocation2 + $0xd0] sm:$0xff] %v7990
    %8167 = vst [vmem:[#allocation2 + $0xd8] sm:$0xff] %v7993
    %8168 = vst [vmem:[#allocation2 + $0xe0] sm:$0xff] %v7998
    %8169 = vst [vmem:[#allocation2 + $0xe8] sm:$0xff] %v8001
    %8170 = vst [vmem:[#allocation2 + $0xf0] sm:$0xff] %v8006
    %8171 = vst [vmem:[#allocation2 + $0xf8] sm:$0xff] %v8009
    %8172 = vst [vmem:[#allocation2 + $0x100] sm:$0xff] %v8014
    %8173 = vst [vmem:[#allocation2 + $0x108] sm:$0xff] %v8017
    %8174 = vst [vmem:[#allocation2 + $0x110] sm:$0xff] %v8022
    %8175 = vst [vmem:[#allocation2 + $0x118] sm:$0xff] %v8025
    %8176 = vst [vmem:[#allocation2 + $0x120] sm:$0xff] %v8030
    %8177 = vst [vmem:[#allocation2 + $0x128] sm:$0xff] %v8033
    %8178 = vst [vmem:[#allocation2 + $0x130] sm:$0xff] %v8038
    %8179 = vst [vmem:[#allocation2 + $0x138] sm:$0xff] %v8041
    %8180 = vst [vmem:[#allocation2 + $0x140] sm:$0xff] %v8046
    %8181 = vst [vmem:[#allocation2 + $0x148] sm:$0xff] %v8049
    %8182 = vst [vmem:[#allocation2 + $0x150] sm:$0xff] %v8054
    %8183 = vst [vmem:[#allocation2 + $0x158] sm:$0xff] %v8057
    %8184 = vst [vmem:[#allocation2 + $0x160] sm:$0xff] %v8062
    %8185 = vst [vmem:[#allocation2 + $0x168] sm:$0xff] %v8065
    %8186 = vst [vmem:[#allocation2 + $0x170] sm:$0xff] %v8070
    %8187 = vst [vmem:[#allocation2 + $0x178] sm:$0xff] %v8073
    %8188 = vst [vmem:[#allocation2 + $0x180] sm:$0xff] %v8078
    %8189 = vst [vmem:[#allocation2 + $0x188] sm:$0xff] %v8081
    %8190 = vst [vmem:[#allocation2 + $0x190] sm:$0xff] %v8086
    %8191 = vst [vmem:[#allocation2 + $0x198] sm:$0xff] %v8089
    %8192 = vst [vmem:[#allocation2 + $0x1a0] sm:$0xff] %v8094
    %8193 = vst [vmem:[#allocation2 + $0x1a8] sm:$0xff] %v8097
    %8194 = vst [vmem:[#allocation2 + $0x1b0] sm:$0xff] %v8102
    %8195 = vst [vmem:[#allocation2 + $0x1b8] sm:$0xff] %v8105
    %8196 = vst [vmem:[#allocation2 + $0x1c0] sm:$0xff] %v8110
    %8197 = vst [vmem:[#allocation2 + $0x1c8] sm:$0xff] %v8113
    %8198 = vst [vmem:[#allocation2 + $0x1d0] sm:$0xff] %v8118
    %8199 = vst [vmem:[#allocation2 + $0x1d8] sm:$0xff] %v8121
    %8200 = vst [vmem:[#allocation2 + $0x1e0] sm:$0xff] %v8126
    %8201 = vst [vmem:[#allocation2 + $0x1e8] sm:$0xff] %v8129
    %8202 = vst [vmem:[#allocation2 + $0x1f0] sm:$0xff] %v8134
    %8203 = vst [vmem:[#allocation2 + $0x1f8] sm:$0xff] %v8137
    // Predicated region
    $region30: #{tpu_custom_call.1} parent=1 // pred_check
      _
    $region31: #{tpu_custom_call.1} parent=1 // pred_check_branch
      %8205 = sbr.rel (0) target = $region33
    $region32: #{tpu_custom_call.1} parent=1 // pred_region
      %s8207 = ssub.s32 8192, 8192
      %8208 = vsyncadd [#allocation3], %s8207
      %s8209 = sshll.u32 [#allocation2], 4
      %s8210 = int_to_ptr.vmem [resolvable:$true] %s8209
      %8215 = dma.vmem_to_hbm [thread:$0]  %s8210, 8192, %s7, [#allocation3], 128, 128, 8
    $region33: #{tpu_custom_call.1} parent=1 // pred_fallthru
      _
    // Predicated region
    $region34: #{tpu_custom_call.1} parent=1 // pred_check
      _
    $region35: #{tpu_custom_call.1} parent=1 // pred_check_branch
      %8217 = sbr.rel (0) target = $region37
    $region36: #{tpu_custom_call.1} parent=1 // pred_region
      %8218 = dma.done [#allocation3], 8192
    $region37: #{tpu_custom_call.1} parent=1 // pred_fallthru
      _
    %8219 = vsyncpa [#allocation3], 1

</llo_original>
